<compile_context>
chip_gen: v5e
topology: v5e:2x2
jax: 0.10.0
libtpu: 0.0.40
codegen_flags: <defaults>
</compile_context>

<pallas_src>
import jax
import jax.numpy as jnp
from jax import lax
from jax.experimental import pallas as pl
from jax.experimental.pallas import tpu as pltpu

N_LABELS = 12
N_MAPS = 128
N_LAYERS = 9
BN_EPS = 1e-5


def fused_res_kernel(p0_ref, w0_ref, wc_ref, wout_ref, bout_ref, out_ref,
                     xpad_ref, col_ref, oldx_ref):
    """One grid step == one layer i of the reference forward (i = 0..9).

    p0_ref  : (N*H*W, 128)      bf16  conv0 im2col taps (cols 0..8 real, rest 0)
    w0_ref  : (128, 128)        bf16  conv0 weight (rows 0..8 real, rest 0)
    wc_ref  : (1, 9*C, C)       bf16  conv_i weight for layer i >= 1 (im2col form)
    wout_ref: (C, n_labels)     f32   output Linear weight, transposed
    bout_ref: (1, n_labels)     f32   output Linear bias
    out_ref : (N, n_labels)     f32   logits (written at the last grid step)
    xpad_ref: (N, H+2, W+2, C)  bf16  current activation x with zero halo
    col_ref : (N*H*W, 9*C)      bf16  per-layer im2col buffer
    oldx_ref: (N*H*W, C)        f32   residual carry old_x (pre-BN)
    """
    i = pl.program_id(0)
    last = pl.num_programs(0) - 1
    N, Hp, Wp, C = xpad_ref.shape
    H, W = Hp - 2, Wp - 2
    R = N * H * W
    f32 = jnp.float32

    # ---------------- layer 0: conv0(Cin=1) + ReLU; old_x = x = y ----------
    @pl.when(i == 0)
    def _():
        # Zero once: the 1-pixel halo ring stays zero for every "same" conv.
        xpad_ref[...] = jnp.zeros_like(xpad_ref)
        acc = jnp.dot(p0_ref[...], w0_ref[...],
                      preferred_element_type=f32)              # (R, C) f32
        y0 = jnp.maximum(acc, 0.0)
        oldx_ref[...] = y0
        xpad_ref[:, 1:H + 1, 1:W + 1, :] = (
            y0.reshape(N, H, W, C).astype(xpad_ref.dtype))

    # ------------ layers 1..9: conv + ReLU (+ residual) + BatchNorm --------
    @pl.when(i > 0)
    def _():
        # im2col: each shifted patch is copied exactly once per layer.
        for dh in range(3):
            for dw in range(3):
                t = dh * 3 + dw
                col_ref[:, t * C:(t + 1) * C] = (
                    xpad_ref[:, dh:dh + H, dw:dw + W, :].reshape(R, C))

        # One big bf16 matmul: (R, 9C) x (9C, C), accumulation inside the MXU.
        acc = jnp.dot(col_ref[...], wc_ref[0], preferred_element_type=f32)
        y = jnp.maximum(acc, 0.0)                               # (R, C) f32

        # Every second layer: x = y + old_x ; old_x = x   (both pre-BN).
        is_even = (i % 2) == 0
        sel = jnp.where(is_even, jnp.float32(1.0), jnp.float32(0.0))
        xv = y + sel * oldx_ref[...]

        @pl.when(is_even)
        def _():
            oldx_ref[...] = xv

        # BatchNorm2d(affine=False): training-mode batch stats, biased var.
        mean = jnp.mean(xv, axis=0, keepdims=True)              # (1, C)
        var = jnp.mean(jnp.square(xv - mean), axis=0, keepdims=True)
        xn = (xv - mean) * lax.rsqrt(var + BN_EPS)              # (R, C) f32

        # Next layer's conv input (dead on the last layer -> skip the store).
        @pl.when(i < last)
        def _():
            xpad_ref[:, 1:H + 1, 1:W + 1, :] = (
                xn.reshape(N, H, W, C).astype(xpad_ref.dtype))

        # -------- last step: global average pool over HxW + Linear head ----
        @pl.when(i == last)
        def _():
            pooled = jnp.mean(xn.reshape(N, H * W, C), axis=1)  # (N, C)
            out_ref[...] = (jnp.dot(pooled, wout_ref[...],
                                    preferred_element_type=f32)
                            + bout_ref[...])


@jax.jit
def res_model_forward(x_nchw, params):
    # PyTorch input is NCHW; the kernel wants NHWC (C on the 128-lane axis).
    x = jnp.transpose(x_nchw, (0, 2, 3, 1)).astype(jnp.float32)   # (N, H, W, 1)
    N, H, W, _ = x.shape
    C = N_MAPS
    R = N * H * W

    # conv0 (Cin=1) im2col: 9 shifted taps of the zero-padded input, padded to
    # 128 lanes and cast to bf16 so layer 0 is a lane-dense bf16 MXU matmul.
    xp = jnp.pad(x, ((0, 0), (1, 1), (1, 1), (0, 0)))
    taps = [xp[:, dh:dh + H, dw:dw + W, :] for dh in range(3) for dw in range(3)]
    p0 = jnp.concatenate(taps, axis=-1)                           # (N, H, W, 9)
    p0 = jnp.pad(p0, ((0, 0), (0, 0), (0, 0), (0, C - 9)))        # (N, H, W, C)
    p0 = p0.reshape(R, C).astype(jnp.bfloat16)

    return pl.pallas_call(
        fused_res_kernel,
        out_shape=jax.ShapeDtypeStruct((N, N_LABELS), jnp.float32),
        grid=(N_LAYERS + 1,),
        in_specs=[
            pl.BlockSpec((R, C), lambda i: (0, 0)),                       # p0
            pl.BlockSpec((C, C), lambda i: (0, 0)),                       # w0
            pl.BlockSpec((1, 9 * C, C),
                         lambda i: (jnp.maximum(i - 1, 0), 0, 0)),        # conv_i
            pl.BlockSpec((C, N_LABELS), lambda i: (0, 0)),                # W_out^T
            pl.BlockSpec((1, N_LABELS), lambda i: (0, 0)),                # b_out
        ],
        out_specs=pl.BlockSpec((N, N_LABELS), lambda i: (0, 0)),
        scratch_shapes=[
            pltpu.VMEM((N, H + 2, W + 2, C), jnp.bfloat16),  # x (padded, halo=0)
            pltpu.VMEM((R, 9 * C), jnp.bfloat16),            # per-layer im2col
            pltpu.VMEM((R, C), jnp.float32),                 # old_x (pre-BN)
        ],
        compiler_params=pltpu.CompilerParams(
            dimension_semantics=("arbitrary",)),  # layers are sequential
    )(p0, params["w0"], params["wc"], params["w_out_t"], params["b_out"])


def init_params(key):
    k0, k1, k2, k3 = jax.random.split(key, 4)
    # conv0: Conv2d(1, n_maps, 3, padding=1, bias=False) -> im2col (9, 128),
    # zero-padded to (128, 128) so the padded input lanes contribute exactly 0.
    w0 = jax.random.normal(k0, (9, N_MAPS), jnp.float32) * (1.0 / 3.0)
    w0 = jnp.concatenate([w0, jnp.zeros((N_MAPS - 9, N_MAPS), jnp.float32)], 0)
    w0 = w0.astype(jnp.bfloat16)
    # conv1..conv9 in HWIO, reshaped to im2col layout (layer, 9*C, C), bf16.
    # Row index = (dh*3 + dw)*C + cin  -> matches the kernel's col buffer.
    wc = jax.random.normal(k1, (N_LAYERS, 3, 3, N_MAPS, N_MAPS), jnp.float32)
    wc = (wc * (1.0 / jnp.sqrt(9.0 * N_MAPS)))
    wc = wc.reshape(N_LAYERS, 9 * N_MAPS, N_MAPS).astype(jnp.bfloat16)
    # output: Linear(n_maps, n_labels); store the weight transposed.
    w_out_t = jax.random.normal(k2, (N_MAPS, N_LABELS), jnp.float32) * (
        1.0 / jnp.sqrt(float(N_MAPS)))
    b_out = jax.random.normal(k3, (1, N_LABELS), jnp.float32) * 0.01
    return {"w0": w0, "wc": wc, "w_out_t": w_out_t, "b_out": b_out}


if __name__ == "__main__":
    key = jax.random.PRNGKey(0)
    pkey, xkey = jax.random.split(key)
    params = init_params(pkey)

    # batch=2, 1 input channel (per the module), 16x16 spatial.
    x = jax.random.normal(xkey, (2, 1, 16, 16), jnp.float32)

    out = res_model_forward(x, params)
    out = jax.block_until_ready(out)
    assert out.shape == (2, N_LABELS), out.shape
    assert bool(jnp.all(jnp.isfinite(out)))
    print("KERNEL_OK")
</pallas_src>

<mosaic_0001>
module attributes {stable_mosaic.version = 11 : i64} {
  func.func @fused_res_kernel(%arg0: i32, %arg1: memref<512x128xbf16, #tpu.memory_space<vmem>>, %arg2: memref<128x128xbf16, #tpu.memory_space<vmem>>, %arg3: memref<1x1152x128xbf16, #tpu.memory_space<vmem>>, %arg4: memref<128x12xf32, #tpu.memory_space<vmem>>, %arg5: memref<1x12xf32, #tpu.memory_space<vmem>>, %arg6: memref<2x12xf32, #tpu.memory_space<vmem>>, %arg7: memref<2x18x18x128xbf16, #tpu.memory_space<vmem>>, %arg8: memref<512x1152xbf16, #tpu.memory_space<vmem>>, %arg9: memref<512x128xf32, #tpu.memory_space<vmem>>) attributes {dimension_semantics = [#tpu.dimension_semantics<arbitrary>], iteration_bounds = array<i64: 10>, scalar_prefetch = 0 : i64, scratch_operands = 3 : i64, tpu.core_type = #tpu.core_type<tc>, window_params = [{pipeline_mode = #tpu.pipeline_mode<synchronous>, transform_indices = @transform_0, window_bounds = array<i64: 512, 128>}, {pipeline_mode = #tpu.pipeline_mode<synchronous>, transform_indices = @transform_1, window_bounds = array<i64: 128, 128>}, {transform_indices = @transform_2, window_bounds = array<i64: 1, 1152, 128>}, {pipeline_mode = #tpu.pipeline_mode<synchronous>, transform_indices = @transform_3, window_bounds = array<i64: 128, 12>}, {pipeline_mode = #tpu.pipeline_mode<synchronous>, transform_indices = @transform_4, window_bounds = array<i64: 1, 12>}, {pipeline_mode = #tpu.pipeline_mode<synchronous>, transform_indices = @transform_5, window_bounds = array<i64: 2, 12>}]} {
    %c0_i32 = arith.constant 0 : i32
    %0 = arith.cmpi eq, %arg0, %c0_i32 : i32
    %1 = arith.extui %0 : i1 to i32
    %c0_i32_0 = arith.constant 0 : i32
    %2 = arith.cmpi ne, %1, %c0_i32_0 : i32
    scf.if %2 {
      %cst = arith.constant 0.000000e+00 : bf16
      %6 = vector.broadcast %cst : bf16 to vector<2x18x18x128xbf16>
      %c0 = arith.constant 0 : index
      %c0_3 = arith.constant 0 : index
      %c0_4 = arith.constant 0 : index
      %c0_5 = arith.constant 0 : index
      %7 = vector.load %arg7[%c0, %c0_3, %c0_4, %c0_5] : memref<2x18x18x128xbf16, #tpu.memory_space<vmem>>, vector<2x18x18x128xbf16>
      tpu.vector_store %arg7[%c0, %c0_3, %c0_4, %c0_5], %6 {strides = array<i32>} : memref<2x18x18x128xbf16, #tpu.memory_space<vmem>>, vector<2x18x18x128xbf16>,
      %c0_6 = arith.constant 0 : index
      %c0_7 = arith.constant 0 : index
      %8 = vector.load %arg1[%c0_6, %c0_7] : memref<512x128xbf16, #tpu.memory_space<vmem>>, vector<512x128xbf16>
      %c0_8 = arith.constant 0 : index
      %c0_9 = arith.constant 0 : index
      %9 = vector.load %arg2[%c0_8, %c0_9] : memref<128x128xbf16, #tpu.memory_space<vmem>>, vector<128x128xbf16>
      %cst_10 = arith.constant dense<0.000000e+00> : vector<512x128xf32>
      %10 = tpu.matmul %8, %9, %cst_10 {dimension_numbers = #tpu.dot_dimension_numbers<[1], [0], [0], [1], [0, 0, 1, 1], [], []>} : vector<512x128xbf16>, vector<128x128xbf16>, vector<512x128xf32> -> vector<512x128xf32>
      %cst_11 = arith.constant 0.000000e+00 : f32
      %11 = vector.broadcast %cst_11 : f32 to vector<512x128xf32>
      %12 = arith.maximumf %10, %11 : vector<512x128xf32>
      %c0_12 = arith.constant 0 : index
      %c0_13 = arith.constant 0 : index
      %13 = vector.load %arg9[%c0_12, %c0_13] : memref<512x128xf32, #tpu.memory_space<vmem>>, vector<512x128xf32>
      tpu.vector_store %arg9[%c0_12, %c0_13], %12 {strides = array<i32>} : memref<512x128xf32, #tpu.memory_space<vmem>>, vector<512x128xf32>,
      %14 = vector.shape_cast %12 : vector<512x128xf32> to vector<2x16x16x128xf32>
      %15 = arith.truncf %14 : vector<2x16x16x128xf32> to vector<2x16x16x128xbf16>
      %c0_14 = arith.constant 0 : index
      %c1 = arith.constant 1 : index
      %c1_15 = arith.constant 1 : index
      %c0_16 = arith.constant 0 : index
      %16 = vector.load %arg7[%c0_14, %c1, %c1_15, %c0_16] : memref<2x18x18x128xbf16, #tpu.memory_space<vmem>>, vector<2x16x16x128xbf16>
      tpu.vector_store %arg7[%c0_14, %c1, %c1_15, %c0_16], %15 {strides = array<i32>} : memref<2x18x18x128xbf16, #tpu.memory_space<vmem>>, vector<2x16x16x128xbf16>,
    } else {
    }
    %c0_i32_1 = arith.constant 0 : i32
    %3 = arith.cmpi sgt, %arg0, %c0_i32_1 : i32
    %4 = arith.extui %3 : i1 to i32
    %c0_i32_2 = arith.constant 0 : i32
    %5 = arith.cmpi ne, %4, %c0_i32_2 : i32
    scf.if %5 {
      %c0 = arith.constant 0 : index
      %c0_3 = arith.constant 0 : index
      %c0_4 = arith.constant 0 : index
      %c0_5 = arith.constant 0 : index
      %6 = vector.load %arg7[%c0, %c0_3, %c0_4, %c0_5] : memref<2x18x18x128xbf16, #tpu.memory_space<vmem>>, vector<2x16x16x128xbf16>
      %7 = vector.shape_cast %6 : vector<2x16x16x128xbf16> to vector<512x128xbf16>
      %c0_6 = arith.constant 0 : index
      %c0_7 = arith.constant 0 : index
      %8 = vector.load %arg8[%c0_6, %c0_7] : memref<512x1152xbf16, #tpu.memory_space<vmem>>, vector<512x128xbf16>
      tpu.vector_store %arg8[%c0_6, %c0_7], %7 {strides = array<i32>} : memref<512x1152xbf16, #tpu.memory_space<vmem>>, vector<512x128xbf16>,
      %c0_8 = arith.constant 0 : index
      %c0_9 = arith.constant 0 : index
      %c1 = arith.constant 1 : index
      %c0_10 = arith.constant 0 : index
      %9 = vector.load %arg7[%c0_8, %c0_9, %c1, %c0_10] : memref<2x18x18x128xbf16, #tpu.memory_space<vmem>>, vector<2x16x16x128xbf16>
      %10 = vector.shape_cast %9 : vector<2x16x16x128xbf16> to vector<512x128xbf16>
      %c0_11 = arith.constant 0 : index
      %c128 = arith.constant 128 : index
      %11 = vector.load %arg8[%c0_11, %c128] : memref<512x1152xbf16, #tpu.memory_space<vmem>>, vector<512x128xbf16>
      tpu.vector_store %arg8[%c0_11, %c128], %10 {strides = array<i32>} : memref<512x1152xbf16, #tpu.memory_space<vmem>>, vector<512x128xbf16>,
      %c0_12 = arith.constant 0 : index
      %c0_13 = arith.constant 0 : index
      %c2 = arith.constant 2 : index
      %c0_14 = arith.constant 0 : index
      %12 = vector.load %arg7[%c0_12, %c0_13, %c2, %c0_14] : memref<2x18x18x128xbf16, #tpu.memory_space<vmem>>, vector<2x16x16x128xbf16>
      %13 = vector.shape_cast %12 : vector<2x16x16x128xbf16> to vector<512x128xbf16>
      %c0_15 = arith.constant 0 : index
      %c256 = arith.constant 256 : index
      %14 = vector.load %arg8[%c0_15, %c256] : memref<512x1152xbf16, #tpu.memory_space<vmem>>, vector<512x128xbf16>
      tpu.vector_store %arg8[%c0_15, %c256], %13 {strides = array<i32>} : memref<512x1152xbf16, #tpu.memory_space<vmem>>, vector<512x128xbf16>,
      %c0_16 = arith.constant 0 : index
      %c1_17 = arith.constant 1 : index
      %c0_18 = arith.constant 0 : index
      %c0_19 = arith.constant 0 : index
      %15 = vector.load %arg7[%c0_16, %c1_17, %c0_18, %c0_19] : memref<2x18x18x128xbf16, #tpu.memory_space<vmem>>, vector<2x16x16x128xbf16>
      %16 = vector.shape_cast %15 : vector<2x16x16x128xbf16> to vector<512x128xbf16>
      %c0_20 = arith.constant 0 : index
      %c384 = arith.constant 384 : index
      %17 = vector.load %arg8[%c0_20, %c384] : memref<512x1152xbf16, #tpu.memory_space<vmem>>, vector<512x128xbf16>
      tpu.vector_store %arg8[%c0_20, %c384], %16 {strides = array<i32>} : memref<512x1152xbf16, #tpu.memory_space<vmem>>, vector<512x128xbf16>,
      %c0_21 = arith.constant 0 : index
      %c1_22 = arith.constant 1 : index
      %c1_23 = arith.constant 1 : index
      %c0_24 = arith.constant 0 : index
      %18 = vector.load %arg7[%c0_21, %c1_22, %c1_23, %c0_24] : memref<2x18x18x128xbf16, #tpu.memory_space<vmem>>, vector<2x16x16x128xbf16>
      %19 = vector.shape_cast %18 : vector<2x16x16x128xbf16> to vector<512x128xbf16>
      %c0_25 = arith.constant 0 : index
      %c512 = arith.constant 512 : index
      %20 = vector.load %arg8[%c0_25, %c512] : memref<512x1152xbf16, #tpu.memory_space<vmem>>, vector<512x128xbf16>
      tpu.vector_store %arg8[%c0_25, %c512], %19 {strides = array<i32>} : memref<512x1152xbf16, #tpu.memory_space<vmem>>, vector<512x128xbf16>,
      %c0_26 = arith.constant 0 : index
      %c1_27 = arith.constant 1 : index
      %c2_28 = arith.constant 2 : index
      %c0_29 = arith.constant 0 : index
      %21 = vector.load %arg7[%c0_26, %c1_27, %c2_28, %c0_29] : memref<2x18x18x128xbf16, #tpu.memory_space<vmem>>, vector<2x16x16x128xbf16>
      %22 = vector.shape_cast %21 : vector<2x16x16x128xbf16> to vector<512x128xbf16>
      %c0_30 = arith.constant 0 : index
      %c640 = arith.constant 640 : index
      %23 = vector.load %arg8[%c0_30, %c640] : memref<512x1152xbf16, #tpu.memory_space<vmem>>, vector<512x128xbf16>
      tpu.vector_store %arg8[%c0_30, %c640], %22 {strides = array<i32>} : memref<512x1152xbf16, #tpu.memory_space<vmem>>, vector<512x128xbf16>,
      %c0_31 = arith.constant 0 : index
      %c2_32 = arith.constant 2 : index
      %c0_33 = arith.constant 0 : index
      %c0_34 = arith.constant 0 : index
      %24 = vector.load %arg7[%c0_31, %c2_32, %c0_33, %c0_34] : memref<2x18x18x128xbf16, #tpu.memory_space<vmem>>, vector<2x16x16x128xbf16>
      %25 = vector.shape_cast %24 : vector<2x16x16x128xbf16> to vector<512x128xbf16>
      %c0_35 = arith.constant 0 : index
      %c768 = arith.constant 768 : index
      %26 = vector.load %arg8[%c0_35, %c768] : memref<512x1152xbf16, #tpu.memory_space<vmem>>, vector<512x128xbf16>
      tpu.vector_store %arg8[%c0_35, %c768], %25 {strides = array<i32>} : memref<512x1152xbf16, #tpu.memory_space<vmem>>, vector<512x128xbf16>,
      %c0_36 = arith.constant 0 : index
      %c2_37 = arith.constant 2 : index
      %c1_38 = arith.constant 1 : index
      %c0_39 = arith.constant 0 : index
      %27 = vector.load %arg7[%c0_36, %c2_37, %c1_38, %c0_39] : memref<2x18x18x128xbf16, #tpu.memory_space<vmem>>, vector<2x16x16x128xbf16>
      %28 = vector.shape_cast %27 : vector<2x16x16x128xbf16> to vector<512x128xbf16>
      %c0_40 = arith.constant 0 : index
      %c896 = arith.constant 896 : index
      %29 = vector.load %arg8[%c0_40, %c896] : memref<512x1152xbf16, #tpu.memory_space<vmem>>, vector<512x128xbf16>
      tpu.vector_store %arg8[%c0_40, %c896], %28 {strides = array<i32>} : memref<512x1152xbf16, #tpu.memory_space<vmem>>, vector<512x128xbf16>,
      %c0_41 = arith.constant 0 : index
      %c2_42 = arith.constant 2 : index
      %c2_43 = arith.constant 2 : index
      %c0_44 = arith.constant 0 : index
      %30 = vector.load %arg7[%c0_41, %c2_42, %c2_43, %c0_44] : memref<2x18x18x128xbf16, #tpu.memory_space<vmem>>, vector<2x16x16x128xbf16>
      %31 = vector.shape_cast %30 : vector<2x16x16x128xbf16> to vector<512x128xbf16>
      %c0_45 = arith.constant 0 : index
      %c1024 = arith.constant 1024 : index
      %32 = vector.load %arg8[%c0_45, %c1024] : memref<512x1152xbf16, #tpu.memory_space<vmem>>, vector<512x128xbf16>
      tpu.vector_store %arg8[%c0_45, %c1024], %31 {strides = array<i32>} : memref<512x1152xbf16, #tpu.memory_space<vmem>>, vector<512x128xbf16>,
      %c0_46 = arith.constant 0 : index
      %c0_47 = arith.constant 0 : index
      %33 = vector.load %arg8[%c0_46, %c0_47] : memref<512x1152xbf16, #tpu.memory_space<vmem>>, vector<512x1152xbf16>
      %c0_48 = arith.constant 0 : index
      %c0_49 = arith.constant 0 : index
      %c0_50 = arith.constant 0 : index
      %34 = vector.load %arg3[%c0_48, %c0_49, %c0_50] : memref<1x1152x128xbf16, #tpu.memory_space<vmem>>, vector<1x1152x128xbf16>
      %35 = vector.shape_cast %34 : vector<1x1152x128xbf16> to vector<1152x128xbf16>
      %cst = arith.constant dense<0.000000e+00> : vector<512x128xf32>
      %36 = tpu.matmul %33, %35, %cst {dimension_numbers = #tpu.dot_dimension_numbers<[1], [0], [0], [1], [0, 0, 1, 1], [], []>} : vector<512x1152xbf16>, vector<1152x128xbf16>, vector<512x128xf32> -> vector<512x128xf32>
      %cst_51 = arith.constant 0.000000e+00 : f32
      %37 = vector.broadcast %cst_51 : f32 to vector<512x128xf32>
      %38 = arith.maximumf %36, %37 : vector<512x128xf32>
      %c2_i32 = arith.constant 2 : i32
      %c0_i32_52 = arith.constant 0 : i32
      %39 = arith.cmpi eq, %c2_i32, %c0_i32_52 : i32
      %c1_i32 = arith.constant 1 : i32
      %40 = arith.select %39, %c1_i32, %c2_i32 : i32
      %41 = arith.remsi %arg0, %40 : i32
      %c0_i32_53 = arith.constant 0 : i32
      %42 = arith.cmpi ne, %41, %c0_i32_53 : i32
      %c0_i32_54 = arith.constant 0 : i32
      %43 = arith.cmpi slt, %41, %c0_i32_54 : i32
      %c0_i32_55 = arith.constant 0 : i32
      %44 = arith.cmpi slt, %40, %c0_i32_55 : i32
      %45 = arith.xori %43, %44 : i1
      %46 = arith.andi %45, %42 : i1
      %47 = arith.addi %41, %40 : i32
      %48 = arith.select %46, %47, %41 : i32
      %c0_i32_56 = arith.constant 0 : i32
      %49 = arith.cmpi eq, %48, %c0_i32_56 : i32
      %cst_57 = arith.constant 1.000000e+00 : f32
      %cst_58 = arith.constant 0.000000e+00 : f32
      %50 = arith.select %49, %cst_57, %cst_58 : f32
      %c0_59 = arith.constant 0 : index
      %c0_60 = arith.constant 0 : index
      %51 = vector.load %arg9[%c0_59, %c0_60] : memref<512x128xf32, #tpu.memory_space<vmem>>, vector<512x128xf32>
      %52 = vector.broadcast %50 : f32 to vector<512x128xf32>
      %53 = arith.mulf %52, %51 : vector<512x128xf32>
      %54 = arith.addf %38, %53 : vector<512x128xf32>
      %55 = arith.extui %49 : i1 to i32
      %c0_i32_61 = arith.constant 0 : i32
      %56 = arith.cmpi ne, %55, %c0_i32_61 : i32
      scf.if %56 {
        %c0_70 = arith.constant 0 : index
        %c0_71 = arith.constant 0 : index
        %81 = vector.load %arg9[%c0_70, %c0_71] : memref<512x128xf32, #tpu.memory_space<vmem>>, vector<512x128xf32>
        tpu.vector_store %arg9[%c0_70, %c0_71], %54 {strides = array<i32>} : memref<512x128xf32, #tpu.memory_space<vmem>>, vector<512x128xf32>,
      } else {
      }
      %cst_62 = arith.constant dense<0.000000e+00> : vector<128xf32>
      %57 = vector.multi_reduction <add>, %54, %cst_62 [0] : vector<512x128xf32> to vector<128xf32>
      %58 = vector.shape_cast %57 : vector<128xf32> to vector<1x128xf32>
      %cst_63 = arith.constant 5.120000e+02 : f32
      %59 = vector.broadcast %cst_63 : f32 to vector<1x128xf32>
      %60 = arith.divf %58, %59 : vector<1x128xf32>
      %61 = vector.broadcast %60 : vector<1x128xf32> to vector<512x128xf32>
      %62 = arith.subf %54, %61 : vector<512x128xf32>
      %63 = arith.mulf %62, %62 : vector<512x128xf32>
      %cst_64 = arith.constant dense<0.000000e+00> : vector<128xf32>
      %64 = vector.multi_reduction <add>, %63, %cst_64 [0] : vector<512x128xf32> to vector<128xf32>
      %65 = vector.shape_cast %64 : vector<128xf32> to vector<1x128xf32>
      %cst_65 = arith.constant 5.120000e+02 : f32
      %66 = vector.broadcast %cst_65 : f32 to vector<1x128xf32>
      %67 = arith.divf %65, %66 : vector<1x128xf32>
      %68 = vector.broadcast %60 : vector<1x128xf32> to vector<512x128xf32>
      %69 = arith.subf %54, %68 : vector<512x128xf32>
      %cst_66 = arith.constant 9.99999974E-6 : f32
      %70 = vector.broadcast %cst_66 : f32 to vector<1x128xf32>
      %71 = arith.addf %67, %70 : vector<1x128xf32>
      %72 = math.rsqrt %71 : vector<1x128xf32>
      %73 = vector.broadcast %72 : vector<1x128xf32> to vector<512x128xf32>
      %74 = arith.mulf %69, %73 : vector<512x128xf32>
      %c9_i32 = arith.constant 9 : i32
      %75 = arith.cmpi slt, %arg0, %c9_i32 : i32
      %76 = arith.extui %75 : i1 to i32
      %c0_i32_67 = arith.constant 0 : i32
      %77 = arith.cmpi ne, %76, %c0_i32_67 : i32
      scf.if %77 {
        %81 = vector.shape_cast %74 : vector<512x128xf32> to vector<2x16x16x128xf32>
        %82 = arith.truncf %81 : vector<2x16x16x128xf32> to vector<2x16x16x128xbf16>
        %c0_70 = arith.constant 0 : index
        %c1_71 = arith.constant 1 : index
        %c1_72 = arith.constant 1 : index
        %c0_73 = arith.constant 0 : index
        %83 = vector.load %arg7[%c0_70, %c1_71, %c1_72, %c0_73] : memref<2x18x18x128xbf16, #tpu.memory_space<vmem>>, vector<2x16x16x128xbf16>
        tpu.vector_store %arg7[%c0_70, %c1_71, %c1_72, %c0_73], %82 {strides = array<i32>} : memref<2x18x18x128xbf16, #tpu.memory_space<vmem>>, vector<2x16x16x128xbf16>,
      } else {
      }
      %c9_i32_68 = arith.constant 9 : i32
      %78 = arith.cmpi eq, %arg0, %c9_i32_68 : i32
      %79 = arith.extui %78 : i1 to i32
      %c0_i32_69 = arith.constant 0 : i32
      %80 = arith.cmpi ne, %79, %c0_i32_69 : i32
      scf.if %80 {
        %81 = vector.shape_cast %74 : vector<512x128xf32> to vector<2x256x128xf32>
        %cst_70 = arith.constant dense<0.000000e+00> : vector<2x128xf32>
        %82 = vector.multi_reduction <add>, %81, %cst_70 [1] : vector<2x256x128xf32> to vector<2x128xf32>
        %cst_71 = arith.constant 2.560000e+02 : f32
        %83 = vector.broadcast %cst_71 : f32 to vector<2x128xf32>
        %84 = arith.divf %82, %83 : vector<2x128xf32>
        %c0_72 = arith.constant 0 : index
        %c0_73 = arith.constant 0 : index
        %85 = vector.load %arg4[%c0_72, %c0_73] : memref<128x12xf32, #tpu.memory_space<vmem>>, vector<128x12xf32>
        %cst_74 = arith.constant dense<0.000000e+00> : vector<2x12xf32>
        %86 = tpu.matmul %84, %85, %cst_74 {dimension_numbers = #tpu.dot_dimension_numbers<[1], [0], [0], [1], [0, 0, 1, 1], [], []>} : vector<2x128xf32>, vector<128x12xf32>, vector<2x12xf32> -> vector<2x12xf32>
        %c0_75 = arith.constant 0 : index
        %c0_76 = arith.constant 0 : index
        %87 = vector.load %arg5[%c0_75, %c0_76] : memref<1x12xf32, #tpu.memory_space<vmem>>, vector<1x12xf32>
        %88 = vector.broadcast %87 : vector<1x12xf32> to vector<2x12xf32>
        %89 = arith.addf %86, %88 : vector<2x12xf32>
        %c0_77 = arith.constant 0 : index
        %c0_78 = arith.constant 0 : index
        %90 = vector.load %arg6[%c0_77, %c0_78] : memref<2x12xf32, #tpu.memory_space<vmem>>, vector<2x12xf32>
        tpu.vector_store %arg6[%c0_77, %c0_78], %89 {strides = array<i32>} : memref<2x12xf32, #tpu.memory_space<vmem>>, vector<2x12xf32>,
      } else {
      }
    } else {
    }
    return
  }
  func.func @transform_0(%arg0: i32) -> (i32, i32) {
    %c0_i32 = arith.constant 0 : i32
    %c0_i32_0 = arith.constant 0 : i32
    %c0_i32_1 = arith.constant 0 : i32
    return %c0_i32, %c0_i32_0 : i32, i32
  }
  func.func @transform_1(%arg0: i32) -> (i32, i32) {
    %c0_i32 = arith.constant 0 : i32
    %c0_i32_0 = arith.constant 0 : i32
    %c0_i32_1 = arith.constant 0 : i32
    return %c0_i32, %c0_i32_0 : i32, i32
  }
  func.func @transform_2(%arg0: i32) -> (i32, i32, i32) {
    %c1_i32 = arith.constant 1 : i32
    %0 = arith.subi %arg0, %c1_i32 : i32
    %c0_i32 = arith.constant 0 : i32
    %1 = arith.maxsi %0, %c0_i32 : i32
    %c0_i32_0 = arith.constant 0 : i32
    %c0_i32_1 = arith.constant 0 : i32
    %c0_i32_2 = arith.constant 0 : i32
    return %1, %c0_i32_0, %c0_i32_1 : i32, i32, i32
  }
  func.func @transform_3(%arg0: i32) -> (i32, i32) {
    %c0_i32 = arith.constant 0 : i32
    %c0_i32_0 = arith.constant 0 : i32
    %c0_i32_1 = arith.constant 0 : i32
    return %c0_i32, %c0_i32_0 : i32, i32
  }
  func.func @transform_4(%arg0: i32) -> (i32, i32) {
    %c0_i32 = arith.constant 0 : i32
    %c0_i32_0 = arith.constant 0 : i32
    %c0_i32_1 = arith.constant 0 : i32
    return %c0_i32, %c0_i32_0 : i32, i32
  }
  func.func @transform_5(%arg0: i32) -> (i32, i32) {
    %c0_i32 = arith.constant 0 : i32
    %c0_i32_0 = arith.constant 0 : i32
    %c0_i32_1 = arith.constant 0 : i32
    return %c0_i32, %c0_i32_0 : i32, i32
  }
}

</mosaic_0001>

<llo_original>
// kernel: res_model_forward.1
$region0: #{res_model_forward.1}
  #allocation0 [shape = 'u32[]', space=smem, size = 0x4, offset = 0x4, fixed_abs, tag = 'smem constant byte address 0x4 - core index']
  #allocation1 [shape = 'u32[72,128]{1,0:T(1,128)}', space=vmem, size = 0x9000, scoped, tag = 'internal scratch']
  #allocation2 [shape = 'bf16[2,18,18,128]{3,2,1,0:T(8,128)(2,1)}', space=vmem, size = 0x36000, scoped, tag = 'scratch operand']
  #allocation3 [shape = 'bf16[512,1152]{1,0:T(8,128)(2,1)}', space=vmem, size = 0x120000, scoped, tag = 'scratch operand']
  #allocation4 [shape = 'f32[512,128]{1,0:T(8,128)}', space=vmem, size = 0x40000, scoped, tag = 'scratch operand']
  %s0 = inlined_call_operand.vmem [shape: bf16[512,128], index: 0, kind: input, shape index: {}]
  %s1 = inlined_call_operand.hbm [shape: bf16[128,128], index: 1, kind: input, shape index: {}]
  %s2 = inlined_call_operand.hbm [shape: bf16[9,1152,128], index: 2, kind: input, shape index: {}]
  %s3 = inlined_call_operand.vmem [shape: f32[128,12], index: 3, kind: input, shape index: {}]
  %s4 = inlined_call_operand.hbm [shape: f32[1,12], index: 4, kind: input, shape index: {}]
  %s5 = inlined_call_operand.hbm [shape: f32[2,12], index: 5, kind: output, shape index: {}]
  %s6 = sld [smem:[#allocation0]]
  $region85: #{res_model_forward.1} parent=0
    _
  %s8 = ssub.s32 1, %s6
  %s9 = scalar_select 0, %s8, %s6
  $region1: #{res_model_forward.1} parent=0
    #allocation5 [shape = 'u8[32768]{0}', space=vmem, size = 0x8000, scoped, tag = 'input window, operand 1, single buffered']
    #allocation6 [shape = 's32[2]{0}', space=sflag, size = 0x8, scoped, tag = 'scoped memory for res_model_forward.1']
    #allocation7 [shape = 's32[2]{0}', space=sflag, size = 0x8, scoped, tag = 'scoped memory for res_model_forward.1']
    #allocation8 [shape = 'u8[589824]{0}', space=vmem, size = 0x90000, scoped, tag = 'input window, operand 2']
    #allocation9 [shape = 's32[2]{0}', space=sflag, size = 0x8, scoped, tag = 'scoped memory for res_model_forward.1']
    #allocation10 [shape = 'u8[512]{0}', space=vmem, size = 0x400, scoped, tag = 'input window, operand 4, single buffered']
    #allocation11 [shape = 'u8[1024]{0}', space=vmem, size = 0x400, scoped, tag = 'output window, operand 0, single buffered']
    %10 = vsyncpa [#allocation6], 0
    %11 = vsyncpa [#allocation9], 0
    %s12 = scalar_lea.sflag [#allocation9], 1
    %13 = vsyncpa %s12, 0
    %14 = vsyncpa [#allocation7], 0
    loop: start=0, step=1, limit=12
    $region2: #{res_model_forward.1} parent=1 // loop_pre_header
      _
    $region3: #{res_model_forward.1} parent=1 // loop_header
      %s16 = sphi 0, %s20
      %p17 = scmp.ge.s32.totalorder %s16, 12
      %s24 = sphi 0, %s24
      %s26 = sphi 0, %s24
      %s27 = sphi 0, %s26
      %s41 = sphi 0, %s27
      %s45 = sphi 0, %s45
      %s47 = sphi 0, %s45
      %s48 = sphi 0, %s47
      %s62 = sphi 0, %s48
      %s74 = sphi 0, %s76
      %s77 = sphi 0, %s74
      %s78 = sphi 0, %s77
      %s94 = sphi 0, %s78
      %s98 = sphi 0, %s98
      %s100 = sphi 0, %s98
      %s101 = sphi 0, %s100
      %s115 = sphi 0, %s101
      %s119 = sphi 0, %s119
      %s121 = sphi 0, %s119
      %s122 = sphi 0, %s121
      %s136 = sphi 0, %s122
      %s140 = sphi 0, %s140
      %s142 = sphi 0, %s140
      %s143 = sphi 0, %s142
      %s157 = sphi 0, %s143
    $region4: #{res_model_forward.1} parent=1 // loop_header_branch
      %19 = sbr.rel (%p17) target = $region8
    $region5: #{res_model_forward.1} parent=1 // loop_body
      %s21 = ssub.s32 %s16, 1
      %s22 = ssub.s32 %s16, 2
      %s23 = sadd.s32 %s16, 1
      %s25 = sadd.s32 %s24, 1
      %p28 = scmp.eq.s32.totalorder %s16, 9
      %p29 = scmp.ne.s32.totalorder %s24, %s26
      %p30 = scmp.eq.s32.totalorder %s16, 0
      %p31 = por %p29, %p30
      %p32 = scmp.ne.s32.totalorder %s24, %s26
      %p33 = scmp.eq.s32.totalorder %s21, 9
      %p34 = por %p32, %p33
      %p35 = scmp.ne.s32.totalorder %s26, %s27
      %p36 = scmp.eq.s32.totalorder %s21, 0
      %p37 = por %p35, %p36
      %p38 = scmp.ne.s32.totalorder %s26, %s27
      %p39 = scmp.eq.s32.totalorder %s22, 9
      %p40 = por %p38, %p39
      %p42 = scmp.ne.s32.totalorder %s27, %s41
      %p43 = scmp.eq.s32.totalorder %s22, 0
      %p44 = por %p42, %p43
      %s46 = sadd.s32 %s45, 1
      %p49 = scmp.eq.s32.totalorder %s16, 9
      %p50 = scmp.ne.s32.totalorder %s45, %s47
      %p51 = scmp.eq.s32.totalorder %s16, 0
      %p52 = por %p50, %p51
      %p53 = scmp.ne.s32.totalorder %s45, %s47
      %p54 = scmp.eq.s32.totalorder %s21, 9
      %p55 = por %p53, %p54
      %p56 = scmp.ne.s32.totalorder %s47, %s48
      %p57 = scmp.eq.s32.totalorder %s21, 0
      %p58 = por %p56, %p57
      %p59 = scmp.ne.s32.totalorder %s47, %s48
      %p60 = scmp.eq.s32.totalorder %s22, 9
      %p61 = por %p59, %p60
      %p63 = scmp.ne.s32.totalorder %s48, %s62
      %p64 = scmp.eq.s32.totalorder %s22, 0
      %p65 = por %p63, %p64
      %s66 = ssub.s32 %s16, 1
      %p67 = scmp.gt.s32.totalorder %s66, 0
      %s68 = scalar_select %p67, %s66, 0
      %s69 = ssub.s32 %s23, 1
      %p70 = scmp.gt.s32.totalorder %s69, 0
      %s71 = scalar_select %p70, %s69, 0
      %s72 = ssub.s32 %s68, %s71
      %p73 = scmp.eq.s32.totalorder %s72, 0
      %s75 = sadd.s32 %s74, 1
      %s76 = scalar_select %p73, %s74, %s75
      %p79 = pneg %p73
      %p80 = scmp.eq.s32.totalorder %s16, 9
      %p81 = por %p79, %p80
      %p82 = scmp.ne.s32.totalorder %s74, %s77
      %p83 = scmp.eq.s32.totalorder %s16, 0
      %p84 = por %p82, %p83
      %p85 = scmp.ne.s32.totalorder %s74, %s77
      %p86 = scmp.eq.s32.totalorder %s21, 9
      %p87 = por %p85, %p86
      %p88 = scmp.ne.s32.totalorder %s77, %s78
      %p89 = scmp.eq.s32.totalorder %s21, 0
      %p90 = por %p88, %p89
      %p91 = scmp.ne.s32.totalorder %s77, %s78
      %p92 = scmp.eq.s32.totalorder %s22, 9
      %p93 = por %p91, %p92
      %p95 = scmp.ne.s32.totalorder %s78, %s94
      %p96 = scmp.eq.s32.totalorder %s22, 0
      %p97 = por %p95, %p96
      %s99 = sadd.s32 %s98, 1
      %p102 = scmp.eq.s32.totalorder %s16, 9
      %p103 = scmp.ne.s32.totalorder %s98, %s100
      %p104 = scmp.eq.s32.totalorder %s16, 0
      %p105 = por %p103, %p104
      %p106 = scmp.ne.s32.totalorder %s98, %s100
      %p107 = scmp.eq.s32.totalorder %s21, 9
      %p108 = por %p106, %p107
      %p109 = scmp.ne.s32.totalorder %s100, %s101
      %p110 = scmp.eq.s32.totalorder %s21, 0
      %p111 = por %p109, %p110
      %p112 = scmp.ne.s32.totalorder %s100, %s101
      %p113 = scmp.eq.s32.totalorder %s22, 9
      %p114 = por %p112, %p113
      %p116 = scmp.ne.s32.totalorder %s101, %s115
      %p117 = scmp.eq.s32.totalorder %s22, 0
      %p118 = por %p116, %p117
      %s120 = sadd.s32 %s119, 1
      %p123 = scmp.eq.s32.totalorder %s16, 9
      %p124 = scmp.ne.s32.totalorder %s119, %s121
      %p125 = scmp.eq.s32.totalorder %s16, 0
      %p126 = por %p124, %p125
      %p127 = scmp.ne.s32.totalorder %s119, %s121
      %p128 = scmp.eq.s32.totalorder %s21, 9
      %p129 = por %p127, %p128
      %p130 = scmp.ne.s32.totalorder %s121, %s122
      %p131 = scmp.eq.s32.totalorder %s21, 0
      %p132 = por %p130, %p131
      %p133 = scmp.ne.s32.totalorder %s121, %s122
      %p134 = scmp.eq.s32.totalorder %s22, 9
      %p135 = por %p133, %p134
      %p137 = scmp.ne.s32.totalorder %s122, %s136
      %p138 = scmp.eq.s32.totalorder %s22, 0
      %p139 = por %p137, %p138
      %s141 = sadd.s32 %s140, 1
      %p144 = scmp.eq.s32.totalorder %s16, 9
      %p145 = scmp.ne.s32.totalorder %s140, %s142
      %p146 = scmp.eq.s32.totalorder %s16, 0
      %p147 = por %p145, %p146
      %p148 = scmp.ne.s32.totalorder %s140, %s142
      %p149 = scmp.eq.s32.totalorder %s21, 9
      %p150 = por %p148, %p149
      %p151 = scmp.ne.s32.totalorder %s142, %s143
      %p152 = scmp.eq.s32.totalorder %s21, 0
      %p153 = por %p151, %p152
      %p154 = scmp.ne.s32.totalorder %s142, %s143
      %p155 = scmp.eq.s32.totalorder %s22, 9
      %p156 = por %p154, %p155
      %p158 = scmp.ne.s32.totalorder %s143, %s157
      %p159 = scmp.eq.s32.totalorder %s22, 0
      %p160 = por %p158, %p159
      %p161 = scmp.le.s32.totalorder 1, %s16
      %p162 = scmp.lt.s32.totalorder %s16, 11
      %p163 = pnand %p161, %p162
      %p164 = pneg %p163
      // Predicated region
      $region9: #{res_model_forward.1} parent=5 // pred_check
        _
      $region10: #{res_model_forward.1} parent=5 // pred_check_branch
        %166 = sbr.rel (%p163) target = $region12
      $region11: #{res_model_forward.1} parent=5 // pred_region
        %s167 = ssub.s32 %s16, 1
        // Predicated region
        $region13: #{res_model_forward.1} parent=11 // pred_check
          %p168 = pneg %p37
        $region14: #{res_model_forward.1} parent=11 // pred_check_branch
          %170 = sbr.rel (%p168) target = $region16
        $region15: #{res_model_forward.1} parent=11 // pred_region
          _
        $region16: #{res_model_forward.1} parent=11 // pred_fallthru
          _
        // Predicated region
        $region17: #{res_model_forward.1} parent=11 // pred_check
          %p171 = pneg %p58
        $region18: #{res_model_forward.1} parent=11 // pred_check_branch
          %173 = sbr.rel (%p171) target = $region20
        $region19: #{res_model_forward.1} parent=11 // pred_region
          %175 = vsyncadd [#allocation6], 0
          %s176 = sshll.u32 %s1, 4
          %s177 = int_to_ptr.hbm [resolvable:$true] %s176
          %s178 = sshll.u32 [#allocation5], 4
          %s179 = int_to_ptr.vmem [resolvable:$true] %s178
          %184 = dma.hbm_to_vmem [thread:$0]  %s177, 1024, %s179, [#allocation6], 64, 64, 4
        $region20: #{res_model_forward.1} parent=11 // pred_fallthru
          _
        // Predicated region
        $region21: #{res_model_forward.1} parent=11 // pred_check
          %p185 = pneg %p111
        $region22: #{res_model_forward.1} parent=11 // pred_check_branch
          %187 = sbr.rel (%p185) target = $region24
        $region23: #{res_model_forward.1} parent=11 // pred_region
          _
        $region24: #{res_model_forward.1} parent=11 // pred_fallthru
          _
        // Predicated region
        $region25: #{res_model_forward.1} parent=11 // pred_check
          %p188 = pneg %p132
        $region26: #{res_model_forward.1} parent=11 // pred_check_branch
          %190 = sbr.rel (%p188) target = $region28
        $region27: #{res_model_forward.1} parent=11 // pred_region
          %192 = vsyncadd [#allocation9], 0
          %s194 = sshll.u32 %s4, 4
          %s195 = int_to_ptr.hbm [resolvable:$true] %s194
          %s196 = sshll.u32 [#allocation10], 4
          %s197 = int_to_ptr.vmem [resolvable:$true] %s196
          %199 = dma.hbm_to_vmem [thread:$0]  %s195, 16, %s197, [#allocation9]
        $region28: #{res_model_forward.1} parent=11 // pred_fallthru
          _
      $region12: #{res_model_forward.1} parent=5 // pred_fallthru
        _
      %p200 = scmp.lt.s32.totalorder %s16, 10
      // Predicated region
      $region29: #{res_model_forward.1} parent=5 // pred_check
        %p201 = pneg %p200
      $region30: #{res_model_forward.1} parent=5 // pred_check_branch
        %203 = sbr.rel (%p201) target = $region32
      $region31: #{res_model_forward.1} parent=5 // pred_region
        // Predicated region
        $region33: #{res_model_forward.1} parent=31 // pred_check
          %p204 = pneg %p84
        $region34: #{res_model_forward.1} parent=31 // pred_check_branch
          %206 = sbr.rel (%p204) target = $region36
        $region35: #{res_model_forward.1} parent=31 // pred_region
          %s207 = sand.u32 %s16, 1
          %s208 = scalar_lea.sflag [#allocation9], %s207
          %s209 = sand.u32 %s74, 1
          %s210 = smul.addr %s209, 576
          %s211 = scalar_lea.vmem [#allocation8], %s210
          %s212 = ssub.s32 %s16, 1
          %p213 = scmp.gt.s32.totalorder %s212, 0
          %s214 = scalar_select %p213, %s212, 0
          %216 = vsyncadd %s208, 0
          %s217 = smul.addr %s214, 144
          %s218 = smul.addr %s217, 4
          %s219 = scalar_lea.hbm %s2, %s218
          %s220 = sshll.u32 %s219, 4
          %s221 = int_to_ptr.hbm [resolvable:$true] %s220
          %s222 = sshll.u32 %s211, 4
          %s223 = int_to_ptr.vmem [resolvable:$true] %s222
          %228 = dma.hbm_to_vmem [thread:$0]  %s221, 9216, %s223, %s208, 64, 64, 4
        $region36: #{res_model_forward.1} parent=31 // pred_fallthru
          _
      $region32: #{res_model_forward.1} parent=5 // pred_fallthru
        _
      %p229 = scmp.le.s32.totalorder 1, %s16
      %p230 = scmp.lt.s32.totalorder %s16, 11
      %p231 = pnand %p229, %p230
      %p232 = pneg %p231
      // Predicated region
      $region37: #{res_model_forward.1} parent=5 // pred_check
        _
      $region38: #{res_model_forward.1} parent=5 // pred_check_branch
        %234 = sbr.rel (%p231) target = $region40
      $region39: #{res_model_forward.1} parent=5 // pred_region
        %s235 = ssub.s32 %s16, 1
        // Predicated region
        $region41: #{res_model_forward.1} parent=39 // pred_check
          %p236 = pneg %p58
        $region42: #{res_model_forward.1} parent=39 // pred_check_branch
          %238 = sbr.rel (%p236) target = $region44
        $region43: #{res_model_forward.1} parent=39 // pred_region
          %240 = dma.done [#allocation6], 1024
        $region44: #{res_model_forward.1} parent=39 // pred_fallthru
          _
        %s241 = sand.u32 %s21, 1
        %s242 = scalar_lea.sflag [#allocation9], %s241
        %s243 = sand.u32 %s77, 1
        %s244 = smul.addr %s243, 576
        %s245 = scalar_lea.vmem [#allocation8], %s244
        // Predicated region
        $region45: #{res_model_forward.1} parent=39 // pred_check
          %p246 = pneg %p90
        $region46: #{res_model_forward.1} parent=39 // pred_check_branch
          %248 = sbr.rel (%p246) target = $region48
        $region47: #{res_model_forward.1} parent=39 // pred_region
          %250 = dma.done %s242, 9216
        $region48: #{res_model_forward.1} parent=39 // pred_fallthru
          _
        // Predicated region
        $region49: #{res_model_forward.1} parent=39 // pred_check
          %p251 = pneg %p132
        $region50: #{res_model_forward.1} parent=39 // pred_check_branch
          %253 = sbr.rel (%p251) target = $region52
        $region51: #{res_model_forward.1} parent=39 // pred_region
          %255 = dma.done [#allocation9], 16
        $region52: #{res_model_forward.1} parent=39 // pred_fallthru
          _
        %p256 = pneg %p37
        %p257 = pneg %p34
        %p258 = pneg %p58
        %p259 = pneg %p55
        %s260 = sand.u32 %s21, 1
        %s261 = scalar_lea.sflag [#allocation9], %s260
        %s262 = sand.u32 %s77, 1
        %s263 = smul.addr %s262, 576
        %s264 = scalar_lea.vmem [#allocation8], %s263
        %p265 = pneg %p90
        %p266 = pneg %p87
        %p267 = pneg %p111
        %p268 = pneg %p108
        %p269 = pneg %p132
        %p270 = pneg %p129
        %p271 = pneg %p153
        %p272 = pneg %p150
        %s273 = ssub.s32 %s21, 1
        %p274 = scmp.gt.s32.totalorder %s273, 0
        %s275 = scalar_select %p274, %s273, 0
        %p277 = scmp.eq.s32.totalorder %s21, 0
        // Predicated region
        $region53: #{res_model_forward.1} parent=39 // pred_check
          %p278 = pneg %p277
        $region54: #{res_model_forward.1} parent=39 // pred_check_branch
          %280 = sbr.rel (%p278) target = $region56
        $region55: #{res_model_forward.1} parent=39 // pred_region
          %281 = vst [vmem:[#allocation2] sm:$0xf] 0
          %282 = vst [vmem:[#allocation2 + $0x4] sm:$0xf] 0
          %283 = vst [vmem:[#allocation2 + $0x8] sm:$0x1] 0
          %284 = vst [vmem:[#allocation2 + $0xc] sm:$0xf] 0
          %285 = vst [vmem:[#allocation2 + $0x10] sm:$0xf] 0
          %286 = vst [vmem:[#allocation2 + $0x14] sm:$0x1] 0
          %287 = vst [vmem:[#allocation2 + $0x18] sm:$0xf] 0
          %288 = vst [vmem:[#allocation2 + $0x1c] sm:$0xf] 0
          %289 = vst [vmem:[#allocation2 + $0x20] sm:$0x1] 0
          %290 = vst [vmem:[#allocation2 + $0x24] sm:$0xf] 0
          %291 = vst [vmem:[#allocation2 + $0x28] sm:$0xf] 0
          %292 = vst [vmem:[#allocation2 + $0x2c] sm:$0x1] 0
          %293 = vst [vmem:[#allocation2 + $0x30] sm:$0xf] 0
          %294 = vst [vmem:[#allocation2 + $0x34] sm:$0xf] 0
          %295 = vst [vmem:[#allocation2 + $0x38] sm:$0x1] 0
          %296 = vst [vmem:[#allocation2 + $0x3c] sm:$0xf] 0
          %297 = vst [vmem:[#allocation2 + $0x40] sm:$0xf] 0
          %298 = vst [vmem:[#allocation2 + $0x44] sm:$0x1] 0
          %299 = vst [vmem:[#allocation2 + $0x48] sm:$0xf] 0
          %300 = vst [vmem:[#allocation2 + $0x4c] sm:$0xf] 0
          %301 = vst [vmem:[#allocation2 + $0x50] sm:$0x1] 0
          %302 = vst [vmem:[#allocation2 + $0x54] sm:$0xf] 0
          %303 = vst [vmem:[#allocation2 + $0x58] sm:$0xf] 0
          %304 = vst [vmem:[#allocation2 + $0x5c] sm:$0x1] 0
          %305 = vst [vmem:[#allocation2 + $0x60] sm:$0xf] 0
          %306 = vst [vmem:[#allocation2 + $0x64] sm:$0xf] 0
          %307 = vst [vmem:[#allocation2 + $0x68] sm:$0x1] 0
          %308 = vst [vmem:[#allocation2 + $0x6c] sm:$0xf] 0
          %309 = vst [vmem:[#allocation2 + $0x70] sm:$0xf] 0
          %310 = vst [vmem:[#allocation2 + $0x74] sm:$0x1] 0
          %311 = vst [vmem:[#allocation2 + $0x78] sm:$0xf] 0
          %312 = vst [vmem:[#allocation2 + $0x7c] sm:$0xf] 0
          %313 = vst [vmem:[#allocation2 + $0x80] sm:$0x1] 0
          %314 = vst [vmem:[#allocation2 + $0x84] sm:$0xf] 0
          %315 = vst [vmem:[#allocation2 + $0x88] sm:$0xf] 0
          %316 = vst [vmem:[#allocation2 + $0x8c] sm:$0x1] 0
          %317 = vst [vmem:[#allocation2 + $0x90] sm:$0xf] 0
          %318 = vst [vmem:[#allocation2 + $0x94] sm:$0xf] 0
          %319 = vst [vmem:[#allocation2 + $0x98] sm:$0x1] 0
          %320 = vst [vmem:[#allocation2 + $0x9c] sm:$0xf] 0
          %321 = vst [vmem:[#allocation2 + $0xa0] sm:$0xf] 0
          %322 = vst [vmem:[#allocation2 + $0xa4] sm:$0x1] 0
          %323 = vst [vmem:[#allocation2 + $0xa8] sm:$0xf] 0
          %324 = vst [vmem:[#allocation2 + $0xac] sm:$0xf] 0
          %325 = vst [vmem:[#allocation2 + $0xb0] sm:$0x1] 0
          %326 = vst [vmem:[#allocation2 + $0xb4] sm:$0xf] 0
          %327 = vst [vmem:[#allocation2 + $0xb8] sm:$0xf] 0
          %328 = vst [vmem:[#allocation2 + $0xbc] sm:$0x1] 0
          %329 = vst [vmem:[#allocation2 + $0xc0] sm:$0xf] 0
          %330 = vst [vmem:[#allocation2 + $0xc4] sm:$0xf] 0
          %331 = vst [vmem:[#allocation2 + $0xc8] sm:$0x1] 0
          %332 = vst [vmem:[#allocation2 + $0xcc] sm:$0xf] 0
          %333 = vst [vmem:[#allocation2 + $0xd0] sm:$0xf] 0
          %334 = vst [vmem:[#allocation2 + $0xd4] sm:$0x1] 0
          %335 = vst [vmem:[#allocation2 + $0xd8] sm:$0xf] 0
          %336 = vst [vmem:[#allocation2 + $0xdc] sm:$0xf] 0
          %337 = vst [vmem:[#allocation2 + $0xe0] sm:$0x1] 0
          %338 = vst [vmem:[#allocation2 + $0xe4] sm:$0xf] 0
          %339 = vst [vmem:[#allocation2 + $0xe8] sm:$0xf] 0
          %340 = vst [vmem:[#allocation2 + $0xec] sm:$0x1] 0
          %341 = vst [vmem:[#allocation2 + $0xf0] sm:$0xf] 0
          %342 = vst [vmem:[#allocation2 + $0xf4] sm:$0xf] 0
          %343 = vst [vmem:[#allocation2 + $0xf8] sm:$0x1] 0
          %344 = vst [vmem:[#allocation2 + $0xfc] sm:$0xf] 0
          %345 = vst [vmem:[#allocation2 + $0x100] sm:$0xf] 0
          %346 = vst [vmem:[#allocation2 + $0x104] sm:$0x1] 0
          %347 = vst [vmem:[#allocation2 + $0x108] sm:$0xf] 0
          %348 = vst [vmem:[#allocation2 + $0x10c] sm:$0xf] 0
          %349 = vst [vmem:[#allocation2 + $0x110] sm:$0x1] 0
          %350 = vst [vmem:[#allocation2 + $0x114] sm:$0xf] 0
          %351 = vst [vmem:[#allocation2 + $0x118] sm:$0xf] 0
          %352 = vst [vmem:[#allocation2 + $0x11c] sm:$0x1] 0
          %353 = vst [vmem:[#allocation2 + $0x120] sm:$0xf] 0
          %354 = vst [vmem:[#allocation2 + $0x124] sm:$0xf] 0
          %355 = vst [vmem:[#allocation2 + $0x128] sm:$0x1] 0
          %356 = vst [vmem:[#allocation2 + $0x12c] sm:$0xf] 0
          %357 = vst [vmem:[#allocation2 + $0x130] sm:$0xf] 0
          %358 = vst [vmem:[#allocation2 + $0x134] sm:$0x1] 0
          %359 = vst [vmem:[#allocation2 + $0x138] sm:$0xf] 0
          %360 = vst [vmem:[#allocation2 + $0x13c] sm:$0xf] 0
          %361 = vst [vmem:[#allocation2 + $0x140] sm:$0x1] 0
          %362 = vst [vmem:[#allocation2 + $0x144] sm:$0xf] 0
          %363 = vst [vmem:[#allocation2 + $0x148] sm:$0xf] 0
          %364 = vst [vmem:[#allocation2 + $0x14c] sm:$0x1] 0
          %365 = vst [vmem:[#allocation2 + $0x150] sm:$0xf] 0
          %366 = vst [vmem:[#allocation2 + $0x154] sm:$0xf] 0
          %367 = vst [vmem:[#allocation2 + $0x158] sm:$0x1] 0
          %368 = vst [vmem:[#allocation2 + $0x15c] sm:$0xf] 0
          %369 = vst [vmem:[#allocation2 + $0x160] sm:$0xf] 0
          %370 = vst [vmem:[#allocation2 + $0x164] sm:$0x1] 0
          %371 = vst [vmem:[#allocation2 + $0x168] sm:$0xf] 0
          %372 = vst [vmem:[#allocation2 + $0x16c] sm:$0xf] 0
          %373 = vst [vmem:[#allocation2 + $0x170] sm:$0x1] 0
          %374 = vst [vmem:[#allocation2 + $0x174] sm:$0xf] 0
          %375 = vst [vmem:[#allocation2 + $0x178] sm:$0xf] 0
          %376 = vst [vmem:[#allocation2 + $0x17c] sm:$0x1] 0
          %377 = vst [vmem:[#allocation2 + $0x180] sm:$0xf] 0
          %378 = vst [vmem:[#allocation2 + $0x184] sm:$0xf] 0
          %379 = vst [vmem:[#allocation2 + $0x188] sm:$0x1] 0
          %380 = vst [vmem:[#allocation2 + $0x18c] sm:$0xf] 0
          %381 = vst [vmem:[#allocation2 + $0x190] sm:$0xf] 0
          %382 = vst [vmem:[#allocation2 + $0x194] sm:$0x1] 0
          %383 = vst [vmem:[#allocation2 + $0x198] sm:$0xf] 0
          %384 = vst [vmem:[#allocation2 + $0x19c] sm:$0xf] 0
          %385 = vst [vmem:[#allocation2 + $0x1a0] sm:$0x1] 0
          %386 = vst [vmem:[#allocation2 + $0x1a4] sm:$0xf] 0
          %387 = vst [vmem:[#allocation2 + $0x1a8] sm:$0xf] 0
          %388 = vst [vmem:[#allocation2 + $0x1ac] sm:$0x1] 0
          %v389 = vld [vmem:[%s0] sm:$0xf]
          %v390 = vld [vmem:[%s0 + $0x4] sm:$0xf]
          %v391 = vld [vmem:[%s0 + $0x8] sm:$0xf]
          %v392 = vld [vmem:[%s0 + $0xc] sm:$0xf]
          %v393 = vld [vmem:[%s0 + $0x10] sm:$0xf]
          %v394 = vld [vmem:[%s0 + $0x14] sm:$0xf]
          %v395 = vld [vmem:[%s0 + $0x18] sm:$0xf]
          %v396 = vld [vmem:[%s0 + $0x1c] sm:$0xf]
          %v397 = vld [vmem:[%s0 + $0x20] sm:$0xf]
          %v398 = vld [vmem:[%s0 + $0x24] sm:$0xf]
          %v399 = vld [vmem:[%s0 + $0x28] sm:$0xf]
          %v400 = vld [vmem:[%s0 + $0x2c] sm:$0xf]
          %v401 = vld [vmem:[%s0 + $0x30] sm:$0xf]
          %v402 = vld [vmem:[%s0 + $0x34] sm:$0xf]
          %v403 = vld [vmem:[%s0 + $0x38] sm:$0xf]
          %v404 = vld [vmem:[%s0 + $0x3c] sm:$0xf]
          %v405 = vld [vmem:[%s0 + $0x40] sm:$0xf]
          %v406 = vld [vmem:[%s0 + $0x44] sm:$0xf]
          %v407 = vld [vmem:[%s0 + $0x48] sm:$0xf]
          %v408 = vld [vmem:[%s0 + $0x4c] sm:$0xf]
          %v409 = vld [vmem:[%s0 + $0x50] sm:$0xf]
          %v410 = vld [vmem:[%s0 + $0x54] sm:$0xf]
          %v411 = vld [vmem:[%s0 + $0x58] sm:$0xf]
          %v412 = vld [vmem:[%s0 + $0x5c] sm:$0xf]
          %v413 = vld [vmem:[%s0 + $0x60] sm:$0xf]
          %v414 = vld [vmem:[%s0 + $0x64] sm:$0xf]
          %v415 = vld [vmem:[%s0 + $0x68] sm:$0xf]
          %v416 = vld [vmem:[%s0 + $0x6c] sm:$0xf]
          %v417 = vld [vmem:[%s0 + $0x70] sm:$0xf]
          %v418 = vld [vmem:[%s0 + $0x74] sm:$0xf]
          %v419 = vld [vmem:[%s0 + $0x78] sm:$0xf]
          %v420 = vld [vmem:[%s0 + $0x7c] sm:$0xf]
          %v421 = vld [vmem:[%s0 + $0x80] sm:$0xf]
          %v422 = vld [vmem:[%s0 + $0x84] sm:$0xf]
          %v423 = vld [vmem:[%s0 + $0x88] sm:$0xf]
          %v424 = vld [vmem:[%s0 + $0x8c] sm:$0xf]
          %v425 = vld [vmem:[%s0 + $0x90] sm:$0xf]
          %v426 = vld [vmem:[%s0 + $0x94] sm:$0xf]
          %v427 = vld [vmem:[%s0 + $0x98] sm:$0xf]
          %v428 = vld [vmem:[%s0 + $0x9c] sm:$0xf]
          %v429 = vld [vmem:[%s0 + $0xa0] sm:$0xf]
          %v430 = vld [vmem:[%s0 + $0xa4] sm:$0xf]
          %v431 = vld [vmem:[%s0 + $0xa8] sm:$0xf]
          %v432 = vld [vmem:[%s0 + $0xac] sm:$0xf]
          %v433 = vld [vmem:[%s0 + $0xb0] sm:$0xf]
          %v434 = vld [vmem:[%s0 + $0xb4] sm:$0xf]
          %v435 = vld [vmem:[%s0 + $0xb8] sm:$0xf]
          %v436 = vld [vmem:[%s0 + $0xbc] sm:$0xf]
          %v437 = vld [vmem:[%s0 + $0xc0] sm:$0xf]
          %v438 = vld [vmem:[%s0 + $0xc4] sm:$0xf]
          %v439 = vld [vmem:[%s0 + $0xc8] sm:$0xf]
          %v440 = vld [vmem:[%s0 + $0xcc] sm:$0xf]
          %v441 = vld [vmem:[%s0 + $0xd0] sm:$0xf]
          %v442 = vld [vmem:[%s0 + $0xd4] sm:$0xf]
          %v443 = vld [vmem:[%s0 + $0xd8] sm:$0xf]
          %v444 = vld [vmem:[%s0 + $0xdc] sm:$0xf]
          %v445 = vld [vmem:[%s0 + $0xe0] sm:$0xf]
          %v446 = vld [vmem:[%s0 + $0xe4] sm:$0xf]
          %v447 = vld [vmem:[%s0 + $0xe8] sm:$0xf]
          %v448 = vld [vmem:[%s0 + $0xec] sm:$0xf]
          %v449 = vld [vmem:[%s0 + $0xf0] sm:$0xf]
          %v450 = vld [vmem:[%s0 + $0xf4] sm:$0xf]
          %v451 = vld [vmem:[%s0 + $0xf8] sm:$0xf]
          %v452 = vld [vmem:[%s0 + $0xfc] sm:$0xf]
          %v453 = vld [vmem:[#allocation5] sm:$0xf]
          %v454 = vld [vmem:[#allocation5 + $0x4] sm:$0xf]
          %v455 = vld [vmem:[#allocation5 + $0x8] sm:$0xf]
          %v456 = vld [vmem:[#allocation5 + $0xc] sm:$0xf]
          %v457 = vld [vmem:[#allocation5 + $0x10] sm:$0xf]
          %v458 = vld [vmem:[#allocation5 + $0x14] sm:$0xf]
          %v459 = vld [vmem:[#allocation5 + $0x18] sm:$0xf]
          %v460 = vld [vmem:[#allocation5 + $0x1c] sm:$0xf]
          %v461 = vld [vmem:[#allocation5 + $0x20] sm:$0xf]
          %v462 = vld [vmem:[#allocation5 + $0x24] sm:$0xf]
          %v463 = vld [vmem:[#allocation5 + $0x28] sm:$0xf]
          %v464 = vld [vmem:[#allocation5 + $0x2c] sm:$0xf]
          %v465 = vld [vmem:[#allocation5 + $0x30] sm:$0xf]
          %v466 = vld [vmem:[#allocation5 + $0x34] sm:$0xf]
          %v467 = vld [vmem:[#allocation5 + $0x38] sm:$0xf]
          %v468 = vld [vmem:[#allocation5 + $0x3c] sm:$0xf]
          %v533 = vunpack.c.l.b16 %v389
          %v534 = vunpack.c.l.b16 %v390
          %v535 = vunpack.c.l.b16 %v391
          %v536 = vunpack.c.l.b16 %v392
          %v537 = vunpack.c.l.b16 %v393
          %v538 = vunpack.c.l.b16 %v394
          %v539 = vunpack.c.l.b16 %v395
          %v540 = vunpack.c.l.b16 %v396
          %v541 = vunpack.c.l.b16 %v397
          %v542 = vunpack.c.l.b16 %v398
          %v543 = vunpack.c.l.b16 %v399
          %v544 = vunpack.c.l.b16 %v400
          %v545 = vunpack.c.l.b16 %v401
          %v546 = vunpack.c.l.b16 %v402
          %v547 = vunpack.c.l.b16 %v403
          %v548 = vunpack.c.l.b16 %v404
          %v549 = vunpack.c.l.b16 %v405
          %v550 = vunpack.c.l.b16 %v406
          %v551 = vunpack.c.l.b16 %v407
          %v552 = vunpack.c.l.b16 %v408
          %v553 = vunpack.c.l.b16 %v409
          %v554 = vunpack.c.l.b16 %v410
          %v555 = vunpack.c.l.b16 %v411
          %v556 = vunpack.c.l.b16 %v412
          %v557 = vunpack.c.l.b16 %v413
          %v558 = vunpack.c.l.b16 %v414
          %v559 = vunpack.c.l.b16 %v415
          %v560 = vunpack.c.l.b16 %v416
          %v561 = vunpack.c.l.b16 %v417
          %v562 = vunpack.c.l.b16 %v418
          %v563 = vunpack.c.l.b16 %v419
          %v564 = vunpack.c.l.b16 %v420
          %v565 = vunpack.c.l.b16 %v421
          %v566 = vunpack.c.l.b16 %v422
          %v567 = vunpack.c.l.b16 %v423
          %v568 = vunpack.c.l.b16 %v424
          %v569 = vunpack.c.l.b16 %v425
          %v570 = vunpack.c.l.b16 %v426
          %v571 = vunpack.c.l.b16 %v427
          %v572 = vunpack.c.l.b16 %v428
          %v573 = vunpack.c.l.b16 %v429
          %v574 = vunpack.c.l.b16 %v430
          %v575 = vunpack.c.l.b16 %v431
          %v576 = vunpack.c.l.b16 %v432
          %v577 = vunpack.c.l.b16 %v433
          %v578 = vunpack.c.l.b16 %v434
          %v579 = vunpack.c.l.b16 %v435
          %v580 = vunpack.c.l.b16 %v436
          %v581 = vunpack.c.l.b16 %v437
          %v582 = vunpack.c.l.b16 %v438
          %v583 = vunpack.c.l.b16 %v439
          %v584 = vunpack.c.l.b16 %v440
          %v585 = vunpack.c.l.b16 %v441
          %v586 = vunpack.c.l.b16 %v442
          %v587 = vunpack.c.l.b16 %v443
          %v588 = vunpack.c.l.b16 %v444
          %v589 = vunpack.c.l.b16 %v445
          %v590 = vunpack.c.l.b16 %v446
          %v591 = vunpack.c.l.b16 %v447
          %v592 = vunpack.c.l.b16 %v448
          %v593 = vunpack.c.l.b16 %v449
          %v594 = vunpack.c.l.b16 %v450
          %v595 = vunpack.c.l.b16 %v451
          %v596 = vunpack.c.l.b16 %v452
          %v597 = vpack.c.b16 %v534, %v533
          %v598 = vpack.c.b16 %v536, %v535
          %v599 = vpack.c.b16 %v538, %v537
          %v600 = vpack.c.b16 %v540, %v539
          %v601 = vpack.c.b16 %v542, %v541
          %v602 = vpack.c.b16 %v544, %v543
          %v603 = vpack.c.b16 %v546, %v545
          %v604 = vpack.c.b16 %v548, %v547
          %v605 = vpack.c.b16 %v550, %v549
          %v606 = vpack.c.b16 %v552, %v551
          %v607 = vpack.c.b16 %v554, %v553
          %v608 = vpack.c.b16 %v556, %v555
          %v609 = vpack.c.b16 %v558, %v557
          %v610 = vpack.c.b16 %v560, %v559
          %v611 = vpack.c.b16 %v562, %v561
          %v612 = vpack.c.b16 %v564, %v563
          %v613 = vpack.c.b16 %v566, %v565
          %v614 = vpack.c.b16 %v568, %v567
          %v615 = vpack.c.b16 %v570, %v569
          %v616 = vpack.c.b16 %v572, %v571
          %v617 = vpack.c.b16 %v574, %v573
          %v618 = vpack.c.b16 %v576, %v575
          %v619 = vpack.c.b16 %v578, %v577
          %v620 = vpack.c.b16 %v580, %v579
          %v621 = vpack.c.b16 %v582, %v581
          %v622 = vpack.c.b16 %v584, %v583
          %v623 = vpack.c.b16 %v586, %v585
          %v624 = vpack.c.b16 %v588, %v587
          %v625 = vpack.c.b16 %v590, %v589
          %v626 = vpack.c.b16 %v592, %v591
          %v627 = vpack.c.b16 %v594, %v593
          %v628 = vpack.c.b16 %v596, %v595
          %v677 = vunpack.c.l.b16 %v453
          %v678 = vunpack.c.l.b16 %v454
          %v679 = vunpack.c.l.b16 %v455
          %v680 = vunpack.c.l.b16 %v456
          %v681 = vunpack.c.l.b16 %v457
          %v682 = vunpack.c.l.b16 %v458
          %v683 = vunpack.c.l.b16 %v459
          %v684 = vunpack.c.l.b16 %v460
          %v685 = vunpack.c.l.b16 %v461
          %v686 = vunpack.c.l.b16 %v462
          %v687 = vunpack.c.l.b16 %v463
          %v688 = vunpack.c.l.b16 %v464
          %v689 = vunpack.c.l.b16 %v465
          %v690 = vunpack.c.l.b16 %v466
          %v691 = vunpack.c.l.b16 %v467
          %v692 = vunpack.c.l.b16 %v468
          %v693 = vpack.c.b16 %v678, %v677
          %v694 = vpack.c.b16 %v680, %v679
          %v695 = vpack.c.b16 %v682, %v681
          %v696 = vpack.c.b16 %v684, %v683
          %v697 = vpack.c.b16 %v686, %v685
          %v698 = vpack.c.b16 %v688, %v687
          %v699 = vpack.c.b16 %v690, %v689
          %v700 = vpack.c.b16 %v692, %v691
          %709 = vmatpush.bf16.msra.mxu0 %v700
          %710 = vmatpush.bf16.msra.mxu0 %v699
          %711 = vmatpush.bf16.msra.mxu0 %v698
          %712 = vmatpush.bf16.msra.mxu0 %v697
          %713 = vmatpush.bf16.msra.mxu0 %v696
          %714 = vmatpush.bf16.msra.mxu0 %v695
          %715 = vmatpush.bf16.msra.mxu0 %v694
          %716 = vmatpush.bf16.msra.mxu0 %v693
          %717 = vmatmul.bf16.gmra.mxu0 %v597
          %v718 = vpop.f32.mrf.mxu0
          %v719 = vadd.f32 0.0, %v718
          %v720 = vpop.f32.mrf.mxu0
          %v721 = vadd.f32 0.0, %v720
          %722 = vmatmul.bf16.gmra.mxu0 %v598
          %v723 = vpop.f32.mrf.mxu0
          %v724 = vadd.f32 0.0, %v723
          %v725 = vpop.f32.mrf.mxu0
          %v726 = vadd.f32 0.0, %v725
          %727 = vmatmul.bf16.gmra.mxu0 %v599
          %v728 = vpop.f32.mrf.mxu0
          %v729 = vadd.f32 0.0, %v728
          %v730 = vpop.f32.mrf.mxu0
          %v731 = vadd.f32 0.0, %v730
          %732 = vmatmul.bf16.gmra.mxu0 %v600
          %v733 = vpop.f32.mrf.mxu0
          %v734 = vadd.f32 0.0, %v733
          %v735 = vpop.f32.mrf.mxu0
          %v736 = vadd.f32 0.0, %v735
          %737 = vmatmul.bf16.gmra.mxu0 %v601
          %v738 = vpop.f32.mrf.mxu0
          %v739 = vadd.f32 0.0, %v738
          %v740 = vpop.f32.mrf.mxu0
          %v741 = vadd.f32 0.0, %v740
          %742 = vmatmul.bf16.gmra.mxu0 %v602
          %v743 = vpop.f32.mrf.mxu0
          %v744 = vadd.f32 0.0, %v743
          %v745 = vpop.f32.mrf.mxu0
          %v746 = vadd.f32 0.0, %v745
          %747 = vmatmul.bf16.gmra.mxu0 %v603
          %v748 = vpop.f32.mrf.mxu0
          %v749 = vadd.f32 0.0, %v748
          %v750 = vpop.f32.mrf.mxu0
          %v751 = vadd.f32 0.0, %v750
          %752 = vmatmul.bf16.gmra.mxu0 %v604
          %v753 = vpop.f32.mrf.mxu0
          %v754 = vadd.f32 0.0, %v753
          %v755 = vpop.f32.mrf.mxu0
          %v756 = vadd.f32 0.0, %v755
          %757 = vmatmul.bf16.gmra.mxu0 %v605
          %v758 = vpop.f32.mrf.mxu0
          %v759 = vadd.f32 0.0, %v758
          %v760 = vpop.f32.mrf.mxu0
          %v761 = vadd.f32 0.0, %v760
          %762 = vmatmul.bf16.gmra.mxu0 %v606
          %v763 = vpop.f32.mrf.mxu0
          %v764 = vadd.f32 0.0, %v763
          %v765 = vpop.f32.mrf.mxu0
          %v766 = vadd.f32 0.0, %v765
          %767 = vmatmul.bf16.gmra.mxu0 %v607
          %v768 = vpop.f32.mrf.mxu0
          %v769 = vadd.f32 0.0, %v768
          %v770 = vpop.f32.mrf.mxu0
          %v771 = vadd.f32 0.0, %v770
          %772 = vmatmul.bf16.gmra.mxu0 %v608
          %v773 = vpop.f32.mrf.mxu0
          %v774 = vadd.f32 0.0, %v773
          %v775 = vpop.f32.mrf.mxu0
          %v776 = vadd.f32 0.0, %v775
          %777 = vmatmul.bf16.gmra.mxu0 %v609
          %v778 = vpop.f32.mrf.mxu0
          %v779 = vadd.f32 0.0, %v778
          %v780 = vpop.f32.mrf.mxu0
          %v781 = vadd.f32 0.0, %v780
          %782 = vmatmul.bf16.gmra.mxu0 %v610
          %v783 = vpop.f32.mrf.mxu0
          %v784 = vadd.f32 0.0, %v783
          %v785 = vpop.f32.mrf.mxu0
          %v786 = vadd.f32 0.0, %v785
          %787 = vmatmul.bf16.gmra.mxu0 %v611
          %v788 = vpop.f32.mrf.mxu0
          %v789 = vadd.f32 0.0, %v788
          %v790 = vpop.f32.mrf.mxu0
          %v791 = vadd.f32 0.0, %v790
          %792 = vmatmul.bf16.gmra.mxu0 %v612
          %v793 = vpop.f32.mrf.mxu0
          %v794 = vadd.f32 0.0, %v793
          %v795 = vpop.f32.mrf.mxu0
          %v796 = vadd.f32 0.0, %v795
          %797 = vmatmul.bf16.gmra.mxu0 %v613
          %v798 = vpop.f32.mrf.mxu0
          %v799 = vadd.f32 0.0, %v798
          %v800 = vpop.f32.mrf.mxu0
          %v801 = vadd.f32 0.0, %v800
          %802 = vmatmul.bf16.gmra.mxu0 %v614
          %v803 = vpop.f32.mrf.mxu0
          %v804 = vadd.f32 0.0, %v803
          %v805 = vpop.f32.mrf.mxu0
          %v806 = vadd.f32 0.0, %v805
          %807 = vmatmul.bf16.gmra.mxu0 %v615
          %v808 = vpop.f32.mrf.mxu0
          %v809 = vadd.f32 0.0, %v808
          %v810 = vpop.f32.mrf.mxu0
          %v811 = vadd.f32 0.0, %v810
          %812 = vmatmul.bf16.gmra.mxu0 %v616
          %v813 = vpop.f32.mrf.mxu0
          %v814 = vadd.f32 0.0, %v813
          %v815 = vpop.f32.mrf.mxu0
          %v816 = vadd.f32 0.0, %v815
          %817 = vmatmul.bf16.gmra.mxu0 %v617
          %v818 = vpop.f32.mrf.mxu0
          %v819 = vadd.f32 0.0, %v818
          %v820 = vpop.f32.mrf.mxu0
          %v821 = vadd.f32 0.0, %v820
          %822 = vmatmul.bf16.gmra.mxu0 %v618
          %v823 = vpop.f32.mrf.mxu0
          %v824 = vadd.f32 0.0, %v823
          %v825 = vpop.f32.mrf.mxu0
          %v826 = vadd.f32 0.0, %v825
          %827 = vmatmul.bf16.gmra.mxu0 %v619
          %v828 = vpop.f32.mrf.mxu0
          %v829 = vadd.f32 0.0, %v828
          %v830 = vpop.f32.mrf.mxu0
          %v831 = vadd.f32 0.0, %v830
          %832 = vmatmul.bf16.gmra.mxu0 %v620
          %v833 = vpop.f32.mrf.mxu0
          %v834 = vadd.f32 0.0, %v833
          %v835 = vpop.f32.mrf.mxu0
          %v836 = vadd.f32 0.0, %v835
          %837 = vmatmul.bf16.gmra.mxu0 %v621
          %v838 = vpop.f32.mrf.mxu0
          %v839 = vadd.f32 0.0, %v838
          %v840 = vpop.f32.mrf.mxu0
          %v841 = vadd.f32 0.0, %v840
          %842 = vmatmul.bf16.gmra.mxu0 %v622
          %v843 = vpop.f32.mrf.mxu0
          %v844 = vadd.f32 0.0, %v843
          %v845 = vpop.f32.mrf.mxu0
          %v846 = vadd.f32 0.0, %v845
          %847 = vmatmul.bf16.gmra.mxu0 %v623
          %v848 = vpop.f32.mrf.mxu0
          %v849 = vadd.f32 0.0, %v848
          %v850 = vpop.f32.mrf.mxu0
          %v851 = vadd.f32 0.0, %v850
          %852 = vmatmul.bf16.gmra.mxu0 %v624
          %v853 = vpop.f32.mrf.mxu0
          %v854 = vadd.f32 0.0, %v853
          %v855 = vpop.f32.mrf.mxu0
          %v856 = vadd.f32 0.0, %v855
          %857 = vmatmul.bf16.gmra.mxu0 %v625
          %v858 = vpop.f32.mrf.mxu0
          %v859 = vadd.f32 0.0, %v858
          %v860 = vpop.f32.mrf.mxu0
          %v861 = vadd.f32 0.0, %v860
          %862 = vmatmul.bf16.gmra.mxu0 %v626
          %v863 = vpop.f32.mrf.mxu0
          %v864 = vadd.f32 0.0, %v863
          %v865 = vpop.f32.mrf.mxu0
          %v866 = vadd.f32 0.0, %v865
          %867 = vmatmul.bf16.gmra.mxu0 %v627
          %v868 = vpop.f32.mrf.mxu0
          %v869 = vadd.f32 0.0, %v868
          %v870 = vpop.f32.mrf.mxu0
          %v871 = vadd.f32 0.0, %v870
          %872 = vmatmul.bf16.gmra.mxu0 %v628
          %v873 = vpop.f32.mrf.mxu0
          %v874 = vadd.f32 0.0, %v873
          %v875 = vpop.f32.mrf.mxu0
          %v876 = vadd.f32 0.0, %v875
          %877 = vdwg.mxu0
          %v878 = vmax.f32 %v719, 0.0
          %v879 = vmax.f32 %v721, 0.0
          %v880 = vmax.f32 %v724, 0.0
          %v881 = vmax.f32 %v726, 0.0
          %v882 = vmax.f32 %v729, 0.0
          %v883 = vmax.f32 %v731, 0.0
          %v884 = vmax.f32 %v734, 0.0
          %v885 = vmax.f32 %v736, 0.0
          %v886 = vmax.f32 %v739, 0.0
          %v887 = vmax.f32 %v741, 0.0
          %v888 = vmax.f32 %v744, 0.0
          %v889 = vmax.f32 %v746, 0.0
          %v890 = vmax.f32 %v749, 0.0
          %v891 = vmax.f32 %v751, 0.0
          %v892 = vmax.f32 %v754, 0.0
          %v893 = vmax.f32 %v756, 0.0
          %v894 = vmax.f32 %v759, 0.0
          %v895 = vmax.f32 %v761, 0.0
          %v896 = vmax.f32 %v764, 0.0
          %v897 = vmax.f32 %v766, 0.0
          %v898 = vmax.f32 %v769, 0.0
          %v899 = vmax.f32 %v771, 0.0
          %v900 = vmax.f32 %v774, 0.0
          %v901 = vmax.f32 %v776, 0.0
          %v902 = vmax.f32 %v779, 0.0
          %v903 = vmax.f32 %v781, 0.0
          %v904 = vmax.f32 %v784, 0.0
          %v905 = vmax.f32 %v786, 0.0
          %v906 = vmax.f32 %v789, 0.0
          %v907 = vmax.f32 %v791, 0.0
          %v908 = vmax.f32 %v794, 0.0
          %v909 = vmax.f32 %v796, 0.0
          %v910 = vmax.f32 %v799, 0.0
          %v911 = vmax.f32 %v801, 0.0
          %v912 = vmax.f32 %v804, 0.0
          %v913 = vmax.f32 %v806, 0.0
          %v914 = vmax.f32 %v809, 0.0
          %v915 = vmax.f32 %v811, 0.0
          %v916 = vmax.f32 %v814, 0.0
          %v917 = vmax.f32 %v816, 0.0
          %v918 = vmax.f32 %v819, 0.0
          %v919 = vmax.f32 %v821, 0.0
          %v920 = vmax.f32 %v824, 0.0
          %v921 = vmax.f32 %v826, 0.0
          %v922 = vmax.f32 %v829, 0.0
          %v923 = vmax.f32 %v831, 0.0
          %v924 = vmax.f32 %v834, 0.0
          %v925 = vmax.f32 %v836, 0.0
          %v926 = vmax.f32 %v839, 0.0
          %v927 = vmax.f32 %v841, 0.0
          %v928 = vmax.f32 %v844, 0.0
          %v929 = vmax.f32 %v846, 0.0
          %v930 = vmax.f32 %v849, 0.0
          %v931 = vmax.f32 %v851, 0.0
          %v932 = vmax.f32 %v854, 0.0
          %v933 = vmax.f32 %v856, 0.0
          %v934 = vmax.f32 %v859, 0.0
          %v935 = vmax.f32 %v861, 0.0
          %v936 = vmax.f32 %v864, 0.0
          %v937 = vmax.f32 %v866, 0.0
          %v938 = vmax.f32 %v869, 0.0
          %v939 = vmax.f32 %v871, 0.0
          %v940 = vmax.f32 %v874, 0.0
          %v941 = vmax.f32 %v876, 0.0
          %942 = vst [vmem:[#allocation4] sm:$0xff] %v878
          %943 = vst [vmem:[#allocation4 + $0x8] sm:$0xff] %v879
          %944 = vst [vmem:[#allocation4 + $0x10] sm:$0xff] %v880
          %945 = vst [vmem:[#allocation4 + $0x18] sm:$0xff] %v881
          %946 = vst [vmem:[#allocation4 + $0x20] sm:$0xff] %v882
          %947 = vst [vmem:[#allocation4 + $0x28] sm:$0xff] %v883
          %948 = vst [vmem:[#allocation4 + $0x30] sm:$0xff] %v884
          %949 = vst [vmem:[#allocation4 + $0x38] sm:$0xff] %v885
          %950 = vst [vmem:[#allocation4 + $0x40] sm:$0xff] %v886
          %951 = vst [vmem:[#allocation4 + $0x48] sm:$0xff] %v887
          %952 = vst [vmem:[#allocation4 + $0x50] sm:$0xff] %v888
          %953 = vst [vmem:[#allocation4 + $0x58] sm:$0xff] %v889
          %954 = vst [vmem:[#allocation4 + $0x60] sm:$0xff] %v890
          %955 = vst [vmem:[#allocation4 + $0x68] sm:$0xff] %v891
          %956 = vst [vmem:[#allocation4 + $0x70] sm:$0xff] %v892
          %957 = vst [vmem:[#allocation4 + $0x78] sm:$0xff] %v893
          %958 = vst [vmem:[#allocation4 + $0x80] sm:$0xff] %v894
          %959 = vst [vmem:[#allocation4 + $0x88] sm:$0xff] %v895
          %960 = vst [vmem:[#allocation4 + $0x90] sm:$0xff] %v896
          %961 = vst [vmem:[#allocation4 + $0x98] sm:$0xff] %v897
          %962 = vst [vmem:[#allocation4 + $0xa0] sm:$0xff] %v898
          %963 = vst [vmem:[#allocation4 + $0xa8] sm:$0xff] %v899
          %964 = vst [vmem:[#allocation4 + $0xb0] sm:$0xff] %v900
          %965 = vst [vmem:[#allocation4 + $0xb8] sm:$0xff] %v901
          %966 = vst [vmem:[#allocation4 + $0xc0] sm:$0xff] %v902
          %967 = vst [vmem:[#allocation4 + $0xc8] sm:$0xff] %v903
          %968 = vst [vmem:[#allocation4 + $0xd0] sm:$0xff] %v904
          %969 = vst [vmem:[#allocation4 + $0xd8] sm:$0xff] %v905
          %970 = vst [vmem:[#allocation4 + $0xe0] sm:$0xff] %v906
          %971 = vst [vmem:[#allocation4 + $0xe8] sm:$0xff] %v907
          %972 = vst [vmem:[#allocation4 + $0xf0] sm:$0xff] %v908
          %973 = vst [vmem:[#allocation4 + $0xf8] sm:$0xff] %v909
          %974 = vst [vmem:[#allocation4 + $0x100] sm:$0xff] %v910
          %975 = vst [vmem:[#allocation4 + $0x108] sm:$0xff] %v911
          %976 = vst [vmem:[#allocation4 + $0x110] sm:$0xff] %v912
          %977 = vst [vmem:[#allocation4 + $0x118] sm:$0xff] %v913
          %978 = vst [vmem:[#allocation4 + $0x120] sm:$0xff] %v914
          %979 = vst [vmem:[#allocation4 + $0x128] sm:$0xff] %v915
          %980 = vst [vmem:[#allocation4 + $0x130] sm:$0xff] %v916
          %981 = vst [vmem:[#allocation4 + $0x138] sm:$0xff] %v917
          %982 = vst [vmem:[#allocation4 + $0x140] sm:$0xff] %v918
          %983 = vst [vmem:[#allocation4 + $0x148] sm:$0xff] %v919
          %984 = vst [vmem:[#allocation4 + $0x150] sm:$0xff] %v920
          %985 = vst [vmem:[#allocation4 + $0x158] sm:$0xff] %v921
          %986 = vst [vmem:[#allocation4 + $0x160] sm:$0xff] %v922
          %987 = vst [vmem:[#allocation4 + $0x168] sm:$0xff] %v923
          %988 = vst [vmem:[#allocation4 + $0x170] sm:$0xff] %v924
          %989 = vst [vmem:[#allocation4 + $0x178] sm:$0xff] %v925
          %990 = vst [vmem:[#allocation4 + $0x180] sm:$0xff] %v926
          %991 = vst [vmem:[#allocation4 + $0x188] sm:$0xff] %v927
          %992 = vst [vmem:[#allocation4 + $0x190] sm:$0xff] %v928
          %993 = vst [vmem:[#allocation4 + $0x198] sm:$0xff] %v929
          %994 = vst [vmem:[#allocation4 + $0x1a0] sm:$0xff] %v930
          %995 = vst [vmem:[#allocation4 + $0x1a8] sm:$0xff] %v931
          %996 = vst [vmem:[#allocation4 + $0x1b0] sm:$0xff] %v932
          %997 = vst [vmem:[#allocation4 + $0x1b8] sm:$0xff] %v933
          %998 = vst [vmem:[#allocation4 + $0x1c0] sm:$0xff] %v934
          %999 = vst [vmem:[#allocation4 + $0x1c8] sm:$0xff] %v935
          %1000 = vst [vmem:[#allocation4 + $0x1d0] sm:$0xff] %v936
          %1001 = vst [vmem:[#allocation4 + $0x1d8] sm:$0xff] %v937
          %1002 = vst [vmem:[#allocation4 + $0x1e0] sm:$0xff] %v938
          %1003 = vst [vmem:[#allocation4 + $0x1e8] sm:$0xff] %v939
          %1004 = vst [vmem:[#allocation4 + $0x1f0] sm:$0xff] %v940
          %1005 = vst [vmem:[#allocation4 + $0x1f8] sm:$0xff] %v941
          %v1006 = vpack.c.bf16 %v878, %v878
          %v1007 = vpack.c.bf16 %v879, %v879
          %v1008 = vpack.c.bf16 %v880, %v880
          %v1009 = vpack.c.bf16 %v881, %v881
          %v1010 = vpack.c.bf16 %v882, %v882
          %v1011 = vpack.c.bf16 %v883, %v883
          %v1012 = vpack.c.bf16 %v884, %v884
          %v1013 = vpack.c.bf16 %v885, %v885
          %v1014 = vpack.c.bf16 %v886, %v886
          %v1015 = vpack.c.bf16 %v887, %v887
          %v1016 = vpack.c.bf16 %v888, %v888
          %v1017 = vpack.c.bf16 %v889, %v889
          %v1018 = vpack.c.bf16 %v890, %v890
          %v1019 = vpack.c.bf16 %v891, %v891
          %v1020 = vpack.c.bf16 %v892, %v892
          %v1021 = vpack.c.bf16 %v893, %v893
          %v1022 = vpack.c.bf16 %v894, %v894
          %v1023 = vpack.c.bf16 %v895, %v895
          %v1024 = vpack.c.bf16 %v896, %v896
          %v1025 = vpack.c.bf16 %v897, %v897
          %v1026 = vpack.c.bf16 %v898, %v898
          %v1027 = vpack.c.bf16 %v899, %v899
          %v1028 = vpack.c.bf16 %v900, %v900
          %v1029 = vpack.c.bf16 %v901, %v901
          %v1030 = vpack.c.bf16 %v902, %v902
          %v1031 = vpack.c.bf16 %v903, %v903
          %v1032 = vpack.c.bf16 %v904, %v904
          %v1033 = vpack.c.bf16 %v905, %v905
          %v1034 = vpack.c.bf16 %v906, %v906
          %v1035 = vpack.c.bf16 %v907, %v907
          %v1036 = vpack.c.bf16 %v908, %v908
          %v1037 = vpack.c.bf16 %v909, %v909
          %v1038 = vpack.c.bf16 %v910, %v910
          %v1039 = vpack.c.bf16 %v911, %v911
          %v1040 = vpack.c.bf16 %v912, %v912
          %v1041 = vpack.c.bf16 %v913, %v913
          %v1042 = vpack.c.bf16 %v914, %v914
          %v1043 = vpack.c.bf16 %v915, %v915
          %v1044 = vpack.c.bf16 %v916, %v916
          %v1045 = vpack.c.bf16 %v917, %v917
          %v1046 = vpack.c.bf16 %v918, %v918
          %v1047 = vpack.c.bf16 %v919, %v919
          %v1048 = vpack.c.bf16 %v920, %v920
          %v1049 = vpack.c.bf16 %v921, %v921
          %v1050 = vpack.c.bf16 %v922, %v922
          %v1051 = vpack.c.bf16 %v923, %v923
          %v1052 = vpack.c.bf16 %v924, %v924
          %v1053 = vpack.c.bf16 %v925, %v925
          %v1054 = vpack.c.bf16 %v926, %v926
          %v1055 = vpack.c.bf16 %v927, %v927
          %v1056 = vpack.c.bf16 %v928, %v928
          %v1057 = vpack.c.bf16 %v929, %v929
          %v1058 = vpack.c.bf16 %v930, %v930
          %v1059 = vpack.c.bf16 %v931, %v931
          %v1060 = vpack.c.bf16 %v932, %v932
          %v1061 = vpack.c.bf16 %v933, %v933
          %v1062 = vpack.c.bf16 %v934, %v934
          %v1063 = vpack.c.bf16 %v935, %v935
          %v1064 = vpack.c.bf16 %v936, %v936
          %v1065 = vpack.c.bf16 %v937, %v937
          %v1066 = vpack.c.bf16 %v938, %v938
          %v1067 = vpack.c.bf16 %v939, %v939
          %v1068 = vpack.c.bf16 %v940, %v940
          %v1069 = vpack.c.bf16 %v941, %v941
          %vm1070 = vsmask.f32 256
          %vm1071 = vsmask.f32 4368
          %vm1072 = vmor %vm1070, %vm1071
          %v1074 = vshrl.u32 %v1006, 16
          %v1076 = vrot.slane %v1074, 7
          %v1077 = vshll.u32 %v1006, 16
          %v1079 = vor.u32 %v1076, %v1077
          %v1080 = vrot.slane %v1076, 4
          %v1082 = vshrl.u32 %v1007, 16
          %v1084 = vrot.slane %v1082, 7
          %v1085 = vshll.u32 %v1007, 16
          %v1087 = vor.u32 %v1084, %v1085
          %v1088 = vsel %vm1072, %v1080, %v1087
          %v1089 = vrot.slane %v1084, 4
          %v1091 = vshrl.u32 %v1008, 16
          %v1093 = vrot.slane %v1091, 7
          %v1094 = vshll.u32 %v1008, 16
          %v1096 = vor.u32 %v1093, %v1094
          %v1097 = vrot.slane %v1093, 4
          %v1099 = vshrl.u32 %v1009, 16
          %v1101 = vrot.slane %v1099, 7
          %v1102 = vshll.u32 %v1009, 16
          %v1104 = vor.u32 %v1101, %v1102
          %v1105 = vsel %vm1072, %v1097, %v1104
          %v1106 = vrot.slane %v1101, 4
          %v1108 = vshrl.u32 %v1010, 16
          %v1110 = vrot.slane %v1108, 7
          %v1111 = vshll.u32 %v1010, 16
          %v1113 = vor.u32 %v1110, %v1111
          %v1114 = vrot.slane %v1110, 4
          %v1116 = vshrl.u32 %v1011, 16
          %v1118 = vrot.slane %v1116, 7
          %v1119 = vshll.u32 %v1011, 16
          %v1121 = vor.u32 %v1118, %v1119
          %v1122 = vsel %vm1072, %v1114, %v1121
          %v1123 = vrot.slane %v1118, 4
          %v1125 = vshrl.u32 %v1012, 16
          %v1127 = vrot.slane %v1125, 7
          %v1128 = vshll.u32 %v1012, 16
          %v1130 = vor.u32 %v1127, %v1128
          %v1131 = vrot.slane %v1127, 4
          %v1133 = vshrl.u32 %v1013, 16
          %v1135 = vrot.slane %v1133, 7
          %v1136 = vshll.u32 %v1013, 16
          %v1138 = vor.u32 %v1135, %v1136
          %v1139 = vsel %vm1072, %v1131, %v1138
          %v1140 = vrot.slane %v1135, 4
          %v1142 = vshrl.u32 %v1014, 16
          %v1144 = vrot.slane %v1142, 7
          %v1145 = vshll.u32 %v1014, 16
          %v1147 = vor.u32 %v1144, %v1145
          %v1148 = vrot.slane %v1144, 4
          %v1150 = vshrl.u32 %v1015, 16
          %v1152 = vrot.slane %v1150, 7
          %v1153 = vshll.u32 %v1015, 16
          %v1155 = vor.u32 %v1152, %v1153
          %v1156 = vsel %vm1072, %v1148, %v1155
          %v1157 = vrot.slane %v1152, 4
          %v1159 = vshrl.u32 %v1016, 16
          %v1161 = vrot.slane %v1159, 7
          %v1162 = vshll.u32 %v1016, 16
          %v1164 = vor.u32 %v1161, %v1162
          %v1165 = vrot.slane %v1161, 4
          %v1167 = vshrl.u32 %v1017, 16
          %v1169 = vrot.slane %v1167, 7
          %v1170 = vshll.u32 %v1017, 16
          %v1172 = vor.u32 %v1169, %v1170
          %v1173 = vsel %vm1072, %v1165, %v1172
          %v1174 = vrot.slane %v1169, 4
          %v1176 = vshrl.u32 %v1018, 16
          %v1178 = vrot.slane %v1176, 7
          %v1179 = vshll.u32 %v1018, 16
          %v1181 = vor.u32 %v1178, %v1179
          %v1182 = vrot.slane %v1178, 4
          %v1184 = vshrl.u32 %v1019, 16
          %v1186 = vrot.slane %v1184, 7
          %v1187 = vshll.u32 %v1019, 16
          %v1189 = vor.u32 %v1186, %v1187
          %v1190 = vsel %vm1072, %v1182, %v1189
          %v1191 = vrot.slane %v1186, 4
          %v1193 = vshrl.u32 %v1020, 16
          %v1195 = vrot.slane %v1193, 7
          %v1196 = vshll.u32 %v1020, 16
          %v1198 = vor.u32 %v1195, %v1196
          %v1199 = vrot.slane %v1195, 4
          %v1201 = vshrl.u32 %v1021, 16
          %v1203 = vrot.slane %v1201, 7
          %v1204 = vshll.u32 %v1021, 16
          %v1206 = vor.u32 %v1203, %v1204
          %v1207 = vsel %vm1072, %v1199, %v1206
          %v1208 = vrot.slane %v1203, 4
          %v1210 = vshrl.u32 %v1022, 16
          %v1212 = vrot.slane %v1210, 7
          %v1213 = vshll.u32 %v1022, 16
          %v1215 = vor.u32 %v1212, %v1213
          %v1216 = vrot.slane %v1212, 4
          %v1218 = vshrl.u32 %v1023, 16
          %v1220 = vrot.slane %v1218, 7
          %v1221 = vshll.u32 %v1023, 16
          %v1223 = vor.u32 %v1220, %v1221
          %v1224 = vsel %vm1072, %v1216, %v1223
          %v1225 = vrot.slane %v1220, 4
          %v1227 = vshrl.u32 %v1024, 16
          %v1229 = vrot.slane %v1227, 7
          %v1230 = vshll.u32 %v1024, 16
          %v1232 = vor.u32 %v1229, %v1230
          %v1233 = vrot.slane %v1229, 4
          %v1235 = vshrl.u32 %v1025, 16
          %v1237 = vrot.slane %v1235, 7
          %v1238 = vshll.u32 %v1025, 16
          %v1240 = vor.u32 %v1237, %v1238
          %v1241 = vsel %vm1072, %v1233, %v1240
          %v1242 = vrot.slane %v1237, 4
          %v1244 = vshrl.u32 %v1026, 16
          %v1246 = vrot.slane %v1244, 7
          %v1247 = vshll.u32 %v1026, 16
          %v1249 = vor.u32 %v1246, %v1247
          %v1250 = vrot.slane %v1246, 4
          %v1252 = vshrl.u32 %v1027, 16
          %v1254 = vrot.slane %v1252, 7
          %v1255 = vshll.u32 %v1027, 16
          %v1257 = vor.u32 %v1254, %v1255
          %v1258 = vsel %vm1072, %v1250, %v1257
          %v1259 = vrot.slane %v1254, 4
          %v1261 = vshrl.u32 %v1028, 16
          %v1263 = vrot.slane %v1261, 7
          %v1264 = vshll.u32 %v1028, 16
          %v1266 = vor.u32 %v1263, %v1264
          %v1267 = vrot.slane %v1263, 4
          %v1269 = vshrl.u32 %v1029, 16
          %v1271 = vrot.slane %v1269, 7
          %v1272 = vshll.u32 %v1029, 16
          %v1274 = vor.u32 %v1271, %v1272
          %v1275 = vsel %vm1072, %v1267, %v1274
          %v1276 = vrot.slane %v1271, 4
          %v1278 = vshrl.u32 %v1030, 16
          %v1280 = vrot.slane %v1278, 7
          %v1281 = vshll.u32 %v1030, 16
          %v1283 = vor.u32 %v1280, %v1281
          %v1284 = vrot.slane %v1280, 4
          %v1286 = vshrl.u32 %v1031, 16
          %v1288 = vrot.slane %v1286, 7
          %v1289 = vshll.u32 %v1031, 16
          %v1291 = vor.u32 %v1288, %v1289
          %v1292 = vsel %vm1072, %v1284, %v1291
          %v1293 = vrot.slane %v1288, 4
          %v1295 = vshrl.u32 %v1032, 16
          %v1297 = vrot.slane %v1295, 7
          %v1298 = vshll.u32 %v1032, 16
          %v1300 = vor.u32 %v1297, %v1298
          %v1301 = vrot.slane %v1297, 4
          %v1303 = vshrl.u32 %v1033, 16
          %v1305 = vrot.slane %v1303, 7
          %v1306 = vshll.u32 %v1033, 16
          %v1308 = vor.u32 %v1305, %v1306
          %v1309 = vsel %vm1072, %v1301, %v1308
          %v1310 = vrot.slane %v1305, 4
          %v1312 = vshrl.u32 %v1034, 16
          %v1314 = vrot.slane %v1312, 7
          %v1315 = vshll.u32 %v1034, 16
          %v1317 = vor.u32 %v1314, %v1315
          %v1318 = vrot.slane %v1314, 4
          %v1320 = vshrl.u32 %v1035, 16
          %v1322 = vrot.slane %v1320, 7
          %v1323 = vshll.u32 %v1035, 16
          %v1325 = vor.u32 %v1322, %v1323
          %v1326 = vsel %vm1072, %v1318, %v1325
          %v1327 = vrot.slane %v1322, 4
          %v1329 = vshrl.u32 %v1036, 16
          %v1331 = vrot.slane %v1329, 7
          %v1332 = vshll.u32 %v1036, 16
          %v1334 = vor.u32 %v1331, %v1332
          %v1335 = vrot.slane %v1331, 4
          %v1337 = vshrl.u32 %v1037, 16
          %v1339 = vrot.slane %v1337, 7
          %v1340 = vshll.u32 %v1037, 16
          %v1342 = vor.u32 %v1339, %v1340
          %v1343 = vsel %vm1072, %v1335, %v1342
          %v1344 = vrot.slane %v1339, 4
          %v1346 = vshrl.u32 %v1038, 16
          %v1348 = vrot.slane %v1346, 7
          %v1349 = vshll.u32 %v1038, 16
          %v1351 = vor.u32 %v1348, %v1349
          %v1352 = vrot.slane %v1348, 4
          %v1354 = vshrl.u32 %v1039, 16
          %v1356 = vrot.slane %v1354, 7
          %v1357 = vshll.u32 %v1039, 16
          %v1359 = vor.u32 %v1356, %v1357
          %v1360 = vsel %vm1072, %v1352, %v1359
          %v1361 = vrot.slane %v1356, 4
          %v1363 = vshrl.u32 %v1040, 16
          %v1365 = vrot.slane %v1363, 7
          %v1366 = vshll.u32 %v1040, 16
          %v1368 = vor.u32 %v1365, %v1366
          %v1369 = vrot.slane %v1365, 4
          %v1371 = vshrl.u32 %v1041, 16
          %v1373 = vrot.slane %v1371, 7
          %v1374 = vshll.u32 %v1041, 16
          %v1376 = vor.u32 %v1373, %v1374
          %v1377 = vsel %vm1072, %v1369, %v1376
          %v1378 = vrot.slane %v1373, 4
          %v1380 = vshrl.u32 %v1042, 16
          %v1382 = vrot.slane %v1380, 7
          %v1383 = vshll.u32 %v1042, 16
          %v1385 = vor.u32 %v1382, %v1383
          %v1386 = vrot.slane %v1382, 4
          %v1388 = vshrl.u32 %v1043, 16
          %v1390 = vrot.slane %v1388, 7
          %v1391 = vshll.u32 %v1043, 16
          %v1393 = vor.u32 %v1390, %v1391
          %v1394 = vsel %vm1072, %v1386, %v1393
          %v1395 = vrot.slane %v1390, 4
          %v1397 = vshrl.u32 %v1044, 16
          %v1399 = vrot.slane %v1397, 7
          %v1400 = vshll.u32 %v1044, 16
          %v1402 = vor.u32 %v1399, %v1400
          %v1403 = vrot.slane %v1399, 4
          %v1405 = vshrl.u32 %v1045, 16
          %v1407 = vrot.slane %v1405, 7
          %v1408 = vshll.u32 %v1045, 16
          %v1410 = vor.u32 %v1407, %v1408
          %v1411 = vsel %vm1072, %v1403, %v1410
          %v1412 = vrot.slane %v1407, 4
          %v1414 = vshrl.u32 %v1046, 16
          %v1416 = vrot.slane %v1414, 7
          %v1417 = vshll.u32 %v1046, 16
          %v1419 = vor.u32 %v1416, %v1417
          %v1420 = vrot.slane %v1416, 4
          %v1422 = vshrl.u32 %v1047, 16
          %v1424 = vrot.slane %v1422, 7
          %v1425 = vshll.u32 %v1047, 16
          %v1427 = vor.u32 %v1424, %v1425
          %v1428 = vsel %vm1072, %v1420, %v1427
          %v1429 = vrot.slane %v1424, 4
          %v1431 = vshrl.u32 %v1048, 16
          %v1433 = vrot.slane %v1431, 7
          %v1434 = vshll.u32 %v1048, 16
          %v1436 = vor.u32 %v1433, %v1434
          %v1437 = vrot.slane %v1433, 4
          %v1439 = vshrl.u32 %v1049, 16
          %v1441 = vrot.slane %v1439, 7
          %v1442 = vshll.u32 %v1049, 16
          %v1444 = vor.u32 %v1441, %v1442
          %v1445 = vsel %vm1072, %v1437, %v1444
          %v1446 = vrot.slane %v1441, 4
          %v1448 = vshrl.u32 %v1050, 16
          %v1450 = vrot.slane %v1448, 7
          %v1451 = vshll.u32 %v1050, 16
          %v1453 = vor.u32 %v1450, %v1451
          %v1454 = vrot.slane %v1450, 4
          %v1456 = vshrl.u32 %v1051, 16
          %v1458 = vrot.slane %v1456, 7
          %v1459 = vshll.u32 %v1051, 16
          %v1461 = vor.u32 %v1458, %v1459
          %v1462 = vsel %vm1072, %v1454, %v1461
          %v1463 = vrot.slane %v1458, 4
          %v1465 = vshrl.u32 %v1052, 16
          %v1467 = vrot.slane %v1465, 7
          %v1468 = vshll.u32 %v1052, 16
          %v1470 = vor.u32 %v1467, %v1468
          %v1471 = vrot.slane %v1467, 4
          %v1473 = vshrl.u32 %v1053, 16
          %v1475 = vrot.slane %v1473, 7
          %v1476 = vshll.u32 %v1053, 16
          %v1478 = vor.u32 %v1475, %v1476
          %v1479 = vsel %vm1072, %v1471, %v1478
          %v1480 = vrot.slane %v1475, 4
          %v1482 = vshrl.u32 %v1054, 16
          %v1484 = vrot.slane %v1482, 7
          %v1485 = vshll.u32 %v1054, 16
          %v1487 = vor.u32 %v1484, %v1485
          %v1488 = vrot.slane %v1484, 4
          %v1490 = vshrl.u32 %v1055, 16
          %v1492 = vrot.slane %v1490, 7
          %v1493 = vshll.u32 %v1055, 16
          %v1495 = vor.u32 %v1492, %v1493
          %v1496 = vsel %vm1072, %v1488, %v1495
          %v1497 = vrot.slane %v1492, 4
          %v1499 = vshrl.u32 %v1056, 16
          %v1501 = vrot.slane %v1499, 7
          %v1502 = vshll.u32 %v1056, 16
          %v1504 = vor.u32 %v1501, %v1502
          %v1505 = vrot.slane %v1501, 4
          %v1507 = vshrl.u32 %v1057, 16
          %v1509 = vrot.slane %v1507, 7
          %v1510 = vshll.u32 %v1057, 16
          %v1512 = vor.u32 %v1509, %v1510
          %v1513 = vsel %vm1072, %v1505, %v1512
          %v1514 = vrot.slane %v1509, 4
          %v1516 = vshrl.u32 %v1058, 16
          %v1518 = vrot.slane %v1516, 7
          %v1519 = vshll.u32 %v1058, 16
          %v1521 = vor.u32 %v1518, %v1519
          %v1522 = vrot.slane %v1518, 4
          %v1524 = vshrl.u32 %v1059, 16
          %v1526 = vrot.slane %v1524, 7
          %v1527 = vshll.u32 %v1059, 16
          %v1529 = vor.u32 %v1526, %v1527
          %v1530 = vsel %vm1072, %v1522, %v1529
          %v1531 = vrot.slane %v1526, 4
          %v1533 = vshrl.u32 %v1060, 16
          %v1535 = vrot.slane %v1533, 7
          %v1536 = vshll.u32 %v1060, 16
          %v1538 = vor.u32 %v1535, %v1536
          %v1539 = vrot.slane %v1535, 4
          %v1541 = vshrl.u32 %v1061, 16
          %v1543 = vrot.slane %v1541, 7
          %v1544 = vshll.u32 %v1061, 16
          %v1546 = vor.u32 %v1543, %v1544
          %v1547 = vsel %vm1072, %v1539, %v1546
          %v1548 = vrot.slane %v1543, 4
          %v1550 = vshrl.u32 %v1062, 16
          %v1552 = vrot.slane %v1550, 7
          %v1553 = vshll.u32 %v1062, 16
          %v1555 = vor.u32 %v1552, %v1553
          %v1556 = vrot.slane %v1552, 4
          %v1558 = vshrl.u32 %v1063, 16
          %v1560 = vrot.slane %v1558, 7
          %v1561 = vshll.u32 %v1063, 16
          %v1563 = vor.u32 %v1560, %v1561
          %v1564 = vsel %vm1072, %v1556, %v1563
          %v1565 = vrot.slane %v1560, 4
          %v1567 = vshrl.u32 %v1064, 16
          %v1569 = vrot.slane %v1567, 7
          %v1570 = vshll.u32 %v1064, 16
          %v1572 = vor.u32 %v1569, %v1570
          %v1573 = vrot.slane %v1569, 4
          %v1575 = vshrl.u32 %v1065, 16
          %v1577 = vrot.slane %v1575, 7
          %v1578 = vshll.u32 %v1065, 16
          %v1580 = vor.u32 %v1577, %v1578
          %v1581 = vsel %vm1072, %v1573, %v1580
          %v1582 = vrot.slane %v1577, 4
          %v1584 = vshrl.u32 %v1066, 16
          %v1586 = vrot.slane %v1584, 7
          %v1587 = vshll.u32 %v1066, 16
          %v1589 = vor.u32 %v1586, %v1587
          %v1590 = vrot.slane %v1586, 4
          %v1592 = vshrl.u32 %v1067, 16
          %v1594 = vrot.slane %v1592, 7
          %v1595 = vshll.u32 %v1067, 16
          %v1597 = vor.u32 %v1594, %v1595
          %v1598 = vsel %vm1072, %v1590, %v1597
          %v1599 = vrot.slane %v1594, 4
          %v1601 = vshrl.u32 %v1068, 16
          %v1603 = vrot.slane %v1601, 7
          %v1604 = vshll.u32 %v1068, 16
          %v1606 = vor.u32 %v1603, %v1604
          %v1607 = vrot.slane %v1603, 4
          %v1609 = vshrl.u32 %v1069, 16
          %v1611 = vrot.slane %v1609, 7
          %v1612 = vshll.u32 %v1069, 16
          %v1614 = vor.u32 %v1611, %v1612
          %v1615 = vsel %vm1072, %v1607, %v1614
          %v1616 = vrot.slane %v1611, 4
          %s1713 = scalar_lea.vmem [#allocation2], 12
          %vm1714 = vcmask 1043456
          %vm1715 = vsmask.f32 7938
          %vm1716 = vmand %vm1714, %vm1715
          %v1717 = vld [vmem:[%s1713] sm:$0xf]
          %v1718 = vsel %vm1716, %v1079, %v1717
          %1719 = vst [vmem:[%s1713] sm:$0xf] %v1718
          %1720 = vst [vmem:[%s1713 + $0x4] sm:$0xf] %v1088
          %vm1721 = vcmask 1040384
          %vm1722 = vmand %vm1721, %vm1070
          %v1723 = vld [vmem:[%s1713 + $0x8] sm:$0x1]
          %v1724 = vsel %vm1722, %v1089, %v1723
          %1725 = vst [vmem:[%s1713 + $0x8] sm:$0x1] %v1724
          %v1726 = vld [vmem:[%s1713 + $0xc] sm:$0xf]
          %v1727 = vsel %vm1716, %v1096, %v1726
          %1728 = vst [vmem:[%s1713 + $0xc] sm:$0xf] %v1727
          %1729 = vst [vmem:[%s1713 + $0x10] sm:$0xf] %v1105
          %v1730 = vld [vmem:[%s1713 + $0x14] sm:$0x1]
          %v1731 = vsel %vm1722, %v1106, %v1730
          %1732 = vst [vmem:[%s1713 + $0x14] sm:$0x1] %v1731
          %v1733 = vld [vmem:[%s1713 + $0x18] sm:$0xf]
          %v1734 = vsel %vm1716, %v1113, %v1733
          %1735 = vst [vmem:[%s1713 + $0x18] sm:$0xf] %v1734
          %1736 = vst [vmem:[%s1713 + $0x1c] sm:$0xf] %v1122
          %v1737 = vld [vmem:[%s1713 + $0x20] sm:$0x1]
          %v1738 = vsel %vm1722, %v1123, %v1737
          %1739 = vst [vmem:[%s1713 + $0x20] sm:$0x1] %v1738
          %v1740 = vld [vmem:[%s1713 + $0x24] sm:$0xf]
          %v1741 = vsel %vm1716, %v1130, %v1740
          %1742 = vst [vmem:[%s1713 + $0x24] sm:$0xf] %v1741
          %1743 = vst [vmem:[%s1713 + $0x28] sm:$0xf] %v1139
          %v1744 = vld [vmem:[%s1713 + $0x2c] sm:$0x1]
          %v1745 = vsel %vm1722, %v1140, %v1744
          %1746 = vst [vmem:[%s1713 + $0x2c] sm:$0x1] %v1745
          %v1747 = vld [vmem:[%s1713 + $0x30] sm:$0xf]
          %v1748 = vsel %vm1716, %v1147, %v1747
          %1749 = vst [vmem:[%s1713 + $0x30] sm:$0xf] %v1748
          %1750 = vst [vmem:[%s1713 + $0x34] sm:$0xf] %v1156
          %v1751 = vld [vmem:[%s1713 + $0x38] sm:$0x1]
          %v1752 = vsel %vm1722, %v1157, %v1751
          %1753 = vst [vmem:[%s1713 + $0x38] sm:$0x1] %v1752
          %v1754 = vld [vmem:[%s1713 + $0x3c] sm:$0xf]
          %v1755 = vsel %vm1716, %v1164, %v1754
          %1756 = vst [vmem:[%s1713 + $0x3c] sm:$0xf] %v1755
          %1757 = vst [vmem:[%s1713 + $0x40] sm:$0xf] %v1173
          %v1758 = vld [vmem:[%s1713 + $0x44] sm:$0x1]
          %v1759 = vsel %vm1722, %v1174, %v1758
          %1760 = vst [vmem:[%s1713 + $0x44] sm:$0x1] %v1759
          %v1761 = vld [vmem:[%s1713 + $0x48] sm:$0xf]
          %v1762 = vsel %vm1716, %v1181, %v1761
          %1763 = vst [vmem:[%s1713 + $0x48] sm:$0xf] %v1762
          %1764 = vst [vmem:[%s1713 + $0x4c] sm:$0xf] %v1190
          %v1765 = vld [vmem:[%s1713 + $0x50] sm:$0x1]
          %v1766 = vsel %vm1722, %v1191, %v1765
          %1767 = vst [vmem:[%s1713 + $0x50] sm:$0x1] %v1766
          %v1768 = vld [vmem:[%s1713 + $0x54] sm:$0xf]
          %v1769 = vsel %vm1716, %v1198, %v1768
          %1770 = vst [vmem:[%s1713 + $0x54] sm:$0xf] %v1769
          %1771 = vst [vmem:[%s1713 + $0x58] sm:$0xf] %v1207
          %v1772 = vld [vmem:[%s1713 + $0x5c] sm:$0x1]
          %v1773 = vsel %vm1722, %v1208, %v1772
          %1774 = vst [vmem:[%s1713 + $0x5c] sm:$0x1] %v1773
          %v1775 = vld [vmem:[%s1713 + $0x60] sm:$0xf]
          %v1776 = vsel %vm1716, %v1215, %v1775
          %1777 = vst [vmem:[%s1713 + $0x60] sm:$0xf] %v1776
          %1778 = vst [vmem:[%s1713 + $0x64] sm:$0xf] %v1224
          %v1779 = vld [vmem:[%s1713 + $0x68] sm:$0x1]
          %v1780 = vsel %vm1722, %v1225, %v1779
          %1781 = vst [vmem:[%s1713 + $0x68] sm:$0x1] %v1780
          %v1782 = vld [vmem:[%s1713 + $0x6c] sm:$0xf]
          %v1783 = vsel %vm1716, %v1232, %v1782
          %1784 = vst [vmem:[%s1713 + $0x6c] sm:$0xf] %v1783
          %1785 = vst [vmem:[%s1713 + $0x70] sm:$0xf] %v1241
          %v1786 = vld [vmem:[%s1713 + $0x74] sm:$0x1]
          %v1787 = vsel %vm1722, %v1242, %v1786
          %1788 = vst [vmem:[%s1713 + $0x74] sm:$0x1] %v1787
          %v1789 = vld [vmem:[%s1713 + $0x78] sm:$0xf]
          %v1790 = vsel %vm1716, %v1249, %v1789
          %1791 = vst [vmem:[%s1713 + $0x78] sm:$0xf] %v1790
          %1792 = vst [vmem:[%s1713 + $0x7c] sm:$0xf] %v1258
          %v1793 = vld [vmem:[%s1713 + $0x80] sm:$0x1]
          %v1794 = vsel %vm1722, %v1259, %v1793
          %1795 = vst [vmem:[%s1713 + $0x80] sm:$0x1] %v1794
          %v1796 = vld [vmem:[%s1713 + $0x84] sm:$0xf]
          %v1797 = vsel %vm1716, %v1266, %v1796
          %1798 = vst [vmem:[%s1713 + $0x84] sm:$0xf] %v1797
          %1799 = vst [vmem:[%s1713 + $0x88] sm:$0xf] %v1275
          %v1800 = vld [vmem:[%s1713 + $0x8c] sm:$0x1]
          %v1801 = vsel %vm1722, %v1276, %v1800
          %1802 = vst [vmem:[%s1713 + $0x8c] sm:$0x1] %v1801
          %v1803 = vld [vmem:[%s1713 + $0x90] sm:$0xf]
          %v1804 = vsel %vm1716, %v1283, %v1803
          %1805 = vst [vmem:[%s1713 + $0x90] sm:$0xf] %v1804
          %1806 = vst [vmem:[%s1713 + $0x94] sm:$0xf] %v1292
          %v1807 = vld [vmem:[%s1713 + $0x98] sm:$0x1]
          %v1808 = vsel %vm1722, %v1293, %v1807
          %1809 = vst [vmem:[%s1713 + $0x98] sm:$0x1] %v1808
          %v1810 = vld [vmem:[%s1713 + $0x9c] sm:$0xf]
          %v1811 = vsel %vm1716, %v1300, %v1810
          %1812 = vst [vmem:[%s1713 + $0x9c] sm:$0xf] %v1811
          %1813 = vst [vmem:[%s1713 + $0xa0] sm:$0xf] %v1309
          %v1814 = vld [vmem:[%s1713 + $0xa4] sm:$0x1]
          %v1815 = vsel %vm1722, %v1310, %v1814
          %1816 = vst [vmem:[%s1713 + $0xa4] sm:$0x1] %v1815
          %v1817 = vld [vmem:[%s1713 + $0xa8] sm:$0xf]
          %v1818 = vsel %vm1716, %v1317, %v1817
          %1819 = vst [vmem:[%s1713 + $0xa8] sm:$0xf] %v1818
          %1820 = vst [vmem:[%s1713 + $0xac] sm:$0xf] %v1326
          %v1821 = vld [vmem:[%s1713 + $0xb0] sm:$0x1]
          %v1822 = vsel %vm1722, %v1327, %v1821
          %1823 = vst [vmem:[%s1713 + $0xb0] sm:$0x1] %v1822
          %v1824 = vld [vmem:[%s1713 + $0xb4] sm:$0xf]
          %v1825 = vsel %vm1716, %v1334, %v1824
          %1826 = vst [vmem:[%s1713 + $0xb4] sm:$0xf] %v1825
          %1827 = vst [vmem:[%s1713 + $0xb8] sm:$0xf] %v1343
          %v1828 = vld [vmem:[%s1713 + $0xbc] sm:$0x1]
          %v1829 = vsel %vm1722, %v1344, %v1828
          %1830 = vst [vmem:[%s1713 + $0xbc] sm:$0x1] %v1829
          %v1831 = vld [vmem:[%s1713 + $0xd8] sm:$0xf]
          %v1832 = vsel %vm1716, %v1351, %v1831
          %1833 = vst [vmem:[%s1713 + $0xd8] sm:$0xf] %v1832
          %1834 = vst [vmem:[%s1713 + $0xdc] sm:$0xf] %v1360
          %v1835 = vld [vmem:[%s1713 + $0xe0] sm:$0x1]
          %v1836 = vsel %vm1722, %v1361, %v1835
          %1837 = vst [vmem:[%s1713 + $0xe0] sm:$0x1] %v1836
          %v1838 = vld [vmem:[%s1713 + $0xe4] sm:$0xf]
          %v1839 = vsel %vm1716, %v1368, %v1838
          %1840 = vst [vmem:[%s1713 + $0xe4] sm:$0xf] %v1839
          %1841 = vst [vmem:[%s1713 + $0xe8] sm:$0xf] %v1377
          %v1842 = vld [vmem:[%s1713 + $0xec] sm:$0x1]
          %v1843 = vsel %vm1722, %v1378, %v1842
          %1844 = vst [vmem:[%s1713 + $0xec] sm:$0x1] %v1843
          %v1845 = vld [vmem:[%s1713 + $0xf0] sm:$0xf]
          %v1846 = vsel %vm1716, %v1385, %v1845
          %1847 = vst [vmem:[%s1713 + $0xf0] sm:$0xf] %v1846
          %1848 = vst [vmem:[%s1713 + $0xf4] sm:$0xf] %v1394
          %v1849 = vld [vmem:[%s1713 + $0xf8] sm:$0x1]
          %v1850 = vsel %vm1722, %v1395, %v1849
          %1851 = vst [vmem:[%s1713 + $0xf8] sm:$0x1] %v1850
          %v1852 = vld [vmem:[%s1713 + $0xfc] sm:$0xf]
          %v1853 = vsel %vm1716, %v1402, %v1852
          %1854 = vst [vmem:[%s1713 + $0xfc] sm:$0xf] %v1853
          %1855 = vst [vmem:[%s1713 + $0x100] sm:$0xf] %v1411
          %v1856 = vld [vmem:[%s1713 + $0x104] sm:$0x1]
          %v1857 = vsel %vm1722, %v1412, %v1856
          %1858 = vst [vmem:[%s1713 + $0x104] sm:$0x1] %v1857
          %v1859 = vld [vmem:[%s1713 + $0x108] sm:$0xf]
          %v1860 = vsel %vm1716, %v1419, %v1859
          %1861 = vst [vmem:[%s1713 + $0x108] sm:$0xf] %v1860
          %1862 = vst [vmem:[%s1713 + $0x10c] sm:$0xf] %v1428
          %v1863 = vld [vmem:[%s1713 + $0x110] sm:$0x1]
          %v1864 = vsel %vm1722, %v1429, %v1863
          %1865 = vst [vmem:[%s1713 + $0x110] sm:$0x1] %v1864
          %v1866 = vld [vmem:[%s1713 + $0x114] sm:$0xf]
          %v1867 = vsel %vm1716, %v1436, %v1866
          %1868 = vst [vmem:[%s1713 + $0x114] sm:$0xf] %v1867
          %1869 = vst [vmem:[%s1713 + $0x118] sm:$0xf] %v1445
          %v1870 = vld [vmem:[%s1713 + $0x11c] sm:$0x1]
          %v1871 = vsel %vm1722, %v1446, %v1870
          %1872 = vst [vmem:[%s1713 + $0x11c] sm:$0x1] %v1871
          %v1873 = vld [vmem:[%s1713 + $0x120] sm:$0xf]
          %v1874 = vsel %vm1716, %v1453, %v1873
          %1875 = vst [vmem:[%s1713 + $0x120] sm:$0xf] %v1874
          %1876 = vst [vmem:[%s1713 + $0x124] sm:$0xf] %v1462
          %v1877 = vld [vmem:[%s1713 + $0x128] sm:$0x1]
          %v1878 = vsel %vm1722, %v1463, %v1877
          %1879 = vst [vmem:[%s1713 + $0x128] sm:$0x1] %v1878
          %v1880 = vld [vmem:[%s1713 + $0x12c] sm:$0xf]
          %v1881 = vsel %vm1716, %v1470, %v1880
          %1882 = vst [vmem:[%s1713 + $0x12c] sm:$0xf] %v1881
          %1883 = vst [vmem:[%s1713 + $0x130] sm:$0xf] %v1479
          %v1884 = vld [vmem:[%s1713 + $0x134] sm:$0x1]
          %v1885 = vsel %vm1722, %v1480, %v1884
          %1886 = vst [vmem:[%s1713 + $0x134] sm:$0x1] %v1885
          %v1887 = vld [vmem:[%s1713 + $0x138] sm:$0xf]
          %v1888 = vsel %vm1716, %v1487, %v1887
          %1889 = vst [vmem:[%s1713 + $0x138] sm:$0xf] %v1888
          %1890 = vst [vmem:[%s1713 + $0x13c] sm:$0xf] %v1496
          %v1891 = vld [vmem:[%s1713 + $0x140] sm:$0x1]
          %v1892 = vsel %vm1722, %v1497, %v1891
          %1893 = vst [vmem:[%s1713 + $0x140] sm:$0x1] %v1892
          %v1894 = vld [vmem:[%s1713 + $0x144] sm:$0xf]
          %v1895 = vsel %vm1716, %v1504, %v1894
          %1896 = vst [vmem:[%s1713 + $0x144] sm:$0xf] %v1895
          %1897 = vst [vmem:[%s1713 + $0x148] sm:$0xf] %v1513
          %v1898 = vld [vmem:[%s1713 + $0x14c] sm:$0x1]
          %v1899 = vsel %vm1722, %v1514, %v1898
          %1900 = vst [vmem:[%s1713 + $0x14c] sm:$0x1] %v1899
          %v1901 = vld [vmem:[%s1713 + $0x150] sm:$0xf]
          %v1902 = vsel %vm1716, %v1521, %v1901
          %1903 = vst [vmem:[%s1713 + $0x150] sm:$0xf] %v1902
          %1904 = vst [vmem:[%s1713 + $0x154] sm:$0xf] %v1530
          %v1905 = vld [vmem:[%s1713 + $0x158] sm:$0x1]
          %v1906 = vsel %vm1722, %v1531, %v1905
          %1907 = vst [vmem:[%s1713 + $0x158] sm:$0x1] %v1906
          %v1908 = vld [vmem:[%s1713 + $0x15c] sm:$0xf]
          %v1909 = vsel %vm1716, %v1538, %v1908
          %1910 = vst [vmem:[%s1713 + $0x15c] sm:$0xf] %v1909
          %1911 = vst [vmem:[%s1713 + $0x160] sm:$0xf] %v1547
          %v1912 = vld [vmem:[%s1713 + $0x164] sm:$0x1]
          %v1913 = vsel %vm1722, %v1548, %v1912
          %1914 = vst [vmem:[%s1713 + $0x164] sm:$0x1] %v1913
          %v1915 = vld [vmem:[%s1713 + $0x168] sm:$0xf]
          %v1916 = vsel %vm1716, %v1555, %v1915
          %1917 = vst [vmem:[%s1713 + $0x168] sm:$0xf] %v1916
          %1918 = vst [vmem:[%s1713 + $0x16c] sm:$0xf] %v1564
          %v1919 = vld [vmem:[%s1713 + $0x170] sm:$0x1]
          %v1920 = vsel %vm1722, %v1565, %v1919
          %1921 = vst [vmem:[%s1713 + $0x170] sm:$0x1] %v1920
          %v1922 = vld [vmem:[%s1713 + $0x174] sm:$0xf]
          %v1923 = vsel %vm1716, %v1572, %v1922
          %1924 = vst [vmem:[%s1713 + $0x174] sm:$0xf] %v1923
          %1925 = vst [vmem:[%s1713 + $0x178] sm:$0xf] %v1581
          %v1926 = vld [vmem:[%s1713 + $0x17c] sm:$0x1]
          %v1927 = vsel %vm1722, %v1582, %v1926
          %1928 = vst [vmem:[%s1713 + $0x17c] sm:$0x1] %v1927
          %v1929 = vld [vmem:[%s1713 + $0x180] sm:$0xf]
          %v1930 = vsel %vm1716, %v1589, %v1929
          %1931 = vst [vmem:[%s1713 + $0x180] sm:$0xf] %v1930
          %1932 = vst [vmem:[%s1713 + $0x184] sm:$0xf] %v1598
          %v1933 = vld [vmem:[%s1713 + $0x188] sm:$0x1]
          %v1934 = vsel %vm1722, %v1599, %v1933
          %1935 = vst [vmem:[%s1713 + $0x188] sm:$0x1] %v1934
          %v1936 = vld [vmem:[%s1713 + $0x18c] sm:$0xf]
          %v1937 = vsel %vm1716, %v1606, %v1936
          %1938 = vst [vmem:[%s1713 + $0x18c] sm:$0xf] %v1937
          %1939 = vst [vmem:[%s1713 + $0x190] sm:$0xf] %v1615
          %v1940 = vld [vmem:[%s1713 + $0x194] sm:$0x1]
          %v1941 = vsel %vm1722, %v1616, %v1940
          %1942 = vst [vmem:[%s1713 + $0x194] sm:$0x1] %v1941
        $region56: #{res_model_forward.1} parent=39 // pred_fallthru
          _
        %p1943 = scmp.gt.s32.totalorder %s21, 0
        // Predicated region
        $region57: #{res_model_forward.1} parent=39 // pred_check
          %p1944 = pneg %p1943
        $region58: #{res_model_forward.1} parent=39 // pred_check_branch
          %1946 = sbr.rel (%p1944) target = $region60
        $region59: #{res_model_forward.1} parent=39 // pred_region
          %v1947 = vld [vmem:[#allocation2] sm:$0xf]
          %v1948 = vld [vmem:[#allocation2 + $0x4] sm:$0xf]
          %v1949 = vld [vmem:[#allocation2 + $0xc] sm:$0xf]
          %v1950 = vld [vmem:[#allocation2 + $0x10] sm:$0xf]
          %v1951 = vld [vmem:[#allocation2 + $0x18] sm:$0xf]
          %v1952 = vld [vmem:[#allocation2 + $0x1c] sm:$0xf]
          %v1953 = vld [vmem:[#allocation2 + $0x24] sm:$0xf]
          %v1954 = vld [vmem:[#allocation2 + $0x28] sm:$0xf]
          %v1955 = vld [vmem:[#allocation2 + $0x30] sm:$0xf]
          %v1956 = vld [vmem:[#allocation2 + $0x34] sm:$0xf]
          %v1957 = vld [vmem:[#allocation2 + $0x3c] sm:$0xf]
          %v1958 = vld [vmem:[#allocation2 + $0x40] sm:$0xf]
          %v1959 = vld [vmem:[#allocation2 + $0x48] sm:$0xf]
          %v1960 = vld [vmem:[#allocation2 + $0x4c] sm:$0xf]
          %v1961 = vld [vmem:[#allocation2 + $0x54] sm:$0xf]
          %v1962 = vld [vmem:[#allocation2 + $0x58] sm:$0xf]
          %v1963 = vld [vmem:[#allocation2 + $0x60] sm:$0xf]
          %v1964 = vld [vmem:[#allocation2 + $0x64] sm:$0xf]
          %v1965 = vld [vmem:[#allocation2 + $0x6c] sm:$0xf]
          %v1966 = vld [vmem:[#allocation2 + $0x70] sm:$0xf]
          %v1967 = vld [vmem:[#allocation2 + $0x78] sm:$0xf]
          %v1968 = vld [vmem:[#allocation2 + $0x7c] sm:$0xf]
          %v1969 = vld [vmem:[#allocation2 + $0x84] sm:$0xf]
          %v1970 = vld [vmem:[#allocation2 + $0x88] sm:$0xf]
          %v1971 = vld [vmem:[#allocation2 + $0x90] sm:$0xf]
          %v1972 = vld [vmem:[#allocation2 + $0x94] sm:$0xf]
          %v1973 = vld [vmem:[#allocation2 + $0x9c] sm:$0xf]
          %v1974 = vld [vmem:[#allocation2 + $0xa0] sm:$0xf]
          %v1975 = vld [vmem:[#allocation2 + $0xa8] sm:$0xf]
          %v1976 = vld [vmem:[#allocation2 + $0xac] sm:$0xf]
          %v1977 = vld [vmem:[#allocation2 + $0xb4] sm:$0xf]
          %v1978 = vld [vmem:[#allocation2 + $0xb8] sm:$0xf]
          %v1979 = vld [vmem:[#allocation2 + $0xd8] sm:$0xf]
          %v1980 = vld [vmem:[#allocation2 + $0xdc] sm:$0xf]
          %v1981 = vld [vmem:[#allocation2 + $0xe4] sm:$0xf]
          %v1982 = vld [vmem:[#allocation2 + $0xe8] sm:$0xf]
          %v1983 = vld [vmem:[#allocation2 + $0xf0] sm:$0xf]
          %v1984 = vld [vmem:[#allocation2 + $0xf4] sm:$0xf]
          %v1985 = vld [vmem:[#allocation2 + $0xfc] sm:$0xf]
          %v1986 = vld [vmem:[#allocation2 + $0x100] sm:$0xf]
          %v1987 = vld [vmem:[#allocation2 + $0x108] sm:$0xf]
          %v1988 = vld [vmem:[#allocation2 + $0x10c] sm:$0xf]
          %v1989 = vld [vmem:[#allocation2 + $0x114] sm:$0xf]
          %v1990 = vld [vmem:[#allocation2 + $0x118] sm:$0xf]
          %v1991 = vld [vmem:[#allocation2 + $0x120] sm:$0xf]
          %v1992 = vld [vmem:[#allocation2 + $0x124] sm:$0xf]
          %v1993 = vld [vmem:[#allocation2 + $0x12c] sm:$0xf]
          %v1994 = vld [vmem:[#allocation2 + $0x130] sm:$0xf]
          %v1995 = vld [vmem:[#allocation2 + $0x138] sm:$0xf]
          %v1996 = vld [vmem:[#allocation2 + $0x13c] sm:$0xf]
          %v1997 = vld [vmem:[#allocation2 + $0x144] sm:$0xf]
          %v1998 = vld [vmem:[#allocation2 + $0x148] sm:$0xf]
          %v1999 = vld [vmem:[#allocation2 + $0x150] sm:$0xf]
          %v2000 = vld [vmem:[#allocation2 + $0x154] sm:$0xf]
          %v2001 = vld [vmem:[#allocation2 + $0x15c] sm:$0xf]
          %v2002 = vld [vmem:[#allocation2 + $0x160] sm:$0xf]
          %v2003 = vld [vmem:[#allocation2 + $0x168] sm:$0xf]
          %v2004 = vld [vmem:[#allocation2 + $0x16c] sm:$0xf]
          %v2005 = vld [vmem:[#allocation2 + $0x174] sm:$0xf]
          %v2006 = vld [vmem:[#allocation2 + $0x178] sm:$0xf]
          %v2007 = vld [vmem:[#allocation2 + $0x180] sm:$0xf]
          %v2008 = vld [vmem:[#allocation2 + $0x184] sm:$0xf]
          %v2009 = vld [vmem:[#allocation2 + $0x18c] sm:$0xf]
          %v2010 = vld [vmem:[#allocation2 + $0x190] sm:$0xf]
          %2011 = vst [vmem:[#allocation3] sm:$0xf] %v1947
          %2012 = vst [vmem:[#allocation3 + $0x24] sm:$0xf] %v1948
          %2013 = vst [vmem:[#allocation3 + $0x48] sm:$0xf] %v1949
          %2014 = vst [vmem:[#allocation3 + $0x6c] sm:$0xf] %v1950
          %2015 = vst [vmem:[#allocation3 + $0x90] sm:$0xf] %v1951
          %2016 = vst [vmem:[#allocation3 + $0xb4] sm:$0xf] %v1952
          %2017 = vst [vmem:[#allocation3 + $0xd8] sm:$0xf] %v1953
          %2018 = vst [vmem:[#allocation3 + $0xfc] sm:$0xf] %v1954
          %2019 = vst [vmem:[#allocation3 + $0x120] sm:$0xf] %v1955
          %2020 = vst [vmem:[#allocation3 + $0x144] sm:$0xf] %v1956
          %2021 = vst [vmem:[#allocation3 + $0x168] sm:$0xf] %v1957
          %2022 = vst [vmem:[#allocation3 + $0x18c] sm:$0xf] %v1958
          %2023 = vst [vmem:[#allocation3 + $0x1b0] sm:$0xf] %v1959
          %2024 = vst [vmem:[#allocation3 + $0x1d4] sm:$0xf] %v1960
          %2025 = vst [vmem:[#allocation3 + $0x1f8] sm:$0xf] %v1961
          %2026 = vst [vmem:[#allocation3 + $0x21c] sm:$0xf] %v1962
          %2027 = vst [vmem:[#allocation3 + $0x240] sm:$0xf] %v1963
          %2028 = vst [vmem:[#allocation3 + $0x264] sm:$0xf] %v1964
          %2029 = vst [vmem:[#allocation3 + $0x288] sm:$0xf] %v1965
          %2030 = vst [vmem:[#allocation3 + $0x2ac] sm:$0xf] %v1966
          %2031 = vst [vmem:[#allocation3 + $0x2d0] sm:$0xf] %v1967
          %2032 = vst [vmem:[#allocation3 + $0x2f4] sm:$0xf] %v1968
          %2033 = vst [vmem:[#allocation3 + $0x318] sm:$0xf] %v1969
          %2034 = vst [vmem:[#allocation3 + $0x33c] sm:$0xf] %v1970
          %2035 = vst [vmem:[#allocation3 + $0x360] sm:$0xf] %v1971
          %2036 = vst [vmem:[#allocation3 + $0x384] sm:$0xf] %v1972
          %2037 = vst [vmem:[#allocation3 + $0x3a8] sm:$0xf] %v1973
          %2038 = vst [vmem:[#allocation3 + $0x3cc] sm:$0xf] %v1974
          %2039 = vst [vmem:[#allocation3 + $0x3f0] sm:$0xf] %v1975
          %2040 = vst [vmem:[#allocation3 + $0x414] sm:$0xf] %v1976
          %2041 = vst [vmem:[#allocation3 + $0x438] sm:$0xf] %v1977
          %2042 = vst [vmem:[#allocation3 + $0x45c] sm:$0xf] %v1978
          %2043 = vst [vmem:[#allocation3 + $0x480] sm:$0xf] %v1979
          %2044 = vst [vmem:[#allocation3 + $0x4a4] sm:$0xf] %v1980
          %2045 = vst [vmem:[#allocation3 + $0x4c8] sm:$0xf] %v1981
          %2046 = vst [vmem:[#allocation3 + $0x4ec] sm:$0xf] %v1982
          %2047 = vst [vmem:[#allocation3 + $0x510] sm:$0xf] %v1983
          %2048 = vst [vmem:[#allocation3 + $0x534] sm:$0xf] %v1984
          %2049 = vst [vmem:[#allocation3 + $0x558] sm:$0xf] %v1985
          %2050 = vst [vmem:[#allocation3 + $0x57c] sm:$0xf] %v1986
          %2051 = vst [vmem:[#allocation3 + $0x5a0] sm:$0xf] %v1987
          %2052 = vst [vmem:[#allocation3 + $0x5c4] sm:$0xf] %v1988
          %2053 = vst [vmem:[#allocation3 + $0x5e8] sm:$0xf] %v1989
          %2054 = vst [vmem:[#allocation3 + $0x60c] sm:$0xf] %v1990
          %2055 = vst [vmem:[#allocation3 + $0x630] sm:$0xf] %v1991
          %2056 = vst [vmem:[#allocation3 + $0x654] sm:$0xf] %v1992
          %2057 = vst [vmem:[#allocation3 + $0x678] sm:$0xf] %v1993
          %2058 = vst [vmem:[#allocation3 + $0x69c] sm:$0xf] %v1994
          %2059 = vst [vmem:[#allocation3 + $0x6c0] sm:$0xf] %v1995
          %2060 = vst [vmem:[#allocation3 + $0x6e4] sm:$0xf] %v1996
          %2061 = vst [vmem:[#allocation3 + $0x708] sm:$0xf] %v1997
          %2062 = vst [vmem:[#allocation3 + $0x72c] sm:$0xf] %v1998
          %2063 = vst [vmem:[#allocation3 + $0x750] sm:$0xf] %v1999
          %2064 = vst [vmem:[#allocation3 + $0x774] sm:$0xf] %v2000
          %2065 = vst [vmem:[#allocation3 + $0x798] sm:$0xf] %v2001
          %2066 = vst [vmem:[#allocation3 + $0x7bc] sm:$0xf] %v2002
          %2067 = vst [vmem:[#allocation3 + $0x7e0] sm:$0xf] %v2003
          %2068 = vst [vmem:[#allocation3 + $0x804] sm:$0xf] %v2004
          %2069 = vst [vmem:[#allocation3 + $0x828] sm:$0xf] %v2005
          %2070 = vst [vmem:[#allocation3 + $0x84c] sm:$0xf] %v2006
          %2071 = vst [vmem:[#allocation3 + $0x870] sm:$0xf] %v2007
          %2072 = vst [vmem:[#allocation3 + $0x894] sm:$0xf] %v2008
          %2073 = vst [vmem:[#allocation3 + $0x8b8] sm:$0xf] %v2009
          %2074 = vst [vmem:[#allocation3 + $0x8dc] sm:$0xf] %v2010
          %v2075 = vld [vmem:[#allocation2] sm:$0xf]
          %v2076 = vld [vmem:[#allocation2 + $0x4] sm:$0xf]
          %v2077 = vld [vmem:[#allocation2 + $0x8] sm:$0x1]
          %v2078 = vld [vmem:[#allocation2 + $0xc] sm:$0xf]
          %v2079 = vld [vmem:[#allocation2 + $0x10] sm:$0xf]
          %v2080 = vld [vmem:[#allocation2 + $0x14] sm:$0x1]
          %v2081 = vld [vmem:[#allocation2 + $0x18] sm:$0xf]
          %v2082 = vld [vmem:[#allocation2 + $0x1c] sm:$0xf]
          %v2083 = vld [vmem:[#allocation2 + $0x20] sm:$0x1]
          %v2084 = vld [vmem:[#allocation2 + $0x24] sm:$0xf]
          %v2085 = vld [vmem:[#allocation2 + $0x28] sm:$0xf]
          %v2086 = vld [vmem:[#allocation2 + $0x2c] sm:$0x1]
          %v2087 = vld [vmem:[#allocation2 + $0x30] sm:$0xf]
          %v2088 = vld [vmem:[#allocation2 + $0x34] sm:$0xf]
          %v2089 = vld [vmem:[#allocation2 + $0x38] sm:$0x1]
          %v2090 = vld [vmem:[#allocation2 + $0x3c] sm:$0xf]
          %v2091 = vld [vmem:[#allocation2 + $0x40] sm:$0xf]
          %v2092 = vld [vmem:[#allocation2 + $0x44] sm:$0x1]
          %v2093 = vld [vmem:[#allocation2 + $0x48] sm:$0xf]
          %v2094 = vld [vmem:[#allocation2 + $0x4c] sm:$0xf]
          %v2095 = vld [vmem:[#allocation2 + $0x50] sm:$0x1]
          %v2096 = vld [vmem:[#allocation2 + $0x54] sm:$0xf]
          %v2097 = vld [vmem:[#allocation2 + $0x58] sm:$0xf]
          %v2098 = vld [vmem:[#allocation2 + $0x5c] sm:$0x1]
          %v2099 = vld [vmem:[#allocation2 + $0x60] sm:$0xf]
          %v2100 = vld [vmem:[#allocation2 + $0x64] sm:$0xf]
          %v2101 = vld [vmem:[#allocation2 + $0x68] sm:$0x1]
          %v2102 = vld [vmem:[#allocation2 + $0x6c] sm:$0xf]
          %v2103 = vld [vmem:[#allocation2 + $0x70] sm:$0xf]
          %v2104 = vld [vmem:[#allocation2 + $0x74] sm:$0x1]
          %v2105 = vld [vmem:[#allocation2 + $0x78] sm:$0xf]
          %v2106 = vld [vmem:[#allocation2 + $0x7c] sm:$0xf]
          %v2107 = vld [vmem:[#allocation2 + $0x80] sm:$0x1]
          %v2108 = vld [vmem:[#allocation2 + $0x84] sm:$0xf]
          %v2109 = vld [vmem:[#allocation2 + $0x88] sm:$0xf]
          %v2110 = vld [vmem:[#allocation2 + $0x8c] sm:$0x1]
          %v2111 = vld [vmem:[#allocation2 + $0x90] sm:$0xf]
          %v2112 = vld [vmem:[#allocation2 + $0x94] sm:$0xf]
          %v2113 = vld [vmem:[#allocation2 + $0x98] sm:$0x1]
          %v2114 = vld [vmem:[#allocation2 + $0x9c] sm:$0xf]
          %v2115 = vld [vmem:[#allocation2 + $0xa0] sm:$0xf]
          %v2116 = vld [vmem:[#allocation2 + $0xa4] sm:$0x1]
          %v2117 = vld [vmem:[#allocation2 + $0xa8] sm:$0xf]
          %v2118 = vld [vmem:[#allocation2 + $0xac] sm:$0xf]
          %v2119 = vld [vmem:[#allocation2 + $0xb0] sm:$0x1]
          %v2120 = vld [vmem:[#allocation2 + $0xb4] sm:$0xf]
          %v2121 = vld [vmem:[#allocation2 + $0xb8] sm:$0xf]
          %v2122 = vld [vmem:[#allocation2 + $0xbc] sm:$0x1]
          %v2123 = vld [vmem:[#allocation2 + $0xd8] sm:$0xf]
          %v2124 = vld [vmem:[#allocation2 + $0xdc] sm:$0xf]
          %v2125 = vld [vmem:[#allocation2 + $0xe0] sm:$0x1]
          %v2126 = vld [vmem:[#allocation2 + $0xe4] sm:$0xf]
          %v2127 = vld [vmem:[#allocation2 + $0xe8] sm:$0xf]
          %v2128 = vld [vmem:[#allocation2 + $0xec] sm:$0x1]
          %v2129 = vld [vmem:[#allocation2 + $0xf0] sm:$0xf]
          %v2130 = vld [vmem:[#allocation2 + $0xf4] sm:$0xf]
          %v2131 = vld [vmem:[#allocation2 + $0xf8] sm:$0x1]
          %v2132 = vld [vmem:[#allocation2 + $0xfc] sm:$0xf]
          %v2133 = vld [vmem:[#allocation2 + $0x100] sm:$0xf]
          %v2134 = vld [vmem:[#allocation2 + $0x104] sm:$0x1]
          %v2135 = vld [vmem:[#allocation2 + $0x108] sm:$0xf]
          %v2136 = vld [vmem:[#allocation2 + $0x10c] sm:$0xf]
          %v2137 = vld [vmem:[#allocation2 + $0x110] sm:$0x1]
          %v2138 = vld [vmem:[#allocation2 + $0x114] sm:$0xf]
          %v2139 = vld [vmem:[#allocation2 + $0x118] sm:$0xf]
          %v2140 = vld [vmem:[#allocation2 + $0x11c] sm:$0x1]
          %v2141 = vld [vmem:[#allocation2 + $0x120] sm:$0xf]
          %v2142 = vld [vmem:[#allocation2 + $0x124] sm:$0xf]
          %v2143 = vld [vmem:[#allocation2 + $0x128] sm:$0x1]
          %v2144 = vld [vmem:[#allocation2 + $0x12c] sm:$0xf]
          %v2145 = vld [vmem:[#allocation2 + $0x130] sm:$0xf]
          %v2146 = vld [vmem:[#allocation2 + $0x134] sm:$0x1]
          %v2147 = vld [vmem:[#allocation2 + $0x138] sm:$0xf]
          %v2148 = vld [vmem:[#allocation2 + $0x13c] sm:$0xf]
          %v2149 = vld [vmem:[#allocation2 + $0x140] sm:$0x1]
          %v2150 = vld [vmem:[#allocation2 + $0x144] sm:$0xf]
          %v2151 = vld [vmem:[#allocation2 + $0x148] sm:$0xf]
          %v2152 = vld [vmem:[#allocation2 + $0x14c] sm:$0x1]
          %v2153 = vld [vmem:[#allocation2 + $0x150] sm:$0xf]
          %v2154 = vld [vmem:[#allocation2 + $0x154] sm:$0xf]
          %v2155 = vld [vmem:[#allocation2 + $0x158] sm:$0x1]
          %v2156 = vld [vmem:[#allocation2 + $0x15c] sm:$0xf]
          %v2157 = vld [vmem:[#allocation2 + $0x160] sm:$0xf]
          %v2158 = vld [vmem:[#allocation2 + $0x164] sm:$0x1]
          %v2159 = vld [vmem:[#allocation2 + $0x168] sm:$0xf]
          %v2160 = vld [vmem:[#allocation2 + $0x16c] sm:$0xf]
          %v2161 = vld [vmem:[#allocation2 + $0x170] sm:$0x1]
          %v2162 = vld [vmem:[#allocation2 + $0x174] sm:$0xf]
          %v2163 = vld [vmem:[#allocation2 + $0x178] sm:$0xf]
          %v2164 = vld [vmem:[#allocation2 + $0x17c] sm:$0x1]
          %v2165 = vld [vmem:[#allocation2 + $0x180] sm:$0xf]
          %v2166 = vld [vmem:[#allocation2 + $0x184] sm:$0xf]
          %v2167 = vld [vmem:[#allocation2 + $0x188] sm:$0x1]
          %v2168 = vld [vmem:[#allocation2 + $0x18c] sm:$0xf]
          %v2169 = vld [vmem:[#allocation2 + $0x190] sm:$0xf]
          %v2170 = vld [vmem:[#allocation2 + $0x194] sm:$0x1]
          %vm2171 = vsmask.f32 3328
          %vm2172 = vsmask.f32 7440
          %vm2173 = vmor %vm2171, %vm2172
          %v2175 = vshrl.u32 %v2075, 16
          %v2177 = vrot.slane %v2175, 4
          %v2178 = vshll.u32 %v2075, 16
          %v2180 = vrot.slane %v2178, 5
          %v2181 = vor.u32 %v2177, %v2180
          %v2182 = vrot.slane %v2181, 4
          %v2184 = vshll.u32 %v2076, 16
          %v2186 = vrot.slane %v2184, 5
          %v2187 = vsel %vm2173, %v2182, %v2186
          %v2188 = vshrl.u32 %v2076, 16
          %v2190 = vrot.slane %v2188, 4
          %v2191 = vor.u32 %v2190, %v2186
          %v2192 = vrot.slane %v2191, 4
          %v2194 = vshll.u32 %v2077, 16
          %v2196 = vrot.slane %v2194, 5
          %v2197 = vsel %vm2173, %v2192, %v2196
          %v2199 = vshrl.u32 %v2078, 16
          %v2201 = vrot.slane %v2199, 4
          %v2202 = vshll.u32 %v2078, 16
          %v2204 = vrot.slane %v2202, 5
          %v2205 = vor.u32 %v2201, %v2204
          %v2206 = vrot.slane %v2205, 4
          %v2208 = vshll.u32 %v2079, 16
          %v2210 = vrot.slane %v2208, 5
          %v2211 = vsel %vm2173, %v2206, %v2210
          %v2212 = vshrl.u32 %v2079, 16
          %v2214 = vrot.slane %v2212, 4
          %v2215 = vor.u32 %v2214, %v2210
          %v2216 = vrot.slane %v2215, 4
          %v2218 = vshll.u32 %v2080, 16
          %v2220 = vrot.slane %v2218, 5
          %v2221 = vsel %vm2173, %v2216, %v2220
          %v2223 = vshrl.u32 %v2081, 16
          %v2225 = vrot.slane %v2223, 4
          %v2226 = vshll.u32 %v2081, 16
          %v2228 = vrot.slane %v2226, 5
          %v2229 = vor.u32 %v2225, %v2228
          %v2230 = vrot.slane %v2229, 4
          %v2232 = vshll.u32 %v2082, 16
          %v2234 = vrot.slane %v2232, 5
          %v2235 = vsel %vm2173, %v2230, %v2234
          %v2236 = vshrl.u32 %v2082, 16
          %v2238 = vrot.slane %v2236, 4
          %v2239 = vor.u32 %v2238, %v2234
          %v2240 = vrot.slane %v2239, 4
          %v2242 = vshll.u32 %v2083, 16
          %v2244 = vrot.slane %v2242, 5
          %v2245 = vsel %vm2173, %v2240, %v2244
          %v2247 = vshrl.u32 %v2084, 16
          %v2249 = vrot.slane %v2247, 4
          %v2250 = vshll.u32 %v2084, 16
          %v2252 = vrot.slane %v2250, 5
          %v2253 = vor.u32 %v2249, %v2252
          %v2254 = vrot.slane %v2253, 4
          %v2256 = vshll.u32 %v2085, 16
          %v2258 = vrot.slane %v2256, 5
          %v2259 = vsel %vm2173, %v2254, %v2258
          %v2260 = vshrl.u32 %v2085, 16
          %v2262 = vrot.slane %v2260, 4
          %v2263 = vor.u32 %v2262, %v2258
          %v2264 = vrot.slane %v2263, 4
          %v2266 = vshll.u32 %v2086, 16
          %v2268 = vrot.slane %v2266, 5
          %v2269 = vsel %vm2173, %v2264, %v2268
          %v2271 = vshrl.u32 %v2087, 16
          %v2273 = vrot.slane %v2271, 4
          %v2274 = vshll.u32 %v2087, 16
          %v2276 = vrot.slane %v2274, 5
          %v2277 = vor.u32 %v2273, %v2276
          %v2278 = vrot.slane %v2277, 4
          %v2280 = vshll.u32 %v2088, 16
          %v2282 = vrot.slane %v2280, 5
          %v2283 = vsel %vm2173, %v2278, %v2282
          %v2284 = vshrl.u32 %v2088, 16
          %v2286 = vrot.slane %v2284, 4
          %v2287 = vor.u32 %v2286, %v2282
          %v2288 = vrot.slane %v2287, 4
          %v2290 = vshll.u32 %v2089, 16
          %v2292 = vrot.slane %v2290, 5
          %v2293 = vsel %vm2173, %v2288, %v2292
          %v2295 = vshrl.u32 %v2090, 16
          %v2297 = vrot.slane %v2295, 4
          %v2298 = vshll.u32 %v2090, 16
          %v2300 = vrot.slane %v2298, 5
          %v2301 = vor.u32 %v2297, %v2300
          %v2302 = vrot.slane %v2301, 4
          %v2304 = vshll.u32 %v2091, 16
          %v2306 = vrot.slane %v2304, 5
          %v2307 = vsel %vm2173, %v2302, %v2306
          %v2308 = vshrl.u32 %v2091, 16
          %v2310 = vrot.slane %v2308, 4
          %v2311 = vor.u32 %v2310, %v2306
          %v2312 = vrot.slane %v2311, 4
          %v2314 = vshll.u32 %v2092, 16
          %v2316 = vrot.slane %v2314, 5
          %v2317 = vsel %vm2173, %v2312, %v2316
          %v2319 = vshrl.u32 %v2093, 16
          %v2321 = vrot.slane %v2319, 4
          %v2322 = vshll.u32 %v2093, 16
          %v2324 = vrot.slane %v2322, 5
          %v2325 = vor.u32 %v2321, %v2324
          %v2326 = vrot.slane %v2325, 4
          %v2328 = vshll.u32 %v2094, 16
          %v2330 = vrot.slane %v2328, 5
          %v2331 = vsel %vm2173, %v2326, %v2330
          %v2332 = vshrl.u32 %v2094, 16
          %v2334 = vrot.slane %v2332, 4
          %v2335 = vor.u32 %v2334, %v2330
          %v2336 = vrot.slane %v2335, 4
          %v2338 = vshll.u32 %v2095, 16
          %v2340 = vrot.slane %v2338, 5
          %v2341 = vsel %vm2173, %v2336, %v2340
          %v2343 = vshrl.u32 %v2096, 16
          %v2345 = vrot.slane %v2343, 4
          %v2346 = vshll.u32 %v2096, 16
          %v2348 = vrot.slane %v2346, 5
          %v2349 = vor.u32 %v2345, %v2348
          %v2350 = vrot.slane %v2349, 4
          %v2352 = vshll.u32 %v2097, 16
          %v2354 = vrot.slane %v2352, 5
          %v2355 = vsel %vm2173, %v2350, %v2354
          %v2356 = vshrl.u32 %v2097, 16
          %v2358 = vrot.slane %v2356, 4
          %v2359 = vor.u32 %v2358, %v2354
          %v2360 = vrot.slane %v2359, 4
          %v2362 = vshll.u32 %v2098, 16
          %v2364 = vrot.slane %v2362, 5
          %v2365 = vsel %vm2173, %v2360, %v2364
          %v2367 = vshrl.u32 %v2099, 16
          %v2369 = vrot.slane %v2367, 4
          %v2370 = vshll.u32 %v2099, 16
          %v2372 = vrot.slane %v2370, 5
          %v2373 = vor.u32 %v2369, %v2372
          %v2374 = vrot.slane %v2373, 4
          %v2376 = vshll.u32 %v2100, 16
          %v2378 = vrot.slane %v2376, 5
          %v2379 = vsel %vm2173, %v2374, %v2378
          %v2380 = vshrl.u32 %v2100, 16
          %v2382 = vrot.slane %v2380, 4
          %v2383 = vor.u32 %v2382, %v2378
          %v2384 = vrot.slane %v2383, 4
          %v2386 = vshll.u32 %v2101, 16
          %v2388 = vrot.slane %v2386, 5
          %v2389 = vsel %vm2173, %v2384, %v2388
          %v2391 = vshrl.u32 %v2102, 16
          %v2393 = vrot.slane %v2391, 4
          %v2394 = vshll.u32 %v2102, 16
          %v2396 = vrot.slane %v2394, 5
          %v2397 = vor.u32 %v2393, %v2396
          %v2398 = vrot.slane %v2397, 4
          %v2400 = vshll.u32 %v2103, 16
          %v2402 = vrot.slane %v2400, 5
          %v2403 = vsel %vm2173, %v2398, %v2402
          %v2404 = vshrl.u32 %v2103, 16
          %v2406 = vrot.slane %v2404, 4
          %v2407 = vor.u32 %v2406, %v2402
          %v2408 = vrot.slane %v2407, 4
          %v2410 = vshll.u32 %v2104, 16
          %v2412 = vrot.slane %v2410, 5
          %v2413 = vsel %vm2173, %v2408, %v2412
          %v2415 = vshrl.u32 %v2105, 16
          %v2417 = vrot.slane %v2415, 4
          %v2418 = vshll.u32 %v2105, 16
          %v2420 = vrot.slane %v2418, 5
          %v2421 = vor.u32 %v2417, %v2420
          %v2422 = vrot.slane %v2421, 4
          %v2424 = vshll.u32 %v2106, 16
          %v2426 = vrot.slane %v2424, 5
          %v2427 = vsel %vm2173, %v2422, %v2426
          %v2428 = vshrl.u32 %v2106, 16
          %v2430 = vrot.slane %v2428, 4
          %v2431 = vor.u32 %v2430, %v2426
          %v2432 = vrot.slane %v2431, 4
          %v2434 = vshll.u32 %v2107, 16
          %v2436 = vrot.slane %v2434, 5
          %v2437 = vsel %vm2173, %v2432, %v2436
          %v2439 = vshrl.u32 %v2108, 16
          %v2441 = vrot.slane %v2439, 4
          %v2442 = vshll.u32 %v2108, 16
          %v2444 = vrot.slane %v2442, 5
          %v2445 = vor.u32 %v2441, %v2444
          %v2446 = vrot.slane %v2445, 4
          %v2448 = vshll.u32 %v2109, 16
          %v2450 = vrot.slane %v2448, 5
          %v2451 = vsel %vm2173, %v2446, %v2450
          %v2452 = vshrl.u32 %v2109, 16
          %v2454 = vrot.slane %v2452, 4
          %v2455 = vor.u32 %v2454, %v2450
          %v2456 = vrot.slane %v2455, 4
          %v2458 = vshll.u32 %v2110, 16
          %v2460 = vrot.slane %v2458, 5
          %v2461 = vsel %vm2173, %v2456, %v2460
          %v2463 = vshrl.u32 %v2111, 16
          %v2465 = vrot.slane %v2463, 4
          %v2466 = vshll.u32 %v2111, 16
          %v2468 = vrot.slane %v2466, 5
          %v2469 = vor.u32 %v2465, %v2468
          %v2470 = vrot.slane %v2469, 4
          %v2472 = vshll.u32 %v2112, 16
          %v2474 = vrot.slane %v2472, 5
          %v2475 = vsel %vm2173, %v2470, %v2474
          %v2476 = vshrl.u32 %v2112, 16
          %v2478 = vrot.slane %v2476, 4
          %v2479 = vor.u32 %v2478, %v2474
          %v2480 = vrot.slane %v2479, 4
          %v2482 = vshll.u32 %v2113, 16
          %v2484 = vrot.slane %v2482, 5
          %v2485 = vsel %vm2173, %v2480, %v2484
          %v2487 = vshrl.u32 %v2114, 16
          %v2489 = vrot.slane %v2487, 4
          %v2490 = vshll.u32 %v2114, 16
          %v2492 = vrot.slane %v2490, 5
          %v2493 = vor.u32 %v2489, %v2492
          %v2494 = vrot.slane %v2493, 4
          %v2496 = vshll.u32 %v2115, 16
          %v2498 = vrot.slane %v2496, 5
          %v2499 = vsel %vm2173, %v2494, %v2498
          %v2500 = vshrl.u32 %v2115, 16
          %v2502 = vrot.slane %v2500, 4
          %v2503 = vor.u32 %v2502, %v2498
          %v2504 = vrot.slane %v2503, 4
          %v2506 = vshll.u32 %v2116, 16
          %v2508 = vrot.slane %v2506, 5
          %v2509 = vsel %vm2173, %v2504, %v2508
          %v2511 = vshrl.u32 %v2117, 16
          %v2513 = vrot.slane %v2511, 4
          %v2514 = vshll.u32 %v2117, 16
          %v2516 = vrot.slane %v2514, 5
          %v2517 = vor.u32 %v2513, %v2516
          %v2518 = vrot.slane %v2517, 4
          %v2520 = vshll.u32 %v2118, 16
          %v2522 = vrot.slane %v2520, 5
          %v2523 = vsel %vm2173, %v2518, %v2522
          %v2524 = vshrl.u32 %v2118, 16
          %v2526 = vrot.slane %v2524, 4
          %v2527 = vor.u32 %v2526, %v2522
          %v2528 = vrot.slane %v2527, 4
          %v2530 = vshll.u32 %v2119, 16
          %v2532 = vrot.slane %v2530, 5
          %v2533 = vsel %vm2173, %v2528, %v2532
          %v2535 = vshrl.u32 %v2120, 16
          %v2537 = vrot.slane %v2535, 4
          %v2538 = vshll.u32 %v2120, 16
          %v2540 = vrot.slane %v2538, 5
          %v2541 = vor.u32 %v2537, %v2540
          %v2542 = vrot.slane %v2541, 4
          %v2544 = vshll.u32 %v2121, 16
          %v2546 = vrot.slane %v2544, 5
          %v2547 = vsel %vm2173, %v2542, %v2546
          %v2548 = vshrl.u32 %v2121, 16
          %v2550 = vrot.slane %v2548, 4
          %v2551 = vor.u32 %v2550, %v2546
          %v2552 = vrot.slane %v2551, 4
          %v2554 = vshll.u32 %v2122, 16
          %v2556 = vrot.slane %v2554, 5
          %v2557 = vsel %vm2173, %v2552, %v2556
          %v2559 = vshrl.u32 %v2123, 16
          %v2561 = vrot.slane %v2559, 4
          %v2562 = vshll.u32 %v2123, 16
          %v2564 = vrot.slane %v2562, 5
          %v2565 = vor.u32 %v2561, %v2564
          %v2566 = vrot.slane %v2565, 4
          %v2568 = vshll.u32 %v2124, 16
          %v2570 = vrot.slane %v2568, 5
          %v2571 = vsel %vm2173, %v2566, %v2570
          %v2572 = vshrl.u32 %v2124, 16
          %v2574 = vrot.slane %v2572, 4
          %v2575 = vor.u32 %v2574, %v2570
          %v2576 = vrot.slane %v2575, 4
          %v2578 = vshll.u32 %v2125, 16
          %v2580 = vrot.slane %v2578, 5
          %v2581 = vsel %vm2173, %v2576, %v2580
          %v2583 = vshrl.u32 %v2126, 16
          %v2585 = vrot.slane %v2583, 4
          %v2586 = vshll.u32 %v2126, 16
          %v2588 = vrot.slane %v2586, 5
          %v2589 = vor.u32 %v2585, %v2588
          %v2590 = vrot.slane %v2589, 4
          %v2592 = vshll.u32 %v2127, 16
          %v2594 = vrot.slane %v2592, 5
          %v2595 = vsel %vm2173, %v2590, %v2594
          %v2596 = vshrl.u32 %v2127, 16
          %v2598 = vrot.slane %v2596, 4
          %v2599 = vor.u32 %v2598, %v2594
          %v2600 = vrot.slane %v2599, 4
          %v2602 = vshll.u32 %v2128, 16
          %v2604 = vrot.slane %v2602, 5
          %v2605 = vsel %vm2173, %v2600, %v2604
          %v2607 = vshrl.u32 %v2129, 16
          %v2609 = vrot.slane %v2607, 4
          %v2610 = vshll.u32 %v2129, 16
          %v2612 = vrot.slane %v2610, 5
          %v2613 = vor.u32 %v2609, %v2612
          %v2614 = vrot.slane %v2613, 4
          %v2616 = vshll.u32 %v2130, 16
          %v2618 = vrot.slane %v2616, 5
          %v2619 = vsel %vm2173, %v2614, %v2618
          %v2620 = vshrl.u32 %v2130, 16
          %v2622 = vrot.slane %v2620, 4
          %v2623 = vor.u32 %v2622, %v2618
          %v2624 = vrot.slane %v2623, 4
          %v2626 = vshll.u32 %v2131, 16
          %v2628 = vrot.slane %v2626, 5
          %v2629 = vsel %vm2173, %v2624, %v2628
          %v2631 = vshrl.u32 %v2132, 16
          %v2633 = vrot.slane %v2631, 4
          %v2634 = vshll.u32 %v2132, 16
          %v2636 = vrot.slane %v2634, 5
          %v2637 = vor.u32 %v2633, %v2636
          %v2638 = vrot.slane %v2637, 4
          %v2640 = vshll.u32 %v2133, 16
          %v2642 = vrot.slane %v2640, 5
          %v2643 = vsel %vm2173, %v2638, %v2642
          %v2644 = vshrl.u32 %v2133, 16
          %v2646 = vrot.slane %v2644, 4
          %v2647 = vor.u32 %v2646, %v2642
          %v2648 = vrot.slane %v2647, 4
          %v2650 = vshll.u32 %v2134, 16
          %v2652 = vrot.slane %v2650, 5
          %v2653 = vsel %vm2173, %v2648, %v2652
          %v2655 = vshrl.u32 %v2135, 16
          %v2657 = vrot.slane %v2655, 4
          %v2658 = vshll.u32 %v2135, 16
          %v2660 = vrot.slane %v2658, 5
          %v2661 = vor.u32 %v2657, %v2660
          %v2662 = vrot.slane %v2661, 4
          %v2664 = vshll.u32 %v2136, 16
          %v2666 = vrot.slane %v2664, 5
          %v2667 = vsel %vm2173, %v2662, %v2666
          %v2668 = vshrl.u32 %v2136, 16
          %v2670 = vrot.slane %v2668, 4
          %v2671 = vor.u32 %v2670, %v2666
          %v2672 = vrot.slane %v2671, 4
          %v2674 = vshll.u32 %v2137, 16
          %v2676 = vrot.slane %v2674, 5
          %v2677 = vsel %vm2173, %v2672, %v2676
          %v2679 = vshrl.u32 %v2138, 16
          %v2681 = vrot.slane %v2679, 4
          %v2682 = vshll.u32 %v2138, 16
          %v2684 = vrot.slane %v2682, 5
          %v2685 = vor.u32 %v2681, %v2684
          %v2686 = vrot.slane %v2685, 4
          %v2688 = vshll.u32 %v2139, 16
          %v2690 = vrot.slane %v2688, 5
          %v2691 = vsel %vm2173, %v2686, %v2690
          %v2692 = vshrl.u32 %v2139, 16
          %v2694 = vrot.slane %v2692, 4
          %v2695 = vor.u32 %v2694, %v2690
          %v2696 = vrot.slane %v2695, 4
          %v2698 = vshll.u32 %v2140, 16
          %v2700 = vrot.slane %v2698, 5
          %v2701 = vsel %vm2173, %v2696, %v2700
          %v2703 = vshrl.u32 %v2141, 16
          %v2705 = vrot.slane %v2703, 4
          %v2706 = vshll.u32 %v2141, 16
          %v2708 = vrot.slane %v2706, 5
          %v2709 = vor.u32 %v2705, %v2708
          %v2710 = vrot.slane %v2709, 4
          %v2712 = vshll.u32 %v2142, 16
          %v2714 = vrot.slane %v2712, 5
          %v2715 = vsel %vm2173, %v2710, %v2714
          %v2716 = vshrl.u32 %v2142, 16
          %v2718 = vrot.slane %v2716, 4
          %v2719 = vor.u32 %v2718, %v2714
          %v2720 = vrot.slane %v2719, 4
          %v2722 = vshll.u32 %v2143, 16
          %v2724 = vrot.slane %v2722, 5
          %v2725 = vsel %vm2173, %v2720, %v2724
          %v2727 = vshrl.u32 %v2144, 16
          %v2729 = vrot.slane %v2727, 4
          %v2730 = vshll.u32 %v2144, 16
          %v2732 = vrot.slane %v2730, 5
          %v2733 = vor.u32 %v2729, %v2732
          %v2734 = vrot.slane %v2733, 4
          %v2736 = vshll.u32 %v2145, 16
          %v2738 = vrot.slane %v2736, 5
          %v2739 = vsel %vm2173, %v2734, %v2738
          %v2740 = vshrl.u32 %v2145, 16
          %v2742 = vrot.slane %v2740, 4
          %v2743 = vor.u32 %v2742, %v2738
          %v2744 = vrot.slane %v2743, 4
          %v2746 = vshll.u32 %v2146, 16
          %v2748 = vrot.slane %v2746, 5
          %v2749 = vsel %vm2173, %v2744, %v2748
          %v2751 = vshrl.u32 %v2147, 16
          %v2753 = vrot.slane %v2751, 4
          %v2754 = vshll.u32 %v2147, 16
          %v2756 = vrot.slane %v2754, 5
          %v2757 = vor.u32 %v2753, %v2756
          %v2758 = vrot.slane %v2757, 4
          %v2760 = vshll.u32 %v2148, 16
          %v2762 = vrot.slane %v2760, 5
          %v2763 = vsel %vm2173, %v2758, %v2762
          %v2764 = vshrl.u32 %v2148, 16
          %v2766 = vrot.slane %v2764, 4
          %v2767 = vor.u32 %v2766, %v2762
          %v2768 = vrot.slane %v2767, 4
          %v2770 = vshll.u32 %v2149, 16
          %v2772 = vrot.slane %v2770, 5
          %v2773 = vsel %vm2173, %v2768, %v2772
          %v2775 = vshrl.u32 %v2150, 16
          %v2777 = vrot.slane %v2775, 4
          %v2778 = vshll.u32 %v2150, 16
          %v2780 = vrot.slane %v2778, 5
          %v2781 = vor.u32 %v2777, %v2780
          %v2782 = vrot.slane %v2781, 4
          %v2784 = vshll.u32 %v2151, 16
          %v2786 = vrot.slane %v2784, 5
          %v2787 = vsel %vm2173, %v2782, %v2786
          %v2788 = vshrl.u32 %v2151, 16
          %v2790 = vrot.slane %v2788, 4
          %v2791 = vor.u32 %v2790, %v2786
          %v2792 = vrot.slane %v2791, 4
          %v2794 = vshll.u32 %v2152, 16
          %v2796 = vrot.slane %v2794, 5
          %v2797 = vsel %vm2173, %v2792, %v2796
          %v2799 = vshrl.u32 %v2153, 16
          %v2801 = vrot.slane %v2799, 4
          %v2802 = vshll.u32 %v2153, 16
          %v2804 = vrot.slane %v2802, 5
          %v2805 = vor.u32 %v2801, %v2804
          %v2806 = vrot.slane %v2805, 4
          %v2808 = vshll.u32 %v2154, 16
          %v2810 = vrot.slane %v2808, 5
          %v2811 = vsel %vm2173, %v2806, %v2810
          %v2812 = vshrl.u32 %v2154, 16
          %v2814 = vrot.slane %v2812, 4
          %v2815 = vor.u32 %v2814, %v2810
          %v2816 = vrot.slane %v2815, 4
          %v2818 = vshll.u32 %v2155, 16
          %v2820 = vrot.slane %v2818, 5
          %v2821 = vsel %vm2173, %v2816, %v2820
          %v2823 = vshrl.u32 %v2156, 16
          %v2825 = vrot.slane %v2823, 4
          %v2826 = vshll.u32 %v2156, 16
          %v2828 = vrot.slane %v2826, 5
          %v2829 = vor.u32 %v2825, %v2828
          %v2830 = vrot.slane %v2829, 4
          %v2832 = vshll.u32 %v2157, 16
          %v2834 = vrot.slane %v2832, 5
          %v2835 = vsel %vm2173, %v2830, %v2834
          %v2836 = vshrl.u32 %v2157, 16
          %v2838 = vrot.slane %v2836, 4
          %v2839 = vor.u32 %v2838, %v2834
          %v2840 = vrot.slane %v2839, 4
          %v2842 = vshll.u32 %v2158, 16
          %v2844 = vrot.slane %v2842, 5
          %v2845 = vsel %vm2173, %v2840, %v2844
          %v2847 = vshrl.u32 %v2159, 16
          %v2849 = vrot.slane %v2847, 4
          %v2850 = vshll.u32 %v2159, 16
          %v2852 = vrot.slane %v2850, 5
          %v2853 = vor.u32 %v2849, %v2852
          %v2854 = vrot.slane %v2853, 4
          %v2856 = vshll.u32 %v2160, 16
          %v2858 = vrot.slane %v2856, 5
          %v2859 = vsel %vm2173, %v2854, %v2858
          %v2860 = vshrl.u32 %v2160, 16
          %v2862 = vrot.slane %v2860, 4
          %v2863 = vor.u32 %v2862, %v2858
          %v2864 = vrot.slane %v2863, 4
          %v2866 = vshll.u32 %v2161, 16
          %v2868 = vrot.slane %v2866, 5
          %v2869 = vsel %vm2173, %v2864, %v2868
          %v2871 = vshrl.u32 %v2162, 16
          %v2873 = vrot.slane %v2871, 4
          %v2874 = vshll.u32 %v2162, 16
          %v2876 = vrot.slane %v2874, 5
          %v2877 = vor.u32 %v2873, %v2876
          %v2878 = vrot.slane %v2877, 4
          %v2880 = vshll.u32 %v2163, 16
          %v2882 = vrot.slane %v2880, 5
          %v2883 = vsel %vm2173, %v2878, %v2882
          %v2884 = vshrl.u32 %v2163, 16
          %v2886 = vrot.slane %v2884, 4
          %v2887 = vor.u32 %v2886, %v2882
          %v2888 = vrot.slane %v2887, 4
          %v2890 = vshll.u32 %v2164, 16
          %v2892 = vrot.slane %v2890, 5
          %v2893 = vsel %vm2173, %v2888, %v2892
          %v2895 = vshrl.u32 %v2165, 16
          %v2897 = vrot.slane %v2895, 4
          %v2898 = vshll.u32 %v2165, 16
          %v2900 = vrot.slane %v2898, 5
          %v2901 = vor.u32 %v2897, %v2900
          %v2902 = vrot.slane %v2901, 4
          %v2904 = vshll.u32 %v2166, 16
          %v2906 = vrot.slane %v2904, 5
          %v2907 = vsel %vm2173, %v2902, %v2906
          %v2908 = vshrl.u32 %v2166, 16
          %v2910 = vrot.slane %v2908, 4
          %v2911 = vor.u32 %v2910, %v2906
          %v2912 = vrot.slane %v2911, 4
          %v2914 = vshll.u32 %v2167, 16
          %v2916 = vrot.slane %v2914, 5
          %v2917 = vsel %vm2173, %v2912, %v2916
          %v2919 = vshrl.u32 %v2168, 16
          %v2921 = vrot.slane %v2919, 4
          %v2922 = vshll.u32 %v2168, 16
          %v2924 = vrot.slane %v2922, 5
          %v2925 = vor.u32 %v2921, %v2924
          %v2926 = vrot.slane %v2925, 4
          %v2928 = vshll.u32 %v2169, 16
          %v2930 = vrot.slane %v2928, 5
          %v2931 = vsel %vm2173, %v2926, %v2930
          %v2932 = vshrl.u32 %v2169, 16
          %v2934 = vrot.slane %v2932, 4
          %v2935 = vor.u32 %v2934, %v2930
          %v2936 = vrot.slane %v2935, 4
          %v2938 = vshll.u32 %v2170, 16
          %v2940 = vrot.slane %v2938, 5
          %v2941 = vsel %vm2173, %v2936, %v2940
          %3006 = vst [vmem:[#allocation3 + $0x4] sm:$0xf] %v2187
          %3007 = vst [vmem:[#allocation3 + $0x28] sm:$0xf] %v2197
          %3008 = vst [vmem:[#allocation3 + $0x4c] sm:$0xf] %v2211
          %3009 = vst [vmem:[#allocation3 + $0x70] sm:$0xf] %v2221
          %3010 = vst [vmem:[#allocation3 + $0x94] sm:$0xf] %v2235
          %3011 = vst [vmem:[#allocation3 + $0xb8] sm:$0xf] %v2245
          %3012 = vst [vmem:[#allocation3 + $0xdc] sm:$0xf] %v2259
          %3013 = vst [vmem:[#allocation3 + $0x100] sm:$0xf] %v2269
          %3014 = vst [vmem:[#allocation3 + $0x124] sm:$0xf] %v2283
          %3015 = vst [vmem:[#allocation3 + $0x148] sm:$0xf] %v2293
          %3016 = vst [vmem:[#allocation3 + $0x16c] sm:$0xf] %v2307
          %3017 = vst [vmem:[#allocation3 + $0x190] sm:$0xf] %v2317
          %3018 = vst [vmem:[#allocation3 + $0x1b4] sm:$0xf] %v2331
          %3019 = vst [vmem:[#allocation3 + $0x1d8] sm:$0xf] %v2341
          %3020 = vst [vmem:[#allocation3 + $0x1fc] sm:$0xf] %v2355
          %3021 = vst [vmem:[#allocation3 + $0x220] sm:$0xf] %v2365
          %3022 = vst [vmem:[#allocation3 + $0x244] sm:$0xf] %v2379
          %3023 = vst [vmem:[#allocation3 + $0x268] sm:$0xf] %v2389
          %3024 = vst [vmem:[#allocation3 + $0x28c] sm:$0xf] %v2403
          %3025 = vst [vmem:[#allocation3 + $0x2b0] sm:$0xf] %v2413
          %3026 = vst [vmem:[#allocation3 + $0x2d4] sm:$0xf] %v2427
          %3027 = vst [vmem:[#allocation3 + $0x2f8] sm:$0xf] %v2437
          %3028 = vst [vmem:[#allocation3 + $0x31c] sm:$0xf] %v2451
          %3029 = vst [vmem:[#allocation3 + $0x340] sm:$0xf] %v2461
          %3030 = vst [vmem:[#allocation3 + $0x364] sm:$0xf] %v2475
          %3031 = vst [vmem:[#allocation3 + $0x388] sm:$0xf] %v2485
          %3032 = vst [vmem:[#allocation3 + $0x3ac] sm:$0xf] %v2499
          %3033 = vst [vmem:[#allocation3 + $0x3d0] sm:$0xf] %v2509
          %3034 = vst [vmem:[#allocation3 + $0x3f4] sm:$0xf] %v2523
          %3035 = vst [vmem:[#allocation3 + $0x418] sm:$0xf] %v2533
          %3036 = vst [vmem:[#allocation3 + $0x43c] sm:$0xf] %v2547
          %3037 = vst [vmem:[#allocation3 + $0x460] sm:$0xf] %v2557
          %3038 = vst [vmem:[#allocation3 + $0x484] sm:$0xf] %v2571
          %3039 = vst [vmem:[#allocation3 + $0x4a8] sm:$0xf] %v2581
          %3040 = vst [vmem:[#allocation3 + $0x4cc] sm:$0xf] %v2595
          %3041 = vst [vmem:[#allocation3 + $0x4f0] sm:$0xf] %v2605
          %3042 = vst [vmem:[#allocation3 + $0x514] sm:$0xf] %v2619
          %3043 = vst [vmem:[#allocation3 + $0x538] sm:$0xf] %v2629
          %3044 = vst [vmem:[#allocation3 + $0x55c] sm:$0xf] %v2643
          %3045 = vst [vmem:[#allocation3 + $0x580] sm:$0xf] %v2653
          %3046 = vst [vmem:[#allocation3 + $0x5a4] sm:$0xf] %v2667
          %3047 = vst [vmem:[#allocation3 + $0x5c8] sm:$0xf] %v2677
          %3048 = vst [vmem:[#allocation3 + $0x5ec] sm:$0xf] %v2691
          %3049 = vst [vmem:[#allocation3 + $0x610] sm:$0xf] %v2701
          %3050 = vst [vmem:[#allocation3 + $0x634] sm:$0xf] %v2715
          %3051 = vst [vmem:[#allocation3 + $0x658] sm:$0xf] %v2725
          %3052 = vst [vmem:[#allocation3 + $0x67c] sm:$0xf] %v2739
          %3053 = vst [vmem:[#allocation3 + $0x6a0] sm:$0xf] %v2749
          %3054 = vst [vmem:[#allocation3 + $0x6c4] sm:$0xf] %v2763
          %3055 = vst [vmem:[#allocation3 + $0x6e8] sm:$0xf] %v2773
          %3056 = vst [vmem:[#allocation3 + $0x70c] sm:$0xf] %v2787
          %3057 = vst [vmem:[#allocation3 + $0x730] sm:$0xf] %v2797
          %3058 = vst [vmem:[#allocation3 + $0x754] sm:$0xf] %v2811
          %3059 = vst [vmem:[#allocation3 + $0x778] sm:$0xf] %v2821
          %3060 = vst [vmem:[#allocation3 + $0x79c] sm:$0xf] %v2835
          %3061 = vst [vmem:[#allocation3 + $0x7c0] sm:$0xf] %v2845
          %3062 = vst [vmem:[#allocation3 + $0x7e4] sm:$0xf] %v2859
          %3063 = vst [vmem:[#allocation3 + $0x808] sm:$0xf] %v2869
          %3064 = vst [vmem:[#allocation3 + $0x82c] sm:$0xf] %v2883
          %3065 = vst [vmem:[#allocation3 + $0x850] sm:$0xf] %v2893
          %3066 = vst [vmem:[#allocation3 + $0x874] sm:$0xf] %v2907
          %3067 = vst [vmem:[#allocation3 + $0x898] sm:$0xf] %v2917
          %3068 = vst [vmem:[#allocation3 + $0x8bc] sm:$0xf] %v2931
          %3069 = vst [vmem:[#allocation3 + $0x8e0] sm:$0xf] %v2941
          %v3070 = vld [vmem:[#allocation2] sm:$0xe]
          %v3071 = vld [vmem:[#allocation2 + $0x4] sm:$0xf]
          %v3072 = vld [vmem:[#allocation2 + $0x8] sm:$0x1]
          %v3073 = vld [vmem:[#allocation2 + $0xc] sm:$0xe]
          %v3074 = vld [vmem:[#allocation2 + $0x10] sm:$0xf]
          %v3075 = vld [vmem:[#allocation2 + $0x14] sm:$0x1]
          %v3076 = vld [vmem:[#allocation2 + $0x18] sm:$0xe]
          %v3077 = vld [vmem:[#allocation2 + $0x1c] sm:$0xf]
          %v3078 = vld [vmem:[#allocation2 + $0x20] sm:$0x1]
          %v3079 = vld [vmem:[#allocation2 + $0x24] sm:$0xe]
          %v3080 = vld [vmem:[#allocation2 + $0x28] sm:$0xf]
          %v3081 = vld [vmem:[#allocation2 + $0x2c] sm:$0x1]
          %v3082 = vld [vmem:[#allocation2 + $0x30] sm:$0xe]
          %v3083 = vld [vmem:[#allocation2 + $0x34] sm:$0xf]
          %v3084 = vld [vmem:[#allocation2 + $0x38] sm:$0x1]
          %v3085 = vld [vmem:[#allocation2 + $0x3c] sm:$0xe]
          %v3086 = vld [vmem:[#allocation2 + $0x40] sm:$0xf]
          %v3087 = vld [vmem:[#allocation2 + $0x44] sm:$0x1]
          %v3088 = vld [vmem:[#allocation2 + $0x48] sm:$0xe]
          %v3089 = vld [vmem:[#allocation2 + $0x4c] sm:$0xf]
          %v3090 = vld [vmem:[#allocation2 + $0x50] sm:$0x1]
          %v3091 = vld [vmem:[#allocation2 + $0x54] sm:$0xe]
          %v3092 = vld [vmem:[#allocation2 + $0x58] sm:$0xf]
          %v3093 = vld [vmem:[#allocation2 + $0x5c] sm:$0x1]
          %v3094 = vld [vmem:[#allocation2 + $0x60] sm:$0xe]
          %v3095 = vld [vmem:[#allocation2 + $0x64] sm:$0xf]
          %v3096 = vld [vmem:[#allocation2 + $0x68] sm:$0x1]
          %v3097 = vld [vmem:[#allocation2 + $0x6c] sm:$0xe]
          %v3098 = vld [vmem:[#allocation2 + $0x70] sm:$0xf]
          %v3099 = vld [vmem:[#allocation2 + $0x74] sm:$0x1]
          %v3100 = vld [vmem:[#allocation2 + $0x78] sm:$0xe]
          %v3101 = vld [vmem:[#allocation2 + $0x7c] sm:$0xf]
          %v3102 = vld [vmem:[#allocation2 + $0x80] sm:$0x1]
          %v3103 = vld [vmem:[#allocation2 + $0x84] sm:$0xe]
          %v3104 = vld [vmem:[#allocation2 + $0x88] sm:$0xf]
          %v3105 = vld [vmem:[#allocation2 + $0x8c] sm:$0x1]
          %v3106 = vld [vmem:[#allocation2 + $0x90] sm:$0xe]
          %v3107 = vld [vmem:[#allocation2 + $0x94] sm:$0xf]
          %v3108 = vld [vmem:[#allocation2 + $0x98] sm:$0x1]
          %v3109 = vld [vmem:[#allocation2 + $0x9c] sm:$0xe]
          %v3110 = vld [vmem:[#allocation2 + $0xa0] sm:$0xf]
          %v3111 = vld [vmem:[#allocation2 + $0xa4] sm:$0x1]
          %v3112 = vld [vmem:[#allocation2 + $0xa8] sm:$0xe]
          %v3113 = vld [vmem:[#allocation2 + $0xac] sm:$0xf]
          %v3114 = vld [vmem:[#allocation2 + $0xb0] sm:$0x1]
          %v3115 = vld [vmem:[#allocation2 + $0xb4] sm:$0xe]
          %v3116 = vld [vmem:[#allocation2 + $0xb8] sm:$0xf]
          %v3117 = vld [vmem:[#allocation2 + $0xbc] sm:$0x1]
          %v3118 = vld [vmem:[#allocation2 + $0xd8] sm:$0xe]
          %v3119 = vld [vmem:[#allocation2 + $0xdc] sm:$0xf]
          %v3120 = vld [vmem:[#allocation2 + $0xe0] sm:$0x1]
          %v3121 = vld [vmem:[#allocation2 + $0xe4] sm:$0xe]
          %v3122 = vld [vmem:[#allocation2 + $0xe8] sm:$0xf]
          %v3123 = vld [vmem:[#allocation2 + $0xec] sm:$0x1]
          %v3124 = vld [vmem:[#allocation2 + $0xf0] sm:$0xe]
          %v3125 = vld [vmem:[#allocation2 + $0xf4] sm:$0xf]
          %v3126 = vld [vmem:[#allocation2 + $0xf8] sm:$0x1]
          %v3127 = vld [vmem:[#allocation2 + $0xfc] sm:$0xe]
          %v3128 = vld [vmem:[#allocation2 + $0x100] sm:$0xf]
          %v3129 = vld [vmem:[#allocation2 + $0x104] sm:$0x1]
          %v3130 = vld [vmem:[#allocation2 + $0x108] sm:$0xe]
          %v3131 = vld [vmem:[#allocation2 + $0x10c] sm:$0xf]
          %v3132 = vld [vmem:[#allocation2 + $0x110] sm:$0x1]
          %v3133 = vld [vmem:[#allocation2 + $0x114] sm:$0xe]
          %v3134 = vld [vmem:[#allocation2 + $0x118] sm:$0xf]
          %v3135 = vld [vmem:[#allocation2 + $0x11c] sm:$0x1]
          %v3136 = vld [vmem:[#allocation2 + $0x120] sm:$0xe]
          %v3137 = vld [vmem:[#allocation2 + $0x124] sm:$0xf]
          %v3138 = vld [vmem:[#allocation2 + $0x128] sm:$0x1]
          %v3139 = vld [vmem:[#allocation2 + $0x12c] sm:$0xe]
          %v3140 = vld [vmem:[#allocation2 + $0x130] sm:$0xf]
          %v3141 = vld [vmem:[#allocation2 + $0x134] sm:$0x1]
          %v3142 = vld [vmem:[#allocation2 + $0x138] sm:$0xe]
          %v3143 = vld [vmem:[#allocation2 + $0x13c] sm:$0xf]
          %v3144 = vld [vmem:[#allocation2 + $0x140] sm:$0x1]
          %v3145 = vld [vmem:[#allocation2 + $0x144] sm:$0xe]
          %v3146 = vld [vmem:[#allocation2 + $0x148] sm:$0xf]
          %v3147 = vld [vmem:[#allocation2 + $0x14c] sm:$0x1]
          %v3148 = vld [vmem:[#allocation2 + $0x150] sm:$0xe]
          %v3149 = vld [vmem:[#allocation2 + $0x154] sm:$0xf]
          %v3150 = vld [vmem:[#allocation2 + $0x158] sm:$0x1]
          %v3151 = vld [vmem:[#allocation2 + $0x15c] sm:$0xe]
          %v3152 = vld [vmem:[#allocation2 + $0x160] sm:$0xf]
          %v3153 = vld [vmem:[#allocation2 + $0x164] sm:$0x1]
          %v3154 = vld [vmem:[#allocation2 + $0x168] sm:$0xe]
          %v3155 = vld [vmem:[#allocation2 + $0x16c] sm:$0xf]
          %v3156 = vld [vmem:[#allocation2 + $0x170] sm:$0x1]
          %v3157 = vld [vmem:[#allocation2 + $0x174] sm:$0xe]
          %v3158 = vld [vmem:[#allocation2 + $0x178] sm:$0xf]
          %v3159 = vld [vmem:[#allocation2 + $0x17c] sm:$0x1]
          %v3160 = vld [vmem:[#allocation2 + $0x180] sm:$0xe]
          %v3161 = vld [vmem:[#allocation2 + $0x184] sm:$0xf]
          %v3162 = vld [vmem:[#allocation2 + $0x188] sm:$0x1]
          %v3163 = vld [vmem:[#allocation2 + $0x18c] sm:$0xe]
          %v3164 = vld [vmem:[#allocation2 + $0x190] sm:$0xf]
          %v3165 = vld [vmem:[#allocation2 + $0x194] sm:$0x1]
          %vm3262 = vcmask 1042432
          %vm3263 = vcmask 1046532
          %vm3264 = vmor %vm3262, %vm3263
          %v3265 = vrot.slane %v3070, 5
          %v3266 = vrot.slane %v3265, 4
          %v3267 = vrot.slane %v3071, 5
          %v3268 = vsel %vm3264, %v3266, %v3267
          %v3269 = vrot.slane %v3267, 4
          %v3270 = vrot.slane %v3072, 5
          %v3271 = vsel %vm3264, %v3269, %v3270
          %v3272 = vrot.slane %v3073, 5
          %v3273 = vrot.slane %v3272, 4
          %v3274 = vrot.slane %v3074, 5
          %v3275 = vsel %vm3264, %v3273, %v3274
          %v3276 = vrot.slane %v3274, 4
          %v3277 = vrot.slane %v3075, 5
          %v3278 = vsel %vm3264, %v3276, %v3277
          %v3279 = vrot.slane %v3076, 5
          %v3280 = vrot.slane %v3279, 4
          %v3281 = vrot.slane %v3077, 5
          %v3282 = vsel %vm3264, %v3280, %v3281
          %v3283 = vrot.slane %v3281, 4
          %v3284 = vrot.slane %v3078, 5
          %v3285 = vsel %vm3264, %v3283, %v3284
          %v3286 = vrot.slane %v3079, 5
          %v3287 = vrot.slane %v3286, 4
          %v3288 = vrot.slane %v3080, 5
          %v3289 = vsel %vm3264, %v3287, %v3288
          %v3290 = vrot.slane %v3288, 4
          %v3291 = vrot.slane %v3081, 5
          %v3292 = vsel %vm3264, %v3290, %v3291
          %v3293 = vrot.slane %v3082, 5
          %v3294 = vrot.slane %v3293, 4
          %v3295 = vrot.slane %v3083, 5
          %v3296 = vsel %vm3264, %v3294, %v3295
          %v3297 = vrot.slane %v3295, 4
          %v3298 = vrot.slane %v3084, 5
          %v3299 = vsel %vm3264, %v3297, %v3298
          %v3300 = vrot.slane %v3085, 5
          %v3301 = vrot.slane %v3300, 4
          %v3302 = vrot.slane %v3086, 5
          %v3303 = vsel %vm3264, %v3301, %v3302
          %v3304 = vrot.slane %v3302, 4
          %v3305 = vrot.slane %v3087, 5
          %v3306 = vsel %vm3264, %v3304, %v3305
          %v3307 = vrot.slane %v3088, 5
          %v3308 = vrot.slane %v3307, 4
          %v3309 = vrot.slane %v3089, 5
          %v3310 = vsel %vm3264, %v3308, %v3309
          %v3311 = vrot.slane %v3309, 4
          %v3312 = vrot.slane %v3090, 5
          %v3313 = vsel %vm3264, %v3311, %v3312
          %v3314 = vrot.slane %v3091, 5
          %v3315 = vrot.slane %v3314, 4
          %v3316 = vrot.slane %v3092, 5
          %v3317 = vsel %vm3264, %v3315, %v3316
          %v3318 = vrot.slane %v3316, 4
          %v3319 = vrot.slane %v3093, 5
          %v3320 = vsel %vm3264, %v3318, %v3319
          %v3321 = vrot.slane %v3094, 5
          %v3322 = vrot.slane %v3321, 4
          %v3323 = vrot.slane %v3095, 5
          %v3324 = vsel %vm3264, %v3322, %v3323
          %v3325 = vrot.slane %v3323, 4
          %v3326 = vrot.slane %v3096, 5
          %v3327 = vsel %vm3264, %v3325, %v3326
          %v3328 = vrot.slane %v3097, 5
          %v3329 = vrot.slane %v3328, 4
          %v3330 = vrot.slane %v3098, 5
          %v3331 = vsel %vm3264, %v3329, %v3330
          %v3332 = vrot.slane %v3330, 4
          %v3333 = vrot.slane %v3099, 5
          %v3334 = vsel %vm3264, %v3332, %v3333
          %v3335 = vrot.slane %v3100, 5
          %v3336 = vrot.slane %v3335, 4
          %v3337 = vrot.slane %v3101, 5
          %v3338 = vsel %vm3264, %v3336, %v3337
          %v3339 = vrot.slane %v3337, 4
          %v3340 = vrot.slane %v3102, 5
          %v3341 = vsel %vm3264, %v3339, %v3340
          %v3342 = vrot.slane %v3103, 5
          %v3343 = vrot.slane %v3342, 4
          %v3344 = vrot.slane %v3104, 5
          %v3345 = vsel %vm3264, %v3343, %v3344
          %v3346 = vrot.slane %v3344, 4
          %v3347 = vrot.slane %v3105, 5
          %v3348 = vsel %vm3264, %v3346, %v3347
          %v3349 = vrot.slane %v3106, 5
          %v3350 = vrot.slane %v3349, 4
          %v3351 = vrot.slane %v3107, 5
          %v3352 = vsel %vm3264, %v3350, %v3351
          %v3353 = vrot.slane %v3351, 4
          %v3354 = vrot.slane %v3108, 5
          %v3355 = vsel %vm3264, %v3353, %v3354
          %v3356 = vrot.slane %v3109, 5
          %v3357 = vrot.slane %v3356, 4
          %v3358 = vrot.slane %v3110, 5
          %v3359 = vsel %vm3264, %v3357, %v3358
          %v3360 = vrot.slane %v3358, 4
          %v3361 = vrot.slane %v3111, 5
          %v3362 = vsel %vm3264, %v3360, %v3361
          %v3363 = vrot.slane %v3112, 5
          %v3364 = vrot.slane %v3363, 4
          %v3365 = vrot.slane %v3113, 5
          %v3366 = vsel %vm3264, %v3364, %v3365
          %v3367 = vrot.slane %v3365, 4
          %v3368 = vrot.slane %v3114, 5
          %v3369 = vsel %vm3264, %v3367, %v3368
          %v3370 = vrot.slane %v3115, 5
          %v3371 = vrot.slane %v3370, 4
          %v3372 = vrot.slane %v3116, 5
          %v3373 = vsel %vm3264, %v3371, %v3372
          %v3374 = vrot.slane %v3372, 4
          %v3375 = vrot.slane %v3117, 5
          %v3376 = vsel %vm3264, %v3374, %v3375
          %v3377 = vrot.slane %v3118, 5
          %v3378 = vrot.slane %v3377, 4
          %v3379 = vrot.slane %v3119, 5
          %v3380 = vsel %vm3264, %v3378, %v3379
          %v3381 = vrot.slane %v3379, 4
          %v3382 = vrot.slane %v3120, 5
          %v3383 = vsel %vm3264, %v3381, %v3382
          %v3384 = vrot.slane %v3121, 5
          %v3385 = vrot.slane %v3384, 4
          %v3386 = vrot.slane %v3122, 5
          %v3387 = vsel %vm3264, %v3385, %v3386
          %v3388 = vrot.slane %v3386, 4
          %v3389 = vrot.slane %v3123, 5
          %v3390 = vsel %vm3264, %v3388, %v3389
          %v3391 = vrot.slane %v3124, 5
          %v3392 = vrot.slane %v3391, 4
          %v3393 = vrot.slane %v3125, 5
          %v3394 = vsel %vm3264, %v3392, %v3393
          %v3395 = vrot.slane %v3393, 4
          %v3396 = vrot.slane %v3126, 5
          %v3397 = vsel %vm3264, %v3395, %v3396
          %v3398 = vrot.slane %v3127, 5
          %v3399 = vrot.slane %v3398, 4
          %v3400 = vrot.slane %v3128, 5
          %v3401 = vsel %vm3264, %v3399, %v3400
          %v3402 = vrot.slane %v3400, 4
          %v3403 = vrot.slane %v3129, 5
          %v3404 = vsel %vm3264, %v3402, %v3403
          %v3405 = vrot.slane %v3130, 5
          %v3406 = vrot.slane %v3405, 4
          %v3407 = vrot.slane %v3131, 5
          %v3408 = vsel %vm3264, %v3406, %v3407
          %v3409 = vrot.slane %v3407, 4
          %v3410 = vrot.slane %v3132, 5
          %v3411 = vsel %vm3264, %v3409, %v3410
          %v3412 = vrot.slane %v3133, 5
          %v3413 = vrot.slane %v3412, 4
          %v3414 = vrot.slane %v3134, 5
          %v3415 = vsel %vm3264, %v3413, %v3414
          %v3416 = vrot.slane %v3414, 4
          %v3417 = vrot.slane %v3135, 5
          %v3418 = vsel %vm3264, %v3416, %v3417
          %v3419 = vrot.slane %v3136, 5
          %v3420 = vrot.slane %v3419, 4
          %v3421 = vrot.slane %v3137, 5
          %v3422 = vsel %vm3264, %v3420, %v3421
          %v3423 = vrot.slane %v3421, 4
          %v3424 = vrot.slane %v3138, 5
          %v3425 = vsel %vm3264, %v3423, %v3424
          %v3426 = vrot.slane %v3139, 5
          %v3427 = vrot.slane %v3426, 4
          %v3428 = vrot.slane %v3140, 5
          %v3429 = vsel %vm3264, %v3427, %v3428
          %v3430 = vrot.slane %v3428, 4
          %v3431 = vrot.slane %v3141, 5
          %v3432 = vsel %vm3264, %v3430, %v3431
          %v3433 = vrot.slane %v3142, 5
          %v3434 = vrot.slane %v3433, 4
          %v3435 = vrot.slane %v3143, 5
          %v3436 = vsel %vm3264, %v3434, %v3435
          %v3437 = vrot.slane %v3435, 4
          %v3438 = vrot.slane %v3144, 5
          %v3439 = vsel %vm3264, %v3437, %v3438
          %v3440 = vrot.slane %v3145, 5
          %v3441 = vrot.slane %v3440, 4
          %v3442 = vrot.slane %v3146, 5
          %v3443 = vsel %vm3264, %v3441, %v3442
          %v3444 = vrot.slane %v3442, 4
          %v3445 = vrot.slane %v3147, 5
          %v3446 = vsel %vm3264, %v3444, %v3445
          %v3447 = vrot.slane %v3148, 5
          %v3448 = vrot.slane %v3447, 4
          %v3449 = vrot.slane %v3149, 5
          %v3450 = vsel %vm3264, %v3448, %v3449
          %v3451 = vrot.slane %v3449, 4
          %v3452 = vrot.slane %v3150, 5
          %v3453 = vsel %vm3264, %v3451, %v3452
          %v3454 = vrot.slane %v3151, 5
          %v3455 = vrot.slane %v3454, 4
          %v3456 = vrot.slane %v3152, 5
          %v3457 = vsel %vm3264, %v3455, %v3456
          %v3458 = vrot.slane %v3456, 4
          %v3459 = vrot.slane %v3153, 5
          %v3460 = vsel %vm3264, %v3458, %v3459
          %v3461 = vrot.slane %v3154, 5
          %v3462 = vrot.slane %v3461, 4
          %v3463 = vrot.slane %v3155, 5
          %v3464 = vsel %vm3264, %v3462, %v3463
          %v3465 = vrot.slane %v3463, 4
          %v3466 = vrot.slane %v3156, 5
          %v3467 = vsel %vm3264, %v3465, %v3466
          %v3468 = vrot.slane %v3157, 5
          %v3469 = vrot.slane %v3468, 4
          %v3470 = vrot.slane %v3158, 5
          %v3471 = vsel %vm3264, %v3469, %v3470
          %v3472 = vrot.slane %v3470, 4
          %v3473 = vrot.slane %v3159, 5
          %v3474 = vsel %vm3264, %v3472, %v3473
          %v3475 = vrot.slane %v3160, 5
          %v3476 = vrot.slane %v3475, 4
          %v3477 = vrot.slane %v3161, 5
          %v3478 = vsel %vm3264, %v3476, %v3477
          %v3479 = vrot.slane %v3477, 4
          %v3480 = vrot.slane %v3162, 5
          %v3481 = vsel %vm3264, %v3479, %v3480
          %v3482 = vrot.slane %v3163, 5
          %v3483 = vrot.slane %v3482, 4
          %v3484 = vrot.slane %v3164, 5
          %v3485 = vsel %vm3264, %v3483, %v3484
          %v3486 = vrot.slane %v3484, 4
          %v3487 = vrot.slane %v3165, 5
          %v3488 = vsel %vm3264, %v3486, %v3487
          %3553 = vst [vmem:[#allocation3 + $0x8] sm:$0xf] %v3268
          %3554 = vst [vmem:[#allocation3 + $0x2c] sm:$0xf] %v3271
          %3555 = vst [vmem:[#allocation3 + $0x50] sm:$0xf] %v3275
          %3556 = vst [vmem:[#allocation3 + $0x74] sm:$0xf] %v3278
          %3557 = vst [vmem:[#allocation3 + $0x98] sm:$0xf] %v3282
          %3558 = vst [vmem:[#allocation3 + $0xbc] sm:$0xf] %v3285
          %3559 = vst [vmem:[#allocation3 + $0xe0] sm:$0xf] %v3289
          %3560 = vst [vmem:[#allocation3 + $0x104] sm:$0xf] %v3292
          %3561 = vst [vmem:[#allocation3 + $0x128] sm:$0xf] %v3296
          %3562 = vst [vmem:[#allocation3 + $0x14c] sm:$0xf] %v3299
          %3563 = vst [vmem:[#allocation3 + $0x170] sm:$0xf] %v3303
          %3564 = vst [vmem:[#allocation3 + $0x194] sm:$0xf] %v3306
          %3565 = vst [vmem:[#allocation3 + $0x1b8] sm:$0xf] %v3310
          %3566 = vst [vmem:[#allocation3 + $0x1dc] sm:$0xf] %v3313
          %3567 = vst [vmem:[#allocation3 + $0x200] sm:$0xf] %v3317
          %3568 = vst [vmem:[#allocation3 + $0x224] sm:$0xf] %v3320
          %3569 = vst [vmem:[#allocation3 + $0x248] sm:$0xf] %v3324
          %3570 = vst [vmem:[#allocation3 + $0x26c] sm:$0xf] %v3327
          %3571 = vst [vmem:[#allocation3 + $0x290] sm:$0xf] %v3331
          %3572 = vst [vmem:[#allocation3 + $0x2b4] sm:$0xf] %v3334
          %3573 = vst [vmem:[#allocation3 + $0x2d8] sm:$0xf] %v3338
          %3574 = vst [vmem:[#allocation3 + $0x2fc] sm:$0xf] %v3341
          %3575 = vst [vmem:[#allocation3 + $0x320] sm:$0xf] %v3345
          %3576 = vst [vmem:[#allocation3 + $0x344] sm:$0xf] %v3348
          %3577 = vst [vmem:[#allocation3 + $0x368] sm:$0xf] %v3352
          %3578 = vst [vmem:[#allocation3 + $0x38c] sm:$0xf] %v3355
          %3579 = vst [vmem:[#allocation3 + $0x3b0] sm:$0xf] %v3359
          %3580 = vst [vmem:[#allocation3 + $0x3d4] sm:$0xf] %v3362
          %3581 = vst [vmem:[#allocation3 + $0x3f8] sm:$0xf] %v3366
          %3582 = vst [vmem:[#allocation3 + $0x41c] sm:$0xf] %v3369
          %3583 = vst [vmem:[#allocation3 + $0x440] sm:$0xf] %v3373
          %3584 = vst [vmem:[#allocation3 + $0x464] sm:$0xf] %v3376
          %3585 = vst [vmem:[#allocation3 + $0x488] sm:$0xf] %v3380
          %3586 = vst [vmem:[#allocation3 + $0x4ac] sm:$0xf] %v3383
          %3587 = vst [vmem:[#allocation3 + $0x4d0] sm:$0xf] %v3387
          %3588 = vst [vmem:[#allocation3 + $0x4f4] sm:$0xf] %v3390
          %3589 = vst [vmem:[#allocation3 + $0x518] sm:$0xf] %v3394
          %3590 = vst [vmem:[#allocation3 + $0x53c] sm:$0xf] %v3397
          %3591 = vst [vmem:[#allocation3 + $0x560] sm:$0xf] %v3401
          %3592 = vst [vmem:[#allocation3 + $0x584] sm:$0xf] %v3404
          %3593 = vst [vmem:[#allocation3 + $0x5a8] sm:$0xf] %v3408
          %3594 = vst [vmem:[#allocation3 + $0x5cc] sm:$0xf] %v3411
          %3595 = vst [vmem:[#allocation3 + $0x5f0] sm:$0xf] %v3415
          %3596 = vst [vmem:[#allocation3 + $0x614] sm:$0xf] %v3418
          %3597 = vst [vmem:[#allocation3 + $0x638] sm:$0xf] %v3422
          %3598 = vst [vmem:[#allocation3 + $0x65c] sm:$0xf] %v3425
          %3599 = vst [vmem:[#allocation3 + $0x680] sm:$0xf] %v3429
          %3600 = vst [vmem:[#allocation3 + $0x6a4] sm:$0xf] %v3432
          %3601 = vst [vmem:[#allocation3 + $0x6c8] sm:$0xf] %v3436
          %3602 = vst [vmem:[#allocation3 + $0x6ec] sm:$0xf] %v3439
          %3603 = vst [vmem:[#allocation3 + $0x710] sm:$0xf] %v3443
          %3604 = vst [vmem:[#allocation3 + $0x734] sm:$0xf] %v3446
          %3605 = vst [vmem:[#allocation3 + $0x758] sm:$0xf] %v3450
          %3606 = vst [vmem:[#allocation3 + $0x77c] sm:$0xf] %v3453
          %3607 = vst [vmem:[#allocation3 + $0x7a0] sm:$0xf] %v3457
          %3608 = vst [vmem:[#allocation3 + $0x7c4] sm:$0xf] %v3460
          %3609 = vst [vmem:[#allocation3 + $0x7e8] sm:$0xf] %v3464
          %3610 = vst [vmem:[#allocation3 + $0x80c] sm:$0xf] %v3467
          %3611 = vst [vmem:[#allocation3 + $0x830] sm:$0xf] %v3471
          %3612 = vst [vmem:[#allocation3 + $0x854] sm:$0xf] %v3474
          %3613 = vst [vmem:[#allocation3 + $0x878] sm:$0xf] %v3478
          %3614 = vst [vmem:[#allocation3 + $0x89c] sm:$0xf] %v3481
          %3615 = vst [vmem:[#allocation3 + $0x8c0] sm:$0xf] %v3485
          %3616 = vst [vmem:[#allocation3 + $0x8e4] sm:$0xf] %v3488
          %s3617 = scalar_lea.vmem [#allocation2], 12
          %v3618 = vld [vmem:[%s3617] sm:$0xf]
          %v3619 = vld [vmem:[%s3617 + $0x4] sm:$0xf]
          %v3620 = vld [vmem:[%s3617 + $0xc] sm:$0xf]
          %v3621 = vld [vmem:[%s3617 + $0x10] sm:$0xf]
          %v3622 = vld [vmem:[%s3617 + $0x18] sm:$0xf]
          %v3623 = vld [vmem:[%s3617 + $0x1c] sm:$0xf]
          %v3624 = vld [vmem:[%s3617 + $0x24] sm:$0xf]
          %v3625 = vld [vmem:[%s3617 + $0x28] sm:$0xf]
          %v3626 = vld [vmem:[%s3617 + $0x30] sm:$0xf]
          %v3627 = vld [vmem:[%s3617 + $0x34] sm:$0xf]
          %v3628 = vld [vmem:[%s3617 + $0x3c] sm:$0xf]
          %v3629 = vld [vmem:[%s3617 + $0x40] sm:$0xf]
          %v3630 = vld [vmem:[%s3617 + $0x48] sm:$0xf]
          %v3631 = vld [vmem:[%s3617 + $0x4c] sm:$0xf]
          %v3632 = vld [vmem:[%s3617 + $0x54] sm:$0xf]
          %v3633 = vld [vmem:[%s3617 + $0x58] sm:$0xf]
          %v3634 = vld [vmem:[%s3617 + $0x60] sm:$0xf]
          %v3635 = vld [vmem:[%s3617 + $0x64] sm:$0xf]
          %v3636 = vld [vmem:[%s3617 + $0x6c] sm:$0xf]
          %v3637 = vld [vmem:[%s3617 + $0x70] sm:$0xf]
          %v3638 = vld [vmem:[%s3617 + $0x78] sm:$0xf]
          %v3639 = vld [vmem:[%s3617 + $0x7c] sm:$0xf]
          %v3640 = vld [vmem:[%s3617 + $0x84] sm:$0xf]
          %v3641 = vld [vmem:[%s3617 + $0x88] sm:$0xf]
          %v3642 = vld [vmem:[%s3617 + $0x90] sm:$0xf]
          %v3643 = vld [vmem:[%s3617 + $0x94] sm:$0xf]
          %v3644 = vld [vmem:[%s3617 + $0x9c] sm:$0xf]
          %v3645 = vld [vmem:[%s3617 + $0xa0] sm:$0xf]
          %v3646 = vld [vmem:[%s3617 + $0xa8] sm:$0xf]
          %v3647 = vld [vmem:[%s3617 + $0xac] sm:$0xf]
          %v3648 = vld [vmem:[%s3617 + $0xb4] sm:$0xf]
          %v3649 = vld [vmem:[%s3617 + $0xb8] sm:$0xf]
          %v3650 = vld [vmem:[%s3617 + $0xd8] sm:$0xf]
          %v3651 = vld [vmem:[%s3617 + $0xdc] sm:$0xf]
          %v3652 = vld [vmem:[%s3617 + $0xe4] sm:$0xf]
          %v3653 = vld [vmem:[%s3617 + $0xe8] sm:$0xf]
          %v3654 = vld [vmem:[%s3617 + $0xf0] sm:$0xf]
          %v3655 = vld [vmem:[%s3617 + $0xf4] sm:$0xf]
          %v3656 = vld [vmem:[%s3617 + $0xfc] sm:$0xf]
          %v3657 = vld [vmem:[%s3617 + $0x100] sm:$0xf]
          %v3658 = vld [vmem:[%s3617 + $0x108] sm:$0xf]
          %v3659 = vld [vmem:[%s3617 + $0x10c] sm:$0xf]
          %v3660 = vld [vmem:[%s3617 + $0x114] sm:$0xf]
          %v3661 = vld [vmem:[%s3617 + $0x118] sm:$0xf]
          %v3662 = vld [vmem:[%s3617 + $0x120] sm:$0xf]
          %v3663 = vld [vmem:[%s3617 + $0x124] sm:$0xf]
          %v3664 = vld [vmem:[%s3617 + $0x12c] sm:$0xf]
          %v3665 = vld [vmem:[%s3617 + $0x130] sm:$0xf]
          %v3666 = vld [vmem:[%s3617 + $0x138] sm:$0xf]
          %v3667 = vld [vmem:[%s3617 + $0x13c] sm:$0xf]
          %v3668 = vld [vmem:[%s3617 + $0x144] sm:$0xf]
          %v3669 = vld [vmem:[%s3617 + $0x148] sm:$0xf]
          %v3670 = vld [vmem:[%s3617 + $0x150] sm:$0xf]
          %v3671 = vld [vmem:[%s3617 + $0x154] sm:$0xf]
          %v3672 = vld [vmem:[%s3617 + $0x15c] sm:$0xf]
          %v3673 = vld [vmem:[%s3617 + $0x160] sm:$0xf]
          %v3674 = vld [vmem:[%s3617 + $0x168] sm:$0xf]
          %v3675 = vld [vmem:[%s3617 + $0x16c] sm:$0xf]
          %v3676 = vld [vmem:[%s3617 + $0x174] sm:$0xf]
          %v3677 = vld [vmem:[%s3617 + $0x178] sm:$0xf]
          %v3678 = vld [vmem:[%s3617 + $0x180] sm:$0xf]
          %v3679 = vld [vmem:[%s3617 + $0x184] sm:$0xf]
          %v3680 = vld [vmem:[%s3617 + $0x18c] sm:$0xf]
          %v3681 = vld [vmem:[%s3617 + $0x190] sm:$0xf]
          %3682 = vst [vmem:[#allocation3 + $0xc] sm:$0xf] %v3618
          %3683 = vst [vmem:[#allocation3 + $0x30] sm:$0xf] %v3619
          %3684 = vst [vmem:[#allocation3 + $0x54] sm:$0xf] %v3620
          %3685 = vst [vmem:[#allocation3 + $0x78] sm:$0xf] %v3621
          %3686 = vst [vmem:[#allocation3 + $0x9c] sm:$0xf] %v3622
          %3687 = vst [vmem:[#allocation3 + $0xc0] sm:$0xf] %v3623
          %3688 = vst [vmem:[#allocation3 + $0xe4] sm:$0xf] %v3624
          %3689 = vst [vmem:[#allocation3 + $0x108] sm:$0xf] %v3625
          %3690 = vst [vmem:[#allocation3 + $0x12c] sm:$0xf] %v3626
          %3691 = vst [vmem:[#allocation3 + $0x150] sm:$0xf] %v3627
          %3692 = vst [vmem:[#allocation3 + $0x174] sm:$0xf] %v3628
          %3693 = vst [vmem:[#allocation3 + $0x198] sm:$0xf] %v3629
          %3694 = vst [vmem:[#allocation3 + $0x1bc] sm:$0xf] %v3630
          %3695 = vst [vmem:[#allocation3 + $0x1e0] sm:$0xf] %v3631
          %3696 = vst [vmem:[#allocation3 + $0x204] sm:$0xf] %v3632
          %3697 = vst [vmem:[#allocation3 + $0x228] sm:$0xf] %v3633
          %3698 = vst [vmem:[#allocation3 + $0x24c] sm:$0xf] %v3634
          %3699 = vst [vmem:[#allocation3 + $0x270] sm:$0xf] %v3635
          %3700 = vst [vmem:[#allocation3 + $0x294] sm:$0xf] %v3636
          %3701 = vst [vmem:[#allocation3 + $0x2b8] sm:$0xf] %v3637
          %3702 = vst [vmem:[#allocation3 + $0x2dc] sm:$0xf] %v3638
          %3703 = vst [vmem:[#allocation3 + $0x300] sm:$0xf] %v3639
          %3704 = vst [vmem:[#allocation3 + $0x324] sm:$0xf] %v3640
          %3705 = vst [vmem:[#allocation3 + $0x348] sm:$0xf] %v3641
          %3706 = vst [vmem:[#allocation3 + $0x36c] sm:$0xf] %v3642
          %3707 = vst [vmem:[#allocation3 + $0x390] sm:$0xf] %v3643
          %3708 = vst [vmem:[#allocation3 + $0x3b4] sm:$0xf] %v3644
          %3709 = vst [vmem:[#allocation3 + $0x3d8] sm:$0xf] %v3645
          %3710 = vst [vmem:[#allocation3 + $0x3fc] sm:$0xf] %v3646
          %3711 = vst [vmem:[#allocation3 + $0x420] sm:$0xf] %v3647
          %3712 = vst [vmem:[#allocation3 + $0x444] sm:$0xf] %v3648
          %3713 = vst [vmem:[#allocation3 + $0x468] sm:$0xf] %v3649
          %3714 = vst [vmem:[#allocation3 + $0x48c] sm:$0xf] %v3650
          %3715 = vst [vmem:[#allocation3 + $0x4b0] sm:$0xf] %v3651
          %3716 = vst [vmem:[#allocation3 + $0x4d4] sm:$0xf] %v3652
          %3717 = vst [vmem:[#allocation3 + $0x4f8] sm:$0xf] %v3653
          %3718 = vst [vmem:[#allocation3 + $0x51c] sm:$0xf] %v3654
          %3719 = vst [vmem:[#allocation3 + $0x540] sm:$0xf] %v3655
          %3720 = vst [vmem:[#allocation3 + $0x564] sm:$0xf] %v3656
          %3721 = vst [vmem:[#allocation3 + $0x588] sm:$0xf] %v3657
          %3722 = vst [vmem:[#allocation3 + $0x5ac] sm:$0xf] %v3658
          %3723 = vst [vmem:[#allocation3 + $0x5d0] sm:$0xf] %v3659
          %3724 = vst [vmem:[#allocation3 + $0x5f4] sm:$0xf] %v3660
          %3725 = vst [vmem:[#allocation3 + $0x618] sm:$0xf] %v3661
          %3726 = vst [vmem:[#allocation3 + $0x63c] sm:$0xf] %v3662
          %3727 = vst [vmem:[#allocation3 + $0x660] sm:$0xf] %v3663
          %3728 = vst [vmem:[#allocation3 + $0x684] sm:$0xf] %v3664
          %3729 = vst [vmem:[#allocation3 + $0x6a8] sm:$0xf] %v3665
          %3730 = vst [vmem:[#allocation3 + $0x6cc] sm:$0xf] %v3666
          %3731 = vst [vmem:[#allocation3 + $0x6f0] sm:$0xf] %v3667
          %3732 = vst [vmem:[#allocation3 + $0x714] sm:$0xf] %v3668
          %3733 = vst [vmem:[#allocation3 + $0x738] sm:$0xf] %v3669
          %3734 = vst [vmem:[#allocation3 + $0x75c] sm:$0xf] %v3670
          %3735 = vst [vmem:[#allocation3 + $0x780] sm:$0xf] %v3671
          %3736 = vst [vmem:[#allocation3 + $0x7a4] sm:$0xf] %v3672
          %3737 = vst [vmem:[#allocation3 + $0x7c8] sm:$0xf] %v3673
          %3738 = vst [vmem:[#allocation3 + $0x7ec] sm:$0xf] %v3674
          %3739 = vst [vmem:[#allocation3 + $0x810] sm:$0xf] %v3675
          %3740 = vst [vmem:[#allocation3 + $0x834] sm:$0xf] %v3676
          %3741 = vst [vmem:[#allocation3 + $0x858] sm:$0xf] %v3677
          %3742 = vst [vmem:[#allocation3 + $0x87c] sm:$0xf] %v3678
          %3743 = vst [vmem:[#allocation3 + $0x8a0] sm:$0xf] %v3679
          %3744 = vst [vmem:[#allocation3 + $0x8c4] sm:$0xf] %v3680
          %3745 = vst [vmem:[#allocation3 + $0x8e8] sm:$0xf] %v3681
          %v3746 = vld [vmem:[%s3617] sm:$0xf]
          %v3747 = vld [vmem:[%s3617 + $0x4] sm:$0xf]
          %v3748 = vld [vmem:[%s3617 + $0x8] sm:$0x1]
          %v3749 = vld [vmem:[%s3617 + $0xc] sm:$0xf]
          %v3750 = vld [vmem:[%s3617 + $0x10] sm:$0xf]
          %v3751 = vld [vmem:[%s3617 + $0x14] sm:$0x1]
          %v3752 = vld [vmem:[%s3617 + $0x18] sm:$0xf]
          %v3753 = vld [vmem:[%s3617 + $0x1c] sm:$0xf]
          %v3754 = vld [vmem:[%s3617 + $0x20] sm:$0x1]
          %v3755 = vld [vmem:[%s3617 + $0x24] sm:$0xf]
          %v3756 = vld [vmem:[%s3617 + $0x28] sm:$0xf]
          %v3757 = vld [vmem:[%s3617 + $0x2c] sm:$0x1]
          %v3758 = vld [vmem:[%s3617 + $0x30] sm:$0xf]
          %v3759 = vld [vmem:[%s3617 + $0x34] sm:$0xf]
          %v3760 = vld [vmem:[%s3617 + $0x38] sm:$0x1]
          %v3761 = vld [vmem:[%s3617 + $0x3c] sm:$0xf]
          %v3762 = vld [vmem:[%s3617 + $0x40] sm:$0xf]
          %v3763 = vld [vmem:[%s3617 + $0x44] sm:$0x1]
          %v3764 = vld [vmem:[%s3617 + $0x48] sm:$0xf]
          %v3765 = vld [vmem:[%s3617 + $0x4c] sm:$0xf]
          %v3766 = vld [vmem:[%s3617 + $0x50] sm:$0x1]
          %v3767 = vld [vmem:[%s3617 + $0x54] sm:$0xf]
          %v3768 = vld [vmem:[%s3617 + $0x58] sm:$0xf]
          %v3769 = vld [vmem:[%s3617 + $0x5c] sm:$0x1]
          %v3770 = vld [vmem:[%s3617 + $0x60] sm:$0xf]
          %v3771 = vld [vmem:[%s3617 + $0x64] sm:$0xf]
          %v3772 = vld [vmem:[%s3617 + $0x68] sm:$0x1]
          %v3773 = vld [vmem:[%s3617 + $0x6c] sm:$0xf]
          %v3774 = vld [vmem:[%s3617 + $0x70] sm:$0xf]
          %v3775 = vld [vmem:[%s3617 + $0x74] sm:$0x1]
          %v3776 = vld [vmem:[%s3617 + $0x78] sm:$0xf]
          %v3777 = vld [vmem:[%s3617 + $0x7c] sm:$0xf]
          %v3778 = vld [vmem:[%s3617 + $0x80] sm:$0x1]
          %v3779 = vld [vmem:[%s3617 + $0x84] sm:$0xf]
          %v3780 = vld [vmem:[%s3617 + $0x88] sm:$0xf]
          %v3781 = vld [vmem:[%s3617 + $0x8c] sm:$0x1]
          %v3782 = vld [vmem:[%s3617 + $0x90] sm:$0xf]
          %v3783 = vld [vmem:[%s3617 + $0x94] sm:$0xf]
          %v3784 = vld [vmem:[%s3617 + $0x98] sm:$0x1]
          %v3785 = vld [vmem:[%s3617 + $0x9c] sm:$0xf]
          %v3786 = vld [vmem:[%s3617 + $0xa0] sm:$0xf]
          %v3787 = vld [vmem:[%s3617 + $0xa4] sm:$0x1]
          %v3788 = vld [vmem:[%s3617 + $0xa8] sm:$0xf]
          %v3789 = vld [vmem:[%s3617 + $0xac] sm:$0xf]
          %v3790 = vld [vmem:[%s3617 + $0xb0] sm:$0x1]
          %v3791 = vld [vmem:[%s3617 + $0xb4] sm:$0xf]
          %v3792 = vld [vmem:[%s3617 + $0xb8] sm:$0xf]
          %v3793 = vld [vmem:[%s3617 + $0xbc] sm:$0x1]
          %v3794 = vld [vmem:[%s3617 + $0xd8] sm:$0xf]
          %v3795 = vld [vmem:[%s3617 + $0xdc] sm:$0xf]
          %v3796 = vld [vmem:[%s3617 + $0xe0] sm:$0x1]
          %v3797 = vld [vmem:[%s3617 + $0xe4] sm:$0xf]
          %v3798 = vld [vmem:[%s3617 + $0xe8] sm:$0xf]
          %v3799 = vld [vmem:[%s3617 + $0xec] sm:$0x1]
          %v3800 = vld [vmem:[%s3617 + $0xf0] sm:$0xf]
          %v3801 = vld [vmem:[%s3617 + $0xf4] sm:$0xf]
          %v3802 = vld [vmem:[%s3617 + $0xf8] sm:$0x1]
          %v3803 = vld [vmem:[%s3617 + $0xfc] sm:$0xf]
          %v3804 = vld [vmem:[%s3617 + $0x100] sm:$0xf]
          %v3805 = vld [vmem:[%s3617 + $0x104] sm:$0x1]
          %v3806 = vld [vmem:[%s3617 + $0x108] sm:$0xf]
          %v3807 = vld [vmem:[%s3617 + $0x10c] sm:$0xf]
          %v3808 = vld [vmem:[%s3617 + $0x110] sm:$0x1]
          %v3809 = vld [vmem:[%s3617 + $0x114] sm:$0xf]
          %v3810 = vld [vmem:[%s3617 + $0x118] sm:$0xf]
          %v3811 = vld [vmem:[%s3617 + $0x11c] sm:$0x1]
          %v3812 = vld [vmem:[%s3617 + $0x120] sm:$0xf]
          %v3813 = vld [vmem:[%s3617 + $0x124] sm:$0xf]
          %v3814 = vld [vmem:[%s3617 + $0x128] sm:$0x1]
          %v3815 = vld [vmem:[%s3617 + $0x12c] sm:$0xf]
          %v3816 = vld [vmem:[%s3617 + $0x130] sm:$0xf]
          %v3817 = vld [vmem:[%s3617 + $0x134] sm:$0x1]
          %v3818 = vld [vmem:[%s3617 + $0x138] sm:$0xf]
          %v3819 = vld [vmem:[%s3617 + $0x13c] sm:$0xf]
          %v3820 = vld [vmem:[%s3617 + $0x140] sm:$0x1]
          %v3821 = vld [vmem:[%s3617 + $0x144] sm:$0xf]
          %v3822 = vld [vmem:[%s3617 + $0x148] sm:$0xf]
          %v3823 = vld [vmem:[%s3617 + $0x14c] sm:$0x1]
          %v3824 = vld [vmem:[%s3617 + $0x150] sm:$0xf]
          %v3825 = vld [vmem:[%s3617 + $0x154] sm:$0xf]
          %v3826 = vld [vmem:[%s3617 + $0x158] sm:$0x1]
          %v3827 = vld [vmem:[%s3617 + $0x15c] sm:$0xf]
          %v3828 = vld [vmem:[%s3617 + $0x160] sm:$0xf]
          %v3829 = vld [vmem:[%s3617 + $0x164] sm:$0x1]
          %v3830 = vld [vmem:[%s3617 + $0x168] sm:$0xf]
          %v3831 = vld [vmem:[%s3617 + $0x16c] sm:$0xf]
          %v3832 = vld [vmem:[%s3617 + $0x170] sm:$0x1]
          %v3833 = vld [vmem:[%s3617 + $0x174] sm:$0xf]
          %v3834 = vld [vmem:[%s3617 + $0x178] sm:$0xf]
          %v3835 = vld [vmem:[%s3617 + $0x17c] sm:$0x1]
          %v3836 = vld [vmem:[%s3617 + $0x180] sm:$0xf]
          %v3837 = vld [vmem:[%s3617 + $0x184] sm:$0xf]
          %v3838 = vld [vmem:[%s3617 + $0x188] sm:$0x1]
          %v3839 = vld [vmem:[%s3617 + $0x18c] sm:$0xf]
          %v3840 = vld [vmem:[%s3617 + $0x190] sm:$0xf]
          %v3841 = vld [vmem:[%s3617 + $0x194] sm:$0x1]
          %v3843 = vshrl.u32 %v3746, 16
          %v3845 = vrot.slane %v3843, 4
          %v3846 = vshll.u32 %v3746, 16
          %v3848 = vrot.slane %v3846, 5
          %v3849 = vor.u32 %v3845, %v3848
          %v3850 = vrot.slane %v3849, 4
          %v3852 = vshll.u32 %v3747, 16
          %v3854 = vrot.slane %v3852, 5
          %v3855 = vsel %vm2173, %v3850, %v3854
          %v3856 = vshrl.u32 %v3747, 16
          %v3858 = vrot.slane %v3856, 4
          %v3859 = vor.u32 %v3858, %v3854
          %v3860 = vrot.slane %v3859, 4
          %v3862 = vshll.u32 %v3748, 16
          %v3864 = vrot.slane %v3862, 5
          %v3865 = vsel %vm2173, %v3860, %v3864
          %v3867 = vshrl.u32 %v3749, 16
          %v3869 = vrot.slane %v3867, 4
          %v3870 = vshll.u32 %v3749, 16
          %v3872 = vrot.slane %v3870, 5
          %v3873 = vor.u32 %v3869, %v3872
          %v3874 = vrot.slane %v3873, 4
          %v3876 = vshll.u32 %v3750, 16
          %v3878 = vrot.slane %v3876, 5
          %v3879 = vsel %vm2173, %v3874, %v3878
          %v3880 = vshrl.u32 %v3750, 16
          %v3882 = vrot.slane %v3880, 4
          %v3883 = vor.u32 %v3882, %v3878
          %v3884 = vrot.slane %v3883, 4
          %v3886 = vshll.u32 %v3751, 16
          %v3888 = vrot.slane %v3886, 5
          %v3889 = vsel %vm2173, %v3884, %v3888
          %v3891 = vshrl.u32 %v3752, 16
          %v3893 = vrot.slane %v3891, 4
          %v3894 = vshll.u32 %v3752, 16
          %v3896 = vrot.slane %v3894, 5
          %v3897 = vor.u32 %v3893, %v3896
          %v3898 = vrot.slane %v3897, 4
          %v3900 = vshll.u32 %v3753, 16
          %v3902 = vrot.slane %v3900, 5
          %v3903 = vsel %vm2173, %v3898, %v3902
          %v3904 = vshrl.u32 %v3753, 16
          %v3906 = vrot.slane %v3904, 4
          %v3907 = vor.u32 %v3906, %v3902
          %v3908 = vrot.slane %v3907, 4
          %v3910 = vshll.u32 %v3754, 16
          %v3912 = vrot.slane %v3910, 5
          %v3913 = vsel %vm2173, %v3908, %v3912
          %v3915 = vshrl.u32 %v3755, 16
          %v3917 = vrot.slane %v3915, 4
          %v3918 = vshll.u32 %v3755, 16
          %v3920 = vrot.slane %v3918, 5
          %v3921 = vor.u32 %v3917, %v3920
          %v3922 = vrot.slane %v3921, 4
          %v3924 = vshll.u32 %v3756, 16
          %v3926 = vrot.slane %v3924, 5
          %v3927 = vsel %vm2173, %v3922, %v3926
          %v3928 = vshrl.u32 %v3756, 16
          %v3930 = vrot.slane %v3928, 4
          %v3931 = vor.u32 %v3930, %v3926
          %v3932 = vrot.slane %v3931, 4
          %v3934 = vshll.u32 %v3757, 16
          %v3936 = vrot.slane %v3934, 5
          %v3937 = vsel %vm2173, %v3932, %v3936
          %v3939 = vshrl.u32 %v3758, 16
          %v3941 = vrot.slane %v3939, 4
          %v3942 = vshll.u32 %v3758, 16
          %v3944 = vrot.slane %v3942, 5
          %v3945 = vor.u32 %v3941, %v3944
          %v3946 = vrot.slane %v3945, 4
          %v3948 = vshll.u32 %v3759, 16
          %v3950 = vrot.slane %v3948, 5
          %v3951 = vsel %vm2173, %v3946, %v3950
          %v3952 = vshrl.u32 %v3759, 16
          %v3954 = vrot.slane %v3952, 4
          %v3955 = vor.u32 %v3954, %v3950
          %v3956 = vrot.slane %v3955, 4
          %v3958 = vshll.u32 %v3760, 16
          %v3960 = vrot.slane %v3958, 5
          %v3961 = vsel %vm2173, %v3956, %v3960
          %v3963 = vshrl.u32 %v3761, 16
          %v3965 = vrot.slane %v3963, 4
          %v3966 = vshll.u32 %v3761, 16
          %v3968 = vrot.slane %v3966, 5
          %v3969 = vor.u32 %v3965, %v3968
          %v3970 = vrot.slane %v3969, 4
          %v3972 = vshll.u32 %v3762, 16
          %v3974 = vrot.slane %v3972, 5
          %v3975 = vsel %vm2173, %v3970, %v3974
          %v3976 = vshrl.u32 %v3762, 16
          %v3978 = vrot.slane %v3976, 4
          %v3979 = vor.u32 %v3978, %v3974
          %v3980 = vrot.slane %v3979, 4
          %v3982 = vshll.u32 %v3763, 16
          %v3984 = vrot.slane %v3982, 5
          %v3985 = vsel %vm2173, %v3980, %v3984
          %v3987 = vshrl.u32 %v3764, 16
          %v3989 = vrot.slane %v3987, 4
          %v3990 = vshll.u32 %v3764, 16
          %v3992 = vrot.slane %v3990, 5
          %v3993 = vor.u32 %v3989, %v3992
          %v3994 = vrot.slane %v3993, 4
          %v3996 = vshll.u32 %v3765, 16
          %v3998 = vrot.slane %v3996, 5
          %v3999 = vsel %vm2173, %v3994, %v3998
          %v4000 = vshrl.u32 %v3765, 16
          %v4002 = vrot.slane %v4000, 4
          %v4003 = vor.u32 %v4002, %v3998
          %v4004 = vrot.slane %v4003, 4
          %v4006 = vshll.u32 %v3766, 16
          %v4008 = vrot.slane %v4006, 5
          %v4009 = vsel %vm2173, %v4004, %v4008
          %v4011 = vshrl.u32 %v3767, 16
          %v4013 = vrot.slane %v4011, 4
          %v4014 = vshll.u32 %v3767, 16
          %v4016 = vrot.slane %v4014, 5
          %v4017 = vor.u32 %v4013, %v4016
          %v4018 = vrot.slane %v4017, 4
          %v4020 = vshll.u32 %v3768, 16
          %v4022 = vrot.slane %v4020, 5
          %v4023 = vsel %vm2173, %v4018, %v4022
          %v4024 = vshrl.u32 %v3768, 16
          %v4026 = vrot.slane %v4024, 4
          %v4027 = vor.u32 %v4026, %v4022
          %v4028 = vrot.slane %v4027, 4
          %v4030 = vshll.u32 %v3769, 16
          %v4032 = vrot.slane %v4030, 5
          %v4033 = vsel %vm2173, %v4028, %v4032
          %v4035 = vshrl.u32 %v3770, 16
          %v4037 = vrot.slane %v4035, 4
          %v4038 = vshll.u32 %v3770, 16
          %v4040 = vrot.slane %v4038, 5
          %v4041 = vor.u32 %v4037, %v4040
          %v4042 = vrot.slane %v4041, 4
          %v4044 = vshll.u32 %v3771, 16
          %v4046 = vrot.slane %v4044, 5
          %v4047 = vsel %vm2173, %v4042, %v4046
          %v4048 = vshrl.u32 %v3771, 16
          %v4050 = vrot.slane %v4048, 4
          %v4051 = vor.u32 %v4050, %v4046
          %v4052 = vrot.slane %v4051, 4
          %v4054 = vshll.u32 %v3772, 16
          %v4056 = vrot.slane %v4054, 5
          %v4057 = vsel %vm2173, %v4052, %v4056
          %v4059 = vshrl.u32 %v3773, 16
          %v4061 = vrot.slane %v4059, 4
          %v4062 = vshll.u32 %v3773, 16
          %v4064 = vrot.slane %v4062, 5
          %v4065 = vor.u32 %v4061, %v4064
          %v4066 = vrot.slane %v4065, 4
          %v4068 = vshll.u32 %v3774, 16
          %v4070 = vrot.slane %v4068, 5
          %v4071 = vsel %vm2173, %v4066, %v4070
          %v4072 = vshrl.u32 %v3774, 16
          %v4074 = vrot.slane %v4072, 4
          %v4075 = vor.u32 %v4074, %v4070
          %v4076 = vrot.slane %v4075, 4
          %v4078 = vshll.u32 %v3775, 16
          %v4080 = vrot.slane %v4078, 5
          %v4081 = vsel %vm2173, %v4076, %v4080
          %v4083 = vshrl.u32 %v3776, 16
          %v4085 = vrot.slane %v4083, 4
          %v4086 = vshll.u32 %v3776, 16
          %v4088 = vrot.slane %v4086, 5
          %v4089 = vor.u32 %v4085, %v4088
          %v4090 = vrot.slane %v4089, 4
          %v4092 = vshll.u32 %v3777, 16
          %v4094 = vrot.slane %v4092, 5
          %v4095 = vsel %vm2173, %v4090, %v4094
          %v4096 = vshrl.u32 %v3777, 16
          %v4098 = vrot.slane %v4096, 4
          %v4099 = vor.u32 %v4098, %v4094
          %v4100 = vrot.slane %v4099, 4
          %v4102 = vshll.u32 %v3778, 16
          %v4104 = vrot.slane %v4102, 5
          %v4105 = vsel %vm2173, %v4100, %v4104
          %v4107 = vshrl.u32 %v3779, 16
          %v4109 = vrot.slane %v4107, 4
          %v4110 = vshll.u32 %v3779, 16
          %v4112 = vrot.slane %v4110, 5
          %v4113 = vor.u32 %v4109, %v4112
          %v4114 = vrot.slane %v4113, 4
          %v4116 = vshll.u32 %v3780, 16
          %v4118 = vrot.slane %v4116, 5
          %v4119 = vsel %vm2173, %v4114, %v4118
          %v4120 = vshrl.u32 %v3780, 16
          %v4122 = vrot.slane %v4120, 4
          %v4123 = vor.u32 %v4122, %v4118
          %v4124 = vrot.slane %v4123, 4
          %v4126 = vshll.u32 %v3781, 16
          %v4128 = vrot.slane %v4126, 5
          %v4129 = vsel %vm2173, %v4124, %v4128
          %v4131 = vshrl.u32 %v3782, 16
          %v4133 = vrot.slane %v4131, 4
          %v4134 = vshll.u32 %v3782, 16
          %v4136 = vrot.slane %v4134, 5
          %v4137 = vor.u32 %v4133, %v4136
          %v4138 = vrot.slane %v4137, 4
          %v4140 = vshll.u32 %v3783, 16
          %v4142 = vrot.slane %v4140, 5
          %v4143 = vsel %vm2173, %v4138, %v4142
          %v4144 = vshrl.u32 %v3783, 16
          %v4146 = vrot.slane %v4144, 4
          %v4147 = vor.u32 %v4146, %v4142
          %v4148 = vrot.slane %v4147, 4
          %v4150 = vshll.u32 %v3784, 16
          %v4152 = vrot.slane %v4150, 5
          %v4153 = vsel %vm2173, %v4148, %v4152
          %v4155 = vshrl.u32 %v3785, 16
          %v4157 = vrot.slane %v4155, 4
          %v4158 = vshll.u32 %v3785, 16
          %v4160 = vrot.slane %v4158, 5
          %v4161 = vor.u32 %v4157, %v4160
          %v4162 = vrot.slane %v4161, 4
          %v4164 = vshll.u32 %v3786, 16
          %v4166 = vrot.slane %v4164, 5
          %v4167 = vsel %vm2173, %v4162, %v4166
          %v4168 = vshrl.u32 %v3786, 16
          %v4170 = vrot.slane %v4168, 4
          %v4171 = vor.u32 %v4170, %v4166
          %v4172 = vrot.slane %v4171, 4
          %v4174 = vshll.u32 %v3787, 16
          %v4176 = vrot.slane %v4174, 5
          %v4177 = vsel %vm2173, %v4172, %v4176
          %v4179 = vshrl.u32 %v3788, 16
          %v4181 = vrot.slane %v4179, 4
          %v4182 = vshll.u32 %v3788, 16
          %v4184 = vrot.slane %v4182, 5
          %v4185 = vor.u32 %v4181, %v4184
          %v4186 = vrot.slane %v4185, 4
          %v4188 = vshll.u32 %v3789, 16
          %v4190 = vrot.slane %v4188, 5
          %v4191 = vsel %vm2173, %v4186, %v4190
          %v4192 = vshrl.u32 %v3789, 16
          %v4194 = vrot.slane %v4192, 4
          %v4195 = vor.u32 %v4194, %v4190
          %v4196 = vrot.slane %v4195, 4
          %v4198 = vshll.u32 %v3790, 16
          %v4200 = vrot.slane %v4198, 5
          %v4201 = vsel %vm2173, %v4196, %v4200
          %v4203 = vshrl.u32 %v3791, 16
          %v4205 = vrot.slane %v4203, 4
          %v4206 = vshll.u32 %v3791, 16
          %v4208 = vrot.slane %v4206, 5
          %v4209 = vor.u32 %v4205, %v4208
          %v4210 = vrot.slane %v4209, 4
          %v4212 = vshll.u32 %v3792, 16
          %v4214 = vrot.slane %v4212, 5
          %v4215 = vsel %vm2173, %v4210, %v4214
          %v4216 = vshrl.u32 %v3792, 16
          %v4218 = vrot.slane %v4216, 4
          %v4219 = vor.u32 %v4218, %v4214
          %v4220 = vrot.slane %v4219, 4
          %v4222 = vshll.u32 %v3793, 16
          %v4224 = vrot.slane %v4222, 5
          %v4225 = vsel %vm2173, %v4220, %v4224
          %v4227 = vshrl.u32 %v3794, 16
          %v4229 = vrot.slane %v4227, 4
          %v4230 = vshll.u32 %v3794, 16
          %v4232 = vrot.slane %v4230, 5
          %v4233 = vor.u32 %v4229, %v4232
          %v4234 = vrot.slane %v4233, 4
          %v4236 = vshll.u32 %v3795, 16
          %v4238 = vrot.slane %v4236, 5
          %v4239 = vsel %vm2173, %v4234, %v4238
          %v4240 = vshrl.u32 %v3795, 16
          %v4242 = vrot.slane %v4240, 4
          %v4243 = vor.u32 %v4242, %v4238
          %v4244 = vrot.slane %v4243, 4
          %v4246 = vshll.u32 %v3796, 16
          %v4248 = vrot.slane %v4246, 5
          %v4249 = vsel %vm2173, %v4244, %v4248
          %v4251 = vshrl.u32 %v3797, 16
          %v4253 = vrot.slane %v4251, 4
          %v4254 = vshll.u32 %v3797, 16
          %v4256 = vrot.slane %v4254, 5
          %v4257 = vor.u32 %v4253, %v4256
          %v4258 = vrot.slane %v4257, 4
          %v4260 = vshll.u32 %v3798, 16
          %v4262 = vrot.slane %v4260, 5
          %v4263 = vsel %vm2173, %v4258, %v4262
          %v4264 = vshrl.u32 %v3798, 16
          %v4266 = vrot.slane %v4264, 4
          %v4267 = vor.u32 %v4266, %v4262
          %v4268 = vrot.slane %v4267, 4
          %v4270 = vshll.u32 %v3799, 16
          %v4272 = vrot.slane %v4270, 5
          %v4273 = vsel %vm2173, %v4268, %v4272
          %v4275 = vshrl.u32 %v3800, 16
          %v4277 = vrot.slane %v4275, 4
          %v4278 = vshll.u32 %v3800, 16
          %v4280 = vrot.slane %v4278, 5
          %v4281 = vor.u32 %v4277, %v4280
          %v4282 = vrot.slane %v4281, 4
          %v4284 = vshll.u32 %v3801, 16
          %v4286 = vrot.slane %v4284, 5
          %v4287 = vsel %vm2173, %v4282, %v4286
          %v4288 = vshrl.u32 %v3801, 16
          %v4290 = vrot.slane %v4288, 4
          %v4291 = vor.u32 %v4290, %v4286
          %v4292 = vrot.slane %v4291, 4
          %v4294 = vshll.u32 %v3802, 16
          %v4296 = vrot.slane %v4294, 5
          %v4297 = vsel %vm2173, %v4292, %v4296
          %v4299 = vshrl.u32 %v3803, 16
          %v4301 = vrot.slane %v4299, 4
          %v4302 = vshll.u32 %v3803, 16
          %v4304 = vrot.slane %v4302, 5
          %v4305 = vor.u32 %v4301, %v4304
          %v4306 = vrot.slane %v4305, 4
          %v4308 = vshll.u32 %v3804, 16
          %v4310 = vrot.slane %v4308, 5
          %v4311 = vsel %vm2173, %v4306, %v4310
          %v4312 = vshrl.u32 %v3804, 16
          %v4314 = vrot.slane %v4312, 4
          %v4315 = vor.u32 %v4314, %v4310
          %v4316 = vrot.slane %v4315, 4
          %v4318 = vshll.u32 %v3805, 16
          %v4320 = vrot.slane %v4318, 5
          %v4321 = vsel %vm2173, %v4316, %v4320
          %v4323 = vshrl.u32 %v3806, 16
          %v4325 = vrot.slane %v4323, 4
          %v4326 = vshll.u32 %v3806, 16
          %v4328 = vrot.slane %v4326, 5
          %v4329 = vor.u32 %v4325, %v4328
          %v4330 = vrot.slane %v4329, 4
          %v4332 = vshll.u32 %v3807, 16
          %v4334 = vrot.slane %v4332, 5
          %v4335 = vsel %vm2173, %v4330, %v4334
          %v4336 = vshrl.u32 %v3807, 16
          %v4338 = vrot.slane %v4336, 4
          %v4339 = vor.u32 %v4338, %v4334
          %v4340 = vrot.slane %v4339, 4
          %v4342 = vshll.u32 %v3808, 16
          %v4344 = vrot.slane %v4342, 5
          %v4345 = vsel %vm2173, %v4340, %v4344
          %v4347 = vshrl.u32 %v3809, 16
          %v4349 = vrot.slane %v4347, 4
          %v4350 = vshll.u32 %v3809, 16
          %v4352 = vrot.slane %v4350, 5
          %v4353 = vor.u32 %v4349, %v4352
          %v4354 = vrot.slane %v4353, 4
          %v4356 = vshll.u32 %v3810, 16
          %v4358 = vrot.slane %v4356, 5
          %v4359 = vsel %vm2173, %v4354, %v4358
          %v4360 = vshrl.u32 %v3810, 16
          %v4362 = vrot.slane %v4360, 4
          %v4363 = vor.u32 %v4362, %v4358
          %v4364 = vrot.slane %v4363, 4
          %v4366 = vshll.u32 %v3811, 16
          %v4368 = vrot.slane %v4366, 5
          %v4369 = vsel %vm2173, %v4364, %v4368
          %v4371 = vshrl.u32 %v3812, 16
          %v4373 = vrot.slane %v4371, 4
          %v4374 = vshll.u32 %v3812, 16
          %v4376 = vrot.slane %v4374, 5
          %v4377 = vor.u32 %v4373, %v4376
          %v4378 = vrot.slane %v4377, 4
          %v4380 = vshll.u32 %v3813, 16
          %v4382 = vrot.slane %v4380, 5
          %v4383 = vsel %vm2173, %v4378, %v4382
          %v4384 = vshrl.u32 %v3813, 16
          %v4386 = vrot.slane %v4384, 4
          %v4387 = vor.u32 %v4386, %v4382
          %v4388 = vrot.slane %v4387, 4
          %v4390 = vshll.u32 %v3814, 16
          %v4392 = vrot.slane %v4390, 5
          %v4393 = vsel %vm2173, %v4388, %v4392
          %v4395 = vshrl.u32 %v3815, 16
          %v4397 = vrot.slane %v4395, 4
          %v4398 = vshll.u32 %v3815, 16
          %v4400 = vrot.slane %v4398, 5
          %v4401 = vor.u32 %v4397, %v4400
          %v4402 = vrot.slane %v4401, 4
          %v4404 = vshll.u32 %v3816, 16
          %v4406 = vrot.slane %v4404, 5
          %v4407 = vsel %vm2173, %v4402, %v4406
          %v4408 = vshrl.u32 %v3816, 16
          %v4410 = vrot.slane %v4408, 4
          %v4411 = vor.u32 %v4410, %v4406
          %v4412 = vrot.slane %v4411, 4
          %v4414 = vshll.u32 %v3817, 16
          %v4416 = vrot.slane %v4414, 5
          %v4417 = vsel %vm2173, %v4412, %v4416
          %v4419 = vshrl.u32 %v3818, 16
          %v4421 = vrot.slane %v4419, 4
          %v4422 = vshll.u32 %v3818, 16
          %v4424 = vrot.slane %v4422, 5
          %v4425 = vor.u32 %v4421, %v4424
          %v4426 = vrot.slane %v4425, 4
          %v4428 = vshll.u32 %v3819, 16
          %v4430 = vrot.slane %v4428, 5
          %v4431 = vsel %vm2173, %v4426, %v4430
          %v4432 = vshrl.u32 %v3819, 16
          %v4434 = vrot.slane %v4432, 4
          %v4435 = vor.u32 %v4434, %v4430
          %v4436 = vrot.slane %v4435, 4
          %v4438 = vshll.u32 %v3820, 16
          %v4440 = vrot.slane %v4438, 5
          %v4441 = vsel %vm2173, %v4436, %v4440
          %v4443 = vshrl.u32 %v3821, 16
          %v4445 = vrot.slane %v4443, 4
          %v4446 = vshll.u32 %v3821, 16
          %v4448 = vrot.slane %v4446, 5
          %v4449 = vor.u32 %v4445, %v4448
          %v4450 = vrot.slane %v4449, 4
          %v4452 = vshll.u32 %v3822, 16
          %v4454 = vrot.slane %v4452, 5
          %v4455 = vsel %vm2173, %v4450, %v4454
          %v4456 = vshrl.u32 %v3822, 16
          %v4458 = vrot.slane %v4456, 4
          %v4459 = vor.u32 %v4458, %v4454
          %v4460 = vrot.slane %v4459, 4
          %v4462 = vshll.u32 %v3823, 16
          %v4464 = vrot.slane %v4462, 5
          %v4465 = vsel %vm2173, %v4460, %v4464
          %v4467 = vshrl.u32 %v3824, 16
          %v4469 = vrot.slane %v4467, 4
          %v4470 = vshll.u32 %v3824, 16
          %v4472 = vrot.slane %v4470, 5
          %v4473 = vor.u32 %v4469, %v4472
          %v4474 = vrot.slane %v4473, 4
          %v4476 = vshll.u32 %v3825, 16
          %v4478 = vrot.slane %v4476, 5
          %v4479 = vsel %vm2173, %v4474, %v4478
          %v4480 = vshrl.u32 %v3825, 16
          %v4482 = vrot.slane %v4480, 4
          %v4483 = vor.u32 %v4482, %v4478
          %v4484 = vrot.slane %v4483, 4
          %v4486 = vshll.u32 %v3826, 16
          %v4488 = vrot.slane %v4486, 5
          %v4489 = vsel %vm2173, %v4484, %v4488
          %v4491 = vshrl.u32 %v3827, 16
          %v4493 = vrot.slane %v4491, 4
          %v4494 = vshll.u32 %v3827, 16
          %v4496 = vrot.slane %v4494, 5
          %v4497 = vor.u32 %v4493, %v4496
          %v4498 = vrot.slane %v4497, 4
          %v4500 = vshll.u32 %v3828, 16
          %v4502 = vrot.slane %v4500, 5
          %v4503 = vsel %vm2173, %v4498, %v4502
          %v4504 = vshrl.u32 %v3828, 16
          %v4506 = vrot.slane %v4504, 4
          %v4507 = vor.u32 %v4506, %v4502
          %v4508 = vrot.slane %v4507, 4
          %v4510 = vshll.u32 %v3829, 16
          %v4512 = vrot.slane %v4510, 5
          %v4513 = vsel %vm2173, %v4508, %v4512
          %v4515 = vshrl.u32 %v3830, 16
          %v4517 = vrot.slane %v4515, 4
          %v4518 = vshll.u32 %v3830, 16
          %v4520 = vrot.slane %v4518, 5
          %v4521 = vor.u32 %v4517, %v4520
          %v4522 = vrot.slane %v4521, 4
          %v4524 = vshll.u32 %v3831, 16
          %v4526 = vrot.slane %v4524, 5
          %v4527 = vsel %vm2173, %v4522, %v4526
          %v4528 = vshrl.u32 %v3831, 16
          %v4530 = vrot.slane %v4528, 4
          %v4531 = vor.u32 %v4530, %v4526
          %v4532 = vrot.slane %v4531, 4
          %v4534 = vshll.u32 %v3832, 16
          %v4536 = vrot.slane %v4534, 5
          %v4537 = vsel %vm2173, %v4532, %v4536
          %v4539 = vshrl.u32 %v3833, 16
          %v4541 = vrot.slane %v4539, 4
          %v4542 = vshll.u32 %v3833, 16
          %v4544 = vrot.slane %v4542, 5
          %v4545 = vor.u32 %v4541, %v4544
          %v4546 = vrot.slane %v4545, 4
          %v4548 = vshll.u32 %v3834, 16
          %v4550 = vrot.slane %v4548, 5
          %v4551 = vsel %vm2173, %v4546, %v4550
          %v4552 = vshrl.u32 %v3834, 16
          %v4554 = vrot.slane %v4552, 4
          %v4555 = vor.u32 %v4554, %v4550
          %v4556 = vrot.slane %v4555, 4
          %v4558 = vshll.u32 %v3835, 16
          %v4560 = vrot.slane %v4558, 5
          %v4561 = vsel %vm2173, %v4556, %v4560
          %v4563 = vshrl.u32 %v3836, 16
          %v4565 = vrot.slane %v4563, 4
          %v4566 = vshll.u32 %v3836, 16
          %v4568 = vrot.slane %v4566, 5
          %v4569 = vor.u32 %v4565, %v4568
          %v4570 = vrot.slane %v4569, 4
          %v4572 = vshll.u32 %v3837, 16
          %v4574 = vrot.slane %v4572, 5
          %v4575 = vsel %vm2173, %v4570, %v4574
          %v4576 = vshrl.u32 %v3837, 16
          %v4578 = vrot.slane %v4576, 4
          %v4579 = vor.u32 %v4578, %v4574
          %v4580 = vrot.slane %v4579, 4
          %v4582 = vshll.u32 %v3838, 16
          %v4584 = vrot.slane %v4582, 5
          %v4585 = vsel %vm2173, %v4580, %v4584
          %v4587 = vshrl.u32 %v3839, 16
          %v4589 = vrot.slane %v4587, 4
          %v4590 = vshll.u32 %v3839, 16
          %v4592 = vrot.slane %v4590, 5
          %v4593 = vor.u32 %v4589, %v4592
          %v4594 = vrot.slane %v4593, 4
          %v4596 = vshll.u32 %v3840, 16
          %v4598 = vrot.slane %v4596, 5
          %v4599 = vsel %vm2173, %v4594, %v4598
          %v4600 = vshrl.u32 %v3840, 16
          %v4602 = vrot.slane %v4600, 4
          %v4603 = vor.u32 %v4602, %v4598
          %v4604 = vrot.slane %v4603, 4
          %v4606 = vshll.u32 %v3841, 16
          %v4608 = vrot.slane %v4606, 5
          %v4609 = vsel %vm2173, %v4604, %v4608
          %4674 = vst [vmem:[#allocation3 + $0x10] sm:$0xf] %v3855
          %4675 = vst [vmem:[#allocation3 + $0x34] sm:$0xf] %v3865
          %4676 = vst [vmem:[#allocation3 + $0x58] sm:$0xf] %v3879
          %4677 = vst [vmem:[#allocation3 + $0x7c] sm:$0xf] %v3889
          %4678 = vst [vmem:[#allocation3 + $0xa0] sm:$0xf] %v3903
          %4679 = vst [vmem:[#allocation3 + $0xc4] sm:$0xf] %v3913
          %4680 = vst [vmem:[#allocation3 + $0xe8] sm:$0xf] %v3927
          %4681 = vst [vmem:[#allocation3 + $0x10c] sm:$0xf] %v3937
          %4682 = vst [vmem:[#allocation3 + $0x130] sm:$0xf] %v3951
          %4683 = vst [vmem:[#allocation3 + $0x154] sm:$0xf] %v3961
          %4684 = vst [vmem:[#allocation3 + $0x178] sm:$0xf] %v3975
          %4685 = vst [vmem:[#allocation3 + $0x19c] sm:$0xf] %v3985
          %4686 = vst [vmem:[#allocation3 + $0x1c0] sm:$0xf] %v3999
          %4687 = vst [vmem:[#allocation3 + $0x1e4] sm:$0xf] %v4009
          %4688 = vst [vmem:[#allocation3 + $0x208] sm:$0xf] %v4023
          %4689 = vst [vmem:[#allocation3 + $0x22c] sm:$0xf] %v4033
          %4690 = vst [vmem:[#allocation3 + $0x250] sm:$0xf] %v4047
          %4691 = vst [vmem:[#allocation3 + $0x274] sm:$0xf] %v4057
          %4692 = vst [vmem:[#allocation3 + $0x298] sm:$0xf] %v4071
          %4693 = vst [vmem:[#allocation3 + $0x2bc] sm:$0xf] %v4081
          %4694 = vst [vmem:[#allocation3 + $0x2e0] sm:$0xf] %v4095
          %4695 = vst [vmem:[#allocation3 + $0x304] sm:$0xf] %v4105
          %4696 = vst [vmem:[#allocation3 + $0x328] sm:$0xf] %v4119
          %4697 = vst [vmem:[#allocation3 + $0x34c] sm:$0xf] %v4129
          %4698 = vst [vmem:[#allocation3 + $0x370] sm:$0xf] %v4143
          %4699 = vst [vmem:[#allocation3 + $0x394] sm:$0xf] %v4153
          %4700 = vst [vmem:[#allocation3 + $0x3b8] sm:$0xf] %v4167
          %4701 = vst [vmem:[#allocation3 + $0x3dc] sm:$0xf] %v4177
          %4702 = vst [vmem:[#allocation3 + $0x400] sm:$0xf] %v4191
          %4703 = vst [vmem:[#allocation3 + $0x424] sm:$0xf] %v4201
          %4704 = vst [vmem:[#allocation3 + $0x448] sm:$0xf] %v4215
          %4705 = vst [vmem:[#allocation3 + $0x46c] sm:$0xf] %v4225
          %4706 = vst [vmem:[#allocation3 + $0x490] sm:$0xf] %v4239
          %4707 = vst [vmem:[#allocation3 + $0x4b4] sm:$0xf] %v4249
          %4708 = vst [vmem:[#allocation3 + $0x4d8] sm:$0xf] %v4263
          %4709 = vst [vmem:[#allocation3 + $0x4fc] sm:$0xf] %v4273
          %4710 = vst [vmem:[#allocation3 + $0x520] sm:$0xf] %v4287
          %4711 = vst [vmem:[#allocation3 + $0x544] sm:$0xf] %v4297
          %4712 = vst [vmem:[#allocation3 + $0x568] sm:$0xf] %v4311
          %4713 = vst [vmem:[#allocation3 + $0x58c] sm:$0xf] %v4321
          %4714 = vst [vmem:[#allocation3 + $0x5b0] sm:$0xf] %v4335
          %4715 = vst [vmem:[#allocation3 + $0x5d4] sm:$0xf] %v4345
          %4716 = vst [vmem:[#allocation3 + $0x5f8] sm:$0xf] %v4359
          %4717 = vst [vmem:[#allocation3 + $0x61c] sm:$0xf] %v4369
          %4718 = vst [vmem:[#allocation3 + $0x640] sm:$0xf] %v4383
          %4719 = vst [vmem:[#allocation3 + $0x664] sm:$0xf] %v4393
          %4720 = vst [vmem:[#allocation3 + $0x688] sm:$0xf] %v4407
          %4721 = vst [vmem:[#allocation3 + $0x6ac] sm:$0xf] %v4417
          %4722 = vst [vmem:[#allocation3 + $0x6d0] sm:$0xf] %v4431
          %4723 = vst [vmem:[#allocation3 + $0x6f4] sm:$0xf] %v4441
          %4724 = vst [vmem:[#allocation3 + $0x718] sm:$0xf] %v4455
          %4725 = vst [vmem:[#allocation3 + $0x73c] sm:$0xf] %v4465
          %4726 = vst [vmem:[#allocation3 + $0x760] sm:$0xf] %v4479
          %4727 = vst [vmem:[#allocation3 + $0x784] sm:$0xf] %v4489
          %4728 = vst [vmem:[#allocation3 + $0x7a8] sm:$0xf] %v4503
          %4729 = vst [vmem:[#allocation3 + $0x7cc] sm:$0xf] %v4513
          %4730 = vst [vmem:[#allocation3 + $0x7f0] sm:$0xf] %v4527
          %4731 = vst [vmem:[#allocation3 + $0x814] sm:$0xf] %v4537
          %4732 = vst [vmem:[#allocation3 + $0x838] sm:$0xf] %v4551
          %4733 = vst [vmem:[#allocation3 + $0x85c] sm:$0xf] %v4561
          %4734 = vst [vmem:[#allocation3 + $0x880] sm:$0xf] %v4575
          %4735 = vst [vmem:[#allocation3 + $0x8a4] sm:$0xf] %v4585
          %4736 = vst [vmem:[#allocation3 + $0x8c8] sm:$0xf] %v4599
          %4737 = vst [vmem:[#allocation3 + $0x8ec] sm:$0xf] %v4609
          %v4738 = vld [vmem:[%s3617] sm:$0xe]
          %v4739 = vld [vmem:[%s3617 + $0x4] sm:$0xf]
          %v4740 = vld [vmem:[%s3617 + $0x8] sm:$0x1]
          %v4741 = vld [vmem:[%s3617 + $0xc] sm:$0xe]
          %v4742 = vld [vmem:[%s3617 + $0x10] sm:$0xf]
          %v4743 = vld [vmem:[%s3617 + $0x14] sm:$0x1]
          %v4744 = vld [vmem:[%s3617 + $0x18] sm:$0xe]
          %v4745 = vld [vmem:[%s3617 + $0x1c] sm:$0xf]
          %v4746 = vld [vmem:[%s3617 + $0x20] sm:$0x1]
          %v4747 = vld [vmem:[%s3617 + $0x24] sm:$0xe]
          %v4748 = vld [vmem:[%s3617 + $0x28] sm:$0xf]
          %v4749 = vld [vmem:[%s3617 + $0x2c] sm:$0x1]
          %v4750 = vld [vmem:[%s3617 + $0x30] sm:$0xe]
          %v4751 = vld [vmem:[%s3617 + $0x34] sm:$0xf]
          %v4752 = vld [vmem:[%s3617 + $0x38] sm:$0x1]
          %v4753 = vld [vmem:[%s3617 + $0x3c] sm:$0xe]
          %v4754 = vld [vmem:[%s3617 + $0x40] sm:$0xf]
          %v4755 = vld [vmem:[%s3617 + $0x44] sm:$0x1]
          %v4756 = vld [vmem:[%s3617 + $0x48] sm:$0xe]
          %v4757 = vld [vmem:[%s3617 + $0x4c] sm:$0xf]
          %v4758 = vld [vmem:[%s3617 + $0x50] sm:$0x1]
          %v4759 = vld [vmem:[%s3617 + $0x54] sm:$0xe]
          %v4760 = vld [vmem:[%s3617 + $0x58] sm:$0xf]
          %v4761 = vld [vmem:[%s3617 + $0x5c] sm:$0x1]
          %v4762 = vld [vmem:[%s3617 + $0x60] sm:$0xe]
          %v4763 = vld [vmem:[%s3617 + $0x64] sm:$0xf]
          %v4764 = vld [vmem:[%s3617 + $0x68] sm:$0x1]
          %v4765 = vld [vmem:[%s3617 + $0x6c] sm:$0xe]
          %v4766 = vld [vmem:[%s3617 + $0x70] sm:$0xf]
          %v4767 = vld [vmem:[%s3617 + $0x74] sm:$0x1]
          %v4768 = vld [vmem:[%s3617 + $0x78] sm:$0xe]
          %v4769 = vld [vmem:[%s3617 + $0x7c] sm:$0xf]
          %v4770 = vld [vmem:[%s3617 + $0x80] sm:$0x1]
          %v4771 = vld [vmem:[%s3617 + $0x84] sm:$0xe]
          %v4772 = vld [vmem:[%s3617 + $0x88] sm:$0xf]
          %v4773 = vld [vmem:[%s3617 + $0x8c] sm:$0x1]
          %v4774 = vld [vmem:[%s3617 + $0x90] sm:$0xe]
          %v4775 = vld [vmem:[%s3617 + $0x94] sm:$0xf]
          %v4776 = vld [vmem:[%s3617 + $0x98] sm:$0x1]
          %v4777 = vld [vmem:[%s3617 + $0x9c] sm:$0xe]
          %v4778 = vld [vmem:[%s3617 + $0xa0] sm:$0xf]
          %v4779 = vld [vmem:[%s3617 + $0xa4] sm:$0x1]
          %v4780 = vld [vmem:[%s3617 + $0xa8] sm:$0xe]
          %v4781 = vld [vmem:[%s3617 + $0xac] sm:$0xf]
          %v4782 = vld [vmem:[%s3617 + $0xb0] sm:$0x1]
          %v4783 = vld [vmem:[%s3617 + $0xb4] sm:$0xe]
          %v4784 = vld [vmem:[%s3617 + $0xb8] sm:$0xf]
          %v4785 = vld [vmem:[%s3617 + $0xbc] sm:$0x1]
          %v4786 = vld [vmem:[%s3617 + $0xd8] sm:$0xe]
          %v4787 = vld [vmem:[%s3617 + $0xdc] sm:$0xf]
          %v4788 = vld [vmem:[%s3617 + $0xe0] sm:$0x1]
          %v4789 = vld [vmem:[%s3617 + $0xe4] sm:$0xe]
          %v4790 = vld [vmem:[%s3617 + $0xe8] sm:$0xf]
          %v4791 = vld [vmem:[%s3617 + $0xec] sm:$0x1]
          %v4792 = vld [vmem:[%s3617 + $0xf0] sm:$0xe]
          %v4793 = vld [vmem:[%s3617 + $0xf4] sm:$0xf]
          %v4794 = vld [vmem:[%s3617 + $0xf8] sm:$0x1]
          %v4795 = vld [vmem:[%s3617 + $0xfc] sm:$0xe]
          %v4796 = vld [vmem:[%s3617 + $0x100] sm:$0xf]
          %v4797 = vld [vmem:[%s3617 + $0x104] sm:$0x1]
          %v4798 = vld [vmem:[%s3617 + $0x108] sm:$0xe]
          %v4799 = vld [vmem:[%s3617 + $0x10c] sm:$0xf]
          %v4800 = vld [vmem:[%s3617 + $0x110] sm:$0x1]
          %v4801 = vld [vmem:[%s3617 + $0x114] sm:$0xe]
          %v4802 = vld [vmem:[%s3617 + $0x118] sm:$0xf]
          %v4803 = vld [vmem:[%s3617 + $0x11c] sm:$0x1]
          %v4804 = vld [vmem:[%s3617 + $0x120] sm:$0xe]
          %v4805 = vld [vmem:[%s3617 + $0x124] sm:$0xf]
          %v4806 = vld [vmem:[%s3617 + $0x128] sm:$0x1]
          %v4807 = vld [vmem:[%s3617 + $0x12c] sm:$0xe]
          %v4808 = vld [vmem:[%s3617 + $0x130] sm:$0xf]
          %v4809 = vld [vmem:[%s3617 + $0x134] sm:$0x1]
          %v4810 = vld [vmem:[%s3617 + $0x138] sm:$0xe]
          %v4811 = vld [vmem:[%s3617 + $0x13c] sm:$0xf]
          %v4812 = vld [vmem:[%s3617 + $0x140] sm:$0x1]
          %v4813 = vld [vmem:[%s3617 + $0x144] sm:$0xe]
          %v4814 = vld [vmem:[%s3617 + $0x148] sm:$0xf]
          %v4815 = vld [vmem:[%s3617 + $0x14c] sm:$0x1]
          %v4816 = vld [vmem:[%s3617 + $0x150] sm:$0xe]
          %v4817 = vld [vmem:[%s3617 + $0x154] sm:$0xf]
          %v4818 = vld [vmem:[%s3617 + $0x158] sm:$0x1]
          %v4819 = vld [vmem:[%s3617 + $0x15c] sm:$0xe]
          %v4820 = vld [vmem:[%s3617 + $0x160] sm:$0xf]
          %v4821 = vld [vmem:[%s3617 + $0x164] sm:$0x1]
          %v4822 = vld [vmem:[%s3617 + $0x168] sm:$0xe]
          %v4823 = vld [vmem:[%s3617 + $0x16c] sm:$0xf]
          %v4824 = vld [vmem:[%s3617 + $0x170] sm:$0x1]
          %v4825 = vld [vmem:[%s3617 + $0x174] sm:$0xe]
          %v4826 = vld [vmem:[%s3617 + $0x178] sm:$0xf]
          %v4827 = vld [vmem:[%s3617 + $0x17c] sm:$0x1]
          %v4828 = vld [vmem:[%s3617 + $0x180] sm:$0xe]
          %v4829 = vld [vmem:[%s3617 + $0x184] sm:$0xf]
          %v4830 = vld [vmem:[%s3617 + $0x188] sm:$0x1]
          %v4831 = vld [vmem:[%s3617 + $0x18c] sm:$0xe]
          %v4832 = vld [vmem:[%s3617 + $0x190] sm:$0xf]
          %v4833 = vld [vmem:[%s3617 + $0x194] sm:$0x1]
          %v4930 = vrot.slane %v4738, 5
          %v4931 = vrot.slane %v4930, 4
          %v4932 = vrot.slane %v4739, 5
          %v4933 = vsel %vm3264, %v4931, %v4932
          %v4934 = vrot.slane %v4932, 4
          %v4935 = vrot.slane %v4740, 5
          %v4936 = vsel %vm3264, %v4934, %v4935
          %v4937 = vrot.slane %v4741, 5
          %v4938 = vrot.slane %v4937, 4
          %v4939 = vrot.slane %v4742, 5
          %v4940 = vsel %vm3264, %v4938, %v4939
          %v4941 = vrot.slane %v4939, 4
          %v4942 = vrot.slane %v4743, 5
          %v4943 = vsel %vm3264, %v4941, %v4942
          %v4944 = vrot.slane %v4744, 5
          %v4945 = vrot.slane %v4944, 4
          %v4946 = vrot.slane %v4745, 5
          %v4947 = vsel %vm3264, %v4945, %v4946
          %v4948 = vrot.slane %v4946, 4
          %v4949 = vrot.slane %v4746, 5
          %v4950 = vsel %vm3264, %v4948, %v4949
          %v4951 = vrot.slane %v4747, 5
          %v4952 = vrot.slane %v4951, 4
          %v4953 = vrot.slane %v4748, 5
          %v4954 = vsel %vm3264, %v4952, %v4953
          %v4955 = vrot.slane %v4953, 4
          %v4956 = vrot.slane %v4749, 5
          %v4957 = vsel %vm3264, %v4955, %v4956
          %v4958 = vrot.slane %v4750, 5
          %v4959 = vrot.slane %v4958, 4
          %v4960 = vrot.slane %v4751, 5
          %v4961 = vsel %vm3264, %v4959, %v4960
          %v4962 = vrot.slane %v4960, 4
          %v4963 = vrot.slane %v4752, 5
          %v4964 = vsel %vm3264, %v4962, %v4963
          %v4965 = vrot.slane %v4753, 5
          %v4966 = vrot.slane %v4965, 4
          %v4967 = vrot.slane %v4754, 5
          %v4968 = vsel %vm3264, %v4966, %v4967
          %v4969 = vrot.slane %v4967, 4
          %v4970 = vrot.slane %v4755, 5
          %v4971 = vsel %vm3264, %v4969, %v4970
          %v4972 = vrot.slane %v4756, 5
          %v4973 = vrot.slane %v4972, 4
          %v4974 = vrot.slane %v4757, 5
          %v4975 = vsel %vm3264, %v4973, %v4974
          %v4976 = vrot.slane %v4974, 4
          %v4977 = vrot.slane %v4758, 5
          %v4978 = vsel %vm3264, %v4976, %v4977
          %v4979 = vrot.slane %v4759, 5
          %v4980 = vrot.slane %v4979, 4
          %v4981 = vrot.slane %v4760, 5
          %v4982 = vsel %vm3264, %v4980, %v4981
          %v4983 = vrot.slane %v4981, 4
          %v4984 = vrot.slane %v4761, 5
          %v4985 = vsel %vm3264, %v4983, %v4984
          %v4986 = vrot.slane %v4762, 5
          %v4987 = vrot.slane %v4986, 4
          %v4988 = vrot.slane %v4763, 5
          %v4989 = vsel %vm3264, %v4987, %v4988
          %v4990 = vrot.slane %v4988, 4
          %v4991 = vrot.slane %v4764, 5
          %v4992 = vsel %vm3264, %v4990, %v4991
          %v4993 = vrot.slane %v4765, 5
          %v4994 = vrot.slane %v4993, 4
          %v4995 = vrot.slane %v4766, 5
          %v4996 = vsel %vm3264, %v4994, %v4995
          %v4997 = vrot.slane %v4995, 4
          %v4998 = vrot.slane %v4767, 5
          %v4999 = vsel %vm3264, %v4997, %v4998
          %v5000 = vrot.slane %v4768, 5
          %v5001 = vrot.slane %v5000, 4
          %v5002 = vrot.slane %v4769, 5
          %v5003 = vsel %vm3264, %v5001, %v5002
          %v5004 = vrot.slane %v5002, 4
          %v5005 = vrot.slane %v4770, 5
          %v5006 = vsel %vm3264, %v5004, %v5005
          %v5007 = vrot.slane %v4771, 5
          %v5008 = vrot.slane %v5007, 4
          %v5009 = vrot.slane %v4772, 5
          %v5010 = vsel %vm3264, %v5008, %v5009
          %v5011 = vrot.slane %v5009, 4
          %v5012 = vrot.slane %v4773, 5
          %v5013 = vsel %vm3264, %v5011, %v5012
          %v5014 = vrot.slane %v4774, 5
          %v5015 = vrot.slane %v5014, 4
          %v5016 = vrot.slane %v4775, 5
          %v5017 = vsel %vm3264, %v5015, %v5016
          %v5018 = vrot.slane %v5016, 4
          %v5019 = vrot.slane %v4776, 5
          %v5020 = vsel %vm3264, %v5018, %v5019
          %v5021 = vrot.slane %v4777, 5
          %v5022 = vrot.slane %v5021, 4
          %v5023 = vrot.slane %v4778, 5
          %v5024 = vsel %vm3264, %v5022, %v5023
          %v5025 = vrot.slane %v5023, 4
          %v5026 = vrot.slane %v4779, 5
          %v5027 = vsel %vm3264, %v5025, %v5026
          %v5028 = vrot.slane %v4780, 5
          %v5029 = vrot.slane %v5028, 4
          %v5030 = vrot.slane %v4781, 5
          %v5031 = vsel %vm3264, %v5029, %v5030
          %v5032 = vrot.slane %v5030, 4
          %v5033 = vrot.slane %v4782, 5
          %v5034 = vsel %vm3264, %v5032, %v5033
          %v5035 = vrot.slane %v4783, 5
          %v5036 = vrot.slane %v5035, 4
          %v5037 = vrot.slane %v4784, 5
          %v5038 = vsel %vm3264, %v5036, %v5037
          %v5039 = vrot.slane %v5037, 4
          %v5040 = vrot.slane %v4785, 5
          %v5041 = vsel %vm3264, %v5039, %v5040
          %v5042 = vrot.slane %v4786, 5
          %v5043 = vrot.slane %v5042, 4
          %v5044 = vrot.slane %v4787, 5
          %v5045 = vsel %vm3264, %v5043, %v5044
          %v5046 = vrot.slane %v5044, 4
          %v5047 = vrot.slane %v4788, 5
          %v5048 = vsel %vm3264, %v5046, %v5047
          %v5049 = vrot.slane %v4789, 5
          %v5050 = vrot.slane %v5049, 4
          %v5051 = vrot.slane %v4790, 5
          %v5052 = vsel %vm3264, %v5050, %v5051
          %v5053 = vrot.slane %v5051, 4
          %v5054 = vrot.slane %v4791, 5
          %v5055 = vsel %vm3264, %v5053, %v5054
          %v5056 = vrot.slane %v4792, 5
          %v5057 = vrot.slane %v5056, 4
          %v5058 = vrot.slane %v4793, 5
          %v5059 = vsel %vm3264, %v5057, %v5058
          %v5060 = vrot.slane %v5058, 4
          %v5061 = vrot.slane %v4794, 5
          %v5062 = vsel %vm3264, %v5060, %v5061
          %v5063 = vrot.slane %v4795, 5
          %v5064 = vrot.slane %v5063, 4
          %v5065 = vrot.slane %v4796, 5
          %v5066 = vsel %vm3264, %v5064, %v5065
          %v5067 = vrot.slane %v5065, 4
          %v5068 = vrot.slane %v4797, 5
          %v5069 = vsel %vm3264, %v5067, %v5068
          %v5070 = vrot.slane %v4798, 5
          %v5071 = vrot.slane %v5070, 4
          %v5072 = vrot.slane %v4799, 5
          %v5073 = vsel %vm3264, %v5071, %v5072
          %v5074 = vrot.slane %v5072, 4
          %v5075 = vrot.slane %v4800, 5
          %v5076 = vsel %vm3264, %v5074, %v5075
          %v5077 = vrot.slane %v4801, 5
          %v5078 = vrot.slane %v5077, 4
          %v5079 = vrot.slane %v4802, 5
          %v5080 = vsel %vm3264, %v5078, %v5079
          %v5081 = vrot.slane %v5079, 4
          %v5082 = vrot.slane %v4803, 5
          %v5083 = vsel %vm3264, %v5081, %v5082
          %v5084 = vrot.slane %v4804, 5
          %v5085 = vrot.slane %v5084, 4
          %v5086 = vrot.slane %v4805, 5
          %v5087 = vsel %vm3264, %v5085, %v5086
          %v5088 = vrot.slane %v5086, 4
          %v5089 = vrot.slane %v4806, 5
          %v5090 = vsel %vm3264, %v5088, %v5089
          %v5091 = vrot.slane %v4807, 5
          %v5092 = vrot.slane %v5091, 4
          %v5093 = vrot.slane %v4808, 5
          %v5094 = vsel %vm3264, %v5092, %v5093
          %v5095 = vrot.slane %v5093, 4
          %v5096 = vrot.slane %v4809, 5
          %v5097 = vsel %vm3264, %v5095, %v5096
          %v5098 = vrot.slane %v4810, 5
          %v5099 = vrot.slane %v5098, 4
          %v5100 = vrot.slane %v4811, 5
          %v5101 = vsel %vm3264, %v5099, %v5100
          %v5102 = vrot.slane %v5100, 4
          %v5103 = vrot.slane %v4812, 5
          %v5104 = vsel %vm3264, %v5102, %v5103
          %v5105 = vrot.slane %v4813, 5
          %v5106 = vrot.slane %v5105, 4
          %v5107 = vrot.slane %v4814, 5
          %v5108 = vsel %vm3264, %v5106, %v5107
          %v5109 = vrot.slane %v5107, 4
          %v5110 = vrot.slane %v4815, 5
          %v5111 = vsel %vm3264, %v5109, %v5110
          %v5112 = vrot.slane %v4816, 5
          %v5113 = vrot.slane %v5112, 4
          %v5114 = vrot.slane %v4817, 5
          %v5115 = vsel %vm3264, %v5113, %v5114
          %v5116 = vrot.slane %v5114, 4
          %v5117 = vrot.slane %v4818, 5
          %v5118 = vsel %vm3264, %v5116, %v5117
          %v5119 = vrot.slane %v4819, 5
          %v5120 = vrot.slane %v5119, 4
          %v5121 = vrot.slane %v4820, 5
          %v5122 = vsel %vm3264, %v5120, %v5121
          %v5123 = vrot.slane %v5121, 4
          %v5124 = vrot.slane %v4821, 5
          %v5125 = vsel %vm3264, %v5123, %v5124
          %v5126 = vrot.slane %v4822, 5
          %v5127 = vrot.slane %v5126, 4
          %v5128 = vrot.slane %v4823, 5
          %v5129 = vsel %vm3264, %v5127, %v5128
          %v5130 = vrot.slane %v5128, 4
          %v5131 = vrot.slane %v4824, 5
          %v5132 = vsel %vm3264, %v5130, %v5131
          %v5133 = vrot.slane %v4825, 5
          %v5134 = vrot.slane %v5133, 4
          %v5135 = vrot.slane %v4826, 5
          %v5136 = vsel %vm3264, %v5134, %v5135
          %v5137 = vrot.slane %v5135, 4
          %v5138 = vrot.slane %v4827, 5
          %v5139 = vsel %vm3264, %v5137, %v5138
          %v5140 = vrot.slane %v4828, 5
          %v5141 = vrot.slane %v5140, 4
          %v5142 = vrot.slane %v4829, 5
          %v5143 = vsel %vm3264, %v5141, %v5142
          %v5144 = vrot.slane %v5142, 4
          %v5145 = vrot.slane %v4830, 5
          %v5146 = vsel %vm3264, %v5144, %v5145
          %v5147 = vrot.slane %v4831, 5
          %v5148 = vrot.slane %v5147, 4
          %v5149 = vrot.slane %v4832, 5
          %v5150 = vsel %vm3264, %v5148, %v5149
          %v5151 = vrot.slane %v5149, 4
          %v5152 = vrot.slane %v4833, 5
          %v5153 = vsel %vm3264, %v5151, %v5152
          %5218 = vst [vmem:[#allocation3 + $0x14] sm:$0xf] %v4933
          %5219 = vst [vmem:[#allocation3 + $0x38] sm:$0xf] %v4936
          %5220 = vst [vmem:[#allocation3 + $0x5c] sm:$0xf] %v4940
          %5221 = vst [vmem:[#allocation3 + $0x80] sm:$0xf] %v4943
          %5222 = vst [vmem:[#allocation3 + $0xa4] sm:$0xf] %v4947
          %5223 = vst [vmem:[#allocation3 + $0xc8] sm:$0xf] %v4950
          %5224 = vst [vmem:[#allocation3 + $0xec] sm:$0xf] %v4954
          %5225 = vst [vmem:[#allocation3 + $0x110] sm:$0xf] %v4957
          %5226 = vst [vmem:[#allocation3 + $0x134] sm:$0xf] %v4961
          %5227 = vst [vmem:[#allocation3 + $0x158] sm:$0xf] %v4964
          %5228 = vst [vmem:[#allocation3 + $0x17c] sm:$0xf] %v4968
          %5229 = vst [vmem:[#allocation3 + $0x1a0] sm:$0xf] %v4971
          %5230 = vst [vmem:[#allocation3 + $0x1c4] sm:$0xf] %v4975
          %5231 = vst [vmem:[#allocation3 + $0x1e8] sm:$0xf] %v4978
          %5232 = vst [vmem:[#allocation3 + $0x20c] sm:$0xf] %v4982
          %5233 = vst [vmem:[#allocation3 + $0x230] sm:$0xf] %v4985
          %5234 = vst [vmem:[#allocation3 + $0x254] sm:$0xf] %v4989
          %5235 = vst [vmem:[#allocation3 + $0x278] sm:$0xf] %v4992
          %5236 = vst [vmem:[#allocation3 + $0x29c] sm:$0xf] %v4996
          %5237 = vst [vmem:[#allocation3 + $0x2c0] sm:$0xf] %v4999
          %5238 = vst [vmem:[#allocation3 + $0x2e4] sm:$0xf] %v5003
          %5239 = vst [vmem:[#allocation3 + $0x308] sm:$0xf] %v5006
          %5240 = vst [vmem:[#allocation3 + $0x32c] sm:$0xf] %v5010
          %5241 = vst [vmem:[#allocation3 + $0x350] sm:$0xf] %v5013
          %5242 = vst [vmem:[#allocation3 + $0x374] sm:$0xf] %v5017
          %5243 = vst [vmem:[#allocation3 + $0x398] sm:$0xf] %v5020
          %5244 = vst [vmem:[#allocation3 + $0x3bc] sm:$0xf] %v5024
          %5245 = vst [vmem:[#allocation3 + $0x3e0] sm:$0xf] %v5027
          %5246 = vst [vmem:[#allocation3 + $0x404] sm:$0xf] %v5031
          %5247 = vst [vmem:[#allocation3 + $0x428] sm:$0xf] %v5034
          %5248 = vst [vmem:[#allocation3 + $0x44c] sm:$0xf] %v5038
          %5249 = vst [vmem:[#allocation3 + $0x470] sm:$0xf] %v5041
          %5250 = vst [vmem:[#allocation3 + $0x494] sm:$0xf] %v5045
          %5251 = vst [vmem:[#allocation3 + $0x4b8] sm:$0xf] %v5048
          %5252 = vst [vmem:[#allocation3 + $0x4dc] sm:$0xf] %v5052
          %5253 = vst [vmem:[#allocation3 + $0x500] sm:$0xf] %v5055
          %5254 = vst [vmem:[#allocation3 + $0x524] sm:$0xf] %v5059
          %5255 = vst [vmem:[#allocation3 + $0x548] sm:$0xf] %v5062
          %5256 = vst [vmem:[#allocation3 + $0x56c] sm:$0xf] %v5066
          %5257 = vst [vmem:[#allocation3 + $0x590] sm:$0xf] %v5069
          %5258 = vst [vmem:[#allocation3 + $0x5b4] sm:$0xf] %v5073
          %5259 = vst [vmem:[#allocation3 + $0x5d8] sm:$0xf] %v5076
          %5260 = vst [vmem:[#allocation3 + $0x5fc] sm:$0xf] %v5080
          %5261 = vst [vmem:[#allocation3 + $0x620] sm:$0xf] %v5083
          %5262 = vst [vmem:[#allocation3 + $0x644] sm:$0xf] %v5087
          %5263 = vst [vmem:[#allocation3 + $0x668] sm:$0xf] %v5090
          %5264 = vst [vmem:[#allocation3 + $0x68c] sm:$0xf] %v5094
          %5265 = vst [vmem:[#allocation3 + $0x6b0] sm:$0xf] %v5097
          %5266 = vst [vmem:[#allocation3 + $0x6d4] sm:$0xf] %v5101
          %5267 = vst [vmem:[#allocation3 + $0x6f8] sm:$0xf] %v5104
          %5268 = vst [vmem:[#allocation3 + $0x71c] sm:$0xf] %v5108
          %5269 = vst [vmem:[#allocation3 + $0x740] sm:$0xf] %v5111
          %5270 = vst [vmem:[#allocation3 + $0x764] sm:$0xf] %v5115
          %5271 = vst [vmem:[#allocation3 + $0x788] sm:$0xf] %v5118
          %5272 = vst [vmem:[#allocation3 + $0x7ac] sm:$0xf] %v5122
          %5273 = vst [vmem:[#allocation3 + $0x7d0] sm:$0xf] %v5125
          %5274 = vst [vmem:[#allocation3 + $0x7f4] sm:$0xf] %v5129
          %5275 = vst [vmem:[#allocation3 + $0x818] sm:$0xf] %v5132
          %5276 = vst [vmem:[#allocation3 + $0x83c] sm:$0xf] %v5136
          %5277 = vst [vmem:[#allocation3 + $0x860] sm:$0xf] %v5139
          %5278 = vst [vmem:[#allocation3 + $0x884] sm:$0xf] %v5143
          %5279 = vst [vmem:[#allocation3 + $0x8a8] sm:$0xf] %v5146
          %5280 = vst [vmem:[#allocation3 + $0x8cc] sm:$0xf] %v5150
          %5281 = vst [vmem:[#allocation3 + $0x8f0] sm:$0xf] %v5153
          %s5282 = scalar_lea.vmem [#allocation2], 24
          %v5283 = vld [vmem:[%s5282] sm:$0xf]
          %v5284 = vld [vmem:[%s5282 + $0x4] sm:$0xf]
          %v5285 = vld [vmem:[%s5282 + $0xc] sm:$0xf]
          %v5286 = vld [vmem:[%s5282 + $0x10] sm:$0xf]
          %v5287 = vld [vmem:[%s5282 + $0x18] sm:$0xf]
          %v5288 = vld [vmem:[%s5282 + $0x1c] sm:$0xf]
          %v5289 = vld [vmem:[%s5282 + $0x24] sm:$0xf]
          %v5290 = vld [vmem:[%s5282 + $0x28] sm:$0xf]
          %v5291 = vld [vmem:[%s5282 + $0x30] sm:$0xf]
          %v5292 = vld [vmem:[%s5282 + $0x34] sm:$0xf]
          %v5293 = vld [vmem:[%s5282 + $0x3c] sm:$0xf]
          %v5294 = vld [vmem:[%s5282 + $0x40] sm:$0xf]
          %v5295 = vld [vmem:[%s5282 + $0x48] sm:$0xf]
          %v5296 = vld [vmem:[%s5282 + $0x4c] sm:$0xf]
          %v5297 = vld [vmem:[%s5282 + $0x54] sm:$0xf]
          %v5298 = vld [vmem:[%s5282 + $0x58] sm:$0xf]
          %v5299 = vld [vmem:[%s5282 + $0x60] sm:$0xf]
          %v5300 = vld [vmem:[%s5282 + $0x64] sm:$0xf]
          %v5301 = vld [vmem:[%s5282 + $0x6c] sm:$0xf]
          %v5302 = vld [vmem:[%s5282 + $0x70] sm:$0xf]
          %v5303 = vld [vmem:[%s5282 + $0x78] sm:$0xf]
          %v5304 = vld [vmem:[%s5282 + $0x7c] sm:$0xf]
          %v5305 = vld [vmem:[%s5282 + $0x84] sm:$0xf]
          %v5306 = vld [vmem:[%s5282 + $0x88] sm:$0xf]
          %v5307 = vld [vmem:[%s5282 + $0x90] sm:$0xf]
          %v5308 = vld [vmem:[%s5282 + $0x94] sm:$0xf]
          %v5309 = vld [vmem:[%s5282 + $0x9c] sm:$0xf]
          %v5310 = vld [vmem:[%s5282 + $0xa0] sm:$0xf]
          %v5311 = vld [vmem:[%s5282 + $0xa8] sm:$0xf]
          %v5312 = vld [vmem:[%s5282 + $0xac] sm:$0xf]
          %v5313 = vld [vmem:[%s5282 + $0xb4] sm:$0xf]
          %v5314 = vld [vmem:[%s5282 + $0xb8] sm:$0xf]
          %v5315 = vld [vmem:[%s5282 + $0xd8] sm:$0xf]
          %v5316 = vld [vmem:[%s5282 + $0xdc] sm:$0xf]
          %v5317 = vld [vmem:[%s5282 + $0xe4] sm:$0xf]
          %v5318 = vld [vmem:[%s5282 + $0xe8] sm:$0xf]
          %v5319 = vld [vmem:[%s5282 + $0xf0] sm:$0xf]
          %v5320 = vld [vmem:[%s5282 + $0xf4] sm:$0xf]
          %v5321 = vld [vmem:[%s5282 + $0xfc] sm:$0xf]
          %v5322 = vld [vmem:[%s5282 + $0x100] sm:$0xf]
          %v5323 = vld [vmem:[%s5282 + $0x108] sm:$0xf]
          %v5324 = vld [vmem:[%s5282 + $0x10c] sm:$0xf]
          %v5325 = vld [vmem:[%s5282 + $0x114] sm:$0xf]
          %v5326 = vld [vmem:[%s5282 + $0x118] sm:$0xf]
          %v5327 = vld [vmem:[%s5282 + $0x120] sm:$0xf]
          %v5328 = vld [vmem:[%s5282 + $0x124] sm:$0xf]
          %v5329 = vld [vmem:[%s5282 + $0x12c] sm:$0xf]
          %v5330 = vld [vmem:[%s5282 + $0x130] sm:$0xf]
          %v5331 = vld [vmem:[%s5282 + $0x138] sm:$0xf]
          %v5332 = vld [vmem:[%s5282 + $0x13c] sm:$0xf]
          %v5333 = vld [vmem:[%s5282 + $0x144] sm:$0xf]
          %v5334 = vld [vmem:[%s5282 + $0x148] sm:$0xf]
          %v5335 = vld [vmem:[%s5282 + $0x150] sm:$0xf]
          %v5336 = vld [vmem:[%s5282 + $0x154] sm:$0xf]
          %v5337 = vld [vmem:[%s5282 + $0x15c] sm:$0xf]
          %v5338 = vld [vmem:[%s5282 + $0x160] sm:$0xf]
          %v5339 = vld [vmem:[%s5282 + $0x168] sm:$0xf]
          %v5340 = vld [vmem:[%s5282 + $0x16c] sm:$0xf]
          %v5341 = vld [vmem:[%s5282 + $0x174] sm:$0xf]
          %v5342 = vld [vmem:[%s5282 + $0x178] sm:$0xf]
          %v5343 = vld [vmem:[%s5282 + $0x180] sm:$0xf]
          %v5344 = vld [vmem:[%s5282 + $0x184] sm:$0xf]
          %v5345 = vld [vmem:[%s5282 + $0x18c] sm:$0xf]
          %v5346 = vld [vmem:[%s5282 + $0x190] sm:$0xf]
          %5347 = vst [vmem:[#allocation3 + $0x18] sm:$0xf] %v5283
          %5348 = vst [vmem:[#allocation3 + $0x3c] sm:$0xf] %v5284
          %5349 = vst [vmem:[#allocation3 + $0x60] sm:$0xf] %v5285
          %5350 = vst [vmem:[#allocation3 + $0x84] sm:$0xf] %v5286
          %5351 = vst [vmem:[#allocation3 + $0xa8] sm:$0xf] %v5287
          %5352 = vst [vmem:[#allocation3 + $0xcc] sm:$0xf] %v5288
          %5353 = vst [vmem:[#allocation3 + $0xf0] sm:$0xf] %v5289
          %5354 = vst [vmem:[#allocation3 + $0x114] sm:$0xf] %v5290
          %5355 = vst [vmem:[#allocation3 + $0x138] sm:$0xf] %v5291
          %5356 = vst [vmem:[#allocation3 + $0x15c] sm:$0xf] %v5292
          %5357 = vst [vmem:[#allocation3 + $0x180] sm:$0xf] %v5293
          %5358 = vst [vmem:[#allocation3 + $0x1a4] sm:$0xf] %v5294
          %5359 = vst [vmem:[#allocation3 + $0x1c8] sm:$0xf] %v5295
          %5360 = vst [vmem:[#allocation3 + $0x1ec] sm:$0xf] %v5296
          %5361 = vst [vmem:[#allocation3 + $0x210] sm:$0xf] %v5297
          %5362 = vst [vmem:[#allocation3 + $0x234] sm:$0xf] %v5298
          %5363 = vst [vmem:[#allocation3 + $0x258] sm:$0xf] %v5299
          %5364 = vst [vmem:[#allocation3 + $0x27c] sm:$0xf] %v5300
          %5365 = vst [vmem:[#allocation3 + $0x2a0] sm:$0xf] %v5301
          %5366 = vst [vmem:[#allocation3 + $0x2c4] sm:$0xf] %v5302
          %5367 = vst [vmem:[#allocation3 + $0x2e8] sm:$0xf] %v5303
          %5368 = vst [vmem:[#allocation3 + $0x30c] sm:$0xf] %v5304
          %5369 = vst [vmem:[#allocation3 + $0x330] sm:$0xf] %v5305
          %5370 = vst [vmem:[#allocation3 + $0x354] sm:$0xf] %v5306
          %5371 = vst [vmem:[#allocation3 + $0x378] sm:$0xf] %v5307
          %5372 = vst [vmem:[#allocation3 + $0x39c] sm:$0xf] %v5308
          %5373 = vst [vmem:[#allocation3 + $0x3c0] sm:$0xf] %v5309
          %5374 = vst [vmem:[#allocation3 + $0x3e4] sm:$0xf] %v5310
          %5375 = vst [vmem:[#allocation3 + $0x408] sm:$0xf] %v5311
          %5376 = vst [vmem:[#allocation3 + $0x42c] sm:$0xf] %v5312
          %5377 = vst [vmem:[#allocation3 + $0x450] sm:$0xf] %v5313
          %5378 = vst [vmem:[#allocation3 + $0x474] sm:$0xf] %v5314
          %5379 = vst [vmem:[#allocation3 + $0x498] sm:$0xf] %v5315
          %5380 = vst [vmem:[#allocation3 + $0x4bc] sm:$0xf] %v5316
          %5381 = vst [vmem:[#allocation3 + $0x4e0] sm:$0xf] %v5317
          %5382 = vst [vmem:[#allocation3 + $0x504] sm:$0xf] %v5318
          %5383 = vst [vmem:[#allocation3 + $0x528] sm:$0xf] %v5319
          %5384 = vst [vmem:[#allocation3 + $0x54c] sm:$0xf] %v5320
          %5385 = vst [vmem:[#allocation3 + $0x570] sm:$0xf] %v5321
          %5386 = vst [vmem:[#allocation3 + $0x594] sm:$0xf] %v5322
          %5387 = vst [vmem:[#allocation3 + $0x5b8] sm:$0xf] %v5323
          %5388 = vst [vmem:[#allocation3 + $0x5dc] sm:$0xf] %v5324
          %5389 = vst [vmem:[#allocation3 + $0x600] sm:$0xf] %v5325
          %5390 = vst [vmem:[#allocation3 + $0x624] sm:$0xf] %v5326
          %5391 = vst [vmem:[#allocation3 + $0x648] sm:$0xf] %v5327
          %5392 = vst [vmem:[#allocation3 + $0x66c] sm:$0xf] %v5328
          %5393 = vst [vmem:[#allocation3 + $0x690] sm:$0xf] %v5329
          %5394 = vst [vmem:[#allocation3 + $0x6b4] sm:$0xf] %v5330
          %5395 = vst [vmem:[#allocation3 + $0x6d8] sm:$0xf] %v5331
          %5396 = vst [vmem:[#allocation3 + $0x6fc] sm:$0xf] %v5332
          %5397 = vst [vmem:[#allocation3 + $0x720] sm:$0xf] %v5333
          %5398 = vst [vmem:[#allocation3 + $0x744] sm:$0xf] %v5334
          %5399 = vst [vmem:[#allocation3 + $0x768] sm:$0xf] %v5335
          %5400 = vst [vmem:[#allocation3 + $0x78c] sm:$0xf] %v5336
          %5401 = vst [vmem:[#allocation3 + $0x7b0] sm:$0xf] %v5337
          %5402 = vst [vmem:[#allocation3 + $0x7d4] sm:$0xf] %v5338
          %5403 = vst [vmem:[#allocation3 + $0x7f8] sm:$0xf] %v5339
          %5404 = vst [vmem:[#allocation3 + $0x81c] sm:$0xf] %v5340
          %5405 = vst [vmem:[#allocation3 + $0x840] sm:$0xf] %v5341
          %5406 = vst [vmem:[#allocation3 + $0x864] sm:$0xf] %v5342
          %5407 = vst [vmem:[#allocation3 + $0x888] sm:$0xf] %v5343
          %5408 = vst [vmem:[#allocation3 + $0x8ac] sm:$0xf] %v5344
          %5409 = vst [vmem:[#allocation3 + $0x8d0] sm:$0xf] %v5345
          %5410 = vst [vmem:[#allocation3 + $0x8f4] sm:$0xf] %v5346
          %v5411 = vld [vmem:[%s5282] sm:$0xf]
          %v5412 = vld [vmem:[%s5282 + $0x4] sm:$0xf]
          %v5413 = vld [vmem:[%s5282 + $0x8] sm:$0x1]
          %v5414 = vld [vmem:[%s5282 + $0xc] sm:$0xf]
          %v5415 = vld [vmem:[%s5282 + $0x10] sm:$0xf]
          %v5416 = vld [vmem:[%s5282 + $0x14] sm:$0x1]
          %v5417 = vld [vmem:[%s5282 + $0x18] sm:$0xf]
          %v5418 = vld [vmem:[%s5282 + $0x1c] sm:$0xf]
          %v5419 = vld [vmem:[%s5282 + $0x20] sm:$0x1]
          %v5420 = vld [vmem:[%s5282 + $0x24] sm:$0xf]
          %v5421 = vld [vmem:[%s5282 + $0x28] sm:$0xf]
          %v5422 = vld [vmem:[%s5282 + $0x2c] sm:$0x1]
          %v5423 = vld [vmem:[%s5282 + $0x30] sm:$0xf]
          %v5424 = vld [vmem:[%s5282 + $0x34] sm:$0xf]
          %v5425 = vld [vmem:[%s5282 + $0x38] sm:$0x1]
          %v5426 = vld [vmem:[%s5282 + $0x3c] sm:$0xf]
          %v5427 = vld [vmem:[%s5282 + $0x40] sm:$0xf]
          %v5428 = vld [vmem:[%s5282 + $0x44] sm:$0x1]
          %v5429 = vld [vmem:[%s5282 + $0x48] sm:$0xf]
          %v5430 = vld [vmem:[%s5282 + $0x4c] sm:$0xf]
          %v5431 = vld [vmem:[%s5282 + $0x50] sm:$0x1]
          %v5432 = vld [vmem:[%s5282 + $0x54] sm:$0xf]
          %v5433 = vld [vmem:[%s5282 + $0x58] sm:$0xf]
          %v5434 = vld [vmem:[%s5282 + $0x5c] sm:$0x1]
          %v5435 = vld [vmem:[%s5282 + $0x60] sm:$0xf]
          %v5436 = vld [vmem:[%s5282 + $0x64] sm:$0xf]
          %v5437 = vld [vmem:[%s5282 + $0x68] sm:$0x1]
          %v5438 = vld [vmem:[%s5282 + $0x6c] sm:$0xf]
          %v5439 = vld [vmem:[%s5282 + $0x70] sm:$0xf]
          %v5440 = vld [vmem:[%s5282 + $0x74] sm:$0x1]
          %v5441 = vld [vmem:[%s5282 + $0x78] sm:$0xf]
          %v5442 = vld [vmem:[%s5282 + $0x7c] sm:$0xf]
          %v5443 = vld [vmem:[%s5282 + $0x80] sm:$0x1]
          %v5444 = vld [vmem:[%s5282 + $0x84] sm:$0xf]
          %v5445 = vld [vmem:[%s5282 + $0x88] sm:$0xf]
          %v5446 = vld [vmem:[%s5282 + $0x8c] sm:$0x1]
          %v5447 = vld [vmem:[%s5282 + $0x90] sm:$0xf]
          %v5448 = vld [vmem:[%s5282 + $0x94] sm:$0xf]
          %v5449 = vld [vmem:[%s5282 + $0x98] sm:$0x1]
          %v5450 = vld [vmem:[%s5282 + $0x9c] sm:$0xf]
          %v5451 = vld [vmem:[%s5282 + $0xa0] sm:$0xf]
          %v5452 = vld [vmem:[%s5282 + $0xa4] sm:$0x1]
          %v5453 = vld [vmem:[%s5282 + $0xa8] sm:$0xf]
          %v5454 = vld [vmem:[%s5282 + $0xac] sm:$0xf]
          %v5455 = vld [vmem:[%s5282 + $0xb0] sm:$0x1]
          %v5456 = vld [vmem:[%s5282 + $0xb4] sm:$0xf]
          %v5457 = vld [vmem:[%s5282 + $0xb8] sm:$0xf]
          %v5458 = vld [vmem:[%s5282 + $0xbc] sm:$0x1]
          %v5459 = vld [vmem:[%s5282 + $0xd8] sm:$0xf]
          %v5460 = vld [vmem:[%s5282 + $0xdc] sm:$0xf]
          %v5461 = vld [vmem:[%s5282 + $0xe0] sm:$0x1]
          %v5462 = vld [vmem:[%s5282 + $0xe4] sm:$0xf]
          %v5463 = vld [vmem:[%s5282 + $0xe8] sm:$0xf]
          %v5464 = vld [vmem:[%s5282 + $0xec] sm:$0x1]
          %v5465 = vld [vmem:[%s5282 + $0xf0] sm:$0xf]
          %v5466 = vld [vmem:[%s5282 + $0xf4] sm:$0xf]
          %v5467 = vld [vmem:[%s5282 + $0xf8] sm:$0x1]
          %v5468 = vld [vmem:[%s5282 + $0xfc] sm:$0xf]
          %v5469 = vld [vmem:[%s5282 + $0x100] sm:$0xf]
          %v5470 = vld [vmem:[%s5282 + $0x104] sm:$0x1]
          %v5471 = vld [vmem:[%s5282 + $0x108] sm:$0xf]
          %v5472 = vld [vmem:[%s5282 + $0x10c] sm:$0xf]
          %v5473 = vld [vmem:[%s5282 + $0x110] sm:$0x1]
          %v5474 = vld [vmem:[%s5282 + $0x114] sm:$0xf]
          %v5475 = vld [vmem:[%s5282 + $0x118] sm:$0xf]
          %v5476 = vld [vmem:[%s5282 + $0x11c] sm:$0x1]
          %v5477 = vld [vmem:[%s5282 + $0x120] sm:$0xf]
          %v5478 = vld [vmem:[%s5282 + $0x124] sm:$0xf]
          %v5479 = vld [vmem:[%s5282 + $0x128] sm:$0x1]
          %v5480 = vld [vmem:[%s5282 + $0x12c] sm:$0xf]
          %v5481 = vld [vmem:[%s5282 + $0x130] sm:$0xf]
          %v5482 = vld [vmem:[%s5282 + $0x134] sm:$0x1]
          %v5483 = vld [vmem:[%s5282 + $0x138] sm:$0xf]
          %v5484 = vld [vmem:[%s5282 + $0x13c] sm:$0xf]
          %v5485 = vld [vmem:[%s5282 + $0x140] sm:$0x1]
          %v5486 = vld [vmem:[%s5282 + $0x144] sm:$0xf]
          %v5487 = vld [vmem:[%s5282 + $0x148] sm:$0xf]
          %v5488 = vld [vmem:[%s5282 + $0x14c] sm:$0x1]
          %v5489 = vld [vmem:[%s5282 + $0x150] sm:$0xf]
          %v5490 = vld [vmem:[%s5282 + $0x154] sm:$0xf]
          %v5491 = vld [vmem:[%s5282 + $0x158] sm:$0x1]
          %v5492 = vld [vmem:[%s5282 + $0x15c] sm:$0xf]
          %v5493 = vld [vmem:[%s5282 + $0x160] sm:$0xf]
          %v5494 = vld [vmem:[%s5282 + $0x164] sm:$0x1]
          %v5495 = vld [vmem:[%s5282 + $0x168] sm:$0xf]
          %v5496 = vld [vmem:[%s5282 + $0x16c] sm:$0xf]
          %v5497 = vld [vmem:[%s5282 + $0x170] sm:$0x1]
          %v5498 = vld [vmem:[%s5282 + $0x174] sm:$0xf]
          %v5499 = vld [vmem:[%s5282 + $0x178] sm:$0xf]
          %v5500 = vld [vmem:[%s5282 + $0x17c] sm:$0x1]
          %v5501 = vld [vmem:[%s5282 + $0x180] sm:$0xf]
          %v5502 = vld [vmem:[%s5282 + $0x184] sm:$0xf]
          %v5503 = vld [vmem:[%s5282 + $0x188] sm:$0x1]
          %v5504 = vld [vmem:[%s5282 + $0x18c] sm:$0xf]
          %v5505 = vld [vmem:[%s5282 + $0x190] sm:$0xf]
          %v5506 = vld [vmem:[%s5282 + $0x194] sm:$0x1]
          %v5508 = vshrl.u32 %v5411, 16
          %v5510 = vrot.slane %v5508, 4
          %v5511 = vshll.u32 %v5411, 16
          %v5513 = vrot.slane %v5511, 5
          %v5514 = vor.u32 %v5510, %v5513
          %v5515 = vrot.slane %v5514, 4
          %v5517 = vshll.u32 %v5412, 16
          %v5519 = vrot.slane %v5517, 5
          %v5520 = vsel %vm2173, %v5515, %v5519
          %v5521 = vshrl.u32 %v5412, 16
          %v5523 = vrot.slane %v5521, 4
          %v5524 = vor.u32 %v5523, %v5519
          %v5525 = vrot.slane %v5524, 4
          %v5527 = vshll.u32 %v5413, 16
          %v5529 = vrot.slane %v5527, 5
          %v5530 = vsel %vm2173, %v5525, %v5529
          %v5532 = vshrl.u32 %v5414, 16
          %v5534 = vrot.slane %v5532, 4
          %v5535 = vshll.u32 %v5414, 16
          %v5537 = vrot.slane %v5535, 5
          %v5538 = vor.u32 %v5534, %v5537
          %v5539 = vrot.slane %v5538, 4
          %v5541 = vshll.u32 %v5415, 16
          %v5543 = vrot.slane %v5541, 5
          %v5544 = vsel %vm2173, %v5539, %v5543
          %v5545 = vshrl.u32 %v5415, 16
          %v5547 = vrot.slane %v5545, 4
          %v5548 = vor.u32 %v5547, %v5543
          %v5549 = vrot.slane %v5548, 4
          %v5551 = vshll.u32 %v5416, 16
          %v5553 = vrot.slane %v5551, 5
          %v5554 = vsel %vm2173, %v5549, %v5553
          %v5556 = vshrl.u32 %v5417, 16
          %v5558 = vrot.slane %v5556, 4
          %v5559 = vshll.u32 %v5417, 16
          %v5561 = vrot.slane %v5559, 5
          %v5562 = vor.u32 %v5558, %v5561
          %v5563 = vrot.slane %v5562, 4
          %v5565 = vshll.u32 %v5418, 16
          %v5567 = vrot.slane %v5565, 5
          %v5568 = vsel %vm2173, %v5563, %v5567
          %v5569 = vshrl.u32 %v5418, 16
          %v5571 = vrot.slane %v5569, 4
          %v5572 = vor.u32 %v5571, %v5567
          %v5573 = vrot.slane %v5572, 4
          %v5575 = vshll.u32 %v5419, 16
          %v5577 = vrot.slane %v5575, 5
          %v5578 = vsel %vm2173, %v5573, %v5577
          %v5580 = vshrl.u32 %v5420, 16
          %v5582 = vrot.slane %v5580, 4
          %v5583 = vshll.u32 %v5420, 16
          %v5585 = vrot.slane %v5583, 5
          %v5586 = vor.u32 %v5582, %v5585
          %v5587 = vrot.slane %v5586, 4
          %v5589 = vshll.u32 %v5421, 16
          %v5591 = vrot.slane %v5589, 5
          %v5592 = vsel %vm2173, %v5587, %v5591
          %v5593 = vshrl.u32 %v5421, 16
          %v5595 = vrot.slane %v5593, 4
          %v5596 = vor.u32 %v5595, %v5591
          %v5597 = vrot.slane %v5596, 4
          %v5599 = vshll.u32 %v5422, 16
          %v5601 = vrot.slane %v5599, 5
          %v5602 = vsel %vm2173, %v5597, %v5601
          %v5604 = vshrl.u32 %v5423, 16
          %v5606 = vrot.slane %v5604, 4
          %v5607 = vshll.u32 %v5423, 16
          %v5609 = vrot.slane %v5607, 5
          %v5610 = vor.u32 %v5606, %v5609
          %v5611 = vrot.slane %v5610, 4
          %v5613 = vshll.u32 %v5424, 16
          %v5615 = vrot.slane %v5613, 5
          %v5616 = vsel %vm2173, %v5611, %v5615
          %v5617 = vshrl.u32 %v5424, 16
          %v5619 = vrot.slane %v5617, 4
          %v5620 = vor.u32 %v5619, %v5615
          %v5621 = vrot.slane %v5620, 4
          %v5623 = vshll.u32 %v5425, 16
          %v5625 = vrot.slane %v5623, 5
          %v5626 = vsel %vm2173, %v5621, %v5625
          %v5628 = vshrl.u32 %v5426, 16
          %v5630 = vrot.slane %v5628, 4
          %v5631 = vshll.u32 %v5426, 16
          %v5633 = vrot.slane %v5631, 5
          %v5634 = vor.u32 %v5630, %v5633
          %v5635 = vrot.slane %v5634, 4
          %v5637 = vshll.u32 %v5427, 16
          %v5639 = vrot.slane %v5637, 5
          %v5640 = vsel %vm2173, %v5635, %v5639
          %v5641 = vshrl.u32 %v5427, 16
          %v5643 = vrot.slane %v5641, 4
          %v5644 = vor.u32 %v5643, %v5639
          %v5645 = vrot.slane %v5644, 4
          %v5647 = vshll.u32 %v5428, 16
          %v5649 = vrot.slane %v5647, 5
          %v5650 = vsel %vm2173, %v5645, %v5649
          %v5652 = vshrl.u32 %v5429, 16
          %v5654 = vrot.slane %v5652, 4
          %v5655 = vshll.u32 %v5429, 16
          %v5657 = vrot.slane %v5655, 5
          %v5658 = vor.u32 %v5654, %v5657
          %v5659 = vrot.slane %v5658, 4
          %v5661 = vshll.u32 %v5430, 16
          %v5663 = vrot.slane %v5661, 5
          %v5664 = vsel %vm2173, %v5659, %v5663
          %v5665 = vshrl.u32 %v5430, 16
          %v5667 = vrot.slane %v5665, 4
          %v5668 = vor.u32 %v5667, %v5663
          %v5669 = vrot.slane %v5668, 4
          %v5671 = vshll.u32 %v5431, 16
          %v5673 = vrot.slane %v5671, 5
          %v5674 = vsel %vm2173, %v5669, %v5673
          %v5676 = vshrl.u32 %v5432, 16
          %v5678 = vrot.slane %v5676, 4
          %v5679 = vshll.u32 %v5432, 16
          %v5681 = vrot.slane %v5679, 5
          %v5682 = vor.u32 %v5678, %v5681
          %v5683 = vrot.slane %v5682, 4
          %v5685 = vshll.u32 %v5433, 16
          %v5687 = vrot.slane %v5685, 5
          %v5688 = vsel %vm2173, %v5683, %v5687
          %v5689 = vshrl.u32 %v5433, 16
          %v5691 = vrot.slane %v5689, 4
          %v5692 = vor.u32 %v5691, %v5687
          %v5693 = vrot.slane %v5692, 4
          %v5695 = vshll.u32 %v5434, 16
          %v5697 = vrot.slane %v5695, 5
          %v5698 = vsel %vm2173, %v5693, %v5697
          %v5700 = vshrl.u32 %v5435, 16
          %v5702 = vrot.slane %v5700, 4
          %v5703 = vshll.u32 %v5435, 16
          %v5705 = vrot.slane %v5703, 5
          %v5706 = vor.u32 %v5702, %v5705
          %v5707 = vrot.slane %v5706, 4
          %v5709 = vshll.u32 %v5436, 16
          %v5711 = vrot.slane %v5709, 5
          %v5712 = vsel %vm2173, %v5707, %v5711
          %v5713 = vshrl.u32 %v5436, 16
          %v5715 = vrot.slane %v5713, 4
          %v5716 = vor.u32 %v5715, %v5711
          %v5717 = vrot.slane %v5716, 4
          %v5719 = vshll.u32 %v5437, 16
          %v5721 = vrot.slane %v5719, 5
          %v5722 = vsel %vm2173, %v5717, %v5721
          %v5724 = vshrl.u32 %v5438, 16
          %v5726 = vrot.slane %v5724, 4
          %v5727 = vshll.u32 %v5438, 16
          %v5729 = vrot.slane %v5727, 5
          %v5730 = vor.u32 %v5726, %v5729
          %v5731 = vrot.slane %v5730, 4
          %v5733 = vshll.u32 %v5439, 16
          %v5735 = vrot.slane %v5733, 5
          %v5736 = vsel %vm2173, %v5731, %v5735
          %v5737 = vshrl.u32 %v5439, 16
          %v5739 = vrot.slane %v5737, 4
          %v5740 = vor.u32 %v5739, %v5735
          %v5741 = vrot.slane %v5740, 4
          %v5743 = vshll.u32 %v5440, 16
          %v5745 = vrot.slane %v5743, 5
          %v5746 = vsel %vm2173, %v5741, %v5745
          %v5748 = vshrl.u32 %v5441, 16
          %v5750 = vrot.slane %v5748, 4
          %v5751 = vshll.u32 %v5441, 16
          %v5753 = vrot.slane %v5751, 5
          %v5754 = vor.u32 %v5750, %v5753
          %v5755 = vrot.slane %v5754, 4
          %v5757 = vshll.u32 %v5442, 16
          %v5759 = vrot.slane %v5757, 5
          %v5760 = vsel %vm2173, %v5755, %v5759
          %v5761 = vshrl.u32 %v5442, 16
          %v5763 = vrot.slane %v5761, 4
          %v5764 = vor.u32 %v5763, %v5759
          %v5765 = vrot.slane %v5764, 4
          %v5767 = vshll.u32 %v5443, 16
          %v5769 = vrot.slane %v5767, 5
          %v5770 = vsel %vm2173, %v5765, %v5769
          %v5772 = vshrl.u32 %v5444, 16
          %v5774 = vrot.slane %v5772, 4
          %v5775 = vshll.u32 %v5444, 16
          %v5777 = vrot.slane %v5775, 5
          %v5778 = vor.u32 %v5774, %v5777
          %v5779 = vrot.slane %v5778, 4
          %v5781 = vshll.u32 %v5445, 16
          %v5783 = vrot.slane %v5781, 5
          %v5784 = vsel %vm2173, %v5779, %v5783
          %v5785 = vshrl.u32 %v5445, 16
          %v5787 = vrot.slane %v5785, 4
          %v5788 = vor.u32 %v5787, %v5783
          %v5789 = vrot.slane %v5788, 4
          %v5791 = vshll.u32 %v5446, 16
          %v5793 = vrot.slane %v5791, 5
          %v5794 = vsel %vm2173, %v5789, %v5793
          %v5796 = vshrl.u32 %v5447, 16
          %v5798 = vrot.slane %v5796, 4
          %v5799 = vshll.u32 %v5447, 16
          %v5801 = vrot.slane %v5799, 5
          %v5802 = vor.u32 %v5798, %v5801
          %v5803 = vrot.slane %v5802, 4
          %v5805 = vshll.u32 %v5448, 16
          %v5807 = vrot.slane %v5805, 5
          %v5808 = vsel %vm2173, %v5803, %v5807
          %v5809 = vshrl.u32 %v5448, 16
          %v5811 = vrot.slane %v5809, 4
          %v5812 = vor.u32 %v5811, %v5807
          %v5813 = vrot.slane %v5812, 4
          %v5815 = vshll.u32 %v5449, 16
          %v5817 = vrot.slane %v5815, 5
          %v5818 = vsel %vm2173, %v5813, %v5817
          %v5820 = vshrl.u32 %v5450, 16
          %v5822 = vrot.slane %v5820, 4
          %v5823 = vshll.u32 %v5450, 16
          %v5825 = vrot.slane %v5823, 5
          %v5826 = vor.u32 %v5822, %v5825
          %v5827 = vrot.slane %v5826, 4
          %v5829 = vshll.u32 %v5451, 16
          %v5831 = vrot.slane %v5829, 5
          %v5832 = vsel %vm2173, %v5827, %v5831
          %v5833 = vshrl.u32 %v5451, 16
          %v5835 = vrot.slane %v5833, 4
          %v5836 = vor.u32 %v5835, %v5831
          %v5837 = vrot.slane %v5836, 4
          %v5839 = vshll.u32 %v5452, 16
          %v5841 = vrot.slane %v5839, 5
          %v5842 = vsel %vm2173, %v5837, %v5841
          %v5844 = vshrl.u32 %v5453, 16
          %v5846 = vrot.slane %v5844, 4
          %v5847 = vshll.u32 %v5453, 16
          %v5849 = vrot.slane %v5847, 5
          %v5850 = vor.u32 %v5846, %v5849
          %v5851 = vrot.slane %v5850, 4
          %v5853 = vshll.u32 %v5454, 16
          %v5855 = vrot.slane %v5853, 5
          %v5856 = vsel %vm2173, %v5851, %v5855
          %v5857 = vshrl.u32 %v5454, 16
          %v5859 = vrot.slane %v5857, 4
          %v5860 = vor.u32 %v5859, %v5855
          %v5861 = vrot.slane %v5860, 4
          %v5863 = vshll.u32 %v5455, 16
          %v5865 = vrot.slane %v5863, 5
          %v5866 = vsel %vm2173, %v5861, %v5865
          %v5868 = vshrl.u32 %v5456, 16
          %v5870 = vrot.slane %v5868, 4
          %v5871 = vshll.u32 %v5456, 16
          %v5873 = vrot.slane %v5871, 5
          %v5874 = vor.u32 %v5870, %v5873
          %v5875 = vrot.slane %v5874, 4
          %v5877 = vshll.u32 %v5457, 16
          %v5879 = vrot.slane %v5877, 5
          %v5880 = vsel %vm2173, %v5875, %v5879
          %v5881 = vshrl.u32 %v5457, 16
          %v5883 = vrot.slane %v5881, 4
          %v5884 = vor.u32 %v5883, %v5879
          %v5885 = vrot.slane %v5884, 4
          %v5887 = vshll.u32 %v5458, 16
          %v5889 = vrot.slane %v5887, 5
          %v5890 = vsel %vm2173, %v5885, %v5889
          %v5892 = vshrl.u32 %v5459, 16
          %v5894 = vrot.slane %v5892, 4
          %v5895 = vshll.u32 %v5459, 16
          %v5897 = vrot.slane %v5895, 5
          %v5898 = vor.u32 %v5894, %v5897
          %v5899 = vrot.slane %v5898, 4
          %v5901 = vshll.u32 %v5460, 16
          %v5903 = vrot.slane %v5901, 5
          %v5904 = vsel %vm2173, %v5899, %v5903
          %v5905 = vshrl.u32 %v5460, 16
          %v5907 = vrot.slane %v5905, 4
          %v5908 = vor.u32 %v5907, %v5903
          %v5909 = vrot.slane %v5908, 4
          %v5911 = vshll.u32 %v5461, 16
          %v5913 = vrot.slane %v5911, 5
          %v5914 = vsel %vm2173, %v5909, %v5913
          %v5916 = vshrl.u32 %v5462, 16
          %v5918 = vrot.slane %v5916, 4
          %v5919 = vshll.u32 %v5462, 16
          %v5921 = vrot.slane %v5919, 5
          %v5922 = vor.u32 %v5918, %v5921
          %v5923 = vrot.slane %v5922, 4
          %v5925 = vshll.u32 %v5463, 16
          %v5927 = vrot.slane %v5925, 5
          %v5928 = vsel %vm2173, %v5923, %v5927
          %v5929 = vshrl.u32 %v5463, 16
          %v5931 = vrot.slane %v5929, 4
          %v5932 = vor.u32 %v5931, %v5927
          %v5933 = vrot.slane %v5932, 4
          %v5935 = vshll.u32 %v5464, 16
          %v5937 = vrot.slane %v5935, 5
          %v5938 = vsel %vm2173, %v5933, %v5937
          %v5940 = vshrl.u32 %v5465, 16
          %v5942 = vrot.slane %v5940, 4
          %v5943 = vshll.u32 %v5465, 16
          %v5945 = vrot.slane %v5943, 5
          %v5946 = vor.u32 %v5942, %v5945
          %v5947 = vrot.slane %v5946, 4
          %v5949 = vshll.u32 %v5466, 16
          %v5951 = vrot.slane %v5949, 5
          %v5952 = vsel %vm2173, %v5947, %v5951
          %v5953 = vshrl.u32 %v5466, 16
          %v5955 = vrot.slane %v5953, 4
          %v5956 = vor.u32 %v5955, %v5951
          %v5957 = vrot.slane %v5956, 4
          %v5959 = vshll.u32 %v5467, 16
          %v5961 = vrot.slane %v5959, 5
          %v5962 = vsel %vm2173, %v5957, %v5961
          %v5964 = vshrl.u32 %v5468, 16
          %v5966 = vrot.slane %v5964, 4
          %v5967 = vshll.u32 %v5468, 16
          %v5969 = vrot.slane %v5967, 5
          %v5970 = vor.u32 %v5966, %v5969
          %v5971 = vrot.slane %v5970, 4
          %v5973 = vshll.u32 %v5469, 16
          %v5975 = vrot.slane %v5973, 5
          %v5976 = vsel %vm2173, %v5971, %v5975
          %v5977 = vshrl.u32 %v5469, 16
          %v5979 = vrot.slane %v5977, 4
          %v5980 = vor.u32 %v5979, %v5975
          %v5981 = vrot.slane %v5980, 4
          %v5983 = vshll.u32 %v5470, 16
          %v5985 = vrot.slane %v5983, 5
          %v5986 = vsel %vm2173, %v5981, %v5985
          %v5988 = vshrl.u32 %v5471, 16
          %v5990 = vrot.slane %v5988, 4
          %v5991 = vshll.u32 %v5471, 16
          %v5993 = vrot.slane %v5991, 5
          %v5994 = vor.u32 %v5990, %v5993
          %v5995 = vrot.slane %v5994, 4
          %v5997 = vshll.u32 %v5472, 16
          %v5999 = vrot.slane %v5997, 5
          %v6000 = vsel %vm2173, %v5995, %v5999
          %v6001 = vshrl.u32 %v5472, 16
          %v6003 = vrot.slane %v6001, 4
          %v6004 = vor.u32 %v6003, %v5999
          %v6005 = vrot.slane %v6004, 4
          %v6007 = vshll.u32 %v5473, 16
          %v6009 = vrot.slane %v6007, 5
          %v6010 = vsel %vm2173, %v6005, %v6009
          %v6012 = vshrl.u32 %v5474, 16
          %v6014 = vrot.slane %v6012, 4
          %v6015 = vshll.u32 %v5474, 16
          %v6017 = vrot.slane %v6015, 5
          %v6018 = vor.u32 %v6014, %v6017
          %v6019 = vrot.slane %v6018, 4
          %v6021 = vshll.u32 %v5475, 16
          %v6023 = vrot.slane %v6021, 5
          %v6024 = vsel %vm2173, %v6019, %v6023
          %v6025 = vshrl.u32 %v5475, 16
          %v6027 = vrot.slane %v6025, 4
          %v6028 = vor.u32 %v6027, %v6023
          %v6029 = vrot.slane %v6028, 4
          %v6031 = vshll.u32 %v5476, 16
          %v6033 = vrot.slane %v6031, 5
          %v6034 = vsel %vm2173, %v6029, %v6033
          %v6036 = vshrl.u32 %v5477, 16
          %v6038 = vrot.slane %v6036, 4
          %v6039 = vshll.u32 %v5477, 16
          %v6041 = vrot.slane %v6039, 5
          %v6042 = vor.u32 %v6038, %v6041
          %v6043 = vrot.slane %v6042, 4
          %v6045 = vshll.u32 %v5478, 16
          %v6047 = vrot.slane %v6045, 5
          %v6048 = vsel %vm2173, %v6043, %v6047
          %v6049 = vshrl.u32 %v5478, 16
          %v6051 = vrot.slane %v6049, 4
          %v6052 = vor.u32 %v6051, %v6047
          %v6053 = vrot.slane %v6052, 4
          %v6055 = vshll.u32 %v5479, 16
          %v6057 = vrot.slane %v6055, 5
          %v6058 = vsel %vm2173, %v6053, %v6057
          %v6060 = vshrl.u32 %v5480, 16
          %v6062 = vrot.slane %v6060, 4
          %v6063 = vshll.u32 %v5480, 16
          %v6065 = vrot.slane %v6063, 5
          %v6066 = vor.u32 %v6062, %v6065
          %v6067 = vrot.slane %v6066, 4
          %v6069 = vshll.u32 %v5481, 16
          %v6071 = vrot.slane %v6069, 5
          %v6072 = vsel %vm2173, %v6067, %v6071
          %v6073 = vshrl.u32 %v5481, 16
          %v6075 = vrot.slane %v6073, 4
          %v6076 = vor.u32 %v6075, %v6071
          %v6077 = vrot.slane %v6076, 4
          %v6079 = vshll.u32 %v5482, 16
          %v6081 = vrot.slane %v6079, 5
          %v6082 = vsel %vm2173, %v6077, %v6081
          %v6084 = vshrl.u32 %v5483, 16
          %v6086 = vrot.slane %v6084, 4
          %v6087 = vshll.u32 %v5483, 16
          %v6089 = vrot.slane %v6087, 5
          %v6090 = vor.u32 %v6086, %v6089
          %v6091 = vrot.slane %v6090, 4
          %v6093 = vshll.u32 %v5484, 16
          %v6095 = vrot.slane %v6093, 5
          %v6096 = vsel %vm2173, %v6091, %v6095
          %v6097 = vshrl.u32 %v5484, 16
          %v6099 = vrot.slane %v6097, 4
          %v6100 = vor.u32 %v6099, %v6095
          %v6101 = vrot.slane %v6100, 4
          %v6103 = vshll.u32 %v5485, 16
          %v6105 = vrot.slane %v6103, 5
          %v6106 = vsel %vm2173, %v6101, %v6105
          %v6108 = vshrl.u32 %v5486, 16
          %v6110 = vrot.slane %v6108, 4
          %v6111 = vshll.u32 %v5486, 16
          %v6113 = vrot.slane %v6111, 5
          %v6114 = vor.u32 %v6110, %v6113
          %v6115 = vrot.slane %v6114, 4
          %v6117 = vshll.u32 %v5487, 16
          %v6119 = vrot.slane %v6117, 5
          %v6120 = vsel %vm2173, %v6115, %v6119
          %v6121 = vshrl.u32 %v5487, 16
          %v6123 = vrot.slane %v6121, 4
          %v6124 = vor.u32 %v6123, %v6119
          %v6125 = vrot.slane %v6124, 4
          %v6127 = vshll.u32 %v5488, 16
          %v6129 = vrot.slane %v6127, 5
          %v6130 = vsel %vm2173, %v6125, %v6129
          %v6132 = vshrl.u32 %v5489, 16
          %v6134 = vrot.slane %v6132, 4
          %v6135 = vshll.u32 %v5489, 16
          %v6137 = vrot.slane %v6135, 5
          %v6138 = vor.u32 %v6134, %v6137
          %v6139 = vrot.slane %v6138, 4
          %v6141 = vshll.u32 %v5490, 16
          %v6143 = vrot.slane %v6141, 5
          %v6144 = vsel %vm2173, %v6139, %v6143
          %v6145 = vshrl.u32 %v5490, 16
          %v6147 = vrot.slane %v6145, 4
          %v6148 = vor.u32 %v6147, %v6143
          %v6149 = vrot.slane %v6148, 4
          %v6151 = vshll.u32 %v5491, 16
          %v6153 = vrot.slane %v6151, 5
          %v6154 = vsel %vm2173, %v6149, %v6153
          %v6156 = vshrl.u32 %v5492, 16
          %v6158 = vrot.slane %v6156, 4
          %v6159 = vshll.u32 %v5492, 16
          %v6161 = vrot.slane %v6159, 5
          %v6162 = vor.u32 %v6158, %v6161
          %v6163 = vrot.slane %v6162, 4
          %v6165 = vshll.u32 %v5493, 16
          %v6167 = vrot.slane %v6165, 5
          %v6168 = vsel %vm2173, %v6163, %v6167
          %v6169 = vshrl.u32 %v5493, 16
          %v6171 = vrot.slane %v6169, 4
          %v6172 = vor.u32 %v6171, %v6167
          %v6173 = vrot.slane %v6172, 4
          %v6175 = vshll.u32 %v5494, 16
          %v6177 = vrot.slane %v6175, 5
          %v6178 = vsel %vm2173, %v6173, %v6177
          %v6180 = vshrl.u32 %v5495, 16
          %v6182 = vrot.slane %v6180, 4
          %v6183 = vshll.u32 %v5495, 16
          %v6185 = vrot.slane %v6183, 5
          %v6186 = vor.u32 %v6182, %v6185
          %v6187 = vrot.slane %v6186, 4
          %v6189 = vshll.u32 %v5496, 16
          %v6191 = vrot.slane %v6189, 5
          %v6192 = vsel %vm2173, %v6187, %v6191
          %v6193 = vshrl.u32 %v5496, 16
          %v6195 = vrot.slane %v6193, 4
          %v6196 = vor.u32 %v6195, %v6191
          %v6197 = vrot.slane %v6196, 4
          %v6199 = vshll.u32 %v5497, 16
          %v6201 = vrot.slane %v6199, 5
          %v6202 = vsel %vm2173, %v6197, %v6201
          %v6204 = vshrl.u32 %v5498, 16
          %v6206 = vrot.slane %v6204, 4
          %v6207 = vshll.u32 %v5498, 16
          %v6209 = vrot.slane %v6207, 5
          %v6210 = vor.u32 %v6206, %v6209
          %v6211 = vrot.slane %v6210, 4
          %v6213 = vshll.u32 %v5499, 16
          %v6215 = vrot.slane %v6213, 5
          %v6216 = vsel %vm2173, %v6211, %v6215
          %v6217 = vshrl.u32 %v5499, 16
          %v6219 = vrot.slane %v6217, 4
          %v6220 = vor.u32 %v6219, %v6215
          %v6221 = vrot.slane %v6220, 4
          %v6223 = vshll.u32 %v5500, 16
          %v6225 = vrot.slane %v6223, 5
          %v6226 = vsel %vm2173, %v6221, %v6225
          %v6228 = vshrl.u32 %v5501, 16
          %v6230 = vrot.slane %v6228, 4
          %v6231 = vshll.u32 %v5501, 16
          %v6233 = vrot.slane %v6231, 5
          %v6234 = vor.u32 %v6230, %v6233
          %v6235 = vrot.slane %v6234, 4
          %v6237 = vshll.u32 %v5502, 16
          %v6239 = vrot.slane %v6237, 5
          %v6240 = vsel %vm2173, %v6235, %v6239
          %v6241 = vshrl.u32 %v5502, 16
          %v6243 = vrot.slane %v6241, 4
          %v6244 = vor.u32 %v6243, %v6239
          %v6245 = vrot.slane %v6244, 4
          %v6247 = vshll.u32 %v5503, 16
          %v6249 = vrot.slane %v6247, 5
          %v6250 = vsel %vm2173, %v6245, %v6249
          %v6252 = vshrl.u32 %v5504, 16
          %v6254 = vrot.slane %v6252, 4
          %v6255 = vshll.u32 %v5504, 16
          %v6257 = vrot.slane %v6255, 5
          %v6258 = vor.u32 %v6254, %v6257
          %v6259 = vrot.slane %v6258, 4
          %v6261 = vshll.u32 %v5505, 16
          %v6263 = vrot.slane %v6261, 5
          %v6264 = vsel %vm2173, %v6259, %v6263
          %v6265 = vshrl.u32 %v5505, 16
          %v6267 = vrot.slane %v6265, 4
          %v6268 = vor.u32 %v6267, %v6263
          %v6269 = vrot.slane %v6268, 4
          %v6271 = vshll.u32 %v5506, 16
          %v6273 = vrot.slane %v6271, 5
          %v6274 = vsel %vm2173, %v6269, %v6273
          %6339 = vst [vmem:[#allocation3 + $0x1c] sm:$0xf] %v5520
          %6340 = vst [vmem:[#allocation3 + $0x40] sm:$0xf] %v5530
          %6341 = vst [vmem:[#allocation3 + $0x64] sm:$0xf] %v5544
          %6342 = vst [vmem:[#allocation3 + $0x88] sm:$0xf] %v5554
          %6343 = vst [vmem:[#allocation3 + $0xac] sm:$0xf] %v5568
          %6344 = vst [vmem:[#allocation3 + $0xd0] sm:$0xf] %v5578
          %6345 = vst [vmem:[#allocation3 + $0xf4] sm:$0xf] %v5592
          %6346 = vst [vmem:[#allocation3 + $0x118] sm:$0xf] %v5602
          %6347 = vst [vmem:[#allocation3 + $0x13c] sm:$0xf] %v5616
          %6348 = vst [vmem:[#allocation3 + $0x160] sm:$0xf] %v5626
          %6349 = vst [vmem:[#allocation3 + $0x184] sm:$0xf] %v5640
          %6350 = vst [vmem:[#allocation3 + $0x1a8] sm:$0xf] %v5650
          %6351 = vst [vmem:[#allocation3 + $0x1cc] sm:$0xf] %v5664
          %6352 = vst [vmem:[#allocation3 + $0x1f0] sm:$0xf] %v5674
          %6353 = vst [vmem:[#allocation3 + $0x214] sm:$0xf] %v5688
          %6354 = vst [vmem:[#allocation3 + $0x238] sm:$0xf] %v5698
          %6355 = vst [vmem:[#allocation3 + $0x25c] sm:$0xf] %v5712
          %6356 = vst [vmem:[#allocation3 + $0x280] sm:$0xf] %v5722
          %6357 = vst [vmem:[#allocation3 + $0x2a4] sm:$0xf] %v5736
          %6358 = vst [vmem:[#allocation3 + $0x2c8] sm:$0xf] %v5746
          %6359 = vst [vmem:[#allocation3 + $0x2ec] sm:$0xf] %v5760
          %6360 = vst [vmem:[#allocation3 + $0x310] sm:$0xf] %v5770
          %6361 = vst [vmem:[#allocation3 + $0x334] sm:$0xf] %v5784
          %6362 = vst [vmem:[#allocation3 + $0x358] sm:$0xf] %v5794
          %6363 = vst [vmem:[#allocation3 + $0x37c] sm:$0xf] %v5808
          %6364 = vst [vmem:[#allocation3 + $0x3a0] sm:$0xf] %v5818
          %6365 = vst [vmem:[#allocation3 + $0x3c4] sm:$0xf] %v5832
          %6366 = vst [vmem:[#allocation3 + $0x3e8] sm:$0xf] %v5842
          %6367 = vst [vmem:[#allocation3 + $0x40c] sm:$0xf] %v5856
          %6368 = vst [vmem:[#allocation3 + $0x430] sm:$0xf] %v5866
          %6369 = vst [vmem:[#allocation3 + $0x454] sm:$0xf] %v5880
          %6370 = vst [vmem:[#allocation3 + $0x478] sm:$0xf] %v5890
          %6371 = vst [vmem:[#allocation3 + $0x49c] sm:$0xf] %v5904
          %6372 = vst [vmem:[#allocation3 + $0x4c0] sm:$0xf] %v5914
          %6373 = vst [vmem:[#allocation3 + $0x4e4] sm:$0xf] %v5928
          %6374 = vst [vmem:[#allocation3 + $0x508] sm:$0xf] %v5938
          %6375 = vst [vmem:[#allocation3 + $0x52c] sm:$0xf] %v5952
          %6376 = vst [vmem:[#allocation3 + $0x550] sm:$0xf] %v5962
          %6377 = vst [vmem:[#allocation3 + $0x574] sm:$0xf] %v5976
          %6378 = vst [vmem:[#allocation3 + $0x598] sm:$0xf] %v5986
          %6379 = vst [vmem:[#allocation3 + $0x5bc] sm:$0xf] %v6000
          %6380 = vst [vmem:[#allocation3 + $0x5e0] sm:$0xf] %v6010
          %6381 = vst [vmem:[#allocation3 + $0x604] sm:$0xf] %v6024
          %6382 = vst [vmem:[#allocation3 + $0x628] sm:$0xf] %v6034
          %6383 = vst [vmem:[#allocation3 + $0x64c] sm:$0xf] %v6048
          %6384 = vst [vmem:[#allocation3 + $0x670] sm:$0xf] %v6058
          %6385 = vst [vmem:[#allocation3 + $0x694] sm:$0xf] %v6072
          %6386 = vst [vmem:[#allocation3 + $0x6b8] sm:$0xf] %v6082
          %6387 = vst [vmem:[#allocation3 + $0x6dc] sm:$0xf] %v6096
          %6388 = vst [vmem:[#allocation3 + $0x700] sm:$0xf] %v6106
          %6389 = vst [vmem:[#allocation3 + $0x724] sm:$0xf] %v6120
          %6390 = vst [vmem:[#allocation3 + $0x748] sm:$0xf] %v6130
          %6391 = vst [vmem:[#allocation3 + $0x76c] sm:$0xf] %v6144
          %6392 = vst [vmem:[#allocation3 + $0x790] sm:$0xf] %v6154
          %6393 = vst [vmem:[#allocation3 + $0x7b4] sm:$0xf] %v6168
          %6394 = vst [vmem:[#allocation3 + $0x7d8] sm:$0xf] %v6178
          %6395 = vst [vmem:[#allocation3 + $0x7fc] sm:$0xf] %v6192
          %6396 = vst [vmem:[#allocation3 + $0x820] sm:$0xf] %v6202
          %6397 = vst [vmem:[#allocation3 + $0x844] sm:$0xf] %v6216
          %6398 = vst [vmem:[#allocation3 + $0x868] sm:$0xf] %v6226
          %6399 = vst [vmem:[#allocation3 + $0x88c] sm:$0xf] %v6240
          %6400 = vst [vmem:[#allocation3 + $0x8b0] sm:$0xf] %v6250
          %6401 = vst [vmem:[#allocation3 + $0x8d4] sm:$0xf] %v6264
          %6402 = vst [vmem:[#allocation3 + $0x8f8] sm:$0xf] %v6274
          %v6403 = vld [vmem:[%s5282] sm:$0xe]
          %v6404 = vld [vmem:[%s5282 + $0x4] sm:$0xf]
          %v6405 = vld [vmem:[%s5282 + $0x8] sm:$0x1]
          %v6406 = vld [vmem:[%s5282 + $0xc] sm:$0xe]
          %v6407 = vld [vmem:[%s5282 + $0x10] sm:$0xf]
          %v6408 = vld [vmem:[%s5282 + $0x14] sm:$0x1]
          %v6409 = vld [vmem:[%s5282 + $0x18] sm:$0xe]
          %v6410 = vld [vmem:[%s5282 + $0x1c] sm:$0xf]
          %v6411 = vld [vmem:[%s5282 + $0x20] sm:$0x1]
          %v6412 = vld [vmem:[%s5282 + $0x24] sm:$0xe]
          %v6413 = vld [vmem:[%s5282 + $0x28] sm:$0xf]
          %v6414 = vld [vmem:[%s5282 + $0x2c] sm:$0x1]
          %v6415 = vld [vmem:[%s5282 + $0x30] sm:$0xe]
          %v6416 = vld [vmem:[%s5282 + $0x34] sm:$0xf]
          %v6417 = vld [vmem:[%s5282 + $0x38] sm:$0x1]
          %v6418 = vld [vmem:[%s5282 + $0x3c] sm:$0xe]
          %v6419 = vld [vmem:[%s5282 + $0x40] sm:$0xf]
          %v6420 = vld [vmem:[%s5282 + $0x44] sm:$0x1]
          %v6421 = vld [vmem:[%s5282 + $0x48] sm:$0xe]
          %v6422 = vld [vmem:[%s5282 + $0x4c] sm:$0xf]
          %v6423 = vld [vmem:[%s5282 + $0x50] sm:$0x1]
          %v6424 = vld [vmem:[%s5282 + $0x54] sm:$0xe]
          %v6425 = vld [vmem:[%s5282 + $0x58] sm:$0xf]
          %v6426 = vld [vmem:[%s5282 + $0x5c] sm:$0x1]
          %v6427 = vld [vmem:[%s5282 + $0x60] sm:$0xe]
          %v6428 = vld [vmem:[%s5282 + $0x64] sm:$0xf]
          %v6429 = vld [vmem:[%s5282 + $0x68] sm:$0x1]
          %v6430 = vld [vmem:[%s5282 + $0x6c] sm:$0xe]
          %v6431 = vld [vmem:[%s5282 + $0x70] sm:$0xf]
          %v6432 = vld [vmem:[%s5282 + $0x74] sm:$0x1]
          %v6433 = vld [vmem:[%s5282 + $0x78] sm:$0xe]
          %v6434 = vld [vmem:[%s5282 + $0x7c] sm:$0xf]
          %v6435 = vld [vmem:[%s5282 + $0x80] sm:$0x1]
          %v6436 = vld [vmem:[%s5282 + $0x84] sm:$0xe]
          %v6437 = vld [vmem:[%s5282 + $0x88] sm:$0xf]
          %v6438 = vld [vmem:[%s5282 + $0x8c] sm:$0x1]
          %v6439 = vld [vmem:[%s5282 + $0x90] sm:$0xe]
          %v6440 = vld [vmem:[%s5282 + $0x94] sm:$0xf]
          %v6441 = vld [vmem:[%s5282 + $0x98] sm:$0x1]
          %v6442 = vld [vmem:[%s5282 + $0x9c] sm:$0xe]
          %v6443 = vld [vmem:[%s5282 + $0xa0] sm:$0xf]
          %v6444 = vld [vmem:[%s5282 + $0xa4] sm:$0x1]
          %v6445 = vld [vmem:[%s5282 + $0xa8] sm:$0xe]
          %v6446 = vld [vmem:[%s5282 + $0xac] sm:$0xf]
          %v6447 = vld [vmem:[%s5282 + $0xb0] sm:$0x1]
          %v6448 = vld [vmem:[%s5282 + $0xb4] sm:$0xe]
          %v6449 = vld [vmem:[%s5282 + $0xb8] sm:$0xf]
          %v6450 = vld [vmem:[%s5282 + $0xbc] sm:$0x1]
          %v6451 = vld [vmem:[%s5282 + $0xd8] sm:$0xe]
          %v6452 = vld [vmem:[%s5282 + $0xdc] sm:$0xf]
          %v6453 = vld [vmem:[%s5282 + $0xe0] sm:$0x1]
          %v6454 = vld [vmem:[%s5282 + $0xe4] sm:$0xe]
          %v6455 = vld [vmem:[%s5282 + $0xe8] sm:$0xf]
          %v6456 = vld [vmem:[%s5282 + $0xec] sm:$0x1]
          %v6457 = vld [vmem:[%s5282 + $0xf0] sm:$0xe]
          %v6458 = vld [vmem:[%s5282 + $0xf4] sm:$0xf]
          %v6459 = vld [vmem:[%s5282 + $0xf8] sm:$0x1]
          %v6460 = vld [vmem:[%s5282 + $0xfc] sm:$0xe]
          %v6461 = vld [vmem:[%s5282 + $0x100] sm:$0xf]
          %v6462 = vld [vmem:[%s5282 + $0x104] sm:$0x1]
          %v6463 = vld [vmem:[%s5282 + $0x108] sm:$0xe]
          %v6464 = vld [vmem:[%s5282 + $0x10c] sm:$0xf]
          %v6465 = vld [vmem:[%s5282 + $0x110] sm:$0x1]
          %v6466 = vld [vmem:[%s5282 + $0x114] sm:$0xe]
          %v6467 = vld [vmem:[%s5282 + $0x118] sm:$0xf]
          %v6468 = vld [vmem:[%s5282 + $0x11c] sm:$0x1]
          %v6469 = vld [vmem:[%s5282 + $0x120] sm:$0xe]
          %v6470 = vld [vmem:[%s5282 + $0x124] sm:$0xf]
          %v6471 = vld [vmem:[%s5282 + $0x128] sm:$0x1]
          %v6472 = vld [vmem:[%s5282 + $0x12c] sm:$0xe]
          %v6473 = vld [vmem:[%s5282 + $0x130] sm:$0xf]
          %v6474 = vld [vmem:[%s5282 + $0x134] sm:$0x1]
          %v6475 = vld [vmem:[%s5282 + $0x138] sm:$0xe]
          %v6476 = vld [vmem:[%s5282 + $0x13c] sm:$0xf]
          %v6477 = vld [vmem:[%s5282 + $0x140] sm:$0x1]
          %v6478 = vld [vmem:[%s5282 + $0x144] sm:$0xe]
          %v6479 = vld [vmem:[%s5282 + $0x148] sm:$0xf]
          %v6480 = vld [vmem:[%s5282 + $0x14c] sm:$0x1]
          %v6481 = vld [vmem:[%s5282 + $0x150] sm:$0xe]
          %v6482 = vld [vmem:[%s5282 + $0x154] sm:$0xf]
          %v6483 = vld [vmem:[%s5282 + $0x158] sm:$0x1]
          %v6484 = vld [vmem:[%s5282 + $0x15c] sm:$0xe]
          %v6485 = vld [vmem:[%s5282 + $0x160] sm:$0xf]
          %v6486 = vld [vmem:[%s5282 + $0x164] sm:$0x1]
          %v6487 = vld [vmem:[%s5282 + $0x168] sm:$0xe]
          %v6488 = vld [vmem:[%s5282 + $0x16c] sm:$0xf]
          %v6489 = vld [vmem:[%s5282 + $0x170] sm:$0x1]
          %v6490 = vld [vmem:[%s5282 + $0x174] sm:$0xe]
          %v6491 = vld [vmem:[%s5282 + $0x178] sm:$0xf]
          %v6492 = vld [vmem:[%s5282 + $0x17c] sm:$0x1]
          %v6493 = vld [vmem:[%s5282 + $0x180] sm:$0xe]
          %v6494 = vld [vmem:[%s5282 + $0x184] sm:$0xf]
          %v6495 = vld [vmem:[%s5282 + $0x188] sm:$0x1]
          %v6496 = vld [vmem:[%s5282 + $0x18c] sm:$0xe]
          %v6497 = vld [vmem:[%s5282 + $0x190] sm:$0xf]
          %v6498 = vld [vmem:[%s5282 + $0x194] sm:$0x1]
          %v6595 = vrot.slane %v6403, 5
          %v6596 = vrot.slane %v6595, 4
          %v6597 = vrot.slane %v6404, 5
          %v6598 = vsel %vm3264, %v6596, %v6597
          %v6599 = vrot.slane %v6597, 4
          %v6600 = vrot.slane %v6405, 5
          %v6601 = vsel %vm3264, %v6599, %v6600
          %v6602 = vrot.slane %v6406, 5
          %v6603 = vrot.slane %v6602, 4
          %v6604 = vrot.slane %v6407, 5
          %v6605 = vsel %vm3264, %v6603, %v6604
          %v6606 = vrot.slane %v6604, 4
          %v6607 = vrot.slane %v6408, 5
          %v6608 = vsel %vm3264, %v6606, %v6607
          %v6609 = vrot.slane %v6409, 5
          %v6610 = vrot.slane %v6609, 4
          %v6611 = vrot.slane %v6410, 5
          %v6612 = vsel %vm3264, %v6610, %v6611
          %v6613 = vrot.slane %v6611, 4
          %v6614 = vrot.slane %v6411, 5
          %v6615 = vsel %vm3264, %v6613, %v6614
          %v6616 = vrot.slane %v6412, 5
          %v6617 = vrot.slane %v6616, 4
          %v6618 = vrot.slane %v6413, 5
          %v6619 = vsel %vm3264, %v6617, %v6618
          %v6620 = vrot.slane %v6618, 4
          %v6621 = vrot.slane %v6414, 5
          %v6622 = vsel %vm3264, %v6620, %v6621
          %v6623 = vrot.slane %v6415, 5
          %v6624 = vrot.slane %v6623, 4
          %v6625 = vrot.slane %v6416, 5
          %v6626 = vsel %vm3264, %v6624, %v6625
          %v6627 = vrot.slane %v6625, 4
          %v6628 = vrot.slane %v6417, 5
          %v6629 = vsel %vm3264, %v6627, %v6628
          %v6630 = vrot.slane %v6418, 5
          %v6631 = vrot.slane %v6630, 4
          %v6632 = vrot.slane %v6419, 5
          %v6633 = vsel %vm3264, %v6631, %v6632
          %v6634 = vrot.slane %v6632, 4
          %v6635 = vrot.slane %v6420, 5
          %v6636 = vsel %vm3264, %v6634, %v6635
          %v6637 = vrot.slane %v6421, 5
          %v6638 = vrot.slane %v6637, 4
          %v6639 = vrot.slane %v6422, 5
          %v6640 = vsel %vm3264, %v6638, %v6639
          %v6641 = vrot.slane %v6639, 4
          %v6642 = vrot.slane %v6423, 5
          %v6643 = vsel %vm3264, %v6641, %v6642
          %v6644 = vrot.slane %v6424, 5
          %v6645 = vrot.slane %v6644, 4
          %v6646 = vrot.slane %v6425, 5
          %v6647 = vsel %vm3264, %v6645, %v6646
          %v6648 = vrot.slane %v6646, 4
          %v6649 = vrot.slane %v6426, 5
          %v6650 = vsel %vm3264, %v6648, %v6649
          %v6651 = vrot.slane %v6427, 5
          %v6652 = vrot.slane %v6651, 4
          %v6653 = vrot.slane %v6428, 5
          %v6654 = vsel %vm3264, %v6652, %v6653
          %v6655 = vrot.slane %v6653, 4
          %v6656 = vrot.slane %v6429, 5
          %v6657 = vsel %vm3264, %v6655, %v6656
          %v6658 = vrot.slane %v6430, 5
          %v6659 = vrot.slane %v6658, 4
          %v6660 = vrot.slane %v6431, 5
          %v6661 = vsel %vm3264, %v6659, %v6660
          %v6662 = vrot.slane %v6660, 4
          %v6663 = vrot.slane %v6432, 5
          %v6664 = vsel %vm3264, %v6662, %v6663
          %v6665 = vrot.slane %v6433, 5
          %v6666 = vrot.slane %v6665, 4
          %v6667 = vrot.slane %v6434, 5
          %v6668 = vsel %vm3264, %v6666, %v6667
          %v6669 = vrot.slane %v6667, 4
          %v6670 = vrot.slane %v6435, 5
          %v6671 = vsel %vm3264, %v6669, %v6670
          %v6672 = vrot.slane %v6436, 5
          %v6673 = vrot.slane %v6672, 4
          %v6674 = vrot.slane %v6437, 5
          %v6675 = vsel %vm3264, %v6673, %v6674
          %v6676 = vrot.slane %v6674, 4
          %v6677 = vrot.slane %v6438, 5
          %v6678 = vsel %vm3264, %v6676, %v6677
          %v6679 = vrot.slane %v6439, 5
          %v6680 = vrot.slane %v6679, 4
          %v6681 = vrot.slane %v6440, 5
          %v6682 = vsel %vm3264, %v6680, %v6681
          %v6683 = vrot.slane %v6681, 4
          %v6684 = vrot.slane %v6441, 5
          %v6685 = vsel %vm3264, %v6683, %v6684
          %v6686 = vrot.slane %v6442, 5
          %v6687 = vrot.slane %v6686, 4
          %v6688 = vrot.slane %v6443, 5
          %v6689 = vsel %vm3264, %v6687, %v6688
          %v6690 = vrot.slane %v6688, 4
          %v6691 = vrot.slane %v6444, 5
          %v6692 = vsel %vm3264, %v6690, %v6691
          %v6693 = vrot.slane %v6445, 5
          %v6694 = vrot.slane %v6693, 4
          %v6695 = vrot.slane %v6446, 5
          %v6696 = vsel %vm3264, %v6694, %v6695
          %v6697 = vrot.slane %v6695, 4
          %v6698 = vrot.slane %v6447, 5
          %v6699 = vsel %vm3264, %v6697, %v6698
          %v6700 = vrot.slane %v6448, 5
          %v6701 = vrot.slane %v6700, 4
          %v6702 = vrot.slane %v6449, 5
          %v6703 = vsel %vm3264, %v6701, %v6702
          %v6704 = vrot.slane %v6702, 4
          %v6705 = vrot.slane %v6450, 5
          %v6706 = vsel %vm3264, %v6704, %v6705
          %v6707 = vrot.slane %v6451, 5
          %v6708 = vrot.slane %v6707, 4
          %v6709 = vrot.slane %v6452, 5
          %v6710 = vsel %vm3264, %v6708, %v6709
          %v6711 = vrot.slane %v6709, 4
          %v6712 = vrot.slane %v6453, 5
          %v6713 = vsel %vm3264, %v6711, %v6712
          %v6714 = vrot.slane %v6454, 5
          %v6715 = vrot.slane %v6714, 4
          %v6716 = vrot.slane %v6455, 5
          %v6717 = vsel %vm3264, %v6715, %v6716
          %v6718 = vrot.slane %v6716, 4
          %v6719 = vrot.slane %v6456, 5
          %v6720 = vsel %vm3264, %v6718, %v6719
          %v6721 = vrot.slane %v6457, 5
          %v6722 = vrot.slane %v6721, 4
          %v6723 = vrot.slane %v6458, 5
          %v6724 = vsel %vm3264, %v6722, %v6723
          %v6725 = vrot.slane %v6723, 4
          %v6726 = vrot.slane %v6459, 5
          %v6727 = vsel %vm3264, %v6725, %v6726
          %v6728 = vrot.slane %v6460, 5
          %v6729 = vrot.slane %v6728, 4
          %v6730 = vrot.slane %v6461, 5
          %v6731 = vsel %vm3264, %v6729, %v6730
          %v6732 = vrot.slane %v6730, 4
          %v6733 = vrot.slane %v6462, 5
          %v6734 = vsel %vm3264, %v6732, %v6733
          %v6735 = vrot.slane %v6463, 5
          %v6736 = vrot.slane %v6735, 4
          %v6737 = vrot.slane %v6464, 5
          %v6738 = vsel %vm3264, %v6736, %v6737
          %v6739 = vrot.slane %v6737, 4
          %v6740 = vrot.slane %v6465, 5
          %v6741 = vsel %vm3264, %v6739, %v6740
          %v6742 = vrot.slane %v6466, 5
          %v6743 = vrot.slane %v6742, 4
          %v6744 = vrot.slane %v6467, 5
          %v6745 = vsel %vm3264, %v6743, %v6744
          %v6746 = vrot.slane %v6744, 4
          %v6747 = vrot.slane %v6468, 5
          %v6748 = vsel %vm3264, %v6746, %v6747
          %v6749 = vrot.slane %v6469, 5
          %v6750 = vrot.slane %v6749, 4
          %v6751 = vrot.slane %v6470, 5
          %v6752 = vsel %vm3264, %v6750, %v6751
          %v6753 = vrot.slane %v6751, 4
          %v6754 = vrot.slane %v6471, 5
          %v6755 = vsel %vm3264, %v6753, %v6754
          %v6756 = vrot.slane %v6472, 5
          %v6757 = vrot.slane %v6756, 4
          %v6758 = vrot.slane %v6473, 5
          %v6759 = vsel %vm3264, %v6757, %v6758
          %v6760 = vrot.slane %v6758, 4
          %v6761 = vrot.slane %v6474, 5
          %v6762 = vsel %vm3264, %v6760, %v6761
          %v6763 = vrot.slane %v6475, 5
          %v6764 = vrot.slane %v6763, 4
          %v6765 = vrot.slane %v6476, 5
          %v6766 = vsel %vm3264, %v6764, %v6765
          %v6767 = vrot.slane %v6765, 4
          %v6768 = vrot.slane %v6477, 5
          %v6769 = vsel %vm3264, %v6767, %v6768
          %v6770 = vrot.slane %v6478, 5
          %v6771 = vrot.slane %v6770, 4
          %v6772 = vrot.slane %v6479, 5
          %v6773 = vsel %vm3264, %v6771, %v6772
          %v6774 = vrot.slane %v6772, 4
          %v6775 = vrot.slane %v6480, 5
          %v6776 = vsel %vm3264, %v6774, %v6775
          %v6777 = vrot.slane %v6481, 5
          %v6778 = vrot.slane %v6777, 4
          %v6779 = vrot.slane %v6482, 5
          %v6780 = vsel %vm3264, %v6778, %v6779
          %v6781 = vrot.slane %v6779, 4
          %v6782 = vrot.slane %v6483, 5
          %v6783 = vsel %vm3264, %v6781, %v6782
          %v6784 = vrot.slane %v6484, 5
          %v6785 = vrot.slane %v6784, 4
          %v6786 = vrot.slane %v6485, 5
          %v6787 = vsel %vm3264, %v6785, %v6786
          %v6788 = vrot.slane %v6786, 4
          %v6789 = vrot.slane %v6486, 5
          %v6790 = vsel %vm3264, %v6788, %v6789
          %v6791 = vrot.slane %v6487, 5
          %v6792 = vrot.slane %v6791, 4
          %v6793 = vrot.slane %v6488, 5
          %v6794 = vsel %vm3264, %v6792, %v6793
          %v6795 = vrot.slane %v6793, 4
          %v6796 = vrot.slane %v6489, 5
          %v6797 = vsel %vm3264, %v6795, %v6796
          %v6798 = vrot.slane %v6490, 5
          %v6799 = vrot.slane %v6798, 4
          %v6800 = vrot.slane %v6491, 5
          %v6801 = vsel %vm3264, %v6799, %v6800
          %v6802 = vrot.slane %v6800, 4
          %v6803 = vrot.slane %v6492, 5
          %v6804 = vsel %vm3264, %v6802, %v6803
          %v6805 = vrot.slane %v6493, 5
          %v6806 = vrot.slane %v6805, 4
          %v6807 = vrot.slane %v6494, 5
          %v6808 = vsel %vm3264, %v6806, %v6807
          %v6809 = vrot.slane %v6807, 4
          %v6810 = vrot.slane %v6495, 5
          %v6811 = vsel %vm3264, %v6809, %v6810
          %v6812 = vrot.slane %v6496, 5
          %v6813 = vrot.slane %v6812, 4
          %v6814 = vrot.slane %v6497, 5
          %v6815 = vsel %vm3264, %v6813, %v6814
          %v6816 = vrot.slane %v6814, 4
          %v6817 = vrot.slane %v6498, 5
          %v6818 = vsel %vm3264, %v6816, %v6817
          %6883 = vst [vmem:[#allocation3 + $0x20] sm:$0xf] %v6598
          %6884 = vst [vmem:[#allocation3 + $0x44] sm:$0xf] %v6601
          %6885 = vst [vmem:[#allocation3 + $0x68] sm:$0xf] %v6605
          %6886 = vst [vmem:[#allocation3 + $0x8c] sm:$0xf] %v6608
          %6887 = vst [vmem:[#allocation3 + $0xb0] sm:$0xf] %v6612
          %6888 = vst [vmem:[#allocation3 + $0xd4] sm:$0xf] %v6615
          %6889 = vst [vmem:[#allocation3 + $0xf8] sm:$0xf] %v6619
          %6890 = vst [vmem:[#allocation3 + $0x11c] sm:$0xf] %v6622
          %6891 = vst [vmem:[#allocation3 + $0x140] sm:$0xf] %v6626
          %6892 = vst [vmem:[#allocation3 + $0x164] sm:$0xf] %v6629
          %6893 = vst [vmem:[#allocation3 + $0x188] sm:$0xf] %v6633
          %6894 = vst [vmem:[#allocation3 + $0x1ac] sm:$0xf] %v6636
          %6895 = vst [vmem:[#allocation3 + $0x1d0] sm:$0xf] %v6640
          %6896 = vst [vmem:[#allocation3 + $0x1f4] sm:$0xf] %v6643
          %6897 = vst [vmem:[#allocation3 + $0x218] sm:$0xf] %v6647
          %6898 = vst [vmem:[#allocation3 + $0x23c] sm:$0xf] %v6650
          %6899 = vst [vmem:[#allocation3 + $0x260] sm:$0xf] %v6654
          %6900 = vst [vmem:[#allocation3 + $0x284] sm:$0xf] %v6657
          %6901 = vst [vmem:[#allocation3 + $0x2a8] sm:$0xf] %v6661
          %6902 = vst [vmem:[#allocation3 + $0x2cc] sm:$0xf] %v6664
          %6903 = vst [vmem:[#allocation3 + $0x2f0] sm:$0xf] %v6668
          %6904 = vst [vmem:[#allocation3 + $0x314] sm:$0xf] %v6671
          %6905 = vst [vmem:[#allocation3 + $0x338] sm:$0xf] %v6675
          %6906 = vst [vmem:[#allocation3 + $0x35c] sm:$0xf] %v6678
          %6907 = vst [vmem:[#allocation3 + $0x380] sm:$0xf] %v6682
          %6908 = vst [vmem:[#allocation3 + $0x3a4] sm:$0xf] %v6685
          %6909 = vst [vmem:[#allocation3 + $0x3c8] sm:$0xf] %v6689
          %6910 = vst [vmem:[#allocation3 + $0x3ec] sm:$0xf] %v6692
          %6911 = vst [vmem:[#allocation3 + $0x410] sm:$0xf] %v6696
          %6912 = vst [vmem:[#allocation3 + $0x434] sm:$0xf] %v6699
          %6913 = vst [vmem:[#allocation3 + $0x458] sm:$0xf] %v6703
          %6914 = vst [vmem:[#allocation3 + $0x47c] sm:$0xf] %v6706
          %6915 = vst [vmem:[#allocation3 + $0x4a0] sm:$0xf] %v6710
          %6916 = vst [vmem:[#allocation3 + $0x4c4] sm:$0xf] %v6713
          %6917 = vst [vmem:[#allocation3 + $0x4e8] sm:$0xf] %v6717
          %6918 = vst [vmem:[#allocation3 + $0x50c] sm:$0xf] %v6720
          %6919 = vst [vmem:[#allocation3 + $0x530] sm:$0xf] %v6724
          %6920 = vst [vmem:[#allocation3 + $0x554] sm:$0xf] %v6727
          %6921 = vst [vmem:[#allocation3 + $0x578] sm:$0xf] %v6731
          %6922 = vst [vmem:[#allocation3 + $0x59c] sm:$0xf] %v6734
          %6923 = vst [vmem:[#allocation3 + $0x5c0] sm:$0xf] %v6738
          %6924 = vst [vmem:[#allocation3 + $0x5e4] sm:$0xf] %v6741
          %6925 = vst [vmem:[#allocation3 + $0x608] sm:$0xf] %v6745
          %6926 = vst [vmem:[#allocation3 + $0x62c] sm:$0xf] %v6748
          %6927 = vst [vmem:[#allocation3 + $0x650] sm:$0xf] %v6752
          %6928 = vst [vmem:[#allocation3 + $0x674] sm:$0xf] %v6755
          %6929 = vst [vmem:[#allocation3 + $0x698] sm:$0xf] %v6759
          %6930 = vst [vmem:[#allocation3 + $0x6bc] sm:$0xf] %v6762
          %6931 = vst [vmem:[#allocation3 + $0x6e0] sm:$0xf] %v6766
          %6932 = vst [vmem:[#allocation3 + $0x704] sm:$0xf] %v6769
          %6933 = vst [vmem:[#allocation3 + $0x728] sm:$0xf] %v6773
          %6934 = vst [vmem:[#allocation3 + $0x74c] sm:$0xf] %v6776
          %6935 = vst [vmem:[#allocation3 + $0x770] sm:$0xf] %v6780
          %6936 = vst [vmem:[#allocation3 + $0x794] sm:$0xf] %v6783
          %6937 = vst [vmem:[#allocation3 + $0x7b8] sm:$0xf] %v6787
          %6938 = vst [vmem:[#allocation3 + $0x7dc] sm:$0xf] %v6790
          %6939 = vst [vmem:[#allocation3 + $0x800] sm:$0xf] %v6794
          %6940 = vst [vmem:[#allocation3 + $0x824] sm:$0xf] %v6797
          %6941 = vst [vmem:[#allocation3 + $0x848] sm:$0xf] %v6801
          %6942 = vst [vmem:[#allocation3 + $0x86c] sm:$0xf] %v6804
          %6943 = vst [vmem:[#allocation3 + $0x890] sm:$0xf] %v6808
          %6944 = vst [vmem:[#allocation3 + $0x8b4] sm:$0xf] %v6811
          %6945 = vst [vmem:[#allocation3 + $0x8d8] sm:$0xf] %v6815
          %6946 = vst [vmem:[#allocation3 + $0x8fc] sm:$0xf] %v6818
          %v6947 = vld [vmem:[#allocation3] sm:$0xff]
          %v6948 = vld [vmem:[#allocation3 + $0x8] sm:$0xff]
          %v6949 = vld [vmem:[#allocation3 + $0x10] sm:$0xff]
          %v6950 = vld [vmem:[#allocation3 + $0x18] sm:$0xff]
          %v6951 = vld [vmem:[#allocation3 + $0x20] sm:$0xf]
          %v6952 = vld [vmem:[#allocation3 + $0x24] sm:$0xff]
          %v6953 = vld [vmem:[#allocation3 + $0x2c] sm:$0xff]
          %v6954 = vld [vmem:[#allocation3 + $0x34] sm:$0xff]
          %v6955 = vld [vmem:[#allocation3 + $0x3c] sm:$0xff]
          %v6956 = vld [vmem:[#allocation3 + $0x44] sm:$0xf]
          %v6957 = vld [vmem:[#allocation3 + $0x48] sm:$0xff]
          %v6958 = vld [vmem:[#allocation3 + $0x50] sm:$0xff]
          %v6959 = vld [vmem:[#allocation3 + $0x58] sm:$0xff]
          %v6960 = vld [vmem:[#allocation3 + $0x60] sm:$0xff]
          %v6961 = vld [vmem:[#allocation3 + $0x68] sm:$0xf]
          %v6962 = vld [vmem:[#allocation3 + $0x6c] sm:$0xff]
          %v6963 = vld [vmem:[#allocation3 + $0x74] sm:$0xff]
          %v6964 = vld [vmem:[#allocation3 + $0x7c] sm:$0xff]
          %v6965 = vld [vmem:[#allocation3 + $0x84] sm:$0xff]
          %v6966 = vld [vmem:[#allocation3 + $0x8c] sm:$0xf]
          %v6967 = vld [vmem:[#allocation3 + $0x90] sm:$0xff]
          %v6968 = vld [vmem:[#allocation3 + $0x98] sm:$0xff]
          %v6969 = vld [vmem:[#allocation3 + $0xa0] sm:$0xff]
          %v6970 = vld [vmem:[#allocation3 + $0xa8] sm:$0xff]
          %v6971 = vld [vmem:[#allocation3 + $0xb0] sm:$0xf]
          %v6972 = vld [vmem:[#allocation3 + $0xb4] sm:$0xff]
          %v6973 = vld [vmem:[#allocation3 + $0xbc] sm:$0xff]
          %v6974 = vld [vmem:[#allocation3 + $0xc4] sm:$0xff]
          %v6975 = vld [vmem:[#allocation3 + $0xcc] sm:$0xff]
          %v6976 = vld [vmem:[#allocation3 + $0xd4] sm:$0xf]
          %v6977 = vld [vmem:[#allocation3 + $0xd8] sm:$0xff]
          %v6978 = vld [vmem:[#allocation3 + $0xe0] sm:$0xff]
          %v6979 = vld [vmem:[#allocation3 + $0xe8] sm:$0xff]
          %v6980 = vld [vmem:[#allocation3 + $0xf0] sm:$0xff]
          %v6981 = vld [vmem:[#allocation3 + $0xf8] sm:$0xf]
          %v6982 = vld [vmem:[#allocation3 + $0xfc] sm:$0xff]
          %v6983 = vld [vmem:[#allocation3 + $0x104] sm:$0xff]
          %v6984 = vld [vmem:[#allocation3 + $0x10c] sm:$0xff]
          %v6985 = vld [vmem:[#allocation3 + $0x114] sm:$0xff]
          %v6986 = vld [vmem:[#allocation3 + $0x11c] sm:$0xf]
          %v6987 = vld [vmem:[#allocation3 + $0x120] sm:$0xff]
          %v6988 = vld [vmem:[#allocation3 + $0x128] sm:$0xff]
          %v6989 = vld [vmem:[#allocation3 + $0x130] sm:$0xff]
          %v6990 = vld [vmem:[#allocation3 + $0x138] sm:$0xff]
          %v6991 = vld [vmem:[#allocation3 + $0x140] sm:$0xf]
          %v6992 = vld [vmem:[#allocation3 + $0x144] sm:$0xff]
          %v6993 = vld [vmem:[#allocation3 + $0x14c] sm:$0xff]
          %v6994 = vld [vmem:[#allocation3 + $0x154] sm:$0xff]
          %v6995 = vld [vmem:[#allocation3 + $0x15c] sm:$0xff]
          %v6996 = vld [vmem:[#allocation3 + $0x164] sm:$0xf]
          %v6997 = vld [vmem:[#allocation3 + $0x168] sm:$0xff]
          %v6998 = vld [vmem:[#allocation3 + $0x170] sm:$0xff]
          %v6999 = vld [vmem:[#allocation3 + $0x178] sm:$0xff]
          %v7000 = vld [vmem:[#allocation3 + $0x180] sm:$0xff]
          %v7001 = vld [vmem:[#allocation3 + $0x188] sm:$0xf]
          %v7002 = vld [vmem:[#allocation3 + $0x18c] sm:$0xff]
          %v7003 = vld [vmem:[#allocation3 + $0x194] sm:$0xff]
          %v7004 = vld [vmem:[#allocation3 + $0x19c] sm:$0xff]
          %v7005 = vld [vmem:[#allocation3 + $0x1a4] sm:$0xff]
          %v7006 = vld [vmem:[#allocation3 + $0x1ac] sm:$0xf]
          %v7007 = vld [vmem:[#allocation3 + $0x1b0] sm:$0xff]
          %v7008 = vld [vmem:[#allocation3 + $0x1b8] sm:$0xff]
          %v7009 = vld [vmem:[#allocation3 + $0x1c0] sm:$0xff]
          %v7010 = vld [vmem:[#allocation3 + $0x1c8] sm:$0xff]
          %v7011 = vld [vmem:[#allocation3 + $0x1d0] sm:$0xf]
          %v7012 = vld [vmem:[#allocation3 + $0x1d4] sm:$0xff]
          %v7013 = vld [vmem:[#allocation3 + $0x1dc] sm:$0xff]
          %v7014 = vld [vmem:[#allocation3 + $0x1e4] sm:$0xff]
          %v7015 = vld [vmem:[#allocation3 + $0x1ec] sm:$0xff]
          %v7016 = vld [vmem:[#allocation3 + $0x1f4] sm:$0xf]
          %v7017 = vld [vmem:[#allocation3 + $0x1f8] sm:$0xff]
          %v7018 = vld [vmem:[#allocation3 + $0x200] sm:$0xff]
          %v7019 = vld [vmem:[#allocation3 + $0x208] sm:$0xff]
          %v7020 = vld [vmem:[#allocation3 + $0x210] sm:$0xff]
          %v7021 = vld [vmem:[#allocation3 + $0x218] sm:$0xf]
          %v7022 = vld [vmem:[#allocation3 + $0x21c] sm:$0xff]
          %v7023 = vld [vmem:[#allocation3 + $0x224] sm:$0xff]
          %v7024 = vld [vmem:[#allocation3 + $0x22c] sm:$0xff]
          %v7025 = vld [vmem:[#allocation3 + $0x234] sm:$0xff]
          %v7026 = vld [vmem:[#allocation3 + $0x23c] sm:$0xf]
          %v7027 = vld [vmem:[#allocation3 + $0x240] sm:$0xff]
          %v7028 = vld [vmem:[#allocation3 + $0x248] sm:$0xff]
          %v7029 = vld [vmem:[#allocation3 + $0x250] sm:$0xff]
          %v7030 = vld [vmem:[#allocation3 + $0x258] sm:$0xff]
          %v7031 = vld [vmem:[#allocation3 + $0x260] sm:$0xf]
          %v7032 = vld [vmem:[#allocation3 + $0x264] sm:$0xff]
          %v7033 = vld [vmem:[#allocation3 + $0x26c] sm:$0xff]
          %v7034 = vld [vmem:[#allocation3 + $0x274] sm:$0xff]
          %v7035 = vld [vmem:[#allocation3 + $0x27c] sm:$0xff]
          %v7036 = vld [vmem:[#allocation3 + $0x284] sm:$0xf]
          %v7037 = vld [vmem:[#allocation3 + $0x288] sm:$0xff]
          %v7038 = vld [vmem:[#allocation3 + $0x290] sm:$0xff]
          %v7039 = vld [vmem:[#allocation3 + $0x298] sm:$0xff]
          %v7040 = vld [vmem:[#allocation3 + $0x2a0] sm:$0xff]
          %v7041 = vld [vmem:[#allocation3 + $0x2a8] sm:$0xf]
          %v7042 = vld [vmem:[#allocation3 + $0x2ac] sm:$0xff]
          %v7043 = vld [vmem:[#allocation3 + $0x2b4] sm:$0xff]
          %v7044 = vld [vmem:[#allocation3 + $0x2bc] sm:$0xff]
          %v7045 = vld [vmem:[#allocation3 + $0x2c4] sm:$0xff]
          %v7046 = vld [vmem:[#allocation3 + $0x2cc] sm:$0xf]
          %v7047 = vld [vmem:[#allocation3 + $0x2d0] sm:$0xff]
          %v7048 = vld [vmem:[#allocation3 + $0x2d8] sm:$0xff]
          %v7049 = vld [vmem:[#allocation3 + $0x2e0] sm:$0xff]
          %v7050 = vld [vmem:[#allocation3 + $0x2e8] sm:$0xff]
          %v7051 = vld [vmem:[#allocation3 + $0x2f0] sm:$0xf]
          %v7052 = vld [vmem:[#allocation3 + $0x2f4] sm:$0xff]
          %v7053 = vld [vmem:[#allocation3 + $0x2fc] sm:$0xff]
          %v7054 = vld [vmem:[#allocation3 + $0x304] sm:$0xff]
          %v7055 = vld [vmem:[#allocation3 + $0x30c] sm:$0xff]
          %v7056 = vld [vmem:[#allocation3 + $0x314] sm:$0xf]
          %v7057 = vld [vmem:[#allocation3 + $0x318] sm:$0xff]
          %v7058 = vld [vmem:[#allocation3 + $0x320] sm:$0xff]
          %v7059 = vld [vmem:[#allocation3 + $0x328] sm:$0xff]
          %v7060 = vld [vmem:[#allocation3 + $0x330] sm:$0xff]
          %v7061 = vld [vmem:[#allocation3 + $0x338] sm:$0xf]
          %v7062 = vld [vmem:[#allocation3 + $0x33c] sm:$0xff]
          %v7063 = vld [vmem:[#allocation3 + $0x344] sm:$0xff]
          %v7064 = vld [vmem:[#allocation3 + $0x34c] sm:$0xff]
          %v7065 = vld [vmem:[#allocation3 + $0x354] sm:$0xff]
          %v7066 = vld [vmem:[#allocation3 + $0x35c] sm:$0xf]
          %v7067 = vld [vmem:[#allocation3 + $0x360] sm:$0xff]
          %v7068 = vld [vmem:[#allocation3 + $0x368] sm:$0xff]
          %v7069 = vld [vmem:[#allocation3 + $0x370] sm:$0xff]
          %v7070 = vld [vmem:[#allocation3 + $0x378] sm:$0xff]
          %v7071 = vld [vmem:[#allocation3 + $0x380] sm:$0xf]
          %v7072 = vld [vmem:[#allocation3 + $0x384] sm:$0xff]
          %v7073 = vld [vmem:[#allocation3 + $0x38c] sm:$0xff]
          %v7074 = vld [vmem:[#allocation3 + $0x394] sm:$0xff]
          %v7075 = vld [vmem:[#allocation3 + $0x39c] sm:$0xff]
          %v7076 = vld [vmem:[#allocation3 + $0x3a4] sm:$0xf]
          %v7077 = vld [vmem:[#allocation3 + $0x3a8] sm:$0xff]
          %v7078 = vld [vmem:[#allocation3 + $0x3b0] sm:$0xff]
          %v7079 = vld [vmem:[#allocation3 + $0x3b8] sm:$0xff]
          %v7080 = vld [vmem:[#allocation3 + $0x3c0] sm:$0xff]
          %v7081 = vld [vmem:[#allocation3 + $0x3c8] sm:$0xf]
          %v7082 = vld [vmem:[#allocation3 + $0x3cc] sm:$0xff]
          %v7083 = vld [vmem:[#allocation3 + $0x3d4] sm:$0xff]
          %v7084 = vld [vmem:[#allocation3 + $0x3dc] sm:$0xff]
          %v7085 = vld [vmem:[#allocation3 + $0x3e4] sm:$0xff]
          %v7086 = vld [vmem:[#allocation3 + $0x3ec] sm:$0xf]
          %v7087 = vld [vmem:[#allocation3 + $0x3f0] sm:$0xff]
          %v7088 = vld [vmem:[#allocation3 + $0x3f8] sm:$0xff]
          %v7089 = vld [vmem:[#allocation3 + $0x400] sm:$0xff]
          %v7090 = vld [vmem:[#allocation3 + $0x408] sm:$0xff]
          %v7091 = vld [vmem:[#allocation3 + $0x410] sm:$0xf]
          %v7092 = vld [vmem:[#allocation3 + $0x414] sm:$0xff]
          %v7093 = vld [vmem:[#allocation3 + $0x41c] sm:$0xff]
          %v7094 = vld [vmem:[#allocation3 + $0x424] sm:$0xff]
          %v7095 = vld [vmem:[#allocation3 + $0x42c] sm:$0xff]
          %v7096 = vld [vmem:[#allocation3 + $0x434] sm:$0xf]
          %v7097 = vld [vmem:[#allocation3 + $0x438] sm:$0xff]
          %v7098 = vld [vmem:[#allocation3 + $0x440] sm:$0xff]
          %v7099 = vld [vmem:[#allocation3 + $0x448] sm:$0xff]
          %v7100 = vld [vmem:[#allocation3 + $0x450] sm:$0xff]
          %v7101 = vld [vmem:[#allocation3 + $0x458] sm:$0xf]
          %v7102 = vld [vmem:[#allocation3 + $0x45c] sm:$0xff]
          %v7103 = vld [vmem:[#allocation3 + $0x464] sm:$0xff]
          %v7104 = vld [vmem:[#allocation3 + $0x46c] sm:$0xff]
          %v7105 = vld [vmem:[#allocation3 + $0x474] sm:$0xff]
          %v7106 = vld [vmem:[#allocation3 + $0x47c] sm:$0xf]
          %v7107 = vld [vmem:[#allocation3 + $0x480] sm:$0xff]
          %v7108 = vld [vmem:[#allocation3 + $0x488] sm:$0xff]
          %v7109 = vld [vmem:[#allocation3 + $0x490] sm:$0xff]
          %v7110 = vld [vmem:[#allocation3 + $0x498] sm:$0xff]
          %v7111 = vld [vmem:[#allocation3 + $0x4a0] sm:$0xf]
          %v7112 = vld [vmem:[#allocation3 + $0x4a4] sm:$0xff]
          %v7113 = vld [vmem:[#allocation3 + $0x4ac] sm:$0xff]
          %v7114 = vld [vmem:[#allocation3 + $0x4b4] sm:$0xff]
          %v7115 = vld [vmem:[#allocation3 + $0x4bc] sm:$0xff]
          %v7116 = vld [vmem:[#allocation3 + $0x4c4] sm:$0xf]
          %v7117 = vld [vmem:[#allocation3 + $0x4c8] sm:$0xff]
          %v7118 = vld [vmem:[#allocation3 + $0x4d0] sm:$0xff]
          %v7119 = vld [vmem:[#allocation3 + $0x4d8] sm:$0xff]
          %v7120 = vld [vmem:[#allocation3 + $0x4e0] sm:$0xff]
          %v7121 = vld [vmem:[#allocation3 + $0x4e8] sm:$0xf]
          %v7122 = vld [vmem:[#allocation3 + $0x4ec] sm:$0xff]
          %v7123 = vld [vmem:[#allocation3 + $0x4f4] sm:$0xff]
          %v7124 = vld [vmem:[#allocation3 + $0x4fc] sm:$0xff]
          %v7125 = vld [vmem:[#allocation3 + $0x504] sm:$0xff]
          %v7126 = vld [vmem:[#allocation3 + $0x50c] sm:$0xf]
          %v7127 = vld [vmem:[#allocation3 + $0x510] sm:$0xff]
          %v7128 = vld [vmem:[#allocation3 + $0x518] sm:$0xff]
          %v7129 = vld [vmem:[#allocation3 + $0x520] sm:$0xff]
          %v7130 = vld [vmem:[#allocation3 + $0x528] sm:$0xff]
          %v7131 = vld [vmem:[#allocation3 + $0x530] sm:$0xf]
          %v7132 = vld [vmem:[#allocation3 + $0x534] sm:$0xff]
          %v7133 = vld [vmem:[#allocation3 + $0x53c] sm:$0xff]
          %v7134 = vld [vmem:[#allocation3 + $0x544] sm:$0xff]
          %v7135 = vld [vmem:[#allocation3 + $0x54c] sm:$0xff]
          %v7136 = vld [vmem:[#allocation3 + $0x554] sm:$0xf]
          %v7137 = vld [vmem:[#allocation3 + $0x558] sm:$0xff]
          %v7138 = vld [vmem:[#allocation3 + $0x560] sm:$0xff]
          %v7139 = vld [vmem:[#allocation3 + $0x568] sm:$0xff]
          %v7140 = vld [vmem:[#allocation3 + $0x570] sm:$0xff]
          %v7141 = vld [vmem:[#allocation3 + $0x578] sm:$0xf]
          %v7142 = vld [vmem:[#allocation3 + $0x57c] sm:$0xff]
          %v7143 = vld [vmem:[#allocation3 + $0x584] sm:$0xff]
          %v7144 = vld [vmem:[#allocation3 + $0x58c] sm:$0xff]
          %v7145 = vld [vmem:[#allocation3 + $0x594] sm:$0xff]
          %v7146 = vld [vmem:[#allocation3 + $0x59c] sm:$0xf]
          %v7147 = vld [vmem:[#allocation3 + $0x5a0] sm:$0xff]
          %v7148 = vld [vmem:[#allocation3 + $0x5a8] sm:$0xff]
          %v7149 = vld [vmem:[#allocation3 + $0x5b0] sm:$0xff]
          %v7150 = vld [vmem:[#allocation3 + $0x5b8] sm:$0xff]
          %v7151 = vld [vmem:[#allocation3 + $0x5c0] sm:$0xf]
          %v7152 = vld [vmem:[#allocation3 + $0x5c4] sm:$0xff]
          %v7153 = vld [vmem:[#allocation3 + $0x5cc] sm:$0xff]
          %v7154 = vld [vmem:[#allocation3 + $0x5d4] sm:$0xff]
          %v7155 = vld [vmem:[#allocation3 + $0x5dc] sm:$0xff]
          %v7156 = vld [vmem:[#allocation3 + $0x5e4] sm:$0xf]
          %v7157 = vld [vmem:[#allocation3 + $0x5e8] sm:$0xff]
          %v7158 = vld [vmem:[#allocation3 + $0x5f0] sm:$0xff]
          %v7159 = vld [vmem:[#allocation3 + $0x5f8] sm:$0xff]
          %v7160 = vld [vmem:[#allocation3 + $0x600] sm:$0xff]
          %v7161 = vld [vmem:[#allocation3 + $0x608] sm:$0xf]
          %v7162 = vld [vmem:[#allocation3 + $0x60c] sm:$0xff]
          %v7163 = vld [vmem:[#allocation3 + $0x614] sm:$0xff]
          %v7164 = vld [vmem:[#allocation3 + $0x61c] sm:$0xff]
          %v7165 = vld [vmem:[#allocation3 + $0x624] sm:$0xff]
          %v7166 = vld [vmem:[#allocation3 + $0x62c] sm:$0xf]
          %v7167 = vld [vmem:[#allocation3 + $0x630] sm:$0xff]
          %v7168 = vld [vmem:[#allocation3 + $0x638] sm:$0xff]
          %v7169 = vld [vmem:[#allocation3 + $0x640] sm:$0xff]
          %v7170 = vld [vmem:[#allocation3 + $0x648] sm:$0xff]
          %v7171 = vld [vmem:[#allocation3 + $0x650] sm:$0xf]
          %v7172 = vld [vmem:[#allocation3 + $0x654] sm:$0xff]
          %v7173 = vld [vmem:[#allocation3 + $0x65c] sm:$0xff]
          %v7174 = vld [vmem:[#allocation3 + $0x664] sm:$0xff]
          %v7175 = vld [vmem:[#allocation3 + $0x66c] sm:$0xff]
          %v7176 = vld [vmem:[#allocation3 + $0x674] sm:$0xf]
          %v7177 = vld [vmem:[#allocation3 + $0x678] sm:$0xff]
          %v7178 = vld [vmem:[#allocation3 + $0x680] sm:$0xff]
          %v7179 = vld [vmem:[#allocation3 + $0x688] sm:$0xff]
          %v7180 = vld [vmem:[#allocation3 + $0x690] sm:$0xff]
          %v7181 = vld [vmem:[#allocation3 + $0x698] sm:$0xf]
          %v7182 = vld [vmem:[#allocation3 + $0x69c] sm:$0xff]
          %v7183 = vld [vmem:[#allocation3 + $0x6a4] sm:$0xff]
          %v7184 = vld [vmem:[#allocation3 + $0x6ac] sm:$0xff]
          %v7185 = vld [vmem:[#allocation3 + $0x6b4] sm:$0xff]
          %v7186 = vld [vmem:[#allocation3 + $0x6bc] sm:$0xf]
          %v7187 = vld [vmem:[#allocation3 + $0x6c0] sm:$0xff]
          %v7188 = vld [vmem:[#allocation3 + $0x6c8] sm:$0xff]
          %v7189 = vld [vmem:[#allocation3 + $0x6d0] sm:$0xff]
          %v7190 = vld [vmem:[#allocation3 + $0x6d8] sm:$0xff]
          %v7191 = vld [vmem:[#allocation3 + $0x6e0] sm:$0xf]
          %v7192 = vld [vmem:[#allocation3 + $0x6e4] sm:$0xff]
          %v7193 = vld [vmem:[#allocation3 + $0x6ec] sm:$0xff]
          %v7194 = vld [vmem:[#allocation3 + $0x6f4] sm:$0xff]
          %v7195 = vld [vmem:[#allocation3 + $0x6fc] sm:$0xff]
          %v7196 = vld [vmem:[#allocation3 + $0x704] sm:$0xf]
          %v7197 = vld [vmem:[#allocation3 + $0x708] sm:$0xff]
          %v7198 = vld [vmem:[#allocation3 + $0x710] sm:$0xff]
          %v7199 = vld [vmem:[#allocation3 + $0x718] sm:$0xff]
          %v7200 = vld [vmem:[#allocation3 + $0x720] sm:$0xff]
          %v7201 = vld [vmem:[#allocation3 + $0x728] sm:$0xf]
          %v7202 = vld [vmem:[#allocation3 + $0x72c] sm:$0xff]
          %v7203 = vld [vmem:[#allocation3 + $0x734] sm:$0xff]
          %v7204 = vld [vmem:[#allocation3 + $0x73c] sm:$0xff]
          %v7205 = vld [vmem:[#allocation3 + $0x744] sm:$0xff]
          %v7206 = vld [vmem:[#allocation3 + $0x74c] sm:$0xf]
          %v7207 = vld [vmem:[#allocation3 + $0x750] sm:$0xff]
          %v7208 = vld [vmem:[#allocation3 + $0x758] sm:$0xff]
          %v7209 = vld [vmem:[#allocation3 + $0x760] sm:$0xff]
          %v7210 = vld [vmem:[#allocation3 + $0x768] sm:$0xff]
          %v7211 = vld [vmem:[#allocation3 + $0x770] sm:$0xf]
          %v7212 = vld [vmem:[#allocation3 + $0x774] sm:$0xff]
          %v7213 = vld [vmem:[#allocation3 + $0x77c] sm:$0xff]
          %v7214 = vld [vmem:[#allocation3 + $0x784] sm:$0xff]
          %v7215 = vld [vmem:[#allocation3 + $0x78c] sm:$0xff]
          %v7216 = vld [vmem:[#allocation3 + $0x794] sm:$0xf]
          %v7217 = vld [vmem:[#allocation3 + $0x798] sm:$0xff]
          %v7218 = vld [vmem:[#allocation3 + $0x7a0] sm:$0xff]
          %v7219 = vld [vmem:[#allocation3 + $0x7a8] sm:$0xff]
          %v7220 = vld [vmem:[#allocation3 + $0x7b0] sm:$0xff]
          %v7221 = vld [vmem:[#allocation3 + $0x7b8] sm:$0xf]
          %v7222 = vld [vmem:[#allocation3 + $0x7bc] sm:$0xff]
          %v7223 = vld [vmem:[#allocation3 + $0x7c4] sm:$0xff]
          %v7224 = vld [vmem:[#allocation3 + $0x7cc] sm:$0xff]
          %v7225 = vld [vmem:[#allocation3 + $0x7d4] sm:$0xff]
          %v7226 = vld [vmem:[#allocation3 + $0x7dc] sm:$0xf]
          %v7227 = vld [vmem:[#allocation3 + $0x7e0] sm:$0xff]
          %v7228 = vld [vmem:[#allocation3 + $0x7e8] sm:$0xff]
          %v7229 = vld [vmem:[#allocation3 + $0x7f0] sm:$0xff]
          %v7230 = vld [vmem:[#allocation3 + $0x7f8] sm:$0xff]
          %v7231 = vld [vmem:[#allocation3 + $0x800] sm:$0xf]
          %v7232 = vld [vmem:[#allocation3 + $0x804] sm:$0xff]
          %v7233 = vld [vmem:[#allocation3 + $0x80c] sm:$0xff]
          %v7234 = vld [vmem:[#allocation3 + $0x814] sm:$0xff]
          %v7235 = vld [vmem:[#allocation3 + $0x81c] sm:$0xff]
          %v7236 = vld [vmem:[#allocation3 + $0x824] sm:$0xf]
          %v7237 = vld [vmem:[#allocation3 + $0x828] sm:$0xff]
          %v7238 = vld [vmem:[#allocation3 + $0x830] sm:$0xff]
          %v7239 = vld [vmem:[#allocation3 + $0x838] sm:$0xff]
          %v7240 = vld [vmem:[#allocation3 + $0x840] sm:$0xff]
          %v7241 = vld [vmem:[#allocation3 + $0x848] sm:$0xf]
          %v7242 = vld [vmem:[#allocation3 + $0x84c] sm:$0xff]
          %v7243 = vld [vmem:[#allocation3 + $0x854] sm:$0xff]
          %v7244 = vld [vmem:[#allocation3 + $0x85c] sm:$0xff]
          %v7245 = vld [vmem:[#allocation3 + $0x864] sm:$0xff]
          %v7246 = vld [vmem:[#allocation3 + $0x86c] sm:$0xf]
          %v7247 = vld [vmem:[#allocation3 + $0x870] sm:$0xff]
          %v7248 = vld [vmem:[#allocation3 + $0x878] sm:$0xff]
          %v7249 = vld [vmem:[#allocation3 + $0x880] sm:$0xff]
          %v7250 = vld [vmem:[#allocation3 + $0x888] sm:$0xff]
          %v7251 = vld [vmem:[#allocation3 + $0x890] sm:$0xf]
          %v7252 = vld [vmem:[#allocation3 + $0x894] sm:$0xff]
          %v7253 = vld [vmem:[#allocation3 + $0x89c] sm:$0xff]
          %v7254 = vld [vmem:[#allocation3 + $0x8a4] sm:$0xff]
          %v7255 = vld [vmem:[#allocation3 + $0x8ac] sm:$0xff]
          %v7256 = vld [vmem:[#allocation3 + $0x8b4] sm:$0xf]
          %v7257 = vld [vmem:[#allocation3 + $0x8b8] sm:$0xff]
          %v7258 = vld [vmem:[#allocation3 + $0x8c0] sm:$0xff]
          %v7259 = vld [vmem:[#allocation3 + $0x8c8] sm:$0xff]
          %v7260 = vld [vmem:[#allocation3 + $0x8d0] sm:$0xff]
          %v7261 = vld [vmem:[#allocation3 + $0x8d8] sm:$0xf]
          %v7262 = vld [vmem:[#allocation3 + $0x8dc] sm:$0xff]
          %v7263 = vld [vmem:[#allocation3 + $0x8e4] sm:$0xff]
          %v7264 = vld [vmem:[#allocation3 + $0x8ec] sm:$0xff]
          %v7265 = vld [vmem:[#allocation3 + $0x8f4] sm:$0xff]
          %v7266 = vld [vmem:[#allocation3 + $0x8fc] sm:$0xf]
          %v7267 = vld [vmem:[%s245] sm:$0xf]
          %v7268 = vld [vmem:[%s245 + $0x4] sm:$0xf]
          %v7269 = vld [vmem:[%s245 + $0x8] sm:$0xf]
          %v7270 = vld [vmem:[%s245 + $0xc] sm:$0xf]
          %v7271 = vld [vmem:[%s245 + $0x10] sm:$0xf]
          %v7272 = vld [vmem:[%s245 + $0x14] sm:$0xf]
          %v7273 = vld [vmem:[%s245 + $0x18] sm:$0xf]
          %v7274 = vld [vmem:[%s245 + $0x1c] sm:$0xf]
          %v7275 = vld [vmem:[%s245 + $0x20] sm:$0xf]
          %v7276 = vld [vmem:[%s245 + $0x24] sm:$0xf]
          %v7277 = vld [vmem:[%s245 + $0x28] sm:$0xf]
          %v7278 = vld [vmem:[%s245 + $0x2c] sm:$0xf]
          %v7279 = vld [vmem:[%s245 + $0x30] sm:$0xf]
          %v7280 = vld [vmem:[%s245 + $0x34] sm:$0xf]
          %v7281 = vld [vmem:[%s245 + $0x38] sm:$0xf]
          %v7282 = vld [vmem:[%s245 + $0x3c] sm:$0xf]
          %v7283 = vld [vmem:[%s245 + $0x40] sm:$0xf]
          %v7284 = vld [vmem:[%s245 + $0x44] sm:$0xf]
          %v7285 = vld [vmem:[%s245 + $0x48] sm:$0xf]
          %v7286 = vld [vmem:[%s245 + $0x4c] sm:$0xf]
          %v7287 = vld [vmem:[%s245 + $0x50] sm:$0xf]
          %v7288 = vld [vmem:[%s245 + $0x54] sm:$0xf]
          %v7289 = vld [vmem:[%s245 + $0x58] sm:$0xf]
          %v7290 = vld [vmem:[%s245 + $0x5c] sm:$0xf]
          %v7291 = vld [vmem:[%s245 + $0x60] sm:$0xf]
          %v7292 = vld [vmem:[%s245 + $0x64] sm:$0xf]
          %v7293 = vld [vmem:[%s245 + $0x68] sm:$0xf]
          %v7294 = vld [vmem:[%s245 + $0x6c] sm:$0xf]
          %v7295 = vld [vmem:[%s245 + $0x70] sm:$0xf]
          %v7296 = vld [vmem:[%s245 + $0x74] sm:$0xf]
          %v7297 = vld [vmem:[%s245 + $0x78] sm:$0xf]
          %v7298 = vld [vmem:[%s245 + $0x7c] sm:$0xf]
          %v7299 = vld [vmem:[%s245 + $0x80] sm:$0xf]
          %v7300 = vld [vmem:[%s245 + $0x84] sm:$0xf]
          %v7301 = vld [vmem:[%s245 + $0x88] sm:$0xf]
          %v7302 = vld [vmem:[%s245 + $0x8c] sm:$0xf]
          %v7303 = vld [vmem:[%s245 + $0x90] sm:$0xf]
          %v7304 = vld [vmem:[%s245 + $0x94] sm:$0xf]
          %v7305 = vld [vmem:[%s245 + $0x98] sm:$0xf]
          %v7306 = vld [vmem:[%s245 + $0x9c] sm:$0xf]
          %v7307 = vld [vmem:[%s245 + $0xa0] sm:$0xf]
          %v7308 = vld [vmem:[%s245 + $0xa4] sm:$0xf]
          %v7309 = vld [vmem:[%s245 + $0xa8] sm:$0xf]
          %v7310 = vld [vmem:[%s245 + $0xac] sm:$0xf]
          %v7311 = vld [vmem:[%s245 + $0xb0] sm:$0xf]
          %v7312 = vld [vmem:[%s245 + $0xb4] sm:$0xf]
          %v7313 = vld [vmem:[%s245 + $0xb8] sm:$0xf]
          %v7314 = vld [vmem:[%s245 + $0xbc] sm:$0xf]
          %v7315 = vld [vmem:[%s245 + $0xc0] sm:$0xf]
          %v7316 = vld [vmem:[%s245 + $0xc4] sm:$0xf]
          %v7317 = vld [vmem:[%s245 + $0xc8] sm:$0xf]
          %v7318 = vld [vmem:[%s245 + $0xcc] sm:$0xf]
          %v7319 = vld [vmem:[%s245 + $0xd0] sm:$0xf]
          %v7320 = vld [vmem:[%s245 + $0xd4] sm:$0xf]
          %v7321 = vld [vmem:[%s245 + $0xd8] sm:$0xf]
          %v7322 = vld [vmem:[%s245 + $0xdc] sm:$0xf]
          %v7323 = vld [vmem:[%s245 + $0xe0] sm:$0xf]
          %v7324 = vld [vmem:[%s245 + $0xe4] sm:$0xf]
          %v7325 = vld [vmem:[%s245 + $0xe8] sm:$0xf]
          %v7326 = vld [vmem:[%s245 + $0xec] sm:$0xf]
          %v7327 = vld [vmem:[%s245 + $0xf0] sm:$0xf]
          %v7328 = vld [vmem:[%s245 + $0xf4] sm:$0xf]
          %v7329 = vld [vmem:[%s245 + $0xf8] sm:$0xf]
          %v7330 = vld [vmem:[%s245 + $0xfc] sm:$0xf]
          %v7331 = vld [vmem:[%s245 + $0x100] sm:$0xf]
          %v7332 = vld [vmem:[%s245 + $0x104] sm:$0xf]
          %v7333 = vld [vmem:[%s245 + $0x108] sm:$0xf]
          %v7334 = vld [vmem:[%s245 + $0x10c] sm:$0xf]
          %v7335 = vld [vmem:[%s245 + $0x110] sm:$0xf]
          %v7336 = vld [vmem:[%s245 + $0x114] sm:$0xf]
          %v7337 = vld [vmem:[%s245 + $0x118] sm:$0xf]
          %v7338 = vld [vmem:[%s245 + $0x11c] sm:$0xf]
          %v7339 = vld [vmem:[%s245 + $0x120] sm:$0xf]
          %v7340 = vld [vmem:[%s245 + $0x124] sm:$0xf]
          %v7341 = vld [vmem:[%s245 + $0x128] sm:$0xf]
          %v7342 = vld [vmem:[%s245 + $0x12c] sm:$0xf]
          %v7343 = vld [vmem:[%s245 + $0x130] sm:$0xf]
          %v7344 = vld [vmem:[%s245 + $0x134] sm:$0xf]
          %v7345 = vld [vmem:[%s245 + $0x138] sm:$0xf]
          %v7346 = vld [vmem:[%s245 + $0x13c] sm:$0xf]
          %v7347 = vld [vmem:[%s245 + $0x140] sm:$0xf]
          %v7348 = vld [vmem:[%s245 + $0x144] sm:$0xf]
          %v7349 = vld [vmem:[%s245 + $0x148] sm:$0xf]
          %v7350 = vld [vmem:[%s245 + $0x14c] sm:$0xf]
          %v7351 = vld [vmem:[%s245 + $0x150] sm:$0xf]
          %v7352 = vld [vmem:[%s245 + $0x154] sm:$0xf]
          %v7353 = vld [vmem:[%s245 + $0x158] sm:$0xf]
          %v7354 = vld [vmem:[%s245 + $0x15c] sm:$0xf]
          %v7355 = vld [vmem:[%s245 + $0x160] sm:$0xf]
          %v7356 = vld [vmem:[%s245 + $0x164] sm:$0xf]
          %v7357 = vld [vmem:[%s245 + $0x168] sm:$0xf]
          %v7358 = vld [vmem:[%s245 + $0x16c] sm:$0xf]
          %v7359 = vld [vmem:[%s245 + $0x170] sm:$0xf]
          %v7360 = vld [vmem:[%s245 + $0x174] sm:$0xf]
          %v7361 = vld [vmem:[%s245 + $0x178] sm:$0xf]
          %v7362 = vld [vmem:[%s245 + $0x17c] sm:$0xf]
          %v7363 = vld [vmem:[%s245 + $0x180] sm:$0xf]
          %v7364 = vld [vmem:[%s245 + $0x184] sm:$0xf]
          %v7365 = vld [vmem:[%s245 + $0x188] sm:$0xf]
          %v7366 = vld [vmem:[%s245 + $0x18c] sm:$0xf]
          %v7367 = vld [vmem:[%s245 + $0x190] sm:$0xf]
          %v7368 = vld [vmem:[%s245 + $0x194] sm:$0xf]
          %v7369 = vld [vmem:[%s245 + $0x198] sm:$0xf]
          %v7370 = vld [vmem:[%s245 + $0x19c] sm:$0xf]
          %v7371 = vld [vmem:[%s245 + $0x1a0] sm:$0xf]
          %v7372 = vld [vmem:[%s245 + $0x1a4] sm:$0xf]
          %v7373 = vld [vmem:[%s245 + $0x1a8] sm:$0xf]
          %v7374 = vld [vmem:[%s245 + $0x1ac] sm:$0xf]
          %v7375 = vld [vmem:[%s245 + $0x1b0] sm:$0xf]
          %v7376 = vld [vmem:[%s245 + $0x1b4] sm:$0xf]
          %v7377 = vld [vmem:[%s245 + $0x1b8] sm:$0xf]
          %v7378 = vld [vmem:[%s245 + $0x1bc] sm:$0xf]
          %v7379 = vld [vmem:[%s245 + $0x1c0] sm:$0xf]
          %v7380 = vld [vmem:[%s245 + $0x1c4] sm:$0xf]
          %v7381 = vld [vmem:[%s245 + $0x1c8] sm:$0xf]
          %v7382 = vld [vmem:[%s245 + $0x1cc] sm:$0xf]
          %v7383 = vld [vmem:[%s245 + $0x1d0] sm:$0xf]
          %v7384 = vld [vmem:[%s245 + $0x1d4] sm:$0xf]
          %v7385 = vld [vmem:[%s245 + $0x1d8] sm:$0xf]
          %v7386 = vld [vmem:[%s245 + $0x1dc] sm:$0xf]
          %v7387 = vld [vmem:[%s245 + $0x1e0] sm:$0xf]
          %v7388 = vld [vmem:[%s245 + $0x1e4] sm:$0xf]
          %v7389 = vld [vmem:[%s245 + $0x1e8] sm:$0xf]
          %v7390 = vld [vmem:[%s245 + $0x1ec] sm:$0xf]
          %v7391 = vld [vmem:[%s245 + $0x1f0] sm:$0xf]
          %v7392 = vld [vmem:[%s245 + $0x1f4] sm:$0xf]
          %v7393 = vld [vmem:[%s245 + $0x1f8] sm:$0xf]
          %v7394 = vld [vmem:[%s245 + $0x1fc] sm:$0xf]
          %v7395 = vld [vmem:[%s245 + $0x200] sm:$0xf]
          %v7396 = vld [vmem:[%s245 + $0x204] sm:$0xf]
          %v7397 = vld [vmem:[%s245 + $0x208] sm:$0xf]
          %v7398 = vld [vmem:[%s245 + $0x20c] sm:$0xf]
          %v7399 = vld [vmem:[%s245 + $0x210] sm:$0xf]
          %v7400 = vld [vmem:[%s245 + $0x214] sm:$0xf]
          %v7401 = vld [vmem:[%s245 + $0x218] sm:$0xf]
          %v7402 = vld [vmem:[%s245 + $0x21c] sm:$0xf]
          %v7403 = vld [vmem:[%s245 + $0x220] sm:$0xf]
          %v7404 = vld [vmem:[%s245 + $0x224] sm:$0xf]
          %v7405 = vld [vmem:[%s245 + $0x228] sm:$0xf]
          %v7406 = vld [vmem:[%s245 + $0x22c] sm:$0xf]
          %v7407 = vld [vmem:[%s245 + $0x230] sm:$0xf]
          %v7408 = vld [vmem:[%s245 + $0x234] sm:$0xf]
          %v7409 = vld [vmem:[%s245 + $0x238] sm:$0xf]
          %v7410 = vld [vmem:[%s245 + $0x23c] sm:$0xf]
          %v7731 = vunpack.c.l.b16 %v6947
          %v7732 = vunpack.c.h.b16 %v6947
          %v7733 = vunpack.c.l.b16 %v6948
          %v7734 = vunpack.c.h.b16 %v6948
          %v7735 = vunpack.c.l.b16 %v6949
          %v7736 = vunpack.c.h.b16 %v6949
          %v7737 = vunpack.c.l.b16 %v6950
          %v7738 = vunpack.c.h.b16 %v6950
          %v7739 = vunpack.c.l.b16 %v6951
          %v7740 = vunpack.c.l.b16 %v6952
          %v7741 = vunpack.c.h.b16 %v6952
          %v7742 = vunpack.c.l.b16 %v6953
          %v7743 = vunpack.c.h.b16 %v6953
          %v7744 = vunpack.c.l.b16 %v6954
          %v7745 = vunpack.c.h.b16 %v6954
          %v7746 = vunpack.c.l.b16 %v6955
          %v7747 = vunpack.c.h.b16 %v6955
          %v7748 = vunpack.c.l.b16 %v6956
          %v7749 = vunpack.c.l.b16 %v6957
          %v7750 = vunpack.c.h.b16 %v6957
          %v7751 = vunpack.c.l.b16 %v6958
          %v7752 = vunpack.c.h.b16 %v6958
          %v7753 = vunpack.c.l.b16 %v6959
          %v7754 = vunpack.c.h.b16 %v6959
          %v7755 = vunpack.c.l.b16 %v6960
          %v7756 = vunpack.c.h.b16 %v6960
          %v7757 = vunpack.c.l.b16 %v6961
          %v7758 = vunpack.c.l.b16 %v6962
          %v7759 = vunpack.c.h.b16 %v6962
          %v7760 = vunpack.c.l.b16 %v6963
          %v7761 = vunpack.c.h.b16 %v6963
          %v7762 = vunpack.c.l.b16 %v6964
          %v7763 = vunpack.c.h.b16 %v6964
          %v7764 = vunpack.c.l.b16 %v6965
          %v7765 = vunpack.c.h.b16 %v6965
          %v7766 = vunpack.c.l.b16 %v6966
          %v7767 = vunpack.c.l.b16 %v6967
          %v7768 = vunpack.c.h.b16 %v6967
          %v7769 = vunpack.c.l.b16 %v6968
          %v7770 = vunpack.c.h.b16 %v6968
          %v7771 = vunpack.c.l.b16 %v6969
          %v7772 = vunpack.c.h.b16 %v6969
          %v7773 = vunpack.c.l.b16 %v6970
          %v7774 = vunpack.c.h.b16 %v6970
          %v7775 = vunpack.c.l.b16 %v6971
          %v7776 = vunpack.c.l.b16 %v6972
          %v7777 = vunpack.c.h.b16 %v6972
          %v7778 = vunpack.c.l.b16 %v6973
          %v7779 = vunpack.c.h.b16 %v6973
          %v7780 = vunpack.c.l.b16 %v6974
          %v7781 = vunpack.c.h.b16 %v6974
          %v7782 = vunpack.c.l.b16 %v6975
          %v7783 = vunpack.c.h.b16 %v6975
          %v7784 = vunpack.c.l.b16 %v6976
          %v7785 = vunpack.c.l.b16 %v6977
          %v7786 = vunpack.c.h.b16 %v6977
          %v7787 = vunpack.c.l.b16 %v6978
          %v7788 = vunpack.c.h.b16 %v6978
          %v7789 = vunpack.c.l.b16 %v6979
          %v7790 = vunpack.c.h.b16 %v6979
          %v7791 = vunpack.c.l.b16 %v6980
          %v7792 = vunpack.c.h.b16 %v6980
          %v7793 = vunpack.c.l.b16 %v6981
          %v7794 = vunpack.c.l.b16 %v6982
          %v7795 = vunpack.c.h.b16 %v6982
          %v7796 = vunpack.c.l.b16 %v6983
          %v7797 = vunpack.c.h.b16 %v6983
          %v7798 = vunpack.c.l.b16 %v6984
          %v7799 = vunpack.c.h.b16 %v6984
          %v7800 = vunpack.c.l.b16 %v6985
          %v7801 = vunpack.c.h.b16 %v6985
          %v7802 = vunpack.c.l.b16 %v6986
          %v7803 = vunpack.c.l.b16 %v6987
          %v7804 = vunpack.c.h.b16 %v6987
          %v7805 = vunpack.c.l.b16 %v6988
          %v7806 = vunpack.c.h.b16 %v6988
          %v7807 = vunpack.c.l.b16 %v6989
          %v7808 = vunpack.c.h.b16 %v6989
          %v7809 = vunpack.c.l.b16 %v6990
          %v7810 = vunpack.c.h.b16 %v6990
          %v7811 = vunpack.c.l.b16 %v6991
          %v7812 = vunpack.c.l.b16 %v6992
          %v7813 = vunpack.c.h.b16 %v6992
          %v7814 = vunpack.c.l.b16 %v6993
          %v7815 = vunpack.c.h.b16 %v6993
          %v7816 = vunpack.c.l.b16 %v6994
          %v7817 = vunpack.c.h.b16 %v6994
          %v7818 = vunpack.c.l.b16 %v6995
          %v7819 = vunpack.c.h.b16 %v6995
          %v7820 = vunpack.c.l.b16 %v6996
          %v7821 = vunpack.c.l.b16 %v6997
          %v7822 = vunpack.c.h.b16 %v6997
          %v7823 = vunpack.c.l.b16 %v6998
          %v7824 = vunpack.c.h.b16 %v6998
          %v7825 = vunpack.c.l.b16 %v6999
          %v7826 = vunpack.c.h.b16 %v6999
          %v7827 = vunpack.c.l.b16 %v7000
          %v7828 = vunpack.c.h.b16 %v7000
          %v7829 = vunpack.c.l.b16 %v7001
          %v7830 = vunpack.c.l.b16 %v7002
          %v7831 = vunpack.c.h.b16 %v7002
          %v7832 = vunpack.c.l.b16 %v7003
          %v7833 = vunpack.c.h.b16 %v7003
          %v7834 = vunpack.c.l.b16 %v7004
          %v7835 = vunpack.c.h.b16 %v7004
          %v7836 = vunpack.c.l.b16 %v7005
          %v7837 = vunpack.c.h.b16 %v7005
          %v7838 = vunpack.c.l.b16 %v7006
          %v7839 = vunpack.c.l.b16 %v7007
          %v7840 = vunpack.c.h.b16 %v7007
          %v7841 = vunpack.c.l.b16 %v7008
          %v7842 = vunpack.c.h.b16 %v7008
          %v7843 = vunpack.c.l.b16 %v7009
          %v7844 = vunpack.c.h.b16 %v7009
          %v7845 = vunpack.c.l.b16 %v7010
          %v7846 = vunpack.c.h.b16 %v7010
          %v7847 = vunpack.c.l.b16 %v7011
          %v7848 = vunpack.c.l.b16 %v7012
          %v7849 = vunpack.c.h.b16 %v7012
          %v7850 = vunpack.c.l.b16 %v7013
          %v7851 = vunpack.c.h.b16 %v7013
          %v7852 = vunpack.c.l.b16 %v7014
          %v7853 = vunpack.c.h.b16 %v7014
          %v7854 = vunpack.c.l.b16 %v7015
          %v7855 = vunpack.c.h.b16 %v7015
          %v7856 = vunpack.c.l.b16 %v7016
          %v7857 = vunpack.c.l.b16 %v7017
          %v7858 = vunpack.c.h.b16 %v7017
          %v7859 = vunpack.c.l.b16 %v7018
          %v7860 = vunpack.c.h.b16 %v7018
          %v7861 = vunpack.c.l.b16 %v7019
          %v7862 = vunpack.c.h.b16 %v7019
          %v7863 = vunpack.c.l.b16 %v7020
          %v7864 = vunpack.c.h.b16 %v7020
          %v7865 = vunpack.c.l.b16 %v7021
          %v7866 = vunpack.c.l.b16 %v7022
          %v7867 = vunpack.c.h.b16 %v7022
          %v7868 = vunpack.c.l.b16 %v7023
          %v7869 = vunpack.c.h.b16 %v7023
          %v7870 = vunpack.c.l.b16 %v7024
          %v7871 = vunpack.c.h.b16 %v7024
          %v7872 = vunpack.c.l.b16 %v7025
          %v7873 = vunpack.c.h.b16 %v7025
          %v7874 = vunpack.c.l.b16 %v7026
          %v7875 = vunpack.c.l.b16 %v7027
          %v7876 = vunpack.c.h.b16 %v7027
          %v7877 = vunpack.c.l.b16 %v7028
          %v7878 = vunpack.c.h.b16 %v7028
          %v7879 = vunpack.c.l.b16 %v7029
          %v7880 = vunpack.c.h.b16 %v7029
          %v7881 = vunpack.c.l.b16 %v7030
          %v7882 = vunpack.c.h.b16 %v7030
          %v7883 = vunpack.c.l.b16 %v7031
          %v7884 = vunpack.c.l.b16 %v7032
          %v7885 = vunpack.c.h.b16 %v7032
          %v7886 = vunpack.c.l.b16 %v7033
          %v7887 = vunpack.c.h.b16 %v7033
          %v7888 = vunpack.c.l.b16 %v7034
          %v7889 = vunpack.c.h.b16 %v7034
          %v7890 = vunpack.c.l.b16 %v7035
          %v7891 = vunpack.c.h.b16 %v7035
          %v7892 = vunpack.c.l.b16 %v7036
          %v7893 = vunpack.c.l.b16 %v7037
          %v7894 = vunpack.c.h.b16 %v7037
          %v7895 = vunpack.c.l.b16 %v7038
          %v7896 = vunpack.c.h.b16 %v7038
          %v7897 = vunpack.c.l.b16 %v7039
          %v7898 = vunpack.c.h.b16 %v7039
          %v7899 = vunpack.c.l.b16 %v7040
          %v7900 = vunpack.c.h.b16 %v7040
          %v7901 = vunpack.c.l.b16 %v7041
          %v7902 = vunpack.c.l.b16 %v7042
          %v7903 = vunpack.c.h.b16 %v7042
          %v7904 = vunpack.c.l.b16 %v7043
          %v7905 = vunpack.c.h.b16 %v7043
          %v7906 = vunpack.c.l.b16 %v7044
          %v7907 = vunpack.c.h.b16 %v7044
          %v7908 = vunpack.c.l.b16 %v7045
          %v7909 = vunpack.c.h.b16 %v7045
          %v7910 = vunpack.c.l.b16 %v7046
          %v7911 = vunpack.c.l.b16 %v7047
          %v7912 = vunpack.c.h.b16 %v7047
          %v7913 = vunpack.c.l.b16 %v7048
          %v7914 = vunpack.c.h.b16 %v7048
          %v7915 = vunpack.c.l.b16 %v7049
          %v7916 = vunpack.c.h.b16 %v7049
          %v7917 = vunpack.c.l.b16 %v7050
          %v7918 = vunpack.c.h.b16 %v7050
          %v7919 = vunpack.c.l.b16 %v7051
          %v7920 = vunpack.c.l.b16 %v7052
          %v7921 = vunpack.c.h.b16 %v7052
          %v7922 = vunpack.c.l.b16 %v7053
          %v7923 = vunpack.c.h.b16 %v7053
          %v7924 = vunpack.c.l.b16 %v7054
          %v7925 = vunpack.c.h.b16 %v7054
          %v7926 = vunpack.c.l.b16 %v7055
          %v7927 = vunpack.c.h.b16 %v7055
          %v7928 = vunpack.c.l.b16 %v7056
          %v7929 = vunpack.c.l.b16 %v7057
          %v7930 = vunpack.c.h.b16 %v7057
          %v7931 = vunpack.c.l.b16 %v7058
          %v7932 = vunpack.c.h.b16 %v7058
          %v7933 = vunpack.c.l.b16 %v7059
          %v7934 = vunpack.c.h.b16 %v7059
          %v7935 = vunpack.c.l.b16 %v7060
          %v7936 = vunpack.c.h.b16 %v7060
          %v7937 = vunpack.c.l.b16 %v7061
          %v7938 = vunpack.c.l.b16 %v7062
          %v7939 = vunpack.c.h.b16 %v7062
          %v7940 = vunpack.c.l.b16 %v7063
          %v7941 = vunpack.c.h.b16 %v7063
          %v7942 = vunpack.c.l.b16 %v7064
          %v7943 = vunpack.c.h.b16 %v7064
          %v7944 = vunpack.c.l.b16 %v7065
          %v7945 = vunpack.c.h.b16 %v7065
          %v7946 = vunpack.c.l.b16 %v7066
          %v7947 = vunpack.c.l.b16 %v7067
          %v7948 = vunpack.c.h.b16 %v7067
          %v7949 = vunpack.c.l.b16 %v7068
          %v7950 = vunpack.c.h.b16 %v7068
          %v7951 = vunpack.c.l.b16 %v7069
          %v7952 = vunpack.c.h.b16 %v7069
          %v7953 = vunpack.c.l.b16 %v7070
          %v7954 = vunpack.c.h.b16 %v7070
          %v7955 = vunpack.c.l.b16 %v7071
          %v7956 = vunpack.c.l.b16 %v7072
          %v7957 = vunpack.c.h.b16 %v7072
          %v7958 = vunpack.c.l.b16 %v7073
          %v7959 = vunpack.c.h.b16 %v7073
          %v7960 = vunpack.c.l.b16 %v7074
          %v7961 = vunpack.c.h.b16 %v7074
          %v7962 = vunpack.c.l.b16 %v7075
          %v7963 = vunpack.c.h.b16 %v7075
          %v7964 = vunpack.c.l.b16 %v7076
          %v7965 = vunpack.c.l.b16 %v7077
          %v7966 = vunpack.c.h.b16 %v7077
          %v7967 = vunpack.c.l.b16 %v7078
          %v7968 = vunpack.c.h.b16 %v7078
          %v7969 = vunpack.c.l.b16 %v7079
          %v7970 = vunpack.c.h.b16 %v7079
          %v7971 = vunpack.c.l.b16 %v7080
          %v7972 = vunpack.c.h.b16 %v7080
          %v7973 = vunpack.c.l.b16 %v7081
          %v7974 = vunpack.c.l.b16 %v7082
          %v7975 = vunpack.c.h.b16 %v7082
          %v7976 = vunpack.c.l.b16 %v7083
          %v7977 = vunpack.c.h.b16 %v7083
          %v7978 = vunpack.c.l.b16 %v7084
          %v7979 = vunpack.c.h.b16 %v7084
          %v7980 = vunpack.c.l.b16 %v7085
          %v7981 = vunpack.c.h.b16 %v7085
          %v7982 = vunpack.c.l.b16 %v7086
          %v7983 = vunpack.c.l.b16 %v7087
          %v7984 = vunpack.c.h.b16 %v7087
          %v7985 = vunpack.c.l.b16 %v7088
          %v7986 = vunpack.c.h.b16 %v7088
          %v7987 = vunpack.c.l.b16 %v7089
          %v7988 = vunpack.c.h.b16 %v7089
          %v7989 = vunpack.c.l.b16 %v7090
          %v7990 = vunpack.c.h.b16 %v7090
          %v7991 = vunpack.c.l.b16 %v7091
          %v7992 = vunpack.c.l.b16 %v7092
          %v7993 = vunpack.c.h.b16 %v7092
          %v7994 = vunpack.c.l.b16 %v7093
          %v7995 = vunpack.c.h.b16 %v7093
          %v7996 = vunpack.c.l.b16 %v7094
          %v7997 = vunpack.c.h.b16 %v7094
          %v7998 = vunpack.c.l.b16 %v7095
          %v7999 = vunpack.c.h.b16 %v7095
          %v8000 = vunpack.c.l.b16 %v7096
          %v8001 = vunpack.c.l.b16 %v7097
          %v8002 = vunpack.c.h.b16 %v7097
          %v8003 = vunpack.c.l.b16 %v7098
          %v8004 = vunpack.c.h.b16 %v7098
          %v8005 = vunpack.c.l.b16 %v7099
          %v8006 = vunpack.c.h.b16 %v7099
          %v8007 = vunpack.c.l.b16 %v7100
          %v8008 = vunpack.c.h.b16 %v7100
          %v8009 = vunpack.c.l.b16 %v7101
          %v8010 = vunpack.c.l.b16 %v7102
          %v8011 = vunpack.c.h.b16 %v7102
          %v8012 = vunpack.c.l.b16 %v7103
          %v8013 = vunpack.c.h.b16 %v7103
          %v8014 = vunpack.c.l.b16 %v7104
          %v8015 = vunpack.c.h.b16 %v7104
          %v8016 = vunpack.c.l.b16 %v7105
          %v8017 = vunpack.c.h.b16 %v7105
          %v8018 = vunpack.c.l.b16 %v7106
          %v8019 = vunpack.c.l.b16 %v7107
          %v8020 = vunpack.c.h.b16 %v7107
          %v8021 = vunpack.c.l.b16 %v7108
          %v8022 = vunpack.c.h.b16 %v7108
          %v8023 = vunpack.c.l.b16 %v7109
          %v8024 = vunpack.c.h.b16 %v7109
          %v8025 = vunpack.c.l.b16 %v7110
          %v8026 = vunpack.c.h.b16 %v7110
          %v8027 = vunpack.c.l.b16 %v7111
          %v8028 = vunpack.c.l.b16 %v7112
          %v8029 = vunpack.c.h.b16 %v7112
          %v8030 = vunpack.c.l.b16 %v7113
          %v8031 = vunpack.c.h.b16 %v7113
          %v8032 = vunpack.c.l.b16 %v7114
          %v8033 = vunpack.c.h.b16 %v7114
          %v8034 = vunpack.c.l.b16 %v7115
          %v8035 = vunpack.c.h.b16 %v7115
          %v8036 = vunpack.c.l.b16 %v7116
          %v8037 = vunpack.c.l.b16 %v7117
          %v8038 = vunpack.c.h.b16 %v7117
          %v8039 = vunpack.c.l.b16 %v7118
          %v8040 = vunpack.c.h.b16 %v7118
          %v8041 = vunpack.c.l.b16 %v7119
          %v8042 = vunpack.c.h.b16 %v7119
          %v8043 = vunpack.c.l.b16 %v7120
          %v8044 = vunpack.c.h.b16 %v7120
          %v8045 = vunpack.c.l.b16 %v7121
          %v8046 = vunpack.c.l.b16 %v7122
          %v8047 = vunpack.c.h.b16 %v7122
          %v8048 = vunpack.c.l.b16 %v7123
          %v8049 = vunpack.c.h.b16 %v7123
          %v8050 = vunpack.c.l.b16 %v7124
          %v8051 = vunpack.c.h.b16 %v7124
          %v8052 = vunpack.c.l.b16 %v7125
          %v8053 = vunpack.c.h.b16 %v7125
          %v8054 = vunpack.c.l.b16 %v7126
          %v8055 = vunpack.c.l.b16 %v7127
          %v8056 = vunpack.c.h.b16 %v7127
          %v8057 = vunpack.c.l.b16 %v7128
          %v8058 = vunpack.c.h.b16 %v7128
          %v8059 = vunpack.c.l.b16 %v7129
          %v8060 = vunpack.c.h.b16 %v7129
          %v8061 = vunpack.c.l.b16 %v7130
          %v8062 = vunpack.c.h.b16 %v7130
          %v8063 = vunpack.c.l.b16 %v7131
          %v8064 = vunpack.c.l.b16 %v7132
          %v8065 = vunpack.c.h.b16 %v7132
          %v8066 = vunpack.c.l.b16 %v7133
          %v8067 = vunpack.c.h.b16 %v7133
          %v8068 = vunpack.c.l.b16 %v7134
          %v8069 = vunpack.c.h.b16 %v7134
          %v8070 = vunpack.c.l.b16 %v7135
          %v8071 = vunpack.c.h.b16 %v7135
          %v8072 = vunpack.c.l.b16 %v7136
          %v8073 = vunpack.c.l.b16 %v7137
          %v8074 = vunpack.c.h.b16 %v7137
          %v8075 = vunpack.c.l.b16 %v7138
          %v8076 = vunpack.c.h.b16 %v7138
          %v8077 = vunpack.c.l.b16 %v7139
          %v8078 = vunpack.c.h.b16 %v7139
          %v8079 = vunpack.c.l.b16 %v7140
          %v8080 = vunpack.c.h.b16 %v7140
          %v8081 = vunpack.c.l.b16 %v7141
          %v8082 = vunpack.c.l.b16 %v7142
          %v8083 = vunpack.c.h.b16 %v7142
          %v8084 = vunpack.c.l.b16 %v7143
          %v8085 = vunpack.c.h.b16 %v7143
          %v8086 = vunpack.c.l.b16 %v7144
          %v8087 = vunpack.c.h.b16 %v7144
          %v8088 = vunpack.c.l.b16 %v7145
          %v8089 = vunpack.c.h.b16 %v7145
          %v8090 = vunpack.c.l.b16 %v7146
          %v8091 = vunpack.c.l.b16 %v7147
          %v8092 = vunpack.c.h.b16 %v7147
          %v8093 = vunpack.c.l.b16 %v7148
          %v8094 = vunpack.c.h.b16 %v7148
          %v8095 = vunpack.c.l.b16 %v7149
          %v8096 = vunpack.c.h.b16 %v7149
          %v8097 = vunpack.c.l.b16 %v7150
          %v8098 = vunpack.c.h.b16 %v7150
          %v8099 = vunpack.c.l.b16 %v7151
          %v8100 = vunpack.c.l.b16 %v7152
          %v8101 = vunpack.c.h.b16 %v7152
          %v8102 = vunpack.c.l.b16 %v7153
          %v8103 = vunpack.c.h.b16 %v7153
          %v8104 = vunpack.c.l.b16 %v7154
          %v8105 = vunpack.c.h.b16 %v7154
          %v8106 = vunpack.c.l.b16 %v7155
          %v8107 = vunpack.c.h.b16 %v7155
          %v8108 = vunpack.c.l.b16 %v7156
          %v8109 = vunpack.c.l.b16 %v7157
          %v8110 = vunpack.c.h.b16 %v7157
          %v8111 = vunpack.c.l.b16 %v7158
          %v8112 = vunpack.c.h.b16 %v7158
          %v8113 = vunpack.c.l.b16 %v7159
          %v8114 = vunpack.c.h.b16 %v7159
          %v8115 = vunpack.c.l.b16 %v7160
          %v8116 = vunpack.c.h.b16 %v7160
          %v8117 = vunpack.c.l.b16 %v7161
          %v8118 = vunpack.c.l.b16 %v7162
          %v8119 = vunpack.c.h.b16 %v7162
          %v8120 = vunpack.c.l.b16 %v7163
          %v8121 = vunpack.c.h.b16 %v7163
          %v8122 = vunpack.c.l.b16 %v7164
          %v8123 = vunpack.c.h.b16 %v7164
          %v8124 = vunpack.c.l.b16 %v7165
          %v8125 = vunpack.c.h.b16 %v7165
          %v8126 = vunpack.c.l.b16 %v7166
          %v8127 = vunpack.c.l.b16 %v7167
          %v8128 = vunpack.c.h.b16 %v7167
          %v8129 = vunpack.c.l.b16 %v7168
          %v8130 = vunpack.c.h.b16 %v7168
          %v8131 = vunpack.c.l.b16 %v7169
          %v8132 = vunpack.c.h.b16 %v7169
          %v8133 = vunpack.c.l.b16 %v7170
          %v8134 = vunpack.c.h.b16 %v7170
          %v8135 = vunpack.c.l.b16 %v7171
          %v8136 = vunpack.c.l.b16 %v7172
          %v8137 = vunpack.c.h.b16 %v7172
          %v8138 = vunpack.c.l.b16 %v7173
          %v8139 = vunpack.c.h.b16 %v7173
          %v8140 = vunpack.c.l.b16 %v7174
          %v8141 = vunpack.c.h.b16 %v7174
          %v8142 = vunpack.c.l.b16 %v7175
          %v8143 = vunpack.c.h.b16 %v7175
          %v8144 = vunpack.c.l.b16 %v7176
          %v8145 = vunpack.c.l.b16 %v7177
          %v8146 = vunpack.c.h.b16 %v7177
          %v8147 = vunpack.c.l.b16 %v7178
          %v8148 = vunpack.c.h.b16 %v7178
          %v8149 = vunpack.c.l.b16 %v7179
          %v8150 = vunpack.c.h.b16 %v7179
          %v8151 = vunpack.c.l.b16 %v7180
          %v8152 = vunpack.c.h.b16 %v7180
          %v8153 = vunpack.c.l.b16 %v7181
          %v8154 = vunpack.c.l.b16 %v7182
          %v8155 = vunpack.c.h.b16 %v7182
          %v8156 = vunpack.c.l.b16 %v7183
          %v8157 = vunpack.c.h.b16 %v7183
          %v8158 = vunpack.c.l.b16 %v7184
          %v8159 = vunpack.c.h.b16 %v7184
          %v8160 = vunpack.c.l.b16 %v7185
          %v8161 = vunpack.c.h.b16 %v7185
          %v8162 = vunpack.c.l.b16 %v7186
          %v8163 = vunpack.c.l.b16 %v7187
          %v8164 = vunpack.c.h.b16 %v7187
          %v8165 = vunpack.c.l.b16 %v7188
          %v8166 = vunpack.c.h.b16 %v7188
          %v8167 = vunpack.c.l.b16 %v7189
          %v8168 = vunpack.c.h.b16 %v7189
          %v8169 = vunpack.c.l.b16 %v7190
          %v8170 = vunpack.c.h.b16 %v7190
          %v8171 = vunpack.c.l.b16 %v7191
          %v8172 = vunpack.c.l.b16 %v7192
          %v8173 = vunpack.c.h.b16 %v7192
          %v8174 = vunpack.c.l.b16 %v7193
          %v8175 = vunpack.c.h.b16 %v7193
          %v8176 = vunpack.c.l.b16 %v7194
          %v8177 = vunpack.c.h.b16 %v7194
          %v8178 = vunpack.c.l.b16 %v7195
          %v8179 = vunpack.c.h.b16 %v7195
          %v8180 = vunpack.c.l.b16 %v7196
          %v8181 = vunpack.c.l.b16 %v7197
          %v8182 = vunpack.c.h.b16 %v7197
          %v8183 = vunpack.c.l.b16 %v7198
          %v8184 = vunpack.c.h.b16 %v7198
          %v8185 = vunpack.c.l.b16 %v7199
          %v8186 = vunpack.c.h.b16 %v7199
          %v8187 = vunpack.c.l.b16 %v7200
          %v8188 = vunpack.c.h.b16 %v7200
          %v8189 = vunpack.c.l.b16 %v7201
          %v8190 = vunpack.c.l.b16 %v7202
          %v8191 = vunpack.c.h.b16 %v7202
          %v8192 = vunpack.c.l.b16 %v7203
          %v8193 = vunpack.c.h.b16 %v7203
          %v8194 = vunpack.c.l.b16 %v7204
          %v8195 = vunpack.c.h.b16 %v7204
          %v8196 = vunpack.c.l.b16 %v7205
          %v8197 = vunpack.c.h.b16 %v7205
          %v8198 = vunpack.c.l.b16 %v7206
          %v8199 = vunpack.c.l.b16 %v7207
          %v8200 = vunpack.c.h.b16 %v7207
          %v8201 = vunpack.c.l.b16 %v7208
          %v8202 = vunpack.c.h.b16 %v7208
          %v8203 = vunpack.c.l.b16 %v7209
          %v8204 = vunpack.c.h.b16 %v7209
          %v8205 = vunpack.c.l.b16 %v7210
          %v8206 = vunpack.c.h.b16 %v7210
          %v8207 = vunpack.c.l.b16 %v7211
          %v8208 = vunpack.c.l.b16 %v7212
          %v8209 = vunpack.c.h.b16 %v7212
          %v8210 = vunpack.c.l.b16 %v7213
          %v8211 = vunpack.c.h.b16 %v7213
          %v8212 = vunpack.c.l.b16 %v7214
          %v8213 = vunpack.c.h.b16 %v7214
          %v8214 = vunpack.c.l.b16 %v7215
          %v8215 = vunpack.c.h.b16 %v7215
          %v8216 = vunpack.c.l.b16 %v7216
          %v8217 = vunpack.c.l.b16 %v7217
          %v8218 = vunpack.c.h.b16 %v7217
          %v8219 = vunpack.c.l.b16 %v7218
          %v8220 = vunpack.c.h.b16 %v7218
          %v8221 = vunpack.c.l.b16 %v7219
          %v8222 = vunpack.c.h.b16 %v7219
          %v8223 = vunpack.c.l.b16 %v7220
          %v8224 = vunpack.c.h.b16 %v7220
          %v8225 = vunpack.c.l.b16 %v7221
          %v8226 = vunpack.c.l.b16 %v7222
          %v8227 = vunpack.c.h.b16 %v7222
          %v8228 = vunpack.c.l.b16 %v7223
          %v8229 = vunpack.c.h.b16 %v7223
          %v8230 = vunpack.c.l.b16 %v7224
          %v8231 = vunpack.c.h.b16 %v7224
          %v8232 = vunpack.c.l.b16 %v7225
          %v8233 = vunpack.c.h.b16 %v7225
          %v8234 = vunpack.c.l.b16 %v7226
          %v8235 = vunpack.c.l.b16 %v7227
          %v8236 = vunpack.c.h.b16 %v7227
          %v8237 = vunpack.c.l.b16 %v7228
          %v8238 = vunpack.c.h.b16 %v7228
          %v8239 = vunpack.c.l.b16 %v7229
          %v8240 = vunpack.c.h.b16 %v7229
          %v8241 = vunpack.c.l.b16 %v7230
          %v8242 = vunpack.c.h.b16 %v7230
          %v8243 = vunpack.c.l.b16 %v7231
          %v8244 = vunpack.c.l.b16 %v7232
          %v8245 = vunpack.c.h.b16 %v7232
          %v8246 = vunpack.c.l.b16 %v7233
          %v8247 = vunpack.c.h.b16 %v7233
          %v8248 = vunpack.c.l.b16 %v7234
          %v8249 = vunpack.c.h.b16 %v7234
          %v8250 = vunpack.c.l.b16 %v7235
          %v8251 = vunpack.c.h.b16 %v7235
          %v8252 = vunpack.c.l.b16 %v7236
          %v8253 = vunpack.c.l.b16 %v7237
          %v8254 = vunpack.c.h.b16 %v7237
          %v8255 = vunpack.c.l.b16 %v7238
          %v8256 = vunpack.c.h.b16 %v7238
          %v8257 = vunpack.c.l.b16 %v7239
          %v8258 = vunpack.c.h.b16 %v7239
          %v8259 = vunpack.c.l.b16 %v7240
          %v8260 = vunpack.c.h.b16 %v7240
          %v8261 = vunpack.c.l.b16 %v7241
          %v8262 = vunpack.c.l.b16 %v7242
          %v8263 = vunpack.c.h.b16 %v7242
          %v8264 = vunpack.c.l.b16 %v7243
          %v8265 = vunpack.c.h.b16 %v7243
          %v8266 = vunpack.c.l.b16 %v7244
          %v8267 = vunpack.c.h.b16 %v7244
          %v8268 = vunpack.c.l.b16 %v7245
          %v8269 = vunpack.c.h.b16 %v7245
          %v8270 = vunpack.c.l.b16 %v7246
          %v8271 = vunpack.c.l.b16 %v7247
          %v8272 = vunpack.c.h.b16 %v7247
          %v8273 = vunpack.c.l.b16 %v7248
          %v8274 = vunpack.c.h.b16 %v7248
          %v8275 = vunpack.c.l.b16 %v7249
          %v8276 = vunpack.c.h.b16 %v7249
          %v8277 = vunpack.c.l.b16 %v7250
          %v8278 = vunpack.c.h.b16 %v7250
          %v8279 = vunpack.c.l.b16 %v7251
          %v8280 = vunpack.c.l.b16 %v7252
          %v8281 = vunpack.c.h.b16 %v7252
          %v8282 = vunpack.c.l.b16 %v7253
          %v8283 = vunpack.c.h.b16 %v7253
          %v8284 = vunpack.c.l.b16 %v7254
          %v8285 = vunpack.c.h.b16 %v7254
          %v8286 = vunpack.c.l.b16 %v7255
          %v8287 = vunpack.c.h.b16 %v7255
          %v8288 = vunpack.c.l.b16 %v7256
          %v8289 = vunpack.c.l.b16 %v7257
          %v8290 = vunpack.c.h.b16 %v7257
          %v8291 = vunpack.c.l.b16 %v7258
          %v8292 = vunpack.c.h.b16 %v7258
          %v8293 = vunpack.c.l.b16 %v7259
          %v8294 = vunpack.c.h.b16 %v7259
          %v8295 = vunpack.c.l.b16 %v7260
          %v8296 = vunpack.c.h.b16 %v7260
          %v8297 = vunpack.c.l.b16 %v7261
          %v8298 = vunpack.c.l.b16 %v7262
          %v8299 = vunpack.c.h.b16 %v7262
          %v8300 = vunpack.c.l.b16 %v7263
          %v8301 = vunpack.c.h.b16 %v7263
          %v8302 = vunpack.c.l.b16 %v7264
          %v8303 = vunpack.c.h.b16 %v7264
          %v8304 = vunpack.c.l.b16 %v7265
          %v8305 = vunpack.c.h.b16 %v7265
          %v8306 = vunpack.c.l.b16 %v7266
          %v8307 = vpack.c.b16 %v7740, %v7731
          %v8308 = vpack.c.b16 %v7741, %v7732
          %v8309 = vpack.c.b16 %v7742, %v7733
          %v8310 = vpack.c.b16 %v7743, %v7734
          %v8311 = vpack.c.b16 %v7744, %v7735
          %v8312 = vpack.c.b16 %v7745, %v7736
          %v8313 = vpack.c.b16 %v7746, %v7737
          %v8314 = vpack.c.b16 %v7747, %v7738
          %v8315 = vpack.c.b16 %v7748, %v7739
          %v8316 = vpack.c.b16 %v7758, %v7749
          %v8317 = vpack.c.b16 %v7759, %v7750
          %v8318 = vpack.c.b16 %v7760, %v7751
          %v8319 = vpack.c.b16 %v7761, %v7752
          %v8320 = vpack.c.b16 %v7762, %v7753
          %v8321 = vpack.c.b16 %v7763, %v7754
          %v8322 = vpack.c.b16 %v7764, %v7755
          %v8323 = vpack.c.b16 %v7765, %v7756
          %v8324 = vpack.c.b16 %v7766, %v7757
          %v8325 = vpack.c.b16 %v7776, %v7767
          %v8326 = vpack.c.b16 %v7777, %v7768
          %v8327 = vpack.c.b16 %v7778, %v7769
          %v8328 = vpack.c.b16 %v7779, %v7770
          %v8329 = vpack.c.b16 %v7780, %v7771
          %v8330 = vpack.c.b16 %v7781, %v7772
          %v8331 = vpack.c.b16 %v7782, %v7773
          %v8332 = vpack.c.b16 %v7783, %v7774
          %v8333 = vpack.c.b16 %v7784, %v7775
          %v8334 = vpack.c.b16 %v7794, %v7785
          %v8335 = vpack.c.b16 %v7795, %v7786
          %v8336 = vpack.c.b16 %v7796, %v7787
          %v8337 = vpack.c.b16 %v7797, %v7788
          %v8338 = vpack.c.b16 %v7798, %v7789
          %v8339 = vpack.c.b16 %v7799, %v7790
          %v8340 = vpack.c.b16 %v7800, %v7791
          %v8341 = vpack.c.b16 %v7801, %v7792
          %v8342 = vpack.c.b16 %v7802, %v7793
          %v8343 = vpack.c.b16 %v7812, %v7803
          %v8344 = vpack.c.b16 %v7813, %v7804
          %v8345 = vpack.c.b16 %v7814, %v7805
          %v8346 = vpack.c.b16 %v7815, %v7806
          %v8347 = vpack.c.b16 %v7816, %v7807
          %v8348 = vpack.c.b16 %v7817, %v7808
          %v8349 = vpack.c.b16 %v7818, %v7809
          %v8350 = vpack.c.b16 %v7819, %v7810
          %v8351 = vpack.c.b16 %v7820, %v7811
          %v8352 = vpack.c.b16 %v7830, %v7821
          %v8353 = vpack.c.b16 %v7831, %v7822
          %v8354 = vpack.c.b16 %v7832, %v7823
          %v8355 = vpack.c.b16 %v7833, %v7824
          %v8356 = vpack.c.b16 %v7834, %v7825
          %v8357 = vpack.c.b16 %v7835, %v7826
          %v8358 = vpack.c.b16 %v7836, %v7827
          %v8359 = vpack.c.b16 %v7837, %v7828
          %v8360 = vpack.c.b16 %v7838, %v7829
          %v8361 = vpack.c.b16 %v7848, %v7839
          %v8362 = vpack.c.b16 %v7849, %v7840
          %v8363 = vpack.c.b16 %v7850, %v7841
          %v8364 = vpack.c.b16 %v7851, %v7842
          %v8365 = vpack.c.b16 %v7852, %v7843
          %v8366 = vpack.c.b16 %v7853, %v7844
          %v8367 = vpack.c.b16 %v7854, %v7845
          %v8368 = vpack.c.b16 %v7855, %v7846
          %v8369 = vpack.c.b16 %v7856, %v7847
          %v8370 = vpack.c.b16 %v7866, %v7857
          %v8371 = vpack.c.b16 %v7867, %v7858
          %v8372 = vpack.c.b16 %v7868, %v7859
          %v8373 = vpack.c.b16 %v7869, %v7860
          %v8374 = vpack.c.b16 %v7870, %v7861
          %v8375 = vpack.c.b16 %v7871, %v7862
          %v8376 = vpack.c.b16 %v7872, %v7863
          %v8377 = vpack.c.b16 %v7873, %v7864
          %v8378 = vpack.c.b16 %v7874, %v7865
          %v8379 = vpack.c.b16 %v7884, %v7875
          %v8380 = vpack.c.b16 %v7885, %v7876
          %v8381 = vpack.c.b16 %v7886, %v7877
          %v8382 = vpack.c.b16 %v7887, %v7878
          %v8383 = vpack.c.b16 %v7888, %v7879
          %v8384 = vpack.c.b16 %v7889, %v7880
          %v8385 = vpack.c.b16 %v7890, %v7881
          %v8386 = vpack.c.b16 %v7891, %v7882
          %v8387 = vpack.c.b16 %v7892, %v7883
          %v8388 = vpack.c.b16 %v7902, %v7893
          %v8389 = vpack.c.b16 %v7903, %v7894
          %v8390 = vpack.c.b16 %v7904, %v7895
          %v8391 = vpack.c.b16 %v7905, %v7896
          %v8392 = vpack.c.b16 %v7906, %v7897
          %v8393 = vpack.c.b16 %v7907, %v7898
          %v8394 = vpack.c.b16 %v7908, %v7899
          %v8395 = vpack.c.b16 %v7909, %v7900
          %v8396 = vpack.c.b16 %v7910, %v7901
          %v8397 = vpack.c.b16 %v7920, %v7911
          %v8398 = vpack.c.b16 %v7921, %v7912
          %v8399 = vpack.c.b16 %v7922, %v7913
          %v8400 = vpack.c.b16 %v7923, %v7914
          %v8401 = vpack.c.b16 %v7924, %v7915
          %v8402 = vpack.c.b16 %v7925, %v7916
          %v8403 = vpack.c.b16 %v7926, %v7917
          %v8404 = vpack.c.b16 %v7927, %v7918
          %v8405 = vpack.c.b16 %v7928, %v7919
          %v8406 = vpack.c.b16 %v7938, %v7929
          %v8407 = vpack.c.b16 %v7939, %v7930
          %v8408 = vpack.c.b16 %v7940, %v7931
          %v8409 = vpack.c.b16 %v7941, %v7932
          %v8410 = vpack.c.b16 %v7942, %v7933
          %v8411 = vpack.c.b16 %v7943, %v7934
          %v8412 = vpack.c.b16 %v7944, %v7935
          %v8413 = vpack.c.b16 %v7945, %v7936
          %v8414 = vpack.c.b16 %v7946, %v7937
          %v8415 = vpack.c.b16 %v7956, %v7947
          %v8416 = vpack.c.b16 %v7957, %v7948
          %v8417 = vpack.c.b16 %v7958, %v7949
          %v8418 = vpack.c.b16 %v7959, %v7950
          %v8419 = vpack.c.b16 %v7960, %v7951
          %v8420 = vpack.c.b16 %v7961, %v7952
          %v8421 = vpack.c.b16 %v7962, %v7953
          %v8422 = vpack.c.b16 %v7963, %v7954
          %v8423 = vpack.c.b16 %v7964, %v7955
          %v8424 = vpack.c.b16 %v7974, %v7965
          %v8425 = vpack.c.b16 %v7975, %v7966
          %v8426 = vpack.c.b16 %v7976, %v7967
          %v8427 = vpack.c.b16 %v7977, %v7968
          %v8428 = vpack.c.b16 %v7978, %v7969
          %v8429 = vpack.c.b16 %v7979, %v7970
          %v8430 = vpack.c.b16 %v7980, %v7971
          %v8431 = vpack.c.b16 %v7981, %v7972
          %v8432 = vpack.c.b16 %v7982, %v7973
          %v8433 = vpack.c.b16 %v7992, %v7983
          %v8434 = vpack.c.b16 %v7993, %v7984
          %v8435 = vpack.c.b16 %v7994, %v7985
          %v8436 = vpack.c.b16 %v7995, %v7986
          %v8437 = vpack.c.b16 %v7996, %v7987
          %v8438 = vpack.c.b16 %v7997, %v7988
          %v8439 = vpack.c.b16 %v7998, %v7989
          %v8440 = vpack.c.b16 %v7999, %v7990
          %v8441 = vpack.c.b16 %v8000, %v7991
          %v8442 = vpack.c.b16 %v8010, %v8001
          %v8443 = vpack.c.b16 %v8011, %v8002
          %v8444 = vpack.c.b16 %v8012, %v8003
          %v8445 = vpack.c.b16 %v8013, %v8004
          %v8446 = vpack.c.b16 %v8014, %v8005
          %v8447 = vpack.c.b16 %v8015, %v8006
          %v8448 = vpack.c.b16 %v8016, %v8007
          %v8449 = vpack.c.b16 %v8017, %v8008
          %v8450 = vpack.c.b16 %v8018, %v8009
          %v8451 = vpack.c.b16 %v8028, %v8019
          %v8452 = vpack.c.b16 %v8029, %v8020
          %v8453 = vpack.c.b16 %v8030, %v8021
          %v8454 = vpack.c.b16 %v8031, %v8022
          %v8455 = vpack.c.b16 %v8032, %v8023
          %v8456 = vpack.c.b16 %v8033, %v8024
          %v8457 = vpack.c.b16 %v8034, %v8025
          %v8458 = vpack.c.b16 %v8035, %v8026
          %v8459 = vpack.c.b16 %v8036, %v8027
          %v8460 = vpack.c.b16 %v8046, %v8037
          %v8461 = vpack.c.b16 %v8047, %v8038
          %v8462 = vpack.c.b16 %v8048, %v8039
          %v8463 = vpack.c.b16 %v8049, %v8040
          %v8464 = vpack.c.b16 %v8050, %v8041
          %v8465 = vpack.c.b16 %v8051, %v8042
          %v8466 = vpack.c.b16 %v8052, %v8043
          %v8467 = vpack.c.b16 %v8053, %v8044
          %v8468 = vpack.c.b16 %v8054, %v8045
          %v8469 = vpack.c.b16 %v8064, %v8055
          %v8470 = vpack.c.b16 %v8065, %v8056
          %v8471 = vpack.c.b16 %v8066, %v8057
          %v8472 = vpack.c.b16 %v8067, %v8058
          %v8473 = vpack.c.b16 %v8068, %v8059
          %v8474 = vpack.c.b16 %v8069, %v8060
          %v8475 = vpack.c.b16 %v8070, %v8061
          %v8476 = vpack.c.b16 %v8071, %v8062
          %v8477 = vpack.c.b16 %v8072, %v8063
          %v8478 = vpack.c.b16 %v8082, %v8073
          %v8479 = vpack.c.b16 %v8083, %v8074
          %v8480 = vpack.c.b16 %v8084, %v8075
          %v8481 = vpack.c.b16 %v8085, %v8076
          %v8482 = vpack.c.b16 %v8086, %v8077
          %v8483 = vpack.c.b16 %v8087, %v8078
          %v8484 = vpack.c.b16 %v8088, %v8079
          %v8485 = vpack.c.b16 %v8089, %v8080
          %v8486 = vpack.c.b16 %v8090, %v8081
          %v8487 = vpack.c.b16 %v8100, %v8091
          %v8488 = vpack.c.b16 %v8101, %v8092
          %v8489 = vpack.c.b16 %v8102, %v8093
          %v8490 = vpack.c.b16 %v8103, %v8094
          %v8491 = vpack.c.b16 %v8104, %v8095
          %v8492 = vpack.c.b16 %v8105, %v8096
          %v8493 = vpack.c.b16 %v8106, %v8097
          %v8494 = vpack.c.b16 %v8107, %v8098
          %v8495 = vpack.c.b16 %v8108, %v8099
          %v8496 = vpack.c.b16 %v8118, %v8109
          %v8497 = vpack.c.b16 %v8119, %v8110
          %v8498 = vpack.c.b16 %v8120, %v8111
          %v8499 = vpack.c.b16 %v8121, %v8112
          %v8500 = vpack.c.b16 %v8122, %v8113
          %v8501 = vpack.c.b16 %v8123, %v8114
          %v8502 = vpack.c.b16 %v8124, %v8115
          %v8503 = vpack.c.b16 %v8125, %v8116
          %v8504 = vpack.c.b16 %v8126, %v8117
          %v8505 = vpack.c.b16 %v8136, %v8127
          %v8506 = vpack.c.b16 %v8137, %v8128
          %v8507 = vpack.c.b16 %v8138, %v8129
          %v8508 = vpack.c.b16 %v8139, %v8130
          %v8509 = vpack.c.b16 %v8140, %v8131
          %v8510 = vpack.c.b16 %v8141, %v8132
          %v8511 = vpack.c.b16 %v8142, %v8133
          %v8512 = vpack.c.b16 %v8143, %v8134
          %v8513 = vpack.c.b16 %v8144, %v8135
          %v8514 = vpack.c.b16 %v8154, %v8145
          %v8515 = vpack.c.b16 %v8155, %v8146
          %v8516 = vpack.c.b16 %v8156, %v8147
          %v8517 = vpack.c.b16 %v8157, %v8148
          %v8518 = vpack.c.b16 %v8158, %v8149
          %v8519 = vpack.c.b16 %v8159, %v8150
          %v8520 = vpack.c.b16 %v8160, %v8151
          %v8521 = vpack.c.b16 %v8161, %v8152
          %v8522 = vpack.c.b16 %v8162, %v8153
          %v8523 = vpack.c.b16 %v8172, %v8163
          %v8524 = vpack.c.b16 %v8173, %v8164
          %v8525 = vpack.c.b16 %v8174, %v8165
          %v8526 = vpack.c.b16 %v8175, %v8166
          %v8527 = vpack.c.b16 %v8176, %v8167
          %v8528 = vpack.c.b16 %v8177, %v8168
          %v8529 = vpack.c.b16 %v8178, %v8169
          %v8530 = vpack.c.b16 %v8179, %v8170
          %v8531 = vpack.c.b16 %v8180, %v8171
          %v8532 = vpack.c.b16 %v8190, %v8181
          %v8533 = vpack.c.b16 %v8191, %v8182
          %v8534 = vpack.c.b16 %v8192, %v8183
          %v8535 = vpack.c.b16 %v8193, %v8184
          %v8536 = vpack.c.b16 %v8194, %v8185
          %v8537 = vpack.c.b16 %v8195, %v8186
          %v8538 = vpack.c.b16 %v8196, %v8187
          %v8539 = vpack.c.b16 %v8197, %v8188
          %v8540 = vpack.c.b16 %v8198, %v8189
          %v8541 = vpack.c.b16 %v8208, %v8199
          %v8542 = vpack.c.b16 %v8209, %v8200
          %v8543 = vpack.c.b16 %v8210, %v8201
          %v8544 = vpack.c.b16 %v8211, %v8202
          %v8545 = vpack.c.b16 %v8212, %v8203
          %v8546 = vpack.c.b16 %v8213, %v8204
          %v8547 = vpack.c.b16 %v8214, %v8205
          %v8548 = vpack.c.b16 %v8215, %v8206
          %v8549 = vpack.c.b16 %v8216, %v8207
          %v8550 = vpack.c.b16 %v8226, %v8217
          %v8551 = vpack.c.b16 %v8227, %v8218
          %v8552 = vpack.c.b16 %v8228, %v8219
          %v8553 = vpack.c.b16 %v8229, %v8220
          %v8554 = vpack.c.b16 %v8230, %v8221
          %v8555 = vpack.c.b16 %v8231, %v8222
          %v8556 = vpack.c.b16 %v8232, %v8223
          %v8557 = vpack.c.b16 %v8233, %v8224
          %v8558 = vpack.c.b16 %v8234, %v8225
          %v8559 = vpack.c.b16 %v8244, %v8235
          %v8560 = vpack.c.b16 %v8245, %v8236
          %v8561 = vpack.c.b16 %v8246, %v8237
          %v8562 = vpack.c.b16 %v8247, %v8238
          %v8563 = vpack.c.b16 %v8248, %v8239
          %v8564 = vpack.c.b16 %v8249, %v8240
          %v8565 = vpack.c.b16 %v8250, %v8241
          %v8566 = vpack.c.b16 %v8251, %v8242
          %v8567 = vpack.c.b16 %v8252, %v8243
          %v8568 = vpack.c.b16 %v8262, %v8253
          %v8569 = vpack.c.b16 %v8263, %v8254
          %v8570 = vpack.c.b16 %v8264, %v8255
          %v8571 = vpack.c.b16 %v8265, %v8256
          %v8572 = vpack.c.b16 %v8266, %v8257
          %v8573 = vpack.c.b16 %v8267, %v8258
          %v8574 = vpack.c.b16 %v8268, %v8259
          %v8575 = vpack.c.b16 %v8269, %v8260
          %v8576 = vpack.c.b16 %v8270, %v8261
          %v8577 = vpack.c.b16 %v8280, %v8271
          %v8578 = vpack.c.b16 %v8281, %v8272
          %v8579 = vpack.c.b16 %v8282, %v8273
          %v8580 = vpack.c.b16 %v8283, %v8274
          %v8581 = vpack.c.b16 %v8284, %v8275
          %v8582 = vpack.c.b16 %v8285, %v8276
          %v8583 = vpack.c.b16 %v8286, %v8277
          %v8584 = vpack.c.b16 %v8287, %v8278
          %v8585 = vpack.c.b16 %v8288, %v8279
          %v8586 = vpack.c.b16 %v8298, %v8289
          %v8587 = vpack.c.b16 %v8299, %v8290
          %v8588 = vpack.c.b16 %v8300, %v8291
          %v8589 = vpack.c.b16 %v8301, %v8292
          %v8590 = vpack.c.b16 %v8302, %v8293
          %v8591 = vpack.c.b16 %v8303, %v8294
          %v8592 = vpack.c.b16 %v8304, %v8295
          %v8593 = vpack.c.b16 %v8305, %v8296
          %v8594 = vpack.c.b16 %v8306, %v8297
          %v9027 = vunpack.c.l.b16 %v7267
          %v9028 = vunpack.c.l.b16 %v7268
          %v9029 = vunpack.c.l.b16 %v7269
          %v9030 = vunpack.c.l.b16 %v7270
          %v9031 = vunpack.c.l.b16 %v7271
          %v9032 = vunpack.c.l.b16 %v7272
          %v9033 = vunpack.c.l.b16 %v7273
          %v9034 = vunpack.c.l.b16 %v7274
          %v9035 = vunpack.c.l.b16 %v7275
          %v9036 = vunpack.c.l.b16 %v7276
          %v9037 = vunpack.c.l.b16 %v7277
          %v9038 = vunpack.c.l.b16 %v7278
          %v9039 = vunpack.c.l.b16 %v7279
          %v9040 = vunpack.c.l.b16 %v7280
          %v9041 = vunpack.c.l.b16 %v7281
          %v9042 = vunpack.c.l.b16 %v7282
          %v9043 = vunpack.c.l.b16 %v7283
          %v9044 = vunpack.c.l.b16 %v7284
          %v9045 = vunpack.c.l.b16 %v7285
          %v9046 = vunpack.c.l.b16 %v7286
          %v9047 = vunpack.c.l.b16 %v7287
          %v9048 = vunpack.c.l.b16 %v7288
          %v9049 = vunpack.c.l.b16 %v7289
          %v9050 = vunpack.c.l.b16 %v7290
          %v9051 = vunpack.c.l.b16 %v7291
          %v9052 = vunpack.c.l.b16 %v7292
          %v9053 = vunpack.c.l.b16 %v7293
          %v9054 = vunpack.c.l.b16 %v7294
          %v9055 = vunpack.c.l.b16 %v7295
          %v9056 = vunpack.c.l.b16 %v7296
          %v9057 = vunpack.c.l.b16 %v7297
          %v9058 = vunpack.c.l.b16 %v7298
          %v9059 = vunpack.c.l.b16 %v7299
          %v9060 = vunpack.c.l.b16 %v7300
          %v9061 = vunpack.c.l.b16 %v7301
          %v9062 = vunpack.c.l.b16 %v7302
          %v9063 = vunpack.c.l.b16 %v7303
          %v9064 = vunpack.c.l.b16 %v7304
          %v9065 = vunpack.c.l.b16 %v7305
          %v9066 = vunpack.c.l.b16 %v7306
          %v9067 = vunpack.c.l.b16 %v7307
          %v9068 = vunpack.c.l.b16 %v7308
          %v9069 = vunpack.c.l.b16 %v7309
          %v9070 = vunpack.c.l.b16 %v7310
          %v9071 = vunpack.c.l.b16 %v7311
          %v9072 = vunpack.c.l.b16 %v7312
          %v9073 = vunpack.c.l.b16 %v7313
          %v9074 = vunpack.c.l.b16 %v7314
          %v9075 = vunpack.c.l.b16 %v7315
          %v9076 = vunpack.c.l.b16 %v7316
          %v9077 = vunpack.c.l.b16 %v7317
          %v9078 = vunpack.c.l.b16 %v7318
          %v9079 = vunpack.c.l.b16 %v7319
          %v9080 = vunpack.c.l.b16 %v7320
          %v9081 = vunpack.c.l.b16 %v7321
          %v9082 = vunpack.c.l.b16 %v7322
          %v9083 = vunpack.c.l.b16 %v7323
          %v9084 = vunpack.c.l.b16 %v7324
          %v9085 = vunpack.c.l.b16 %v7325
          %v9086 = vunpack.c.l.b16 %v7326
          %v9087 = vunpack.c.l.b16 %v7327
          %v9088 = vunpack.c.l.b16 %v7328
          %v9089 = vunpack.c.l.b16 %v7329
          %v9090 = vunpack.c.l.b16 %v7330
          %v9091 = vunpack.c.l.b16 %v7331
          %v9092 = vunpack.c.l.b16 %v7332
          %v9093 = vunpack.c.l.b16 %v7333
          %v9094 = vunpack.c.l.b16 %v7334
          %v9095 = vunpack.c.l.b16 %v7335
          %v9096 = vunpack.c.l.b16 %v7336
          %v9097 = vunpack.c.l.b16 %v7337
          %v9098 = vunpack.c.l.b16 %v7338
          %v9099 = vunpack.c.l.b16 %v7339
          %v9100 = vunpack.c.l.b16 %v7340
          %v9101 = vunpack.c.l.b16 %v7341
          %v9102 = vunpack.c.l.b16 %v7342
          %v9103 = vunpack.c.l.b16 %v7343
          %v9104 = vunpack.c.l.b16 %v7344
          %v9105 = vunpack.c.l.b16 %v7345
          %v9106 = vunpack.c.l.b16 %v7346
          %v9107 = vunpack.c.l.b16 %v7347
          %v9108 = vunpack.c.l.b16 %v7348
          %v9109 = vunpack.c.l.b16 %v7349
          %v9110 = vunpack.c.l.b16 %v7350
          %v9111 = vunpack.c.l.b16 %v7351
          %v9112 = vunpack.c.l.b16 %v7352
          %v9113 = vunpack.c.l.b16 %v7353
          %v9114 = vunpack.c.l.b16 %v7354
          %v9115 = vunpack.c.l.b16 %v7355
          %v9116 = vunpack.c.l.b16 %v7356
          %v9117 = vunpack.c.l.b16 %v7357
          %v9118 = vunpack.c.l.b16 %v7358
          %v9119 = vunpack.c.l.b16 %v7359
          %v9120 = vunpack.c.l.b16 %v7360
          %v9121 = vunpack.c.l.b16 %v7361
          %v9122 = vunpack.c.l.b16 %v7362
          %v9123 = vunpack.c.l.b16 %v7363
          %v9124 = vunpack.c.l.b16 %v7364
          %v9125 = vunpack.c.l.b16 %v7365
          %v9126 = vunpack.c.l.b16 %v7366
          %v9127 = vunpack.c.l.b16 %v7367
          %v9128 = vunpack.c.l.b16 %v7368
          %v9129 = vunpack.c.l.b16 %v7369
          %v9130 = vunpack.c.l.b16 %v7370
          %v9131 = vunpack.c.l.b16 %v7371
          %v9132 = vunpack.c.l.b16 %v7372
          %v9133 = vunpack.c.l.b16 %v7373
          %v9134 = vunpack.c.l.b16 %v7374
          %v9135 = vunpack.c.l.b16 %v7375
          %v9136 = vunpack.c.l.b16 %v7376
          %v9137 = vunpack.c.l.b16 %v7377
          %v9138 = vunpack.c.l.b16 %v7378
          %v9139 = vunpack.c.l.b16 %v7379
          %v9140 = vunpack.c.l.b16 %v7380
          %v9141 = vunpack.c.l.b16 %v7381
          %v9142 = vunpack.c.l.b16 %v7382
          %v9143 = vunpack.c.l.b16 %v7383
          %v9144 = vunpack.c.l.b16 %v7384
          %v9145 = vunpack.c.l.b16 %v7385
          %v9146 = vunpack.c.l.b16 %v7386
          %v9147 = vunpack.c.l.b16 %v7387
          %v9148 = vunpack.c.l.b16 %v7388
          %v9149 = vunpack.c.l.b16 %v7389
          %v9150 = vunpack.c.l.b16 %v7390
          %v9151 = vunpack.c.l.b16 %v7391
          %v9152 = vunpack.c.l.b16 %v7392
          %v9153 = vunpack.c.l.b16 %v7393
          %v9154 = vunpack.c.l.b16 %v7394
          %v9155 = vunpack.c.l.b16 %v7395
          %v9156 = vunpack.c.l.b16 %v7396
          %v9157 = vunpack.c.l.b16 %v7397
          %v9158 = vunpack.c.l.b16 %v7398
          %v9159 = vunpack.c.l.b16 %v7399
          %v9160 = vunpack.c.l.b16 %v7400
          %v9161 = vunpack.c.l.b16 %v7401
          %v9162 = vunpack.c.l.b16 %v7402
          %v9163 = vunpack.c.l.b16 %v7403
          %v9164 = vunpack.c.l.b16 %v7404
          %v9165 = vunpack.c.l.b16 %v7405
          %v9166 = vunpack.c.l.b16 %v7406
          %v9167 = vunpack.c.l.b16 %v7407
          %v9168 = vunpack.c.l.b16 %v7408
          %v9169 = vunpack.c.l.b16 %v7409
          %v9170 = vunpack.c.l.b16 %v7410
          %v9171 = vpack.c.b16 %v9028, %v9027
          %v9172 = vpack.c.b16 %v9030, %v9029
          %v9173 = vpack.c.b16 %v9032, %v9031
          %v9174 = vpack.c.b16 %v9034, %v9033
          %v9175 = vpack.c.b16 %v9036, %v9035
          %v9176 = vpack.c.b16 %v9038, %v9037
          %v9177 = vpack.c.b16 %v9040, %v9039
          %v9178 = vpack.c.b16 %v9042, %v9041
          %v9179 = vpack.c.b16 %v9044, %v9043
          %v9180 = vpack.c.b16 %v9046, %v9045
          %v9181 = vpack.c.b16 %v9048, %v9047
          %v9182 = vpack.c.b16 %v9050, %v9049
          %v9183 = vpack.c.b16 %v9052, %v9051
          %v9184 = vpack.c.b16 %v9054, %v9053
          %v9185 = vpack.c.b16 %v9056, %v9055
          %v9186 = vpack.c.b16 %v9058, %v9057
          %v9187 = vpack.c.b16 %v9060, %v9059
          %v9188 = vpack.c.b16 %v9062, %v9061
          %v9189 = vpack.c.b16 %v9064, %v9063
          %v9190 = vpack.c.b16 %v9066, %v9065
          %v9191 = vpack.c.b16 %v9068, %v9067
          %v9192 = vpack.c.b16 %v9070, %v9069
          %v9193 = vpack.c.b16 %v9072, %v9071
          %v9194 = vpack.c.b16 %v9074, %v9073
          %v9195 = vpack.c.b16 %v9076, %v9075
          %v9196 = vpack.c.b16 %v9078, %v9077
          %v9197 = vpack.c.b16 %v9080, %v9079
          %v9198 = vpack.c.b16 %v9082, %v9081
          %v9199 = vpack.c.b16 %v9084, %v9083
          %v9200 = vpack.c.b16 %v9086, %v9085
          %v9201 = vpack.c.b16 %v9088, %v9087
          %v9202 = vpack.c.b16 %v9090, %v9089
          %v9203 = vpack.c.b16 %v9092, %v9091
          %v9204 = vpack.c.b16 %v9094, %v9093
          %v9205 = vpack.c.b16 %v9096, %v9095
          %v9206 = vpack.c.b16 %v9098, %v9097
          %v9207 = vpack.c.b16 %v9100, %v9099
          %v9208 = vpack.c.b16 %v9102, %v9101
          %v9209 = vpack.c.b16 %v9104, %v9103
          %v9210 = vpack.c.b16 %v9106, %v9105
          %v9211 = vpack.c.b16 %v9108, %v9107
          %v9212 = vpack.c.b16 %v9110, %v9109
          %v9213 = vpack.c.b16 %v9112, %v9111
          %v9214 = vpack.c.b16 %v9114, %v9113
          %v9215 = vpack.c.b16 %v9116, %v9115
          %v9216 = vpack.c.b16 %v9118, %v9117
          %v9217 = vpack.c.b16 %v9120, %v9119
          %v9218 = vpack.c.b16 %v9122, %v9121
          %v9219 = vpack.c.b16 %v9124, %v9123
          %v9220 = vpack.c.b16 %v9126, %v9125
          %v9221 = vpack.c.b16 %v9128, %v9127
          %v9222 = vpack.c.b16 %v9130, %v9129
          %v9223 = vpack.c.b16 %v9132, %v9131
          %v9224 = vpack.c.b16 %v9134, %v9133
          %v9225 = vpack.c.b16 %v9136, %v9135
          %v9226 = vpack.c.b16 %v9138, %v9137
          %v9227 = vpack.c.b16 %v9140, %v9139
          %v9228 = vpack.c.b16 %v9142, %v9141
          %v9229 = vpack.c.b16 %v9144, %v9143
          %v9230 = vpack.c.b16 %v9146, %v9145
          %v9231 = vpack.c.b16 %v9148, %v9147
          %v9232 = vpack.c.b16 %v9150, %v9149
          %v9233 = vpack.c.b16 %v9152, %v9151
          %v9234 = vpack.c.b16 %v9154, %v9153
          %v9235 = vpack.c.b16 %v9156, %v9155
          %v9236 = vpack.c.b16 %v9158, %v9157
          %v9237 = vpack.c.b16 %v9160, %v9159
          %v9238 = vpack.c.b16 %v9162, %v9161
          %v9239 = vpack.c.b16 %v9164, %v9163
          %v9240 = vpack.c.b16 %v9166, %v9165
          %v9241 = vpack.c.b16 %v9168, %v9167
          %v9242 = vpack.c.b16 %v9170, %v9169
          %9315 = vmatpush.bf16.msra.mxu0 %v9178
          %9316 = vmatpush.bf16.msra.mxu0 %v9177
          %9317 = vmatpush.bf16.msra.mxu0 %v9176
          %9318 = vmatpush.bf16.msra.mxu0 %v9175
          %9319 = vmatpush.bf16.msra.mxu0 %v9174
          %9320 = vmatpush.bf16.msra.mxu0 %v9173
          %9321 = vmatpush.bf16.msra.mxu0 %v9172
          %9322 = vmatpush.bf16.msra.mxu0 %v9171
          %9323 = vmatmul.bf16.gmra.mxu0 %v8307
          %v9324 = vpop.f32.mrf.mxu0
          %v9325 = vadd.f32 0.0, %v9324
          %v9326 = vpop.f32.mrf.mxu0
          %v9327 = vadd.f32 0.0, %v9326
          %9328 = vmatmul.bf16.gmra.mxu0 %v8316
          %v9329 = vpop.f32.mrf.mxu0
          %v9330 = vadd.f32 0.0, %v9329
          %v9331 = vpop.f32.mrf.mxu0
          %v9332 = vadd.f32 0.0, %v9331
          %9333 = vmatmul.bf16.gmra.mxu0 %v8325
          %v9334 = vpop.f32.mrf.mxu0
          %v9335 = vadd.f32 0.0, %v9334
          %v9336 = vpop.f32.mrf.mxu0
          %v9337 = vadd.f32 0.0, %v9336
          %9338 = vmatmul.bf16.gmra.mxu0 %v8334
          %v9339 = vpop.f32.mrf.mxu0
          %v9340 = vadd.f32 0.0, %v9339
          %v9341 = vpop.f32.mrf.mxu0
          %v9342 = vadd.f32 0.0, %v9341
          %9343 = vmatmul.bf16.gmra.mxu0 %v8343
          %v9344 = vpop.f32.mrf.mxu0
          %v9345 = vadd.f32 0.0, %v9344
          %v9346 = vpop.f32.mrf.mxu0
          %v9347 = vadd.f32 0.0, %v9346
          %9348 = vmatmul.bf16.gmra.mxu0 %v8352
          %v9349 = vpop.f32.mrf.mxu0
          %v9350 = vadd.f32 0.0, %v9349
          %v9351 = vpop.f32.mrf.mxu0
          %v9352 = vadd.f32 0.0, %v9351
          %9353 = vmatmul.bf16.gmra.mxu0 %v8361
          %v9354 = vpop.f32.mrf.mxu0
          %v9355 = vadd.f32 0.0, %v9354
          %v9356 = vpop.f32.mrf.mxu0
          %v9357 = vadd.f32 0.0, %v9356
          %9358 = vmatmul.bf16.gmra.mxu0 %v8370
          %v9359 = vpop.f32.mrf.mxu0
          %v9360 = vadd.f32 0.0, %v9359
          %v9361 = vpop.f32.mrf.mxu0
          %v9362 = vadd.f32 0.0, %v9361
          %9363 = vmatmul.bf16.gmra.mxu0 %v8379
          %v9364 = vpop.f32.mrf.mxu0
          %v9365 = vadd.f32 0.0, %v9364
          %v9366 = vpop.f32.mrf.mxu0
          %v9367 = vadd.f32 0.0, %v9366
          %9368 = vmatmul.bf16.gmra.mxu0 %v8388
          %v9369 = vpop.f32.mrf.mxu0
          %v9370 = vadd.f32 0.0, %v9369
          %v9371 = vpop.f32.mrf.mxu0
          %v9372 = vadd.f32 0.0, %v9371
          %9373 = vmatmul.bf16.gmra.mxu0 %v8397
          %v9374 = vpop.f32.mrf.mxu0
          %v9375 = vadd.f32 0.0, %v9374
          %v9376 = vpop.f32.mrf.mxu0
          %v9377 = vadd.f32 0.0, %v9376
          %9378 = vmatmul.bf16.gmra.mxu0 %v8406
          %v9379 = vpop.f32.mrf.mxu0
          %v9380 = vadd.f32 0.0, %v9379
          %v9381 = vpop.f32.mrf.mxu0
          %v9382 = vadd.f32 0.0, %v9381
          %9383 = vmatmul.bf16.gmra.mxu0 %v8415
          %v9384 = vpop.f32.mrf.mxu0
          %v9385 = vadd.f32 0.0, %v9384
          %v9386 = vpop.f32.mrf.mxu0
          %v9387 = vadd.f32 0.0, %v9386
          %9388 = vmatmul.bf16.gmra.mxu0 %v8424
          %v9389 = vpop.f32.mrf.mxu0
          %v9390 = vadd.f32 0.0, %v9389
          %v9391 = vpop.f32.mrf.mxu0
          %v9392 = vadd.f32 0.0, %v9391
          %9393 = vmatmul.bf16.gmra.mxu0 %v8433
          %v9394 = vpop.f32.mrf.mxu0
          %v9395 = vadd.f32 0.0, %v9394
          %v9396 = vpop.f32.mrf.mxu0
          %v9397 = vadd.f32 0.0, %v9396
          %9398 = vmatmul.bf16.gmra.mxu0 %v8442
          %v9399 = vpop.f32.mrf.mxu0
          %v9400 = vadd.f32 0.0, %v9399
          %v9401 = vpop.f32.mrf.mxu0
          %v9402 = vadd.f32 0.0, %v9401
          %9403 = vmatmul.bf16.gmra.mxu0 %v8451
          %v9404 = vpop.f32.mrf.mxu0
          %v9405 = vadd.f32 0.0, %v9404
          %v9406 = vpop.f32.mrf.mxu0
          %v9407 = vadd.f32 0.0, %v9406
          %9408 = vmatmul.bf16.gmra.mxu0 %v8460
          %v9409 = vpop.f32.mrf.mxu0
          %v9410 = vadd.f32 0.0, %v9409
          %v9411 = vpop.f32.mrf.mxu0
          %v9412 = vadd.f32 0.0, %v9411
          %9413 = vmatmul.bf16.gmra.mxu0 %v8469
          %v9414 = vpop.f32.mrf.mxu0
          %v9415 = vadd.f32 0.0, %v9414
          %v9416 = vpop.f32.mrf.mxu0
          %v9417 = vadd.f32 0.0, %v9416
          %9418 = vmatmul.bf16.gmra.mxu0 %v8478
          %v9419 = vpop.f32.mrf.mxu0
          %v9420 = vadd.f32 0.0, %v9419
          %v9421 = vpop.f32.mrf.mxu0
          %v9422 = vadd.f32 0.0, %v9421
          %9423 = vmatmul.bf16.gmra.mxu0 %v8487
          %v9424 = vpop.f32.mrf.mxu0
          %v9425 = vadd.f32 0.0, %v9424
          %v9426 = vpop.f32.mrf.mxu0
          %v9427 = vadd.f32 0.0, %v9426
          %9428 = vmatmul.bf16.gmra.mxu0 %v8496
          %v9429 = vpop.f32.mrf.mxu0
          %v9430 = vadd.f32 0.0, %v9429
          %v9431 = vpop.f32.mrf.mxu0
          %v9432 = vadd.f32 0.0, %v9431
          %9433 = vmatmul.bf16.gmra.mxu0 %v8505
          %v9434 = vpop.f32.mrf.mxu0
          %v9435 = vadd.f32 0.0, %v9434
          %v9436 = vpop.f32.mrf.mxu0
          %v9437 = vadd.f32 0.0, %v9436
          %9438 = vmatmul.bf16.gmra.mxu0 %v8514
          %v9439 = vpop.f32.mrf.mxu0
          %v9440 = vadd.f32 0.0, %v9439
          %v9441 = vpop.f32.mrf.mxu0
          %v9442 = vadd.f32 0.0, %v9441
          %9443 = vmatmul.bf16.gmra.mxu0 %v8523
          %v9444 = vpop.f32.mrf.mxu0
          %v9445 = vadd.f32 0.0, %v9444
          %v9446 = vpop.f32.mrf.mxu0
          %v9447 = vadd.f32 0.0, %v9446
          %9448 = vmatmul.bf16.gmra.mxu0 %v8532
          %v9449 = vpop.f32.mrf.mxu0
          %v9450 = vadd.f32 0.0, %v9449
          %v9451 = vpop.f32.mrf.mxu0
          %v9452 = vadd.f32 0.0, %v9451
          %9453 = vmatmul.bf16.gmra.mxu0 %v8541
          %v9454 = vpop.f32.mrf.mxu0
          %v9455 = vadd.f32 0.0, %v9454
          %v9456 = vpop.f32.mrf.mxu0
          %v9457 = vadd.f32 0.0, %v9456
          %9458 = vmatmul.bf16.gmra.mxu0 %v8550
          %v9459 = vpop.f32.mrf.mxu0
          %v9460 = vadd.f32 0.0, %v9459
          %v9461 = vpop.f32.mrf.mxu0
          %v9462 = vadd.f32 0.0, %v9461
          %9463 = vmatmul.bf16.gmra.mxu0 %v8559
          %v9464 = vpop.f32.mrf.mxu0
          %v9465 = vadd.f32 0.0, %v9464
          %v9466 = vpop.f32.mrf.mxu0
          %v9467 = vadd.f32 0.0, %v9466
          %9468 = vmatmul.bf16.gmra.mxu0 %v8568
          %v9469 = vpop.f32.mrf.mxu0
          %v9470 = vadd.f32 0.0, %v9469
          %v9471 = vpop.f32.mrf.mxu0
          %v9472 = vadd.f32 0.0, %v9471
          %9473 = vmatmul.bf16.gmra.mxu0 %v8577
          %v9474 = vpop.f32.mrf.mxu0
          %v9475 = vadd.f32 0.0, %v9474
          %v9476 = vpop.f32.mrf.mxu0
          %v9477 = vadd.f32 0.0, %v9476
          %9478 = vmatmul.bf16.gmra.mxu0 %v8586
          %v9479 = vpop.f32.mrf.mxu0
          %v9480 = vadd.f32 0.0, %v9479
          %v9481 = vpop.f32.mrf.mxu0
          %v9482 = vadd.f32 0.0, %v9481
          %9483 = vdwg.mxu0
          %9484 = vmatpush.bf16.msra.mxu0 %v9186
          %9485 = vmatpush.bf16.msra.mxu0 %v9185
          %9486 = vmatpush.bf16.msra.mxu0 %v9184
          %9487 = vmatpush.bf16.msra.mxu0 %v9183
          %9488 = vmatpush.bf16.msra.mxu0 %v9182
          %9489 = vmatpush.bf16.msra.mxu0 %v9181
          %9490 = vmatpush.bf16.msra.mxu0 %v9180
          %9491 = vmatpush.bf16.msra.mxu0 %v9179
          %9492 = vmatmul.bf16.gmra.mxu0 %v8308
          %v9493 = vpop.f32.mrf.mxu0
          %v9494 = vadd.f32 %v9325, %v9493
          %v9495 = vpop.f32.mrf.mxu0
          %v9496 = vadd.f32 %v9327, %v9495
          %9497 = vmatmul.bf16.gmra.mxu0 %v8317
          %v9498 = vpop.f32.mrf.mxu0
          %v9499 = vadd.f32 %v9330, %v9498
          %v9500 = vpop.f32.mrf.mxu0
          %v9501 = vadd.f32 %v9332, %v9500
          %9502 = vmatmul.bf16.gmra.mxu0 %v8326
          %v9503 = vpop.f32.mrf.mxu0
          %v9504 = vadd.f32 %v9335, %v9503
          %v9505 = vpop.f32.mrf.mxu0
          %v9506 = vadd.f32 %v9337, %v9505
          %9507 = vmatmul.bf16.gmra.mxu0 %v8335
          %v9508 = vpop.f32.mrf.mxu0
          %v9509 = vadd.f32 %v9340, %v9508
          %v9510 = vpop.f32.mrf.mxu0
          %v9511 = vadd.f32 %v9342, %v9510
          %9512 = vmatmul.bf16.gmra.mxu0 %v8344
          %v9513 = vpop.f32.mrf.mxu0
          %v9514 = vadd.f32 %v9345, %v9513
          %v9515 = vpop.f32.mrf.mxu0
          %v9516 = vadd.f32 %v9347, %v9515
          %9517 = vmatmul.bf16.gmra.mxu0 %v8353
          %v9518 = vpop.f32.mrf.mxu0
          %v9519 = vadd.f32 %v9350, %v9518
          %v9520 = vpop.f32.mrf.mxu0
          %v9521 = vadd.f32 %v9352, %v9520
          %9522 = vmatmul.bf16.gmra.mxu0 %v8362
          %v9523 = vpop.f32.mrf.mxu0
          %v9524 = vadd.f32 %v9355, %v9523
          %v9525 = vpop.f32.mrf.mxu0
          %v9526 = vadd.f32 %v9357, %v9525
          %9527 = vmatmul.bf16.gmra.mxu0 %v8371
          %v9528 = vpop.f32.mrf.mxu0
          %v9529 = vadd.f32 %v9360, %v9528
          %v9530 = vpop.f32.mrf.mxu0
          %v9531 = vadd.f32 %v9362, %v9530
          %9532 = vmatmul.bf16.gmra.mxu0 %v8380
          %v9533 = vpop.f32.mrf.mxu0
          %v9534 = vadd.f32 %v9365, %v9533
          %v9535 = vpop.f32.mrf.mxu0
          %v9536 = vadd.f32 %v9367, %v9535
          %9537 = vmatmul.bf16.gmra.mxu0 %v8389
          %v9538 = vpop.f32.mrf.mxu0
          %v9539 = vadd.f32 %v9370, %v9538
          %v9540 = vpop.f32.mrf.mxu0
          %v9541 = vadd.f32 %v9372, %v9540
          %9542 = vmatmul.bf16.gmra.mxu0 %v8398
          %v9543 = vpop.f32.mrf.mxu0
          %v9544 = vadd.f32 %v9375, %v9543
          %v9545 = vpop.f32.mrf.mxu0
          %v9546 = vadd.f32 %v9377, %v9545
          %9547 = vmatmul.bf16.gmra.mxu0 %v8407
          %v9548 = vpop.f32.mrf.mxu0
          %v9549 = vadd.f32 %v9380, %v9548
          %v9550 = vpop.f32.mrf.mxu0
          %v9551 = vadd.f32 %v9382, %v9550
          %9552 = vmatmul.bf16.gmra.mxu0 %v8416
          %v9553 = vpop.f32.mrf.mxu0
          %v9554 = vadd.f32 %v9385, %v9553
          %v9555 = vpop.f32.mrf.mxu0
          %v9556 = vadd.f32 %v9387, %v9555
          %9557 = vmatmul.bf16.gmra.mxu0 %v8425
          %v9558 = vpop.f32.mrf.mxu0
          %v9559 = vadd.f32 %v9390, %v9558
          %v9560 = vpop.f32.mrf.mxu0
          %v9561 = vadd.f32 %v9392, %v9560
          %9562 = vmatmul.bf16.gmra.mxu0 %v8434
          %v9563 = vpop.f32.mrf.mxu0
          %v9564 = vadd.f32 %v9395, %v9563
          %v9565 = vpop.f32.mrf.mxu0
          %v9566 = vadd.f32 %v9397, %v9565
          %9567 = vmatmul.bf16.gmra.mxu0 %v8443
          %v9568 = vpop.f32.mrf.mxu0
          %v9569 = vadd.f32 %v9400, %v9568
          %v9570 = vpop.f32.mrf.mxu0
          %v9571 = vadd.f32 %v9402, %v9570
          %9572 = vmatmul.bf16.gmra.mxu0 %v8452
          %v9573 = vpop.f32.mrf.mxu0
          %v9574 = vadd.f32 %v9405, %v9573
          %v9575 = vpop.f32.mrf.mxu0
          %v9576 = vadd.f32 %v9407, %v9575
          %9577 = vmatmul.bf16.gmra.mxu0 %v8461
          %v9578 = vpop.f32.mrf.mxu0
          %v9579 = vadd.f32 %v9410, %v9578
          %v9580 = vpop.f32.mrf.mxu0
          %v9581 = vadd.f32 %v9412, %v9580
          %9582 = vmatmul.bf16.gmra.mxu0 %v8470
          %v9583 = vpop.f32.mrf.mxu0
          %v9584 = vadd.f32 %v9415, %v9583
          %v9585 = vpop.f32.mrf.mxu0
          %v9586 = vadd.f32 %v9417, %v9585
          %9587 = vmatmul.bf16.gmra.mxu0 %v8479
          %v9588 = vpop.f32.mrf.mxu0
          %v9589 = vadd.f32 %v9420, %v9588
          %v9590 = vpop.f32.mrf.mxu0
          %v9591 = vadd.f32 %v9422, %v9590
          %9592 = vmatmul.bf16.gmra.mxu0 %v8488
          %v9593 = vpop.f32.mrf.mxu0
          %v9594 = vadd.f32 %v9425, %v9593
          %v9595 = vpop.f32.mrf.mxu0
          %v9596 = vadd.f32 %v9427, %v9595
          %9597 = vmatmul.bf16.gmra.mxu0 %v8497
          %v9598 = vpop.f32.mrf.mxu0
          %v9599 = vadd.f32 %v9430, %v9598
          %v9600 = vpop.f32.mrf.mxu0
          %v9601 = vadd.f32 %v9432, %v9600
          %9602 = vmatmul.bf16.gmra.mxu0 %v8506
          %v9603 = vpop.f32.mrf.mxu0
          %v9604 = vadd.f32 %v9435, %v9603
          %v9605 = vpop.f32.mrf.mxu0
          %v9606 = vadd.f32 %v9437, %v9605
          %9607 = vmatmul.bf16.gmra.mxu0 %v8515
          %v9608 = vpop.f32.mrf.mxu0
          %v9609 = vadd.f32 %v9440, %v9608
          %v9610 = vpop.f32.mrf.mxu0
          %v9611 = vadd.f32 %v9442, %v9610
          %9612 = vmatmul.bf16.gmra.mxu0 %v8524
          %v9613 = vpop.f32.mrf.mxu0
          %v9614 = vadd.f32 %v9445, %v9613
          %v9615 = vpop.f32.mrf.mxu0
          %v9616 = vadd.f32 %v9447, %v9615
          %9617 = vmatmul.bf16.gmra.mxu0 %v8533
          %v9618 = vpop.f32.mrf.mxu0
          %v9619 = vadd.f32 %v9450, %v9618
          %v9620 = vpop.f32.mrf.mxu0
          %v9621 = vadd.f32 %v9452, %v9620
          %9622 = vmatmul.bf16.gmra.mxu0 %v8542
          %v9623 = vpop.f32.mrf.mxu0
          %v9624 = vadd.f32 %v9455, %v9623
          %v9625 = vpop.f32.mrf.mxu0
          %v9626 = vadd.f32 %v9457, %v9625
          %9627 = vmatmul.bf16.gmra.mxu0 %v8551
          %v9628 = vpop.f32.mrf.mxu0
          %v9629 = vadd.f32 %v9460, %v9628
          %v9630 = vpop.f32.mrf.mxu0
          %v9631 = vadd.f32 %v9462, %v9630
          %9632 = vmatmul.bf16.gmra.mxu0 %v8560
          %v9633 = vpop.f32.mrf.mxu0
          %v9634 = vadd.f32 %v9465, %v9633
          %v9635 = vpop.f32.mrf.mxu0
          %v9636 = vadd.f32 %v9467, %v9635
          %9637 = vmatmul.bf16.gmra.mxu0 %v8569
          %v9638 = vpop.f32.mrf.mxu0
          %v9639 = vadd.f32 %v9470, %v9638
          %v9640 = vpop.f32.mrf.mxu0
          %v9641 = vadd.f32 %v9472, %v9640
          %9642 = vmatmul.bf16.gmra.mxu0 %v8578
          %v9643 = vpop.f32.mrf.mxu0
          %v9644 = vadd.f32 %v9475, %v9643
          %v9645 = vpop.f32.mrf.mxu0
          %v9646 = vadd.f32 %v9477, %v9645
          %9647 = vmatmul.bf16.gmra.mxu0 %v8587
          %v9648 = vpop.f32.mrf.mxu0
          %v9649 = vadd.f32 %v9480, %v9648
          %v9650 = vpop.f32.mrf.mxu0
          %v9651 = vadd.f32 %v9482, %v9650
          %9652 = vdwg.mxu0
          %9653 = vmatpush.bf16.msra.mxu0 %v9194
          %9654 = vmatpush.bf16.msra.mxu0 %v9193
          %9655 = vmatpush.bf16.msra.mxu0 %v9192
          %9656 = vmatpush.bf16.msra.mxu0 %v9191
          %9657 = vmatpush.bf16.msra.mxu0 %v9190
          %9658 = vmatpush.bf16.msra.mxu0 %v9189
          %9659 = vmatpush.bf16.msra.mxu0 %v9188
          %9660 = vmatpush.bf16.msra.mxu0 %v9187
          %9661 = vmatmul.bf16.gmra.mxu0 %v8309
          %v9662 = vpop.f32.mrf.mxu0
          %v9663 = vadd.f32 %v9494, %v9662
          %v9664 = vpop.f32.mrf.mxu0
          %v9665 = vadd.f32 %v9496, %v9664
          %9666 = vmatmul.bf16.gmra.mxu0 %v8318
          %v9667 = vpop.f32.mrf.mxu0
          %v9668 = vadd.f32 %v9499, %v9667
          %v9669 = vpop.f32.mrf.mxu0
          %v9670 = vadd.f32 %v9501, %v9669
          %9671 = vmatmul.bf16.gmra.mxu0 %v8327
          %v9672 = vpop.f32.mrf.mxu0
          %v9673 = vadd.f32 %v9504, %v9672
          %v9674 = vpop.f32.mrf.mxu0
          %v9675 = vadd.f32 %v9506, %v9674
          %9676 = vmatmul.bf16.gmra.mxu0 %v8336
          %v9677 = vpop.f32.mrf.mxu0
          %v9678 = vadd.f32 %v9509, %v9677
          %v9679 = vpop.f32.mrf.mxu0
          %v9680 = vadd.f32 %v9511, %v9679
          %9681 = vmatmul.bf16.gmra.mxu0 %v8345
          %v9682 = vpop.f32.mrf.mxu0
          %v9683 = vadd.f32 %v9514, %v9682
          %v9684 = vpop.f32.mrf.mxu0
          %v9685 = vadd.f32 %v9516, %v9684
          %9686 = vmatmul.bf16.gmra.mxu0 %v8354
          %v9687 = vpop.f32.mrf.mxu0
          %v9688 = vadd.f32 %v9519, %v9687
          %v9689 = vpop.f32.mrf.mxu0
          %v9690 = vadd.f32 %v9521, %v9689
          %9691 = vmatmul.bf16.gmra.mxu0 %v8363
          %v9692 = vpop.f32.mrf.mxu0
          %v9693 = vadd.f32 %v9524, %v9692
          %v9694 = vpop.f32.mrf.mxu0
          %v9695 = vadd.f32 %v9526, %v9694
          %9696 = vmatmul.bf16.gmra.mxu0 %v8372
          %v9697 = vpop.f32.mrf.mxu0
          %v9698 = vadd.f32 %v9529, %v9697
          %v9699 = vpop.f32.mrf.mxu0
          %v9700 = vadd.f32 %v9531, %v9699
          %9701 = vmatmul.bf16.gmra.mxu0 %v8381
          %v9702 = vpop.f32.mrf.mxu0
          %v9703 = vadd.f32 %v9534, %v9702
          %v9704 = vpop.f32.mrf.mxu0
          %v9705 = vadd.f32 %v9536, %v9704
          %9706 = vmatmul.bf16.gmra.mxu0 %v8390
          %v9707 = vpop.f32.mrf.mxu0
          %v9708 = vadd.f32 %v9539, %v9707
          %v9709 = vpop.f32.mrf.mxu0
          %v9710 = vadd.f32 %v9541, %v9709
          %9711 = vmatmul.bf16.gmra.mxu0 %v8399
          %v9712 = vpop.f32.mrf.mxu0
          %v9713 = vadd.f32 %v9544, %v9712
          %v9714 = vpop.f32.mrf.mxu0
          %v9715 = vadd.f32 %v9546, %v9714
          %9716 = vmatmul.bf16.gmra.mxu0 %v8408
          %v9717 = vpop.f32.mrf.mxu0
          %v9718 = vadd.f32 %v9549, %v9717
          %v9719 = vpop.f32.mrf.mxu0
          %v9720 = vadd.f32 %v9551, %v9719
          %9721 = vmatmul.bf16.gmra.mxu0 %v8417
          %v9722 = vpop.f32.mrf.mxu0
          %v9723 = vadd.f32 %v9554, %v9722
          %v9724 = vpop.f32.mrf.mxu0
          %v9725 = vadd.f32 %v9556, %v9724
          %9726 = vmatmul.bf16.gmra.mxu0 %v8426
          %v9727 = vpop.f32.mrf.mxu0
          %v9728 = vadd.f32 %v9559, %v9727
          %v9729 = vpop.f32.mrf.mxu0
          %v9730 = vadd.f32 %v9561, %v9729
          %9731 = vmatmul.bf16.gmra.mxu0 %v8435
          %v9732 = vpop.f32.mrf.mxu0
          %v9733 = vadd.f32 %v9564, %v9732
          %v9734 = vpop.f32.mrf.mxu0
          %v9735 = vadd.f32 %v9566, %v9734
          %9736 = vmatmul.bf16.gmra.mxu0 %v8444
          %v9737 = vpop.f32.mrf.mxu0
          %v9738 = vadd.f32 %v9569, %v9737
          %v9739 = vpop.f32.mrf.mxu0
          %v9740 = vadd.f32 %v9571, %v9739
          %9741 = vmatmul.bf16.gmra.mxu0 %v8453
          %v9742 = vpop.f32.mrf.mxu0
          %v9743 = vadd.f32 %v9574, %v9742
          %v9744 = vpop.f32.mrf.mxu0
          %v9745 = vadd.f32 %v9576, %v9744
          %9746 = vmatmul.bf16.gmra.mxu0 %v8462
          %v9747 = vpop.f32.mrf.mxu0
          %v9748 = vadd.f32 %v9579, %v9747
          %v9749 = vpop.f32.mrf.mxu0
          %v9750 = vadd.f32 %v9581, %v9749
          %9751 = vmatmul.bf16.gmra.mxu0 %v8471
          %v9752 = vpop.f32.mrf.mxu0
          %v9753 = vadd.f32 %v9584, %v9752
          %v9754 = vpop.f32.mrf.mxu0
          %v9755 = vadd.f32 %v9586, %v9754
          %9756 = vmatmul.bf16.gmra.mxu0 %v8480
          %v9757 = vpop.f32.mrf.mxu0
          %v9758 = vadd.f32 %v9589, %v9757
          %v9759 = vpop.f32.mrf.mxu0
          %v9760 = vadd.f32 %v9591, %v9759
          %9761 = vmatmul.bf16.gmra.mxu0 %v8489
          %v9762 = vpop.f32.mrf.mxu0
          %v9763 = vadd.f32 %v9594, %v9762
          %v9764 = vpop.f32.mrf.mxu0
          %v9765 = vadd.f32 %v9596, %v9764
          %9766 = vmatmul.bf16.gmra.mxu0 %v8498
          %v9767 = vpop.f32.mrf.mxu0
          %v9768 = vadd.f32 %v9599, %v9767
          %v9769 = vpop.f32.mrf.mxu0
          %v9770 = vadd.f32 %v9601, %v9769
          %9771 = vmatmul.bf16.gmra.mxu0 %v8507
          %v9772 = vpop.f32.mrf.mxu0
          %v9773 = vadd.f32 %v9604, %v9772
          %v9774 = vpop.f32.mrf.mxu0
          %v9775 = vadd.f32 %v9606, %v9774
          %9776 = vmatmul.bf16.gmra.mxu0 %v8516
          %v9777 = vpop.f32.mrf.mxu0
          %v9778 = vadd.f32 %v9609, %v9777
          %v9779 = vpop.f32.mrf.mxu0
          %v9780 = vadd.f32 %v9611, %v9779
          %9781 = vmatmul.bf16.gmra.mxu0 %v8525
          %v9782 = vpop.f32.mrf.mxu0
          %v9783 = vadd.f32 %v9614, %v9782
          %v9784 = vpop.f32.mrf.mxu0
          %v9785 = vadd.f32 %v9616, %v9784
          %9786 = vmatmul.bf16.gmra.mxu0 %v8534
          %v9787 = vpop.f32.mrf.mxu0
          %v9788 = vadd.f32 %v9619, %v9787
          %v9789 = vpop.f32.mrf.mxu0
          %v9790 = vadd.f32 %v9621, %v9789
          %9791 = vmatmul.bf16.gmra.mxu0 %v8543
          %v9792 = vpop.f32.mrf.mxu0
          %v9793 = vadd.f32 %v9624, %v9792
          %v9794 = vpop.f32.mrf.mxu0
          %v9795 = vadd.f32 %v9626, %v9794
          %9796 = vmatmul.bf16.gmra.mxu0 %v8552
          %v9797 = vpop.f32.mrf.mxu0
          %v9798 = vadd.f32 %v9629, %v9797
          %v9799 = vpop.f32.mrf.mxu0
          %v9800 = vadd.f32 %v9631, %v9799
          %9801 = vmatmul.bf16.gmra.mxu0 %v8561
          %v9802 = vpop.f32.mrf.mxu0
          %v9803 = vadd.f32 %v9634, %v9802
          %v9804 = vpop.f32.mrf.mxu0
          %v9805 = vadd.f32 %v9636, %v9804
          %9806 = vmatmul.bf16.gmra.mxu0 %v8570
          %v9807 = vpop.f32.mrf.mxu0
          %v9808 = vadd.f32 %v9639, %v9807
          %v9809 = vpop.f32.mrf.mxu0
          %v9810 = vadd.f32 %v9641, %v9809
          %9811 = vmatmul.bf16.gmra.mxu0 %v8579
          %v9812 = vpop.f32.mrf.mxu0
          %v9813 = vadd.f32 %v9644, %v9812
          %v9814 = vpop.f32.mrf.mxu0
          %v9815 = vadd.f32 %v9646, %v9814
          %9816 = vmatmul.bf16.gmra.mxu0 %v8588
          %v9817 = vpop.f32.mrf.mxu0
          %v9818 = vadd.f32 %v9649, %v9817
          %v9819 = vpop.f32.mrf.mxu0
          %v9820 = vadd.f32 %v9651, %v9819
          %9821 = vdwg.mxu0
          %9822 = vmatpush.bf16.msra.mxu0 %v9202
          %9823 = vmatpush.bf16.msra.mxu0 %v9201
          %9824 = vmatpush.bf16.msra.mxu0 %v9200
          %9825 = vmatpush.bf16.msra.mxu0 %v9199
          %9826 = vmatpush.bf16.msra.mxu0 %v9198
          %9827 = vmatpush.bf16.msra.mxu0 %v9197
          %9828 = vmatpush.bf16.msra.mxu0 %v9196
          %9829 = vmatpush.bf16.msra.mxu0 %v9195
          %9830 = vmatmul.bf16.gmra.mxu0 %v8310
          %v9831 = vpop.f32.mrf.mxu0
          %v9832 = vadd.f32 %v9663, %v9831
          %v9833 = vpop.f32.mrf.mxu0
          %v9834 = vadd.f32 %v9665, %v9833
          %9835 = vmatmul.bf16.gmra.mxu0 %v8319
          %v9836 = vpop.f32.mrf.mxu0
          %v9837 = vadd.f32 %v9668, %v9836
          %v9838 = vpop.f32.mrf.mxu0
          %v9839 = vadd.f32 %v9670, %v9838
          %9840 = vmatmul.bf16.gmra.mxu0 %v8328
          %v9841 = vpop.f32.mrf.mxu0
          %v9842 = vadd.f32 %v9673, %v9841
          %v9843 = vpop.f32.mrf.mxu0
          %v9844 = vadd.f32 %v9675, %v9843
          %9845 = vmatmul.bf16.gmra.mxu0 %v8337
          %v9846 = vpop.f32.mrf.mxu0
          %v9847 = vadd.f32 %v9678, %v9846
          %v9848 = vpop.f32.mrf.mxu0
          %v9849 = vadd.f32 %v9680, %v9848
          %9850 = vmatmul.bf16.gmra.mxu0 %v8346
          %v9851 = vpop.f32.mrf.mxu0
          %v9852 = vadd.f32 %v9683, %v9851
          %v9853 = vpop.f32.mrf.mxu0
          %v9854 = vadd.f32 %v9685, %v9853
          %9855 = vmatmul.bf16.gmra.mxu0 %v8355
          %v9856 = vpop.f32.mrf.mxu0
          %v9857 = vadd.f32 %v9688, %v9856
          %v9858 = vpop.f32.mrf.mxu0
          %v9859 = vadd.f32 %v9690, %v9858
          %9860 = vmatmul.bf16.gmra.mxu0 %v8364
          %v9861 = vpop.f32.mrf.mxu0
          %v9862 = vadd.f32 %v9693, %v9861
          %v9863 = vpop.f32.mrf.mxu0
          %v9864 = vadd.f32 %v9695, %v9863
          %9865 = vmatmul.bf16.gmra.mxu0 %v8373
          %v9866 = vpop.f32.mrf.mxu0
          %v9867 = vadd.f32 %v9698, %v9866
          %v9868 = vpop.f32.mrf.mxu0
          %v9869 = vadd.f32 %v9700, %v9868
          %9870 = vmatmul.bf16.gmra.mxu0 %v8382
          %v9871 = vpop.f32.mrf.mxu0
          %v9872 = vadd.f32 %v9703, %v9871
          %v9873 = vpop.f32.mrf.mxu0
          %v9874 = vadd.f32 %v9705, %v9873
          %9875 = vmatmul.bf16.gmra.mxu0 %v8391
          %v9876 = vpop.f32.mrf.mxu0
          %v9877 = vadd.f32 %v9708, %v9876
          %v9878 = vpop.f32.mrf.mxu0
          %v9879 = vadd.f32 %v9710, %v9878
          %9880 = vmatmul.bf16.gmra.mxu0 %v8400
          %v9881 = vpop.f32.mrf.mxu0
          %v9882 = vadd.f32 %v9713, %v9881
          %v9883 = vpop.f32.mrf.mxu0
          %v9884 = vadd.f32 %v9715, %v9883
          %9885 = vmatmul.bf16.gmra.mxu0 %v8409
          %v9886 = vpop.f32.mrf.mxu0
          %v9887 = vadd.f32 %v9718, %v9886
          %v9888 = vpop.f32.mrf.mxu0
          %v9889 = vadd.f32 %v9720, %v9888
          %9890 = vmatmul.bf16.gmra.mxu0 %v8418
          %v9891 = vpop.f32.mrf.mxu0
          %v9892 = vadd.f32 %v9723, %v9891
          %v9893 = vpop.f32.mrf.mxu0
          %v9894 = vadd.f32 %v9725, %v9893
          %9895 = vmatmul.bf16.gmra.mxu0 %v8427
          %v9896 = vpop.f32.mrf.mxu0
          %v9897 = vadd.f32 %v9728, %v9896
          %v9898 = vpop.f32.mrf.mxu0
          %v9899 = vadd.f32 %v9730, %v9898
          %9900 = vmatmul.bf16.gmra.mxu0 %v8436
          %v9901 = vpop.f32.mrf.mxu0
          %v9902 = vadd.f32 %v9733, %v9901
          %v9903 = vpop.f32.mrf.mxu0
          %v9904 = vadd.f32 %v9735, %v9903
          %9905 = vmatmul.bf16.gmra.mxu0 %v8445
          %v9906 = vpop.f32.mrf.mxu0
          %v9907 = vadd.f32 %v9738, %v9906
          %v9908 = vpop.f32.mrf.mxu0
          %v9909 = vadd.f32 %v9740, %v9908
          %9910 = vmatmul.bf16.gmra.mxu0 %v8454
          %v9911 = vpop.f32.mrf.mxu0
          %v9912 = vadd.f32 %v9743, %v9911
          %v9913 = vpop.f32.mrf.mxu0
          %v9914 = vadd.f32 %v9745, %v9913
          %9915 = vmatmul.bf16.gmra.mxu0 %v8463
          %v9916 = vpop.f32.mrf.mxu0
          %v9917 = vadd.f32 %v9748, %v9916
          %v9918 = vpop.f32.mrf.mxu0
          %v9919 = vadd.f32 %v9750, %v9918
          %9920 = vmatmul.bf16.gmra.mxu0 %v8472
          %v9921 = vpop.f32.mrf.mxu0
          %v9922 = vadd.f32 %v9753, %v9921
          %v9923 = vpop.f32.mrf.mxu0
          %v9924 = vadd.f32 %v9755, %v9923
          %9925 = vmatmul.bf16.gmra.mxu0 %v8481
          %v9926 = vpop.f32.mrf.mxu0
          %v9927 = vadd.f32 %v9758, %v9926
          %v9928 = vpop.f32.mrf.mxu0
          %v9929 = vadd.f32 %v9760, %v9928
          %9930 = vmatmul.bf16.gmra.mxu0 %v8490
          %v9931 = vpop.f32.mrf.mxu0
          %v9932 = vadd.f32 %v9763, %v9931
          %v9933 = vpop.f32.mrf.mxu0
          %v9934 = vadd.f32 %v9765, %v9933
          %9935 = vmatmul.bf16.gmra.mxu0 %v8499
          %v9936 = vpop.f32.mrf.mxu0
          %v9937 = vadd.f32 %v9768, %v9936
          %v9938 = vpop.f32.mrf.mxu0
          %v9939 = vadd.f32 %v9770, %v9938
          %9940 = vmatmul.bf16.gmra.mxu0 %v8508
          %v9941 = vpop.f32.mrf.mxu0
          %v9942 = vadd.f32 %v9773, %v9941
          %v9943 = vpop.f32.mrf.mxu0
          %v9944 = vadd.f32 %v9775, %v9943
          %9945 = vmatmul.bf16.gmra.mxu0 %v8517
          %v9946 = vpop.f32.mrf.mxu0
          %v9947 = vadd.f32 %v9778, %v9946
          %v9948 = vpop.f32.mrf.mxu0
          %v9949 = vadd.f32 %v9780, %v9948
          %9950 = vmatmul.bf16.gmra.mxu0 %v8526
          %v9951 = vpop.f32.mrf.mxu0
          %v9952 = vadd.f32 %v9783, %v9951
          %v9953 = vpop.f32.mrf.mxu0
          %v9954 = vadd.f32 %v9785, %v9953
          %9955 = vmatmul.bf16.gmra.mxu0 %v8535
          %v9956 = vpop.f32.mrf.mxu0
          %v9957 = vadd.f32 %v9788, %v9956
          %v9958 = vpop.f32.mrf.mxu0
          %v9959 = vadd.f32 %v9790, %v9958
          %9960 = vmatmul.bf16.gmra.mxu0 %v8544
          %v9961 = vpop.f32.mrf.mxu0
          %v9962 = vadd.f32 %v9793, %v9961
          %v9963 = vpop.f32.mrf.mxu0
          %v9964 = vadd.f32 %v9795, %v9963
          %9965 = vmatmul.bf16.gmra.mxu0 %v8553
          %v9966 = vpop.f32.mrf.mxu0
          %v9967 = vadd.f32 %v9798, %v9966
          %v9968 = vpop.f32.mrf.mxu0
          %v9969 = vadd.f32 %v9800, %v9968
          %9970 = vmatmul.bf16.gmra.mxu0 %v8562
          %v9971 = vpop.f32.mrf.mxu0
          %v9972 = vadd.f32 %v9803, %v9971
          %v9973 = vpop.f32.mrf.mxu0
          %v9974 = vadd.f32 %v9805, %v9973
          %9975 = vmatmul.bf16.gmra.mxu0 %v8571
          %v9976 = vpop.f32.mrf.mxu0
          %v9977 = vadd.f32 %v9808, %v9976
          %v9978 = vpop.f32.mrf.mxu0
          %v9979 = vadd.f32 %v9810, %v9978
          %9980 = vmatmul.bf16.gmra.mxu0 %v8580
          %v9981 = vpop.f32.mrf.mxu0
          %v9982 = vadd.f32 %v9813, %v9981
          %v9983 = vpop.f32.mrf.mxu0
          %v9984 = vadd.f32 %v9815, %v9983
          %9985 = vmatmul.bf16.gmra.mxu0 %v8589
          %v9986 = vpop.f32.mrf.mxu0
          %v9987 = vadd.f32 %v9818, %v9986
          %v9988 = vpop.f32.mrf.mxu0
          %v9989 = vadd.f32 %v9820, %v9988
          %9990 = vdwg.mxu0
          %9991 = vmatpush.bf16.msra.mxu0 %v9210
          %9992 = vmatpush.bf16.msra.mxu0 %v9209
          %9993 = vmatpush.bf16.msra.mxu0 %v9208
          %9994 = vmatpush.bf16.msra.mxu0 %v9207
          %9995 = vmatpush.bf16.msra.mxu0 %v9206
          %9996 = vmatpush.bf16.msra.mxu0 %v9205
          %9997 = vmatpush.bf16.msra.mxu0 %v9204
          %9998 = vmatpush.bf16.msra.mxu0 %v9203
          %9999 = vmatmul.bf16.gmra.mxu0 %v8311
          %v10000 = vpop.f32.mrf.mxu0
          %v10001 = vadd.f32 %v9832, %v10000
          %v10002 = vpop.f32.mrf.mxu0
          %v10003 = vadd.f32 %v9834, %v10002
          %10004 = vmatmul.bf16.gmra.mxu0 %v8320
          %v10005 = vpop.f32.mrf.mxu0
          %v10006 = vadd.f32 %v9837, %v10005
          %v10007 = vpop.f32.mrf.mxu0
          %v10008 = vadd.f32 %v9839, %v10007
          %10009 = vmatmul.bf16.gmra.mxu0 %v8329
          %v10010 = vpop.f32.mrf.mxu0
          %v10011 = vadd.f32 %v9842, %v10010
          %v10012 = vpop.f32.mrf.mxu0
          %v10013 = vadd.f32 %v9844, %v10012
          %10014 = vmatmul.bf16.gmra.mxu0 %v8338
          %v10015 = vpop.f32.mrf.mxu0
          %v10016 = vadd.f32 %v9847, %v10015
          %v10017 = vpop.f32.mrf.mxu0
          %v10018 = vadd.f32 %v9849, %v10017
          %10019 = vmatmul.bf16.gmra.mxu0 %v8347
          %v10020 = vpop.f32.mrf.mxu0
          %v10021 = vadd.f32 %v9852, %v10020
          %v10022 = vpop.f32.mrf.mxu0
          %v10023 = vadd.f32 %v9854, %v10022
          %10024 = vmatmul.bf16.gmra.mxu0 %v8356
          %v10025 = vpop.f32.mrf.mxu0
          %v10026 = vadd.f32 %v9857, %v10025
          %v10027 = vpop.f32.mrf.mxu0
          %v10028 = vadd.f32 %v9859, %v10027
          %10029 = vmatmul.bf16.gmra.mxu0 %v8365
          %v10030 = vpop.f32.mrf.mxu0
          %v10031 = vadd.f32 %v9862, %v10030
          %v10032 = vpop.f32.mrf.mxu0
          %v10033 = vadd.f32 %v9864, %v10032
          %10034 = vmatmul.bf16.gmra.mxu0 %v8374
          %v10035 = vpop.f32.mrf.mxu0
          %v10036 = vadd.f32 %v9867, %v10035
          %v10037 = vpop.f32.mrf.mxu0
          %v10038 = vadd.f32 %v9869, %v10037
          %10039 = vmatmul.bf16.gmra.mxu0 %v8383
          %v10040 = vpop.f32.mrf.mxu0
          %v10041 = vadd.f32 %v9872, %v10040
          %v10042 = vpop.f32.mrf.mxu0
          %v10043 = vadd.f32 %v9874, %v10042
          %10044 = vmatmul.bf16.gmra.mxu0 %v8392
          %v10045 = vpop.f32.mrf.mxu0
          %v10046 = vadd.f32 %v9877, %v10045
          %v10047 = vpop.f32.mrf.mxu0
          %v10048 = vadd.f32 %v9879, %v10047
          %10049 = vmatmul.bf16.gmra.mxu0 %v8401
          %v10050 = vpop.f32.mrf.mxu0
          %v10051 = vadd.f32 %v9882, %v10050
          %v10052 = vpop.f32.mrf.mxu0
          %v10053 = vadd.f32 %v9884, %v10052
          %10054 = vmatmul.bf16.gmra.mxu0 %v8410
          %v10055 = vpop.f32.mrf.mxu0
          %v10056 = vadd.f32 %v9887, %v10055
          %v10057 = vpop.f32.mrf.mxu0
          %v10058 = vadd.f32 %v9889, %v10057
          %10059 = vmatmul.bf16.gmra.mxu0 %v8419
          %v10060 = vpop.f32.mrf.mxu0
          %v10061 = vadd.f32 %v9892, %v10060
          %v10062 = vpop.f32.mrf.mxu0
          %v10063 = vadd.f32 %v9894, %v10062
          %10064 = vmatmul.bf16.gmra.mxu0 %v8428
          %v10065 = vpop.f32.mrf.mxu0
          %v10066 = vadd.f32 %v9897, %v10065
          %v10067 = vpop.f32.mrf.mxu0
          %v10068 = vadd.f32 %v9899, %v10067
          %10069 = vmatmul.bf16.gmra.mxu0 %v8437
          %v10070 = vpop.f32.mrf.mxu0
          %v10071 = vadd.f32 %v9902, %v10070
          %v10072 = vpop.f32.mrf.mxu0
          %v10073 = vadd.f32 %v9904, %v10072
          %10074 = vmatmul.bf16.gmra.mxu0 %v8446
          %v10075 = vpop.f32.mrf.mxu0
          %v10076 = vadd.f32 %v9907, %v10075
          %v10077 = vpop.f32.mrf.mxu0
          %v10078 = vadd.f32 %v9909, %v10077
          %10079 = vmatmul.bf16.gmra.mxu0 %v8455
          %v10080 = vpop.f32.mrf.mxu0
          %v10081 = vadd.f32 %v9912, %v10080
          %v10082 = vpop.f32.mrf.mxu0
          %v10083 = vadd.f32 %v9914, %v10082
          %10084 = vmatmul.bf16.gmra.mxu0 %v8464
          %v10085 = vpop.f32.mrf.mxu0
          %v10086 = vadd.f32 %v9917, %v10085
          %v10087 = vpop.f32.mrf.mxu0
          %v10088 = vadd.f32 %v9919, %v10087
          %10089 = vmatmul.bf16.gmra.mxu0 %v8473
          %v10090 = vpop.f32.mrf.mxu0
          %v10091 = vadd.f32 %v9922, %v10090
          %v10092 = vpop.f32.mrf.mxu0
          %v10093 = vadd.f32 %v9924, %v10092
          %10094 = vmatmul.bf16.gmra.mxu0 %v8482
          %v10095 = vpop.f32.mrf.mxu0
          %v10096 = vadd.f32 %v9927, %v10095
          %v10097 = vpop.f32.mrf.mxu0
          %v10098 = vadd.f32 %v9929, %v10097
          %10099 = vmatmul.bf16.gmra.mxu0 %v8491
          %v10100 = vpop.f32.mrf.mxu0
          %v10101 = vadd.f32 %v9932, %v10100
          %v10102 = vpop.f32.mrf.mxu0
          %v10103 = vadd.f32 %v9934, %v10102
          %10104 = vmatmul.bf16.gmra.mxu0 %v8500
          %v10105 = vpop.f32.mrf.mxu0
          %v10106 = vadd.f32 %v9937, %v10105
          %v10107 = vpop.f32.mrf.mxu0
          %v10108 = vadd.f32 %v9939, %v10107
          %10109 = vmatmul.bf16.gmra.mxu0 %v8509
          %v10110 = vpop.f32.mrf.mxu0
          %v10111 = vadd.f32 %v9942, %v10110
          %v10112 = vpop.f32.mrf.mxu0
          %v10113 = vadd.f32 %v9944, %v10112
          %10114 = vmatmul.bf16.gmra.mxu0 %v8518
          %v10115 = vpop.f32.mrf.mxu0
          %v10116 = vadd.f32 %v9947, %v10115
          %v10117 = vpop.f32.mrf.mxu0
          %v10118 = vadd.f32 %v9949, %v10117
          %10119 = vmatmul.bf16.gmra.mxu0 %v8527
          %v10120 = vpop.f32.mrf.mxu0
          %v10121 = vadd.f32 %v9952, %v10120
          %v10122 = vpop.f32.mrf.mxu0
          %v10123 = vadd.f32 %v9954, %v10122
          %10124 = vmatmul.bf16.gmra.mxu0 %v8536
          %v10125 = vpop.f32.mrf.mxu0
          %v10126 = vadd.f32 %v9957, %v10125
          %v10127 = vpop.f32.mrf.mxu0
          %v10128 = vadd.f32 %v9959, %v10127
          %10129 = vmatmul.bf16.gmra.mxu0 %v8545
          %v10130 = vpop.f32.mrf.mxu0
          %v10131 = vadd.f32 %v9962, %v10130
          %v10132 = vpop.f32.mrf.mxu0
          %v10133 = vadd.f32 %v9964, %v10132
          %10134 = vmatmul.bf16.gmra.mxu0 %v8554
          %v10135 = vpop.f32.mrf.mxu0
          %v10136 = vadd.f32 %v9967, %v10135
          %v10137 = vpop.f32.mrf.mxu0
          %v10138 = vadd.f32 %v9969, %v10137
          %10139 = vmatmul.bf16.gmra.mxu0 %v8563
          %v10140 = vpop.f32.mrf.mxu0
          %v10141 = vadd.f32 %v9972, %v10140
          %v10142 = vpop.f32.mrf.mxu0
          %v10143 = vadd.f32 %v9974, %v10142
          %10144 = vmatmul.bf16.gmra.mxu0 %v8572
          %v10145 = vpop.f32.mrf.mxu0
          %v10146 = vadd.f32 %v9977, %v10145
          %v10147 = vpop.f32.mrf.mxu0
          %v10148 = vadd.f32 %v9979, %v10147
          %10149 = vmatmul.bf16.gmra.mxu0 %v8581
          %v10150 = vpop.f32.mrf.mxu0
          %v10151 = vadd.f32 %v9982, %v10150
          %v10152 = vpop.f32.mrf.mxu0
          %v10153 = vadd.f32 %v9984, %v10152
          %10154 = vmatmul.bf16.gmra.mxu0 %v8590
          %v10155 = vpop.f32.mrf.mxu0
          %v10156 = vadd.f32 %v9987, %v10155
          %v10157 = vpop.f32.mrf.mxu0
          %v10158 = vadd.f32 %v9989, %v10157
          %10159 = vdwg.mxu0
          %10160 = vmatpush.bf16.msra.mxu0 %v9218
          %10161 = vmatpush.bf16.msra.mxu0 %v9217
          %10162 = vmatpush.bf16.msra.mxu0 %v9216
          %10163 = vmatpush.bf16.msra.mxu0 %v9215
          %10164 = vmatpush.bf16.msra.mxu0 %v9214
          %10165 = vmatpush.bf16.msra.mxu0 %v9213
          %10166 = vmatpush.bf16.msra.mxu0 %v9212
          %10167 = vmatpush.bf16.msra.mxu0 %v9211
          %10168 = vmatmul.bf16.gmra.mxu0 %v8312
          %v10169 = vpop.f32.mrf.mxu0
          %v10170 = vadd.f32 %v10001, %v10169
          %v10171 = vpop.f32.mrf.mxu0
          %v10172 = vadd.f32 %v10003, %v10171
          %10173 = vmatmul.bf16.gmra.mxu0 %v8321
          %v10174 = vpop.f32.mrf.mxu0
          %v10175 = vadd.f32 %v10006, %v10174
          %v10176 = vpop.f32.mrf.mxu0
          %v10177 = vadd.f32 %v10008, %v10176
          %10178 = vmatmul.bf16.gmra.mxu0 %v8330
          %v10179 = vpop.f32.mrf.mxu0
          %v10180 = vadd.f32 %v10011, %v10179
          %v10181 = vpop.f32.mrf.mxu0
          %v10182 = vadd.f32 %v10013, %v10181
          %10183 = vmatmul.bf16.gmra.mxu0 %v8339
          %v10184 = vpop.f32.mrf.mxu0
          %v10185 = vadd.f32 %v10016, %v10184
          %v10186 = vpop.f32.mrf.mxu0
          %v10187 = vadd.f32 %v10018, %v10186
          %10188 = vmatmul.bf16.gmra.mxu0 %v8348
          %v10189 = vpop.f32.mrf.mxu0
          %v10190 = vadd.f32 %v10021, %v10189
          %v10191 = vpop.f32.mrf.mxu0
          %v10192 = vadd.f32 %v10023, %v10191
          %10193 = vmatmul.bf16.gmra.mxu0 %v8357
          %v10194 = vpop.f32.mrf.mxu0
          %v10195 = vadd.f32 %v10026, %v10194
          %v10196 = vpop.f32.mrf.mxu0
          %v10197 = vadd.f32 %v10028, %v10196
          %10198 = vmatmul.bf16.gmra.mxu0 %v8366
          %v10199 = vpop.f32.mrf.mxu0
          %v10200 = vadd.f32 %v10031, %v10199
          %v10201 = vpop.f32.mrf.mxu0
          %v10202 = vadd.f32 %v10033, %v10201
          %10203 = vmatmul.bf16.gmra.mxu0 %v8375
          %v10204 = vpop.f32.mrf.mxu0
          %v10205 = vadd.f32 %v10036, %v10204
          %v10206 = vpop.f32.mrf.mxu0
          %v10207 = vadd.f32 %v10038, %v10206
          %10208 = vmatmul.bf16.gmra.mxu0 %v8384
          %v10209 = vpop.f32.mrf.mxu0
          %v10210 = vadd.f32 %v10041, %v10209
          %v10211 = vpop.f32.mrf.mxu0
          %v10212 = vadd.f32 %v10043, %v10211
          %10213 = vmatmul.bf16.gmra.mxu0 %v8393
          %v10214 = vpop.f32.mrf.mxu0
          %v10215 = vadd.f32 %v10046, %v10214
          %v10216 = vpop.f32.mrf.mxu0
          %v10217 = vadd.f32 %v10048, %v10216
          %10218 = vmatmul.bf16.gmra.mxu0 %v8402
          %v10219 = vpop.f32.mrf.mxu0
          %v10220 = vadd.f32 %v10051, %v10219
          %v10221 = vpop.f32.mrf.mxu0
          %v10222 = vadd.f32 %v10053, %v10221
          %10223 = vmatmul.bf16.gmra.mxu0 %v8411
          %v10224 = vpop.f32.mrf.mxu0
          %v10225 = vadd.f32 %v10056, %v10224
          %v10226 = vpop.f32.mrf.mxu0
          %v10227 = vadd.f32 %v10058, %v10226
          %10228 = vmatmul.bf16.gmra.mxu0 %v8420
          %v10229 = vpop.f32.mrf.mxu0
          %v10230 = vadd.f32 %v10061, %v10229
          %v10231 = vpop.f32.mrf.mxu0
          %v10232 = vadd.f32 %v10063, %v10231
          %10233 = vmatmul.bf16.gmra.mxu0 %v8429
          %v10234 = vpop.f32.mrf.mxu0
          %v10235 = vadd.f32 %v10066, %v10234
          %v10236 = vpop.f32.mrf.mxu0
          %v10237 = vadd.f32 %v10068, %v10236
          %10238 = vmatmul.bf16.gmra.mxu0 %v8438
          %v10239 = vpop.f32.mrf.mxu0
          %v10240 = vadd.f32 %v10071, %v10239
          %v10241 = vpop.f32.mrf.mxu0
          %v10242 = vadd.f32 %v10073, %v10241
          %10243 = vmatmul.bf16.gmra.mxu0 %v8447
          %v10244 = vpop.f32.mrf.mxu0
          %v10245 = vadd.f32 %v10076, %v10244
          %v10246 = vpop.f32.mrf.mxu0
          %v10247 = vadd.f32 %v10078, %v10246
          %10248 = vmatmul.bf16.gmra.mxu0 %v8456
          %v10249 = vpop.f32.mrf.mxu0
          %v10250 = vadd.f32 %v10081, %v10249
          %v10251 = vpop.f32.mrf.mxu0
          %v10252 = vadd.f32 %v10083, %v10251
          %10253 = vmatmul.bf16.gmra.mxu0 %v8465
          %v10254 = vpop.f32.mrf.mxu0
          %v10255 = vadd.f32 %v10086, %v10254
          %v10256 = vpop.f32.mrf.mxu0
          %v10257 = vadd.f32 %v10088, %v10256
          %10258 = vmatmul.bf16.gmra.mxu0 %v8474
          %v10259 = vpop.f32.mrf.mxu0
          %v10260 = vadd.f32 %v10091, %v10259
          %v10261 = vpop.f32.mrf.mxu0
          %v10262 = vadd.f32 %v10093, %v10261
          %10263 = vmatmul.bf16.gmra.mxu0 %v8483
          %v10264 = vpop.f32.mrf.mxu0
          %v10265 = vadd.f32 %v10096, %v10264
          %v10266 = vpop.f32.mrf.mxu0
          %v10267 = vadd.f32 %v10098, %v10266
          %10268 = vmatmul.bf16.gmra.mxu0 %v8492
          %v10269 = vpop.f32.mrf.mxu0
          %v10270 = vadd.f32 %v10101, %v10269
          %v10271 = vpop.f32.mrf.mxu0
          %v10272 = vadd.f32 %v10103, %v10271
          %10273 = vmatmul.bf16.gmra.mxu0 %v8501
          %v10274 = vpop.f32.mrf.mxu0
          %v10275 = vadd.f32 %v10106, %v10274
          %v10276 = vpop.f32.mrf.mxu0
          %v10277 = vadd.f32 %v10108, %v10276
          %10278 = vmatmul.bf16.gmra.mxu0 %v8510
          %v10279 = vpop.f32.mrf.mxu0
          %v10280 = vadd.f32 %v10111, %v10279
          %v10281 = vpop.f32.mrf.mxu0
          %v10282 = vadd.f32 %v10113, %v10281
          %10283 = vmatmul.bf16.gmra.mxu0 %v8519
          %v10284 = vpop.f32.mrf.mxu0
          %v10285 = vadd.f32 %v10116, %v10284
          %v10286 = vpop.f32.mrf.mxu0
          %v10287 = vadd.f32 %v10118, %v10286
          %10288 = vmatmul.bf16.gmra.mxu0 %v8528
          %v10289 = vpop.f32.mrf.mxu0
          %v10290 = vadd.f32 %v10121, %v10289
          %v10291 = vpop.f32.mrf.mxu0
          %v10292 = vadd.f32 %v10123, %v10291
          %10293 = vmatmul.bf16.gmra.mxu0 %v8537
          %v10294 = vpop.f32.mrf.mxu0
          %v10295 = vadd.f32 %v10126, %v10294
          %v10296 = vpop.f32.mrf.mxu0
          %v10297 = vadd.f32 %v10128, %v10296
          %10298 = vmatmul.bf16.gmra.mxu0 %v8546
          %v10299 = vpop.f32.mrf.mxu0
          %v10300 = vadd.f32 %v10131, %v10299
          %v10301 = vpop.f32.mrf.mxu0
          %v10302 = vadd.f32 %v10133, %v10301
          %10303 = vmatmul.bf16.gmra.mxu0 %v8555
          %v10304 = vpop.f32.mrf.mxu0
          %v10305 = vadd.f32 %v10136, %v10304
          %v10306 = vpop.f32.mrf.mxu0
          %v10307 = vadd.f32 %v10138, %v10306
          %10308 = vmatmul.bf16.gmra.mxu0 %v8564
          %v10309 = vpop.f32.mrf.mxu0
          %v10310 = vadd.f32 %v10141, %v10309
          %v10311 = vpop.f32.mrf.mxu0
          %v10312 = vadd.f32 %v10143, %v10311
          %10313 = vmatmul.bf16.gmra.mxu0 %v8573
          %v10314 = vpop.f32.mrf.mxu0
          %v10315 = vadd.f32 %v10146, %v10314
          %v10316 = vpop.f32.mrf.mxu0
          %v10317 = vadd.f32 %v10148, %v10316
          %10318 = vmatmul.bf16.gmra.mxu0 %v8582
          %v10319 = vpop.f32.mrf.mxu0
          %v10320 = vadd.f32 %v10151, %v10319
          %v10321 = vpop.f32.mrf.mxu0
          %v10322 = vadd.f32 %v10153, %v10321
          %10323 = vmatmul.bf16.gmra.mxu0 %v8591
          %v10324 = vpop.f32.mrf.mxu0
          %v10325 = vadd.f32 %v10156, %v10324
          %v10326 = vpop.f32.mrf.mxu0
          %v10327 = vadd.f32 %v10158, %v10326
          %10328 = vdwg.mxu0
          %10329 = vmatpush.bf16.msra.mxu0 %v9226
          %10330 = vmatpush.bf16.msra.mxu0 %v9225
          %10331 = vmatpush.bf16.msra.mxu0 %v9224
          %10332 = vmatpush.bf16.msra.mxu0 %v9223
          %10333 = vmatpush.bf16.msra.mxu0 %v9222
          %10334 = vmatpush.bf16.msra.mxu0 %v9221
          %10335 = vmatpush.bf16.msra.mxu0 %v9220
          %10336 = vmatpush.bf16.msra.mxu0 %v9219
          %10337 = vmatmul.bf16.gmra.mxu0 %v8313
          %v10338 = vpop.f32.mrf.mxu0
          %v10339 = vadd.f32 %v10170, %v10338
          %v10340 = vpop.f32.mrf.mxu0
          %v10341 = vadd.f32 %v10172, %v10340
          %10342 = vmatmul.bf16.gmra.mxu0 %v8322
          %v10343 = vpop.f32.mrf.mxu0
          %v10344 = vadd.f32 %v10175, %v10343
          %v10345 = vpop.f32.mrf.mxu0
          %v10346 = vadd.f32 %v10177, %v10345
          %10347 = vmatmul.bf16.gmra.mxu0 %v8331
          %v10348 = vpop.f32.mrf.mxu0
          %v10349 = vadd.f32 %v10180, %v10348
          %v10350 = vpop.f32.mrf.mxu0
          %v10351 = vadd.f32 %v10182, %v10350
          %10352 = vmatmul.bf16.gmra.mxu0 %v8340
          %v10353 = vpop.f32.mrf.mxu0
          %v10354 = vadd.f32 %v10185, %v10353
          %v10355 = vpop.f32.mrf.mxu0
          %v10356 = vadd.f32 %v10187, %v10355
          %10357 = vmatmul.bf16.gmra.mxu0 %v8349
          %v10358 = vpop.f32.mrf.mxu0
          %v10359 = vadd.f32 %v10190, %v10358
          %v10360 = vpop.f32.mrf.mxu0
          %v10361 = vadd.f32 %v10192, %v10360
          %10362 = vmatmul.bf16.gmra.mxu0 %v8358
          %v10363 = vpop.f32.mrf.mxu0
          %v10364 = vadd.f32 %v10195, %v10363
          %v10365 = vpop.f32.mrf.mxu0
          %v10366 = vadd.f32 %v10197, %v10365
          %10367 = vmatmul.bf16.gmra.mxu0 %v8367
          %v10368 = vpop.f32.mrf.mxu0
          %v10369 = vadd.f32 %v10200, %v10368
          %v10370 = vpop.f32.mrf.mxu0
          %v10371 = vadd.f32 %v10202, %v10370
          %10372 = vmatmul.bf16.gmra.mxu0 %v8376
          %v10373 = vpop.f32.mrf.mxu0
          %v10374 = vadd.f32 %v10205, %v10373
          %v10375 = vpop.f32.mrf.mxu0
          %v10376 = vadd.f32 %v10207, %v10375
          %10377 = vmatmul.bf16.gmra.mxu0 %v8385
          %v10378 = vpop.f32.mrf.mxu0
          %v10379 = vadd.f32 %v10210, %v10378
          %v10380 = vpop.f32.mrf.mxu0
          %v10381 = vadd.f32 %v10212, %v10380
          %10382 = vmatmul.bf16.gmra.mxu0 %v8394
          %v10383 = vpop.f32.mrf.mxu0
          %v10384 = vadd.f32 %v10215, %v10383
          %v10385 = vpop.f32.mrf.mxu0
          %v10386 = vadd.f32 %v10217, %v10385
          %10387 = vmatmul.bf16.gmra.mxu0 %v8403
          %v10388 = vpop.f32.mrf.mxu0
          %v10389 = vadd.f32 %v10220, %v10388
          %v10390 = vpop.f32.mrf.mxu0
          %v10391 = vadd.f32 %v10222, %v10390
          %10392 = vmatmul.bf16.gmra.mxu0 %v8412
          %v10393 = vpop.f32.mrf.mxu0
          %v10394 = vadd.f32 %v10225, %v10393
          %v10395 = vpop.f32.mrf.mxu0
          %v10396 = vadd.f32 %v10227, %v10395
          %10397 = vmatmul.bf16.gmra.mxu0 %v8421
          %v10398 = vpop.f32.mrf.mxu0
          %v10399 = vadd.f32 %v10230, %v10398
          %v10400 = vpop.f32.mrf.mxu0
          %v10401 = vadd.f32 %v10232, %v10400
          %10402 = vmatmul.bf16.gmra.mxu0 %v8430
          %v10403 = vpop.f32.mrf.mxu0
          %v10404 = vadd.f32 %v10235, %v10403
          %v10405 = vpop.f32.mrf.mxu0
          %v10406 = vadd.f32 %v10237, %v10405
          %10407 = vmatmul.bf16.gmra.mxu0 %v8439
          %v10408 = vpop.f32.mrf.mxu0
          %v10409 = vadd.f32 %v10240, %v10408
          %v10410 = vpop.f32.mrf.mxu0
          %v10411 = vadd.f32 %v10242, %v10410
          %10412 = vmatmul.bf16.gmra.mxu0 %v8448
          %v10413 = vpop.f32.mrf.mxu0
          %v10414 = vadd.f32 %v10245, %v10413
          %v10415 = vpop.f32.mrf.mxu0
          %v10416 = vadd.f32 %v10247, %v10415
          %10417 = vmatmul.bf16.gmra.mxu0 %v8457
          %v10418 = vpop.f32.mrf.mxu0
          %v10419 = vadd.f32 %v10250, %v10418
          %v10420 = vpop.f32.mrf.mxu0
          %v10421 = vadd.f32 %v10252, %v10420
          %10422 = vmatmul.bf16.gmra.mxu0 %v8466
          %v10423 = vpop.f32.mrf.mxu0
          %v10424 = vadd.f32 %v10255, %v10423
          %v10425 = vpop.f32.mrf.mxu0
          %v10426 = vadd.f32 %v10257, %v10425
          %10427 = vmatmul.bf16.gmra.mxu0 %v8475
          %v10428 = vpop.f32.mrf.mxu0
          %v10429 = vadd.f32 %v10260, %v10428
          %v10430 = vpop.f32.mrf.mxu0
          %v10431 = vadd.f32 %v10262, %v10430
          %10432 = vmatmul.bf16.gmra.mxu0 %v8484
          %v10433 = vpop.f32.mrf.mxu0
          %v10434 = vadd.f32 %v10265, %v10433
          %v10435 = vpop.f32.mrf.mxu0
          %v10436 = vadd.f32 %v10267, %v10435
          %10437 = vmatmul.bf16.gmra.mxu0 %v8493
          %v10438 = vpop.f32.mrf.mxu0
          %v10439 = vadd.f32 %v10270, %v10438
          %v10440 = vpop.f32.mrf.mxu0
          %v10441 = vadd.f32 %v10272, %v10440
          %10442 = vmatmul.bf16.gmra.mxu0 %v8502
          %v10443 = vpop.f32.mrf.mxu0
          %v10444 = vadd.f32 %v10275, %v10443
          %v10445 = vpop.f32.mrf.mxu0
          %v10446 = vadd.f32 %v10277, %v10445
          %10447 = vmatmul.bf16.gmra.mxu0 %v8511
          %v10448 = vpop.f32.mrf.mxu0
          %v10449 = vadd.f32 %v10280, %v10448
          %v10450 = vpop.f32.mrf.mxu0
          %v10451 = vadd.f32 %v10282, %v10450
          %10452 = vmatmul.bf16.gmra.mxu0 %v8520
          %v10453 = vpop.f32.mrf.mxu0
          %v10454 = vadd.f32 %v10285, %v10453
          %v10455 = vpop.f32.mrf.mxu0
          %v10456 = vadd.f32 %v10287, %v10455
          %10457 = vmatmul.bf16.gmra.mxu0 %v8529
          %v10458 = vpop.f32.mrf.mxu0
          %v10459 = vadd.f32 %v10290, %v10458
          %v10460 = vpop.f32.mrf.mxu0
          %v10461 = vadd.f32 %v10292, %v10460
          %10462 = vmatmul.bf16.gmra.mxu0 %v8538
          %v10463 = vpop.f32.mrf.mxu0
          %v10464 = vadd.f32 %v10295, %v10463
          %v10465 = vpop.f32.mrf.mxu0
          %v10466 = vadd.f32 %v10297, %v10465
          %10467 = vmatmul.bf16.gmra.mxu0 %v8547
          %v10468 = vpop.f32.mrf.mxu0
          %v10469 = vadd.f32 %v10300, %v10468
          %v10470 = vpop.f32.mrf.mxu0
          %v10471 = vadd.f32 %v10302, %v10470
          %10472 = vmatmul.bf16.gmra.mxu0 %v8556
          %v10473 = vpop.f32.mrf.mxu0
          %v10474 = vadd.f32 %v10305, %v10473
          %v10475 = vpop.f32.mrf.mxu0
          %v10476 = vadd.f32 %v10307, %v10475
          %10477 = vmatmul.bf16.gmra.mxu0 %v8565
          %v10478 = vpop.f32.mrf.mxu0
          %v10479 = vadd.f32 %v10310, %v10478
          %v10480 = vpop.f32.mrf.mxu0
          %v10481 = vadd.f32 %v10312, %v10480
          %10482 = vmatmul.bf16.gmra.mxu0 %v8574
          %v10483 = vpop.f32.mrf.mxu0
          %v10484 = vadd.f32 %v10315, %v10483
          %v10485 = vpop.f32.mrf.mxu0
          %v10486 = vadd.f32 %v10317, %v10485
          %10487 = vmatmul.bf16.gmra.mxu0 %v8583
          %v10488 = vpop.f32.mrf.mxu0
          %v10489 = vadd.f32 %v10320, %v10488
          %v10490 = vpop.f32.mrf.mxu0
          %v10491 = vadd.f32 %v10322, %v10490
          %10492 = vmatmul.bf16.gmra.mxu0 %v8592
          %v10493 = vpop.f32.mrf.mxu0
          %v10494 = vadd.f32 %v10325, %v10493
          %v10495 = vpop.f32.mrf.mxu0
          %v10496 = vadd.f32 %v10327, %v10495
          %10497 = vdwg.mxu0
          %10498 = vmatpush.bf16.msra.mxu0 %v9234
          %10499 = vmatpush.bf16.msra.mxu0 %v9233
          %10500 = vmatpush.bf16.msra.mxu0 %v9232
          %10501 = vmatpush.bf16.msra.mxu0 %v9231
          %10502 = vmatpush.bf16.msra.mxu0 %v9230
          %10503 = vmatpush.bf16.msra.mxu0 %v9229
          %10504 = vmatpush.bf16.msra.mxu0 %v9228
          %10505 = vmatpush.bf16.msra.mxu0 %v9227
          %10506 = vmatmul.bf16.gmra.mxu0 %v8314
          %v10507 = vpop.f32.mrf.mxu0
          %v10508 = vadd.f32 %v10339, %v10507
          %v10509 = vpop.f32.mrf.mxu0
          %v10510 = vadd.f32 %v10341, %v10509
          %10511 = vmatmul.bf16.gmra.mxu0 %v8323
          %v10512 = vpop.f32.mrf.mxu0
          %v10513 = vadd.f32 %v10344, %v10512
          %v10514 = vpop.f32.mrf.mxu0
          %v10515 = vadd.f32 %v10346, %v10514
          %10516 = vmatmul.bf16.gmra.mxu0 %v8332
          %v10517 = vpop.f32.mrf.mxu0
          %v10518 = vadd.f32 %v10349, %v10517
          %v10519 = vpop.f32.mrf.mxu0
          %v10520 = vadd.f32 %v10351, %v10519
          %10521 = vmatmul.bf16.gmra.mxu0 %v8341
          %v10522 = vpop.f32.mrf.mxu0
          %v10523 = vadd.f32 %v10354, %v10522
          %v10524 = vpop.f32.mrf.mxu0
          %v10525 = vadd.f32 %v10356, %v10524
          %10526 = vmatmul.bf16.gmra.mxu0 %v8350
          %v10527 = vpop.f32.mrf.mxu0
          %v10528 = vadd.f32 %v10359, %v10527
          %v10529 = vpop.f32.mrf.mxu0
          %v10530 = vadd.f32 %v10361, %v10529
          %10531 = vmatmul.bf16.gmra.mxu0 %v8359
          %v10532 = vpop.f32.mrf.mxu0
          %v10533 = vadd.f32 %v10364, %v10532
          %v10534 = vpop.f32.mrf.mxu0
          %v10535 = vadd.f32 %v10366, %v10534
          %10536 = vmatmul.bf16.gmra.mxu0 %v8368
          %v10537 = vpop.f32.mrf.mxu0
          %v10538 = vadd.f32 %v10369, %v10537
          %v10539 = vpop.f32.mrf.mxu0
          %v10540 = vadd.f32 %v10371, %v10539
          %10541 = vmatmul.bf16.gmra.mxu0 %v8377
          %v10542 = vpop.f32.mrf.mxu0
          %v10543 = vadd.f32 %v10374, %v10542
          %v10544 = vpop.f32.mrf.mxu0
          %v10545 = vadd.f32 %v10376, %v10544
          %10546 = vmatmul.bf16.gmra.mxu0 %v8386
          %v10547 = vpop.f32.mrf.mxu0
          %v10548 = vadd.f32 %v10379, %v10547
          %v10549 = vpop.f32.mrf.mxu0
          %v10550 = vadd.f32 %v10381, %v10549
          %10551 = vmatmul.bf16.gmra.mxu0 %v8395
          %v10552 = vpop.f32.mrf.mxu0
          %v10553 = vadd.f32 %v10384, %v10552
          %v10554 = vpop.f32.mrf.mxu0
          %v10555 = vadd.f32 %v10386, %v10554
          %10556 = vmatmul.bf16.gmra.mxu0 %v8404
          %v10557 = vpop.f32.mrf.mxu0
          %v10558 = vadd.f32 %v10389, %v10557
          %v10559 = vpop.f32.mrf.mxu0
          %v10560 = vadd.f32 %v10391, %v10559
          %10561 = vmatmul.bf16.gmra.mxu0 %v8413
          %v10562 = vpop.f32.mrf.mxu0
          %v10563 = vadd.f32 %v10394, %v10562
          %v10564 = vpop.f32.mrf.mxu0
          %v10565 = vadd.f32 %v10396, %v10564
          %10566 = vmatmul.bf16.gmra.mxu0 %v8422
          %v10567 = vpop.f32.mrf.mxu0
          %v10568 = vadd.f32 %v10399, %v10567
          %v10569 = vpop.f32.mrf.mxu0
          %v10570 = vadd.f32 %v10401, %v10569
          %10571 = vmatmul.bf16.gmra.mxu0 %v8431
          %v10572 = vpop.f32.mrf.mxu0
          %v10573 = vadd.f32 %v10404, %v10572
          %v10574 = vpop.f32.mrf.mxu0
          %v10575 = vadd.f32 %v10406, %v10574
          %10576 = vmatmul.bf16.gmra.mxu0 %v8440
          %v10577 = vpop.f32.mrf.mxu0
          %v10578 = vadd.f32 %v10409, %v10577
          %v10579 = vpop.f32.mrf.mxu0
          %v10580 = vadd.f32 %v10411, %v10579
          %10581 = vmatmul.bf16.gmra.mxu0 %v8449
          %v10582 = vpop.f32.mrf.mxu0
          %v10583 = vadd.f32 %v10414, %v10582
          %v10584 = vpop.f32.mrf.mxu0
          %v10585 = vadd.f32 %v10416, %v10584
          %10586 = vmatmul.bf16.gmra.mxu0 %v8458
          %v10587 = vpop.f32.mrf.mxu0
          %v10588 = vadd.f32 %v10419, %v10587
          %v10589 = vpop.f32.mrf.mxu0
          %v10590 = vadd.f32 %v10421, %v10589
          %10591 = vmatmul.bf16.gmra.mxu0 %v8467
          %v10592 = vpop.f32.mrf.mxu0
          %v10593 = vadd.f32 %v10424, %v10592
          %v10594 = vpop.f32.mrf.mxu0
          %v10595 = vadd.f32 %v10426, %v10594
          %10596 = vmatmul.bf16.gmra.mxu0 %v8476
          %v10597 = vpop.f32.mrf.mxu0
          %v10598 = vadd.f32 %v10429, %v10597
          %v10599 = vpop.f32.mrf.mxu0
          %v10600 = vadd.f32 %v10431, %v10599
          %10601 = vmatmul.bf16.gmra.mxu0 %v8485
          %v10602 = vpop.f32.mrf.mxu0
          %v10603 = vadd.f32 %v10434, %v10602
          %v10604 = vpop.f32.mrf.mxu0
          %v10605 = vadd.f32 %v10436, %v10604
          %10606 = vmatmul.bf16.gmra.mxu0 %v8494
          %v10607 = vpop.f32.mrf.mxu0
          %v10608 = vadd.f32 %v10439, %v10607
          %v10609 = vpop.f32.mrf.mxu0
          %v10610 = vadd.f32 %v10441, %v10609
          %10611 = vmatmul.bf16.gmra.mxu0 %v8503
          %v10612 = vpop.f32.mrf.mxu0
          %v10613 = vadd.f32 %v10444, %v10612
          %v10614 = vpop.f32.mrf.mxu0
          %v10615 = vadd.f32 %v10446, %v10614
          %10616 = vmatmul.bf16.gmra.mxu0 %v8512
          %v10617 = vpop.f32.mrf.mxu0
          %v10618 = vadd.f32 %v10449, %v10617
          %v10619 = vpop.f32.mrf.mxu0
          %v10620 = vadd.f32 %v10451, %v10619
          %10621 = vmatmul.bf16.gmra.mxu0 %v8521
          %v10622 = vpop.f32.mrf.mxu0
          %v10623 = vadd.f32 %v10454, %v10622
          %v10624 = vpop.f32.mrf.mxu0
          %v10625 = vadd.f32 %v10456, %v10624
          %10626 = vmatmul.bf16.gmra.mxu0 %v8530
          %v10627 = vpop.f32.mrf.mxu0
          %v10628 = vadd.f32 %v10459, %v10627
          %v10629 = vpop.f32.mrf.mxu0
          %v10630 = vadd.f32 %v10461, %v10629
          %10631 = vmatmul.bf16.gmra.mxu0 %v8539
          %v10632 = vpop.f32.mrf.mxu0
          %v10633 = vadd.f32 %v10464, %v10632
          %v10634 = vpop.f32.mrf.mxu0
          %v10635 = vadd.f32 %v10466, %v10634
          %10636 = vmatmul.bf16.gmra.mxu0 %v8548
          %v10637 = vpop.f32.mrf.mxu0
          %v10638 = vadd.f32 %v10469, %v10637
          %v10639 = vpop.f32.mrf.mxu0
          %v10640 = vadd.f32 %v10471, %v10639
          %10641 = vmatmul.bf16.gmra.mxu0 %v8557
          %v10642 = vpop.f32.mrf.mxu0
          %v10643 = vadd.f32 %v10474, %v10642
          %v10644 = vpop.f32.mrf.mxu0
          %v10645 = vadd.f32 %v10476, %v10644
          %10646 = vmatmul.bf16.gmra.mxu0 %v8566
          %v10647 = vpop.f32.mrf.mxu0
          %v10648 = vadd.f32 %v10479, %v10647
          %v10649 = vpop.f32.mrf.mxu0
          %v10650 = vadd.f32 %v10481, %v10649
          %10651 = vmatmul.bf16.gmra.mxu0 %v8575
          %v10652 = vpop.f32.mrf.mxu0
          %v10653 = vadd.f32 %v10484, %v10652
          %v10654 = vpop.f32.mrf.mxu0
          %v10655 = vadd.f32 %v10486, %v10654
          %10656 = vmatmul.bf16.gmra.mxu0 %v8584
          %v10657 = vpop.f32.mrf.mxu0
          %v10658 = vadd.f32 %v10489, %v10657
          %v10659 = vpop.f32.mrf.mxu0
          %v10660 = vadd.f32 %v10491, %v10659
          %10661 = vmatmul.bf16.gmra.mxu0 %v8593
          %v10662 = vpop.f32.mrf.mxu0
          %v10663 = vadd.f32 %v10494, %v10662
          %v10664 = vpop.f32.mrf.mxu0
          %v10665 = vadd.f32 %v10496, %v10664
          %10666 = vdwg.mxu0
          %10667 = vmatpush.bf16.msra.mxu0 %v9242
          %10668 = vmatpush.bf16.msra.mxu0 %v9241
          %10669 = vmatpush.bf16.msra.mxu0 %v9240
          %10670 = vmatpush.bf16.msra.mxu0 %v9239
          %10671 = vmatpush.bf16.msra.mxu0 %v9238
          %10672 = vmatpush.bf16.msra.mxu0 %v9237
          %10673 = vmatpush.bf16.msra.mxu0 %v9236
          %10674 = vmatpush.bf16.msra.mxu0 %v9235
          %10675 = vmatmul.bf16.gmra.mxu0 %v8315
          %v10676 = vpop.f32.mrf.mxu0
          %v10677 = vadd.f32 %v10508, %v10676
          %v10678 = vpop.f32.mrf.mxu0
          %v10679 = vadd.f32 %v10510, %v10678
          %10680 = vmatmul.bf16.gmra.mxu0 %v8324
          %v10681 = vpop.f32.mrf.mxu0
          %v10682 = vadd.f32 %v10513, %v10681
          %v10683 = vpop.f32.mrf.mxu0
          %v10684 = vadd.f32 %v10515, %v10683
          %10685 = vmatmul.bf16.gmra.mxu0 %v8333
          %v10686 = vpop.f32.mrf.mxu0
          %v10687 = vadd.f32 %v10518, %v10686
          %v10688 = vpop.f32.mrf.mxu0
          %v10689 = vadd.f32 %v10520, %v10688
          %10690 = vmatmul.bf16.gmra.mxu0 %v8342
          %v10691 = vpop.f32.mrf.mxu0
          %v10692 = vadd.f32 %v10523, %v10691
          %v10693 = vpop.f32.mrf.mxu0
          %v10694 = vadd.f32 %v10525, %v10693
          %10695 = vmatmul.bf16.gmra.mxu0 %v8351
          %v10696 = vpop.f32.mrf.mxu0
          %v10697 = vadd.f32 %v10528, %v10696
          %v10698 = vpop.f32.mrf.mxu0
          %v10699 = vadd.f32 %v10530, %v10698
          %10700 = vmatmul.bf16.gmra.mxu0 %v8360
          %v10701 = vpop.f32.mrf.mxu0
          %v10702 = vadd.f32 %v10533, %v10701
          %v10703 = vpop.f32.mrf.mxu0
          %v10704 = vadd.f32 %v10535, %v10703
          %10705 = vmatmul.bf16.gmra.mxu0 %v8369
          %v10706 = vpop.f32.mrf.mxu0
          %v10707 = vadd.f32 %v10538, %v10706
          %v10708 = vpop.f32.mrf.mxu0
          %v10709 = vadd.f32 %v10540, %v10708
          %10710 = vmatmul.bf16.gmra.mxu0 %v8378
          %v10711 = vpop.f32.mrf.mxu0
          %v10712 = vadd.f32 %v10543, %v10711
          %v10713 = vpop.f32.mrf.mxu0
          %v10714 = vadd.f32 %v10545, %v10713
          %10715 = vmatmul.bf16.gmra.mxu0 %v8387
          %v10716 = vpop.f32.mrf.mxu0
          %v10717 = vadd.f32 %v10548, %v10716
          %v10718 = vpop.f32.mrf.mxu0
          %v10719 = vadd.f32 %v10550, %v10718
          %10720 = vmatmul.bf16.gmra.mxu0 %v8396
          %v10721 = vpop.f32.mrf.mxu0
          %v10722 = vadd.f32 %v10553, %v10721
          %v10723 = vpop.f32.mrf.mxu0
          %v10724 = vadd.f32 %v10555, %v10723
          %10725 = vmatmul.bf16.gmra.mxu0 %v8405
          %v10726 = vpop.f32.mrf.mxu0
          %v10727 = vadd.f32 %v10558, %v10726
          %v10728 = vpop.f32.mrf.mxu0
          %v10729 = vadd.f32 %v10560, %v10728
          %10730 = vmatmul.bf16.gmra.mxu0 %v8414
          %v10731 = vpop.f32.mrf.mxu0
          %v10732 = vadd.f32 %v10563, %v10731
          %v10733 = vpop.f32.mrf.mxu0
          %v10734 = vadd.f32 %v10565, %v10733
          %10735 = vmatmul.bf16.gmra.mxu0 %v8423
          %v10736 = vpop.f32.mrf.mxu0
          %v10737 = vadd.f32 %v10568, %v10736
          %v10738 = vpop.f32.mrf.mxu0
          %v10739 = vadd.f32 %v10570, %v10738
          %10740 = vmatmul.bf16.gmra.mxu0 %v8432
          %v10741 = vpop.f32.mrf.mxu0
          %v10742 = vadd.f32 %v10573, %v10741
          %v10743 = vpop.f32.mrf.mxu0
          %v10744 = vadd.f32 %v10575, %v10743
          %10745 = vmatmul.bf16.gmra.mxu0 %v8441
          %v10746 = vpop.f32.mrf.mxu0
          %v10747 = vadd.f32 %v10578, %v10746
          %v10748 = vpop.f32.mrf.mxu0
          %v10749 = vadd.f32 %v10580, %v10748
          %10750 = vmatmul.bf16.gmra.mxu0 %v8450
          %v10751 = vpop.f32.mrf.mxu0
          %v10752 = vadd.f32 %v10583, %v10751
          %v10753 = vpop.f32.mrf.mxu0
          %v10754 = vadd.f32 %v10585, %v10753
          %10755 = vmatmul.bf16.gmra.mxu0 %v8459
          %v10756 = vpop.f32.mrf.mxu0
          %v10757 = vadd.f32 %v10588, %v10756
          %v10758 = vpop.f32.mrf.mxu0
          %v10759 = vadd.f32 %v10590, %v10758
          %10760 = vmatmul.bf16.gmra.mxu0 %v8468
          %v10761 = vpop.f32.mrf.mxu0
          %v10762 = vadd.f32 %v10593, %v10761
          %v10763 = vpop.f32.mrf.mxu0
          %v10764 = vadd.f32 %v10595, %v10763
          %10765 = vmatmul.bf16.gmra.mxu0 %v8477
          %v10766 = vpop.f32.mrf.mxu0
          %v10767 = vadd.f32 %v10598, %v10766
          %v10768 = vpop.f32.mrf.mxu0
          %v10769 = vadd.f32 %v10600, %v10768
          %10770 = vmatmul.bf16.gmra.mxu0 %v8486
          %v10771 = vpop.f32.mrf.mxu0
          %v10772 = vadd.f32 %v10603, %v10771
          %v10773 = vpop.f32.mrf.mxu0
          %v10774 = vadd.f32 %v10605, %v10773
          %10775 = vmatmul.bf16.gmra.mxu0 %v8495
          %v10776 = vpop.f32.mrf.mxu0
          %v10777 = vadd.f32 %v10608, %v10776
          %v10778 = vpop.f32.mrf.mxu0
          %v10779 = vadd.f32 %v10610, %v10778
          %10780 = vmatmul.bf16.gmra.mxu0 %v8504
          %v10781 = vpop.f32.mrf.mxu0
          %v10782 = vadd.f32 %v10613, %v10781
          %v10783 = vpop.f32.mrf.mxu0
          %v10784 = vadd.f32 %v10615, %v10783
          %10785 = vmatmul.bf16.gmra.mxu0 %v8513
          %v10786 = vpop.f32.mrf.mxu0
          %v10787 = vadd.f32 %v10618, %v10786
          %v10788 = vpop.f32.mrf.mxu0
          %v10789 = vadd.f32 %v10620, %v10788
          %10790 = vmatmul.bf16.gmra.mxu0 %v8522
          %v10791 = vpop.f32.mrf.mxu0
          %v10792 = vadd.f32 %v10623, %v10791
          %v10793 = vpop.f32.mrf.mxu0
          %v10794 = vadd.f32 %v10625, %v10793
          %10795 = vmatmul.bf16.gmra.mxu0 %v8531
          %v10796 = vpop.f32.mrf.mxu0
          %v10797 = vadd.f32 %v10628, %v10796
          %v10798 = vpop.f32.mrf.mxu0
          %v10799 = vadd.f32 %v10630, %v10798
          %10800 = vmatmul.bf16.gmra.mxu0 %v8540
          %v10801 = vpop.f32.mrf.mxu0
          %v10802 = vadd.f32 %v10633, %v10801
          %v10803 = vpop.f32.mrf.mxu0
          %v10804 = vadd.f32 %v10635, %v10803
          %10805 = vmatmul.bf16.gmra.mxu0 %v8549
          %v10806 = vpop.f32.mrf.mxu0
          %v10807 = vadd.f32 %v10638, %v10806
          %v10808 = vpop.f32.mrf.mxu0
          %v10809 = vadd.f32 %v10640, %v10808
          %10810 = vmatmul.bf16.gmra.mxu0 %v8558
          %v10811 = vpop.f32.mrf.mxu0
          %v10812 = vadd.f32 %v10643, %v10811
          %v10813 = vpop.f32.mrf.mxu0
          %v10814 = vadd.f32 %v10645, %v10813
          %10815 = vmatmul.bf16.gmra.mxu0 %v8567
          %v10816 = vpop.f32.mrf.mxu0
          %v10817 = vadd.f32 %v10648, %v10816
          %v10818 = vpop.f32.mrf.mxu0
          %v10819 = vadd.f32 %v10650, %v10818
          %10820 = vmatmul.bf16.gmra.mxu0 %v8576
          %v10821 = vpop.f32.mrf.mxu0
          %v10822 = vadd.f32 %v10653, %v10821
          %v10823 = vpop.f32.mrf.mxu0
          %v10824 = vadd.f32 %v10655, %v10823
          %10825 = vmatmul.bf16.gmra.mxu0 %v8585
          %v10826 = vpop.f32.mrf.mxu0
          %v10827 = vadd.f32 %v10658, %v10826
          %v10828 = vpop.f32.mrf.mxu0
          %v10829 = vadd.f32 %v10660, %v10828
          %10830 = vmatmul.bf16.gmra.mxu0 %v8594
          %v10831 = vpop.f32.mrf.mxu0
          %v10832 = vadd.f32 %v10663, %v10831
          %v10833 = vpop.f32.mrf.mxu0
          %v10834 = vadd.f32 %v10665, %v10833
          %10835 = vdwg.mxu0
          %v10836 = vmax.f32 %v10677, 0.0
          %v10837 = vmax.f32 %v10679, 0.0
          %v10838 = vmax.f32 %v10682, 0.0
          %v10839 = vmax.f32 %v10684, 0.0
          %v10840 = vmax.f32 %v10687, 0.0
          %v10841 = vmax.f32 %v10689, 0.0
          %v10842 = vmax.f32 %v10692, 0.0
          %v10843 = vmax.f32 %v10694, 0.0
          %v10844 = vmax.f32 %v10697, 0.0
          %v10845 = vmax.f32 %v10699, 0.0
          %v10846 = vmax.f32 %v10702, 0.0
          %v10847 = vmax.f32 %v10704, 0.0
          %v10848 = vmax.f32 %v10707, 0.0
          %v10849 = vmax.f32 %v10709, 0.0
          %v10850 = vmax.f32 %v10712, 0.0
          %v10851 = vmax.f32 %v10714, 0.0
          %v10852 = vmax.f32 %v10717, 0.0
          %v10853 = vmax.f32 %v10719, 0.0
          %v10854 = vmax.f32 %v10722, 0.0
          %v10855 = vmax.f32 %v10724, 0.0
          %v10856 = vmax.f32 %v10727, 0.0
          %v10857 = vmax.f32 %v10729, 0.0
          %v10858 = vmax.f32 %v10732, 0.0
          %v10859 = vmax.f32 %v10734, 0.0
          %v10860 = vmax.f32 %v10737, 0.0
          %v10861 = vmax.f32 %v10739, 0.0
          %v10862 = vmax.f32 %v10742, 0.0
          %v10863 = vmax.f32 %v10744, 0.0
          %v10864 = vmax.f32 %v10747, 0.0
          %v10865 = vmax.f32 %v10749, 0.0
          %v10866 = vmax.f32 %v10752, 0.0
          %v10867 = vmax.f32 %v10754, 0.0
          %v10868 = vmax.f32 %v10757, 0.0
          %v10869 = vmax.f32 %v10759, 0.0
          %v10870 = vmax.f32 %v10762, 0.0
          %v10871 = vmax.f32 %v10764, 0.0
          %v10872 = vmax.f32 %v10767, 0.0
          %v10873 = vmax.f32 %v10769, 0.0
          %v10874 = vmax.f32 %v10772, 0.0
          %v10875 = vmax.f32 %v10774, 0.0
          %v10876 = vmax.f32 %v10777, 0.0
          %v10877 = vmax.f32 %v10779, 0.0
          %v10878 = vmax.f32 %v10782, 0.0
          %v10879 = vmax.f32 %v10784, 0.0
          %v10880 = vmax.f32 %v10787, 0.0
          %v10881 = vmax.f32 %v10789, 0.0
          %v10882 = vmax.f32 %v10792, 0.0
          %v10883 = vmax.f32 %v10794, 0.0
          %v10884 = vmax.f32 %v10797, 0.0
          %v10885 = vmax.f32 %v10799, 0.0
          %v10886 = vmax.f32 %v10802, 0.0
          %v10887 = vmax.f32 %v10804, 0.0
          %v10888 = vmax.f32 %v10807, 0.0
          %v10889 = vmax.f32 %v10809, 0.0
          %v10890 = vmax.f32 %v10812, 0.0
          %v10891 = vmax.f32 %v10814, 0.0
          %v10892 = vmax.f32 %v10817, 0.0
          %v10893 = vmax.f32 %v10819, 0.0
          %v10894 = vmax.f32 %v10822, 0.0
          %v10895 = vmax.f32 %v10824, 0.0
          %v10896 = vmax.f32 %v10827, 0.0
          %v10897 = vmax.f32 %v10829, 0.0
          %v10898 = vmax.f32 %v10832, 0.0
          %v10899 = vmax.f32 %v10834, 0.0
          %p10900 = scmp.lt.s32.totalorder %s21, 0
          %s10901 = ssub.s32 0, %s21
          %s10902 = scalar_select %p10900, %s10901, %s21
          %s10903 = sand.u32 %s10902, 1
          %s10904 = ssub.s32 0, %s10903
          %s10905 = scalar_select %p10900, %s10904, %s10903
          %p10906 = scmp.ne.s32.totalorder %s10905, 0
          %p10907 = scmp.lt.s32.totalorder %s10905, 0
          %p10908 = pnand %p10907, %p10906
          %p10909 = pneg %p10908
          %s10910 = sadd.s32 %s10905, 2
          %s10911 = scalar_select %p10909, %s10910, %s10905
          %p10912 = scmp.eq.s32.totalorder %s10911, 0
          %s10913 = scalar_select %p10912, 1.0, 0.0
          %v10914 = vld [vmem:[#allocation4] sm:$0xff]
          %v10915 = vld [vmem:[#allocation4 + $0x8] sm:$0xff]
          %v10916 = vld [vmem:[#allocation4 + $0x10] sm:$0xff]
          %v10917 = vld [vmem:[#allocation4 + $0x18] sm:$0xff]
          %v10918 = vld [vmem:[#allocation4 + $0x20] sm:$0xff]
          %v10919 = vld [vmem:[#allocation4 + $0x28] sm:$0xff]
          %v10920 = vld [vmem:[#allocation4 + $0x30] sm:$0xff]
          %v10921 = vld [vmem:[#allocation4 + $0x38] sm:$0xff]
          %v10922 = vld [vmem:[#allocation4 + $0x40] sm:$0xff]
          %v10923 = vld [vmem:[#allocation4 + $0x48] sm:$0xff]
          %v10924 = vld [vmem:[#allocation4 + $0x50] sm:$0xff]
          %v10925 = vld [vmem:[#allocation4 + $0x58] sm:$0xff]
          %v10926 = vld [vmem:[#allocation4 + $0x60] sm:$0xff]
          %v10927 = vld [vmem:[#allocation4 + $0x68] sm:$0xff]
          %v10928 = vld [vmem:[#allocation4 + $0x70] sm:$0xff]
          %v10929 = vld [vmem:[#allocation4 + $0x78] sm:$0xff]
          %v10930 = vld [vmem:[#allocation4 + $0x80] sm:$0xff]
          %v10931 = vld [vmem:[#allocation4 + $0x88] sm:$0xff]
          %v10932 = vld [vmem:[#allocation4 + $0x90] sm:$0xff]
          %v10933 = vld [vmem:[#allocation4 + $0x98] sm:$0xff]
          %v10934 = vld [vmem:[#allocation4 + $0xa0] sm:$0xff]
          %v10935 = vld [vmem:[#allocation4 + $0xa8] sm:$0xff]
          %v10936 = vld [vmem:[#allocation4 + $0xb0] sm:$0xff]
          %v10937 = vld [vmem:[#allocation4 + $0xb8] sm:$0xff]
          %v10938 = vld [vmem:[#allocation4 + $0xc0] sm:$0xff]
          %v10939 = vld [vmem:[#allocation4 + $0xc8] sm:$0xff]
          %v10940 = vld [vmem:[#allocation4 + $0xd0] sm:$0xff]
          %v10941 = vld [vmem:[#allocation4 + $0xd8] sm:$0xff]
          %v10942 = vld [vmem:[#allocation4 + $0xe0] sm:$0xff]
          %v10943 = vld [vmem:[#allocation4 + $0xe8] sm:$0xff]
          %v10944 = vld [vmem:[#allocation4 + $0xf0] sm:$0xff]
          %v10945 = vld [vmem:[#allocation4 + $0xf8] sm:$0xff]
          %v10946 = vld [vmem:[#allocation4 + $0x100] sm:$0xff]
          %v10947 = vld [vmem:[#allocation4 + $0x108] sm:$0xff]
          %v10948 = vld [vmem:[#allocation4 + $0x110] sm:$0xff]
          %v10949 = vld [vmem:[#allocation4 + $0x118] sm:$0xff]
          %v10950 = vld [vmem:[#allocation4 + $0x120] sm:$0xff]
          %v10951 = vld [vmem:[#allocation4 + $0x128] sm:$0xff]
          %v10952 = vld [vmem:[#allocation4 + $0x130] sm:$0xff]
          %v10953 = vld [vmem:[#allocation4 + $0x138] sm:$0xff]
          %v10954 = vld [vmem:[#allocation4 + $0x140] sm:$0xff]
          %v10955 = vld [vmem:[#allocation4 + $0x148] sm:$0xff]
          %v10956 = vld [vmem:[#allocation4 + $0x150] sm:$0xff]
          %v10957 = vld [vmem:[#allocation4 + $0x158] sm:$0xff]
          %v10958 = vld [vmem:[#allocation4 + $0x160] sm:$0xff]
          %v10959 = vld [vmem:[#allocation4 + $0x168] sm:$0xff]
          %v10960 = vld [vmem:[#allocation4 + $0x170] sm:$0xff]
          %v10961 = vld [vmem:[#allocation4 + $0x178] sm:$0xff]
          %v10962 = vld [vmem:[#allocation4 + $0x180] sm:$0xff]
          %v10963 = vld [vmem:[#allocation4 + $0x188] sm:$0xff]
          %v10964 = vld [vmem:[#allocation4 + $0x190] sm:$0xff]
          %v10965 = vld [vmem:[#allocation4 + $0x198] sm:$0xff]
          %v10966 = vld [vmem:[#allocation4 + $0x1a0] sm:$0xff]
          %v10967 = vld [vmem:[#allocation4 + $0x1a8] sm:$0xff]
          %v10968 = vld [vmem:[#allocation4 + $0x1b0] sm:$0xff]
          %v10969 = vld [vmem:[#allocation4 + $0x1b8] sm:$0xff]
          %v10970 = vld [vmem:[#allocation4 + $0x1c0] sm:$0xff]
          %v10971 = vld [vmem:[#allocation4 + $0x1c8] sm:$0xff]
          %v10972 = vld [vmem:[#allocation4 + $0x1d0] sm:$0xff]
          %v10973 = vld [vmem:[#allocation4 + $0x1d8] sm:$0xff]
          %v10974 = vld [vmem:[#allocation4 + $0x1e0] sm:$0xff]
          %v10975 = vld [vmem:[#allocation4 + $0x1e8] sm:$0xff]
          %v10976 = vld [vmem:[#allocation4 + $0x1f0] sm:$0xff]
          %v10977 = vld [vmem:[#allocation4 + $0x1f8] sm:$0xff]
          %v10978 = vstv %s10913
          %v10979 = vmul.f32 %v10978, %v10914
          %v10980 = vmul.f32 %v10978, %v10915
          %v10981 = vmul.f32 %v10978, %v10916
          %v10982 = vmul.f32 %v10978, %v10917
          %v10983 = vmul.f32 %v10978, %v10918
          %v10984 = vmul.f32 %v10978, %v10919
          %v10985 = vmul.f32 %v10978, %v10920
          %v10986 = vmul.f32 %v10978, %v10921
          %v10987 = vmul.f32 %v10978, %v10922
          %v10988 = vmul.f32 %v10978, %v10923
          %v10989 = vmul.f32 %v10978, %v10924
          %v10990 = vmul.f32 %v10978, %v10925
          %v10991 = vmul.f32 %v10978, %v10926
          %v10992 = vmul.f32 %v10978, %v10927
          %v10993 = vmul.f32 %v10978, %v10928
          %v10994 = vmul.f32 %v10978, %v10929
          %v10995 = vmul.f32 %v10978, %v10930
          %v10996 = vmul.f32 %v10978, %v10931
          %v10997 = vmul.f32 %v10978, %v10932
          %v10998 = vmul.f32 %v10978, %v10933
          %v10999 = vmul.f32 %v10978, %v10934
          %v11000 = vmul.f32 %v10978, %v10935
          %v11001 = vmul.f32 %v10978, %v10936
          %v11002 = vmul.f32 %v10978, %v10937
          %v11003 = vmul.f32 %v10978, %v10938
          %v11004 = vmul.f32 %v10978, %v10939
          %v11005 = vmul.f32 %v10978, %v10940
          %v11006 = vmul.f32 %v10978, %v10941
          %v11007 = vmul.f32 %v10978, %v10942
          %v11008 = vmul.f32 %v10978, %v10943
          %v11009 = vmul.f32 %v10978, %v10944
          %v11010 = vmul.f32 %v10978, %v10945
          %v11011 = vmul.f32 %v10978, %v10946
          %v11012 = vmul.f32 %v10978, %v10947
          %v11013 = vmul.f32 %v10978, %v10948
          %v11014 = vmul.f32 %v10978, %v10949
          %v11015 = vmul.f32 %v10978, %v10950
          %v11016 = vmul.f32 %v10978, %v10951
          %v11017 = vmul.f32 %v10978, %v10952
          %v11018 = vmul.f32 %v10978, %v10953
          %v11019 = vmul.f32 %v10978, %v10954
          %v11020 = vmul.f32 %v10978, %v10955
          %v11021 = vmul.f32 %v10978, %v10956
          %v11022 = vmul.f32 %v10978, %v10957
          %v11023 = vmul.f32 %v10978, %v10958
          %v11024 = vmul.f32 %v10978, %v10959
          %v11025 = vmul.f32 %v10978, %v10960
          %v11026 = vmul.f32 %v10978, %v10961
          %v11027 = vmul.f32 %v10978, %v10962
          %v11028 = vmul.f32 %v10978, %v10963
          %v11029 = vmul.f32 %v10978, %v10964
          %v11030 = vmul.f32 %v10978, %v10965
          %v11031 = vmul.f32 %v10978, %v10966
          %v11032 = vmul.f32 %v10978, %v10967
          %v11033 = vmul.f32 %v10978, %v10968
          %v11034 = vmul.f32 %v10978, %v10969
          %v11035 = vmul.f32 %v10978, %v10970
          %v11036 = vmul.f32 %v10978, %v10971
          %v11037 = vmul.f32 %v10978, %v10972
          %v11038 = vmul.f32 %v10978, %v10973
          %v11039 = vmul.f32 %v10978, %v10974
          %v11040 = vmul.f32 %v10978, %v10975
          %v11041 = vmul.f32 %v10978, %v10976
          %v11042 = vmul.f32 %v10978, %v10977
          %v11043 = vadd.f32 %v10836, %v10979
          %v11044 = vadd.f32 %v10837, %v10980
          %v11045 = vadd.f32 %v10838, %v10981
          %v11046 = vadd.f32 %v10839, %v10982
          %v11047 = vadd.f32 %v10840, %v10983
          %v11048 = vadd.f32 %v10841, %v10984
          %v11049 = vadd.f32 %v10842, %v10985
          %v11050 = vadd.f32 %v10843, %v10986
          %v11051 = vadd.f32 %v10844, %v10987
          %v11052 = vadd.f32 %v10845, %v10988
          %v11053 = vadd.f32 %v10846, %v10989
          %v11054 = vadd.f32 %v10847, %v10990
          %v11055 = vadd.f32 %v10848, %v10991
          %v11056 = vadd.f32 %v10849, %v10992
          %v11057 = vadd.f32 %v10850, %v10993
          %v11058 = vadd.f32 %v10851, %v10994
          %v11059 = vadd.f32 %v10852, %v10995
          %v11060 = vadd.f32 %v10853, %v10996
          %v11061 = vadd.f32 %v10854, %v10997
          %v11062 = vadd.f32 %v10855, %v10998
          %v11063 = vadd.f32 %v10856, %v10999
          %v11064 = vadd.f32 %v10857, %v11000
          %v11065 = vadd.f32 %v10858, %v11001
          %v11066 = vadd.f32 %v10859, %v11002
          %v11067 = vadd.f32 %v10860, %v11003
          %v11068 = vadd.f32 %v10861, %v11004
          %v11069 = vadd.f32 %v10862, %v11005
          %v11070 = vadd.f32 %v10863, %v11006
          %v11071 = vadd.f32 %v10864, %v11007
          %v11072 = vadd.f32 %v10865, %v11008
          %v11073 = vadd.f32 %v10866, %v11009
          %v11074 = vadd.f32 %v10867, %v11010
          %v11075 = vadd.f32 %v10868, %v11011
          %v11076 = vadd.f32 %v10869, %v11012
          %v11077 = vadd.f32 %v10870, %v11013
          %v11078 = vadd.f32 %v10871, %v11014
          %v11079 = vadd.f32 %v10872, %v11015
          %v11080 = vadd.f32 %v10873, %v11016
          %v11081 = vadd.f32 %v10874, %v11017
          %v11082 = vadd.f32 %v10875, %v11018
          %v11083 = vadd.f32 %v10876, %v11019
          %v11084 = vadd.f32 %v10877, %v11020
          %v11085 = vadd.f32 %v10878, %v11021
          %v11086 = vadd.f32 %v10879, %v11022
          %v11087 = vadd.f32 %v10880, %v11023
          %v11088 = vadd.f32 %v10881, %v11024
          %v11089 = vadd.f32 %v10882, %v11025
          %v11090 = vadd.f32 %v10883, %v11026
          %v11091 = vadd.f32 %v10884, %v11027
          %v11092 = vadd.f32 %v10885, %v11028
          %v11093 = vadd.f32 %v10886, %v11029
          %v11094 = vadd.f32 %v10887, %v11030
          %v11095 = vadd.f32 %v10888, %v11031
          %v11096 = vadd.f32 %v10889, %v11032
          %v11097 = vadd.f32 %v10890, %v11033
          %v11098 = vadd.f32 %v10891, %v11034
          %v11099 = vadd.f32 %v10892, %v11035
          %v11100 = vadd.f32 %v10893, %v11036
          %v11101 = vadd.f32 %v10894, %v11037
          %v11102 = vadd.f32 %v10895, %v11038
          %v11103 = vadd.f32 %v10896, %v11039
          %v11104 = vadd.f32 %v10897, %v11040
          %v11105 = vadd.f32 %v10898, %v11041
          %v11106 = vadd.f32 %v10899, %v11042
          // Predicated region
          $region61: #{res_model_forward.1} parent=59 // pred_check
            %p11107 = pneg %p10912
          $region62: #{res_model_forward.1} parent=59 // pred_check_branch
            %11109 = sbr.rel (%p11107) target = $region64
          $region63: #{res_model_forward.1} parent=59 // pred_region
            %11110 = vst [vmem:[#allocation4] sm:$0xff] %v11043
            %11111 = vst [vmem:[#allocation4 + $0x8] sm:$0xff] %v11044
            %11112 = vst [vmem:[#allocation4 + $0x10] sm:$0xff] %v11045
            %11113 = vst [vmem:[#allocation4 + $0x18] sm:$0xff] %v11046
            %11114 = vst [vmem:[#allocation4 + $0x20] sm:$0xff] %v11047
            %11115 = vst [vmem:[#allocation4 + $0x28] sm:$0xff] %v11048
            %11116 = vst [vmem:[#allocation4 + $0x30] sm:$0xff] %v11049
            %11117 = vst [vmem:[#allocation4 + $0x38] sm:$0xff] %v11050
            %11118 = vst [vmem:[#allocation4 + $0x40] sm:$0xff] %v11051
            %11119 = vst [vmem:[#allocation4 + $0x48] sm:$0xff] %v11052
            %11120 = vst [vmem:[#allocation4 + $0x50] sm:$0xff] %v11053
            %11121 = vst [vmem:[#allocation4 + $0x58] sm:$0xff] %v11054
            %11122 = vst [vmem:[#allocation4 + $0x60] sm:$0xff] %v11055
            %11123 = vst [vmem:[#allocation4 + $0x68] sm:$0xff] %v11056
            %11124 = vst [vmem:[#allocation4 + $0x70] sm:$0xff] %v11057
            %11125 = vst [vmem:[#allocation4 + $0x78] sm:$0xff] %v11058
            %11126 = vst [vmem:[#allocation4 + $0x80] sm:$0xff] %v11059
            %11127 = vst [vmem:[#allocation4 + $0x88] sm:$0xff] %v11060
            %11128 = vst [vmem:[#allocation4 + $0x90] sm:$0xff] %v11061
            %11129 = vst [vmem:[#allocation4 + $0x98] sm:$0xff] %v11062
            %11130 = vst [vmem:[#allocation4 + $0xa0] sm:$0xff] %v11063
            %11131 = vst [vmem:[#allocation4 + $0xa8] sm:$0xff] %v11064
            %11132 = vst [vmem:[#allocation4 + $0xb0] sm:$0xff] %v11065
            %11133 = vst [vmem:[#allocation4 + $0xb8] sm:$0xff] %v11066
            %11134 = vst [vmem:[#allocation4 + $0xc0] sm:$0xff] %v11067
            %11135 = vst [vmem:[#allocation4 + $0xc8] sm:$0xff] %v11068
            %11136 = vst [vmem:[#allocation4 + $0xd0] sm:$0xff] %v11069
            %11137 = vst [vmem:[#allocation4 + $0xd8] sm:$0xff] %v11070
            %11138 = vst [vmem:[#allocation4 + $0xe0] sm:$0xff] %v11071
            %11139 = vst [vmem:[#allocation4 + $0xe8] sm:$0xff] %v11072
            %11140 = vst [vmem:[#allocation4 + $0xf0] sm:$0xff] %v11073
            %11141 = vst [vmem:[#allocation4 + $0xf8] sm:$0xff] %v11074
            %11142 = vst [vmem:[#allocation4 + $0x100] sm:$0xff] %v11075
            %11143 = vst [vmem:[#allocation4 + $0x108] sm:$0xff] %v11076
            %11144 = vst [vmem:[#allocation4 + $0x110] sm:$0xff] %v11077
            %11145 = vst [vmem:[#allocation4 + $0x118] sm:$0xff] %v11078
            %11146 = vst [vmem:[#allocation4 + $0x120] sm:$0xff] %v11079
            %11147 = vst [vmem:[#allocation4 + $0x128] sm:$0xff] %v11080
            %11148 = vst [vmem:[#allocation4 + $0x130] sm:$0xff] %v11081
            %11149 = vst [vmem:[#allocation4 + $0x138] sm:$0xff] %v11082
            %11150 = vst [vmem:[#allocation4 + $0x140] sm:$0xff] %v11083
            %11151 = vst [vmem:[#allocation4 + $0x148] sm:$0xff] %v11084
            %11152 = vst [vmem:[#allocation4 + $0x150] sm:$0xff] %v11085
            %11153 = vst [vmem:[#allocation4 + $0x158] sm:$0xff] %v11086
            %11154 = vst [vmem:[#allocation4 + $0x160] sm:$0xff] %v11087
            %11155 = vst [vmem:[#allocation4 + $0x168] sm:$0xff] %v11088
            %11156 = vst [vmem:[#allocation4 + $0x170] sm:$0xff] %v11089
            %11157 = vst [vmem:[#allocation4 + $0x178] sm:$0xff] %v11090
            %11158 = vst [vmem:[#allocation4 + $0x180] sm:$0xff] %v11091
            %11159 = vst [vmem:[#allocation4 + $0x188] sm:$0xff] %v11092
            %11160 = vst [vmem:[#allocation4 + $0x190] sm:$0xff] %v11093
            %11161 = vst [vmem:[#allocation4 + $0x198] sm:$0xff] %v11094
            %11162 = vst [vmem:[#allocation4 + $0x1a0] sm:$0xff] %v11095
            %11163 = vst [vmem:[#allocation4 + $0x1a8] sm:$0xff] %v11096
            %11164 = vst [vmem:[#allocation4 + $0x1b0] sm:$0xff] %v11097
            %11165 = vst [vmem:[#allocation4 + $0x1b8] sm:$0xff] %v11098
            %11166 = vst [vmem:[#allocation4 + $0x1c0] sm:$0xff] %v11099
            %11167 = vst [vmem:[#allocation4 + $0x1c8] sm:$0xff] %v11100
            %11168 = vst [vmem:[#allocation4 + $0x1d0] sm:$0xff] %v11101
            %11169 = vst [vmem:[#allocation4 + $0x1d8] sm:$0xff] %v11102
            %11170 = vst [vmem:[#allocation4 + $0x1e0] sm:$0xff] %v11103
            %11171 = vst [vmem:[#allocation4 + $0x1e8] sm:$0xff] %v11104
            %11172 = vst [vmem:[#allocation4 + $0x1f0] sm:$0xff] %v11105
            %11173 = vst [vmem:[#allocation4 + $0x1f8] sm:$0xff] %v11106
          $region64: #{res_model_forward.1} parent=59 // pred_fallthru
            _
          %v11174 = vadd.f32 %v11043, %v11044
          %v11175 = vadd.f32 %v11174, %v11045
          %v11176 = vadd.f32 %v11175, %v11046
          %v11177 = vadd.f32 %v11176, %v11047
          %v11178 = vadd.f32 %v11177, %v11048
          %v11179 = vadd.f32 %v11178, %v11049
          %v11180 = vadd.f32 %v11179, %v11050
          %v11181 = vadd.f32 %v11180, %v11051
          %v11182 = vadd.f32 %v11181, %v11052
          %v11183 = vadd.f32 %v11182, %v11053
          %v11184 = vadd.f32 %v11183, %v11054
          %v11185 = vadd.f32 %v11184, %v11055
          %v11186 = vadd.f32 %v11185, %v11056
          %v11187 = vadd.f32 %v11186, %v11057
          %v11188 = vadd.f32 %v11187, %v11058
          %v11189 = vadd.f32 %v11188, %v11059
          %v11190 = vadd.f32 %v11189, %v11060
          %v11191 = vadd.f32 %v11190, %v11061
          %v11192 = vadd.f32 %v11191, %v11062
          %v11193 = vadd.f32 %v11192, %v11063
          %v11194 = vadd.f32 %v11193, %v11064
          %v11195 = vadd.f32 %v11194, %v11065
          %v11196 = vadd.f32 %v11195, %v11066
          %v11197 = vadd.f32 %v11196, %v11067
          %v11198 = vadd.f32 %v11197, %v11068
          %v11199 = vadd.f32 %v11198, %v11069
          %v11200 = vadd.f32 %v11199, %v11070
          %v11201 = vadd.f32 %v11200, %v11071
          %v11202 = vadd.f32 %v11201, %v11072
          %v11203 = vadd.f32 %v11202, %v11073
          %v11204 = vadd.f32 %v11203, %v11074
          %v11205 = vadd.f32 %v11204, %v11075
          %v11206 = vadd.f32 %v11205, %v11076
          %v11207 = vadd.f32 %v11206, %v11077
          %v11208 = vadd.f32 %v11207, %v11078
          %v11209 = vadd.f32 %v11208, %v11079
          %v11210 = vadd.f32 %v11209, %v11080
          %v11211 = vadd.f32 %v11210, %v11081
          %v11212 = vadd.f32 %v11211, %v11082
          %v11213 = vadd.f32 %v11212, %v11083
          %v11214 = vadd.f32 %v11213, %v11084
          %v11215 = vadd.f32 %v11214, %v11085
          %v11216 = vadd.f32 %v11215, %v11086
          %v11217 = vadd.f32 %v11216, %v11087
          %v11218 = vadd.f32 %v11217, %v11088
          %v11219 = vadd.f32 %v11218, %v11089
          %v11220 = vadd.f32 %v11219, %v11090
          %v11221 = vadd.f32 %v11220, %v11091
          %v11222 = vadd.f32 %v11221, %v11092
          %v11223 = vadd.f32 %v11222, %v11093
          %v11224 = vadd.f32 %v11223, %v11094
          %v11225 = vadd.f32 %v11224, %v11095
          %v11226 = vadd.f32 %v11225, %v11096
          %v11227 = vadd.f32 %v11226, %v11097
          %v11228 = vadd.f32 %v11227, %v11098
          %v11229 = vadd.f32 %v11228, %v11099
          %v11230 = vadd.f32 %v11229, %v11100
          %v11231 = vadd.f32 %v11230, %v11101
          %v11232 = vadd.f32 %v11231, %v11102
          %v11233 = vadd.f32 %v11232, %v11103
          %v11234 = vadd.f32 %v11233, %v11104
          %v11235 = vadd.f32 %v11234, %v11105
          %v11236 = vadd.f32 %v11235, %v11106
          %v11237 = vrot.slane %v11236, 4
          %v11238 = vadd.f32 %v11236, %v11237
          %v11239 = vrot.slane %v11238, 2
          %v11240 = vadd.f32 %v11238, %v11239
          %v11241 = vrot.slane %v11240, 1
          %v11242 = vadd.f32 %v11240, %v11241
          %v11243 = vrcp.pop 512.0
          %v11244 = vmul.f32 512.0, %v11243
          %v11245 = vsub.f32 1.0, %v11244
          %v11246 = vmul.f32 %v11243, %v11245
          %v11247 = vadd.f32 %v11243, %v11246
          %vm11248 = vweird.f32 %v11243
          %v11249 = vsel %vm11248, %v11243, %v11247
          %v11250 = vmul.f32 %v11242, %v11249
          %v11251 = vsub.f32 %v11043, %v11250
          %v11252 = vsub.f32 %v11044, %v11250
          %v11253 = vsub.f32 %v11045, %v11250
          %v11254 = vsub.f32 %v11046, %v11250
          %v11255 = vsub.f32 %v11047, %v11250
          %v11256 = vsub.f32 %v11048, %v11250
          %v11257 = vsub.f32 %v11049, %v11250
          %v11258 = vsub.f32 %v11050, %v11250
          %v11259 = vsub.f32 %v11051, %v11250
          %v11260 = vsub.f32 %v11052, %v11250
          %v11261 = vsub.f32 %v11053, %v11250
          %v11262 = vsub.f32 %v11054, %v11250
          %v11263 = vsub.f32 %v11055, %v11250
          %v11264 = vsub.f32 %v11056, %v11250
          %v11265 = vsub.f32 %v11057, %v11250
          %v11266 = vsub.f32 %v11058, %v11250
          %v11267 = vsub.f32 %v11059, %v11250
          %v11268 = vsub.f32 %v11060, %v11250
          %v11269 = vsub.f32 %v11061, %v11250
          %v11270 = vsub.f32 %v11062, %v11250
          %v11271 = vsub.f32 %v11063, %v11250
          %v11272 = vsub.f32 %v11064, %v11250
          %v11273 = vsub.f32 %v11065, %v11250
          %v11274 = vsub.f32 %v11066, %v11250
          %v11275 = vsub.f32 %v11067, %v11250
          %v11276 = vsub.f32 %v11068, %v11250
          %v11277 = vsub.f32 %v11069, %v11250
          %v11278 = vsub.f32 %v11070, %v11250
          %v11279 = vsub.f32 %v11071, %v11250
          %v11280 = vsub.f32 %v11072, %v11250
          %v11281 = vsub.f32 %v11073, %v11250
          %v11282 = vsub.f32 %v11074, %v11250
          %v11283 = vsub.f32 %v11075, %v11250
          %v11284 = vsub.f32 %v11076, %v11250
          %v11285 = vsub.f32 %v11077, %v11250
          %v11286 = vsub.f32 %v11078, %v11250
          %v11287 = vsub.f32 %v11079, %v11250
          %v11288 = vsub.f32 %v11080, %v11250
          %v11289 = vsub.f32 %v11081, %v11250
          %v11290 = vsub.f32 %v11082, %v11250
          %v11291 = vsub.f32 %v11083, %v11250
          %v11292 = vsub.f32 %v11084, %v11250
          %v11293 = vsub.f32 %v11085, %v11250
          %v11294 = vsub.f32 %v11086, %v11250
          %v11295 = vsub.f32 %v11087, %v11250
          %v11296 = vsub.f32 %v11088, %v11250
          %v11297 = vsub.f32 %v11089, %v11250
          %v11298 = vsub.f32 %v11090, %v11250
          %v11299 = vsub.f32 %v11091, %v11250
          %v11300 = vsub.f32 %v11092, %v11250
          %v11301 = vsub.f32 %v11093, %v11250
          %v11302 = vsub.f32 %v11094, %v11250
          %v11303 = vsub.f32 %v11095, %v11250
          %v11304 = vsub.f32 %v11096, %v11250
          %v11305 = vsub.f32 %v11097, %v11250
          %v11306 = vsub.f32 %v11098, %v11250
          %v11307 = vsub.f32 %v11099, %v11250
          %v11308 = vsub.f32 %v11100, %v11250
          %v11309 = vsub.f32 %v11101, %v11250
          %v11310 = vsub.f32 %v11102, %v11250
          %v11311 = vsub.f32 %v11103, %v11250
          %v11312 = vsub.f32 %v11104, %v11250
          %v11313 = vsub.f32 %v11105, %v11250
          %v11314 = vsub.f32 %v11106, %v11250
          %v11315 = vmul.f32 %v11251, %v11251
          %v11316 = vmul.f32 %v11252, %v11252
          %v11317 = vmul.f32 %v11253, %v11253
          %v11318 = vmul.f32 %v11254, %v11254
          %v11319 = vmul.f32 %v11255, %v11255
          %v11320 = vmul.f32 %v11256, %v11256
          %v11321 = vmul.f32 %v11257, %v11257
          %v11322 = vmul.f32 %v11258, %v11258
          %v11323 = vmul.f32 %v11259, %v11259
          %v11324 = vmul.f32 %v11260, %v11260
          %v11325 = vmul.f32 %v11261, %v11261
          %v11326 = vmul.f32 %v11262, %v11262
          %v11327 = vmul.f32 %v11263, %v11263
          %v11328 = vmul.f32 %v11264, %v11264
          %v11329 = vmul.f32 %v11265, %v11265
          %v11330 = vmul.f32 %v11266, %v11266
          %v11331 = vmul.f32 %v11267, %v11267
          %v11332 = vmul.f32 %v11268, %v11268
          %v11333 = vmul.f32 %v11269, %v11269
          %v11334 = vmul.f32 %v11270, %v11270
          %v11335 = vmul.f32 %v11271, %v11271
          %v11336 = vmul.f32 %v11272, %v11272
          %v11337 = vmul.f32 %v11273, %v11273
          %v11338 = vmul.f32 %v11274, %v11274
          %v11339 = vmul.f32 %v11275, %v11275
          %v11340 = vmul.f32 %v11276, %v11276
          %v11341 = vmul.f32 %v11277, %v11277
          %v11342 = vmul.f32 %v11278, %v11278
          %v11343 = vmul.f32 %v11279, %v11279
          %v11344 = vmul.f32 %v11280, %v11280
          %v11345 = vmul.f32 %v11281, %v11281
          %v11346 = vmul.f32 %v11282, %v11282
          %v11347 = vmul.f32 %v11283, %v11283
          %v11348 = vmul.f32 %v11284, %v11284
          %v11349 = vmul.f32 %v11285, %v11285
          %v11350 = vmul.f32 %v11286, %v11286
          %v11351 = vmul.f32 %v11287, %v11287
          %v11352 = vmul.f32 %v11288, %v11288
          %v11353 = vmul.f32 %v11289, %v11289
          %v11354 = vmul.f32 %v11290, %v11290
          %v11355 = vmul.f32 %v11291, %v11291
          %v11356 = vmul.f32 %v11292, %v11292
          %v11357 = vmul.f32 %v11293, %v11293
          %v11358 = vmul.f32 %v11294, %v11294
          %v11359 = vmul.f32 %v11295, %v11295
          %v11360 = vmul.f32 %v11296, %v11296
          %v11361 = vmul.f32 %v11297, %v11297
          %v11362 = vmul.f32 %v11298, %v11298
          %v11363 = vmul.f32 %v11299, %v11299
          %v11364 = vmul.f32 %v11300, %v11300
          %v11365 = vmul.f32 %v11301, %v11301
          %v11366 = vmul.f32 %v11302, %v11302
          %v11367 = vmul.f32 %v11303, %v11303
          %v11368 = vmul.f32 %v11304, %v11304
          %v11369 = vmul.f32 %v11305, %v11305
          %v11370 = vmul.f32 %v11306, %v11306
          %v11371 = vmul.f32 %v11307, %v11307
          %v11372 = vmul.f32 %v11308, %v11308
          %v11373 = vmul.f32 %v11309, %v11309
          %v11374 = vmul.f32 %v11310, %v11310
          %v11375 = vmul.f32 %v11311, %v11311
          %v11376 = vmul.f32 %v11312, %v11312
          %v11377 = vmul.f32 %v11313, %v11313
          %v11378 = vmul.f32 %v11314, %v11314
          %v11379 = vadd.f32 %v11315, %v11316
          %v11380 = vadd.f32 %v11379, %v11317
          %v11381 = vadd.f32 %v11380, %v11318
          %v11382 = vadd.f32 %v11381, %v11319
          %v11383 = vadd.f32 %v11382, %v11320
          %v11384 = vadd.f32 %v11383, %v11321
          %v11385 = vadd.f32 %v11384, %v11322
          %v11386 = vadd.f32 %v11385, %v11323
          %v11387 = vadd.f32 %v11386, %v11324
          %v11388 = vadd.f32 %v11387, %v11325
          %v11389 = vadd.f32 %v11388, %v11326
          %v11390 = vadd.f32 %v11389, %v11327
          %v11391 = vadd.f32 %v11390, %v11328
          %v11392 = vadd.f32 %v11391, %v11329
          %v11393 = vadd.f32 %v11392, %v11330
          %v11394 = vadd.f32 %v11393, %v11331
          %v11395 = vadd.f32 %v11394, %v11332
          %v11396 = vadd.f32 %v11395, %v11333
          %v11397 = vadd.f32 %v11396, %v11334
          %v11398 = vadd.f32 %v11397, %v11335
          %v11399 = vadd.f32 %v11398, %v11336
          %v11400 = vadd.f32 %v11399, %v11337
          %v11401 = vadd.f32 %v11400, %v11338
          %v11402 = vadd.f32 %v11401, %v11339
          %v11403 = vadd.f32 %v11402, %v11340
          %v11404 = vadd.f32 %v11403, %v11341
          %v11405 = vadd.f32 %v11404, %v11342
          %v11406 = vadd.f32 %v11405, %v11343
          %v11407 = vadd.f32 %v11406, %v11344
          %v11408 = vadd.f32 %v11407, %v11345
          %v11409 = vadd.f32 %v11408, %v11346
          %v11410 = vadd.f32 %v11409, %v11347
          %v11411 = vadd.f32 %v11410, %v11348
          %v11412 = vadd.f32 %v11411, %v11349
          %v11413 = vadd.f32 %v11412, %v11350
          %v11414 = vadd.f32 %v11413, %v11351
          %v11415 = vadd.f32 %v11414, %v11352
          %v11416 = vadd.f32 %v11415, %v11353
          %v11417 = vadd.f32 %v11416, %v11354
          %v11418 = vadd.f32 %v11417, %v11355
          %v11419 = vadd.f32 %v11418, %v11356
          %v11420 = vadd.f32 %v11419, %v11357
          %v11421 = vadd.f32 %v11420, %v11358
          %v11422 = vadd.f32 %v11421, %v11359
          %v11423 = vadd.f32 %v11422, %v11360
          %v11424 = vadd.f32 %v11423, %v11361
          %v11425 = vadd.f32 %v11424, %v11362
          %v11426 = vadd.f32 %v11425, %v11363
          %v11427 = vadd.f32 %v11426, %v11364
          %v11428 = vadd.f32 %v11427, %v11365
          %v11429 = vadd.f32 %v11428, %v11366
          %v11430 = vadd.f32 %v11429, %v11367
          %v11431 = vadd.f32 %v11430, %v11368
          %v11432 = vadd.f32 %v11431, %v11369
          %v11433 = vadd.f32 %v11432, %v11370
          %v11434 = vadd.f32 %v11433, %v11371
          %v11435 = vadd.f32 %v11434, %v11372
          %v11436 = vadd.f32 %v11435, %v11373
          %v11437 = vadd.f32 %v11436, %v11374
          %v11438 = vadd.f32 %v11437, %v11375
          %v11439 = vadd.f32 %v11438, %v11376
          %v11440 = vadd.f32 %v11439, %v11377
          %v11441 = vadd.f32 %v11440, %v11378
          %v11442 = vrot.slane %v11441, 4
          %v11443 = vadd.f32 %v11441, %v11442
          %v11444 = vrot.slane %v11443, 2
          %v11445 = vadd.f32 %v11443, %v11444
          %v11446 = vrot.slane %v11445, 1
          %v11447 = vadd.f32 %v11445, %v11446
          %v11448 = vmul.f32 %v11447, %v11249
          %v11449 = vadd.f32 %v11448, 1e-05
          %v11450 = vrsqrt.pop %v11449
          %v11451 = vmul.f32 %v11450, %v11449
          %v11452 = vmul.f32 %v11451, %v11450
          %v11453 = vmul.f32 0.5, %v11452
          %v11454 = vsub.f32 1.5, %v11453
          %v11455 = vmul.f32 %v11450, %v11454
          %vm11456 = vweird.f32 %v11449
          %vm11457 = vweird.f32 %v11450
          %vm11458 = vmor %vm11456, %vm11457
          %v11459 = vsel %vm11458, %v11450, %v11455
          %v11460 = vmul.f32 %v11251, %v11459
          %v11461 = vmul.f32 %v11252, %v11459
          %v11462 = vmul.f32 %v11253, %v11459
          %v11463 = vmul.f32 %v11254, %v11459
          %v11464 = vmul.f32 %v11255, %v11459
          %v11465 = vmul.f32 %v11256, %v11459
          %v11466 = vmul.f32 %v11257, %v11459
          %v11467 = vmul.f32 %v11258, %v11459
          %v11468 = vmul.f32 %v11259, %v11459
          %v11469 = vmul.f32 %v11260, %v11459
          %v11470 = vmul.f32 %v11261, %v11459
          %v11471 = vmul.f32 %v11262, %v11459
          %v11472 = vmul.f32 %v11263, %v11459
          %v11473 = vmul.f32 %v11264, %v11459
          %v11474 = vmul.f32 %v11265, %v11459
          %v11475 = vmul.f32 %v11266, %v11459
          %v11476 = vmul.f32 %v11267, %v11459
          %v11477 = vmul.f32 %v11268, %v11459
          %v11478 = vmul.f32 %v11269, %v11459
          %v11479 = vmul.f32 %v11270, %v11459
          %v11480 = vmul.f32 %v11271, %v11459
          %v11481 = vmul.f32 %v11272, %v11459
          %v11482 = vmul.f32 %v11273, %v11459
          %v11483 = vmul.f32 %v11274, %v11459
          %v11484 = vmul.f32 %v11275, %v11459
          %v11485 = vmul.f32 %v11276, %v11459
          %v11486 = vmul.f32 %v11277, %v11459
          %v11487 = vmul.f32 %v11278, %v11459
          %v11488 = vmul.f32 %v11279, %v11459
          %v11489 = vmul.f32 %v11280, %v11459
          %v11490 = vmul.f32 %v11281, %v11459
          %v11491 = vmul.f32 %v11282, %v11459
          %v11492 = vmul.f32 %v11283, %v11459
          %v11493 = vmul.f32 %v11284, %v11459
          %v11494 = vmul.f32 %v11285, %v11459
          %v11495 = vmul.f32 %v11286, %v11459
          %v11496 = vmul.f32 %v11287, %v11459
          %v11497 = vmul.f32 %v11288, %v11459
          %v11498 = vmul.f32 %v11289, %v11459
          %v11499 = vmul.f32 %v11290, %v11459
          %v11500 = vmul.f32 %v11291, %v11459
          %v11501 = vmul.f32 %v11292, %v11459
          %v11502 = vmul.f32 %v11293, %v11459
          %v11503 = vmul.f32 %v11294, %v11459
          %v11504 = vmul.f32 %v11295, %v11459
          %v11505 = vmul.f32 %v11296, %v11459
          %v11506 = vmul.f32 %v11297, %v11459
          %v11507 = vmul.f32 %v11298, %v11459
          %v11508 = vmul.f32 %v11299, %v11459
          %v11509 = vmul.f32 %v11300, %v11459
          %v11510 = vmul.f32 %v11301, %v11459
          %v11511 = vmul.f32 %v11302, %v11459
          %v11512 = vmul.f32 %v11303, %v11459
          %v11513 = vmul.f32 %v11304, %v11459
          %v11514 = vmul.f32 %v11305, %v11459
          %v11515 = vmul.f32 %v11306, %v11459
          %v11516 = vmul.f32 %v11307, %v11459
          %v11517 = vmul.f32 %v11308, %v11459
          %v11518 = vmul.f32 %v11309, %v11459
          %v11519 = vmul.f32 %v11310, %v11459
          %v11520 = vmul.f32 %v11311, %v11459
          %v11521 = vmul.f32 %v11312, %v11459
          %v11522 = vmul.f32 %v11313, %v11459
          %v11523 = vmul.f32 %v11314, %v11459
          %p11524 = scmp.lt.s32.totalorder %s21, 9
          // Predicated region
          $region65: #{res_model_forward.1} parent=59 // pred_check
            %p11525 = pneg %p11524
          $region66: #{res_model_forward.1} parent=59 // pred_check_branch
            %11527 = sbr.rel (%p11525) target = $region68
          $region67: #{res_model_forward.1} parent=59 // pred_region
            %v11528 = vpack.c.bf16 %v11460, %v11460
            %v11529 = vpack.c.bf16 %v11461, %v11461
            %v11530 = vpack.c.bf16 %v11462, %v11462
            %v11531 = vpack.c.bf16 %v11463, %v11463
            %v11532 = vpack.c.bf16 %v11464, %v11464
            %v11533 = vpack.c.bf16 %v11465, %v11465
            %v11534 = vpack.c.bf16 %v11466, %v11466
            %v11535 = vpack.c.bf16 %v11467, %v11467
            %v11536 = vpack.c.bf16 %v11468, %v11468
            %v11537 = vpack.c.bf16 %v11469, %v11469
            %v11538 = vpack.c.bf16 %v11470, %v11470
            %v11539 = vpack.c.bf16 %v11471, %v11471
            %v11540 = vpack.c.bf16 %v11472, %v11472
            %v11541 = vpack.c.bf16 %v11473, %v11473
            %v11542 = vpack.c.bf16 %v11474, %v11474
            %v11543 = vpack.c.bf16 %v11475, %v11475
            %v11544 = vpack.c.bf16 %v11476, %v11476
            %v11545 = vpack.c.bf16 %v11477, %v11477
            %v11546 = vpack.c.bf16 %v11478, %v11478
            %v11547 = vpack.c.bf16 %v11479, %v11479
            %v11548 = vpack.c.bf16 %v11480, %v11480
            %v11549 = vpack.c.bf16 %v11481, %v11481
            %v11550 = vpack.c.bf16 %v11482, %v11482
            %v11551 = vpack.c.bf16 %v11483, %v11483
            %v11552 = vpack.c.bf16 %v11484, %v11484
            %v11553 = vpack.c.bf16 %v11485, %v11485
            %v11554 = vpack.c.bf16 %v11486, %v11486
            %v11555 = vpack.c.bf16 %v11487, %v11487
            %v11556 = vpack.c.bf16 %v11488, %v11488
            %v11557 = vpack.c.bf16 %v11489, %v11489
            %v11558 = vpack.c.bf16 %v11490, %v11490
            %v11559 = vpack.c.bf16 %v11491, %v11491
            %v11560 = vpack.c.bf16 %v11492, %v11492
            %v11561 = vpack.c.bf16 %v11493, %v11493
            %v11562 = vpack.c.bf16 %v11494, %v11494
            %v11563 = vpack.c.bf16 %v11495, %v11495
            %v11564 = vpack.c.bf16 %v11496, %v11496
            %v11565 = vpack.c.bf16 %v11497, %v11497
            %v11566 = vpack.c.bf16 %v11498, %v11498
            %v11567 = vpack.c.bf16 %v11499, %v11499
            %v11568 = vpack.c.bf16 %v11500, %v11500
            %v11569 = vpack.c.bf16 %v11501, %v11501
            %v11570 = vpack.c.bf16 %v11502, %v11502
            %v11571 = vpack.c.bf16 %v11503, %v11503
            %v11572 = vpack.c.bf16 %v11504, %v11504
            %v11573 = vpack.c.bf16 %v11505, %v11505
            %v11574 = vpack.c.bf16 %v11506, %v11506
            %v11575 = vpack.c.bf16 %v11507, %v11507
            %v11576 = vpack.c.bf16 %v11508, %v11508
            %v11577 = vpack.c.bf16 %v11509, %v11509
            %v11578 = vpack.c.bf16 %v11510, %v11510
            %v11579 = vpack.c.bf16 %v11511, %v11511
            %v11580 = vpack.c.bf16 %v11512, %v11512
            %v11581 = vpack.c.bf16 %v11513, %v11513
            %v11582 = vpack.c.bf16 %v11514, %v11514
            %v11583 = vpack.c.bf16 %v11515, %v11515
            %v11584 = vpack.c.bf16 %v11516, %v11516
            %v11585 = vpack.c.bf16 %v11517, %v11517
            %v11586 = vpack.c.bf16 %v11518, %v11518
            %v11587 = vpack.c.bf16 %v11519, %v11519
            %v11588 = vpack.c.bf16 %v11520, %v11520
            %v11589 = vpack.c.bf16 %v11521, %v11521
            %v11590 = vpack.c.bf16 %v11522, %v11522
            %v11591 = vpack.c.bf16 %v11523, %v11523
            %vm11592 = vsmask.f32 256
            %vm11593 = vsmask.f32 4368
            %vm11594 = vmor %vm11592, %vm11593
            %v11596 = vshrl.u32 %v11528, 16
            %v11598 = vrot.slane %v11596, 7
            %v11599 = vshll.u32 %v11528, 16
            %v11601 = vor.u32 %v11598, %v11599
            %v11602 = vrot.slane %v11598, 4
            %v11604 = vshrl.u32 %v11529, 16
            %v11606 = vrot.slane %v11604, 7
            %v11607 = vshll.u32 %v11529, 16
            %v11609 = vor.u32 %v11606, %v11607
            %v11610 = vsel %vm11594, %v11602, %v11609
            %v11611 = vrot.slane %v11606, 4
            %v11613 = vshrl.u32 %v11530, 16
            %v11615 = vrot.slane %v11613, 7
            %v11616 = vshll.u32 %v11530, 16
            %v11618 = vor.u32 %v11615, %v11616
            %v11619 = vrot.slane %v11615, 4
            %v11621 = vshrl.u32 %v11531, 16
            %v11623 = vrot.slane %v11621, 7
            %v11624 = vshll.u32 %v11531, 16
            %v11626 = vor.u32 %v11623, %v11624
            %v11627 = vsel %vm11594, %v11619, %v11626
            %v11628 = vrot.slane %v11623, 4
            %v11630 = vshrl.u32 %v11532, 16
            %v11632 = vrot.slane %v11630, 7
            %v11633 = vshll.u32 %v11532, 16
            %v11635 = vor.u32 %v11632, %v11633
            %v11636 = vrot.slane %v11632, 4
            %v11638 = vshrl.u32 %v11533, 16
            %v11640 = vrot.slane %v11638, 7
            %v11641 = vshll.u32 %v11533, 16
            %v11643 = vor.u32 %v11640, %v11641
            %v11644 = vsel %vm11594, %v11636, %v11643
            %v11645 = vrot.slane %v11640, 4
            %v11647 = vshrl.u32 %v11534, 16
            %v11649 = vrot.slane %v11647, 7
            %v11650 = vshll.u32 %v11534, 16
            %v11652 = vor.u32 %v11649, %v11650
            %v11653 = vrot.slane %v11649, 4
            %v11655 = vshrl.u32 %v11535, 16
            %v11657 = vrot.slane %v11655, 7
            %v11658 = vshll.u32 %v11535, 16
            %v11660 = vor.u32 %v11657, %v11658
            %v11661 = vsel %vm11594, %v11653, %v11660
            %v11662 = vrot.slane %v11657, 4
            %v11664 = vshrl.u32 %v11536, 16
            %v11666 = vrot.slane %v11664, 7
            %v11667 = vshll.u32 %v11536, 16
            %v11669 = vor.u32 %v11666, %v11667
            %v11670 = vrot.slane %v11666, 4
            %v11672 = vshrl.u32 %v11537, 16
            %v11674 = vrot.slane %v11672, 7
            %v11675 = vshll.u32 %v11537, 16
            %v11677 = vor.u32 %v11674, %v11675
            %v11678 = vsel %vm11594, %v11670, %v11677
            %v11679 = vrot.slane %v11674, 4
            %v11681 = vshrl.u32 %v11538, 16
            %v11683 = vrot.slane %v11681, 7
            %v11684 = vshll.u32 %v11538, 16
            %v11686 = vor.u32 %v11683, %v11684
            %v11687 = vrot.slane %v11683, 4
            %v11689 = vshrl.u32 %v11539, 16
            %v11691 = vrot.slane %v11689, 7
            %v11692 = vshll.u32 %v11539, 16
            %v11694 = vor.u32 %v11691, %v11692
            %v11695 = vsel %vm11594, %v11687, %v11694
            %v11696 = vrot.slane %v11691, 4
            %v11698 = vshrl.u32 %v11540, 16
            %v11700 = vrot.slane %v11698, 7
            %v11701 = vshll.u32 %v11540, 16
            %v11703 = vor.u32 %v11700, %v11701
            %v11704 = vrot.slane %v11700, 4
            %v11706 = vshrl.u32 %v11541, 16
            %v11708 = vrot.slane %v11706, 7
            %v11709 = vshll.u32 %v11541, 16
            %v11711 = vor.u32 %v11708, %v11709
            %v11712 = vsel %vm11594, %v11704, %v11711
            %v11713 = vrot.slane %v11708, 4
            %v11715 = vshrl.u32 %v11542, 16
            %v11717 = vrot.slane %v11715, 7
            %v11718 = vshll.u32 %v11542, 16
            %v11720 = vor.u32 %v11717, %v11718
            %v11721 = vrot.slane %v11717, 4
            %v11723 = vshrl.u32 %v11543, 16
            %v11725 = vrot.slane %v11723, 7
            %v11726 = vshll.u32 %v11543, 16
            %v11728 = vor.u32 %v11725, %v11726
            %v11729 = vsel %vm11594, %v11721, %v11728
            %v11730 = vrot.slane %v11725, 4
            %v11732 = vshrl.u32 %v11544, 16
            %v11734 = vrot.slane %v11732, 7
            %v11735 = vshll.u32 %v11544, 16
            %v11737 = vor.u32 %v11734, %v11735
            %v11738 = vrot.slane %v11734, 4
            %v11740 = vshrl.u32 %v11545, 16
            %v11742 = vrot.slane %v11740, 7
            %v11743 = vshll.u32 %v11545, 16
            %v11745 = vor.u32 %v11742, %v11743
            %v11746 = vsel %vm11594, %v11738, %v11745
            %v11747 = vrot.slane %v11742, 4
            %v11749 = vshrl.u32 %v11546, 16
            %v11751 = vrot.slane %v11749, 7
            %v11752 = vshll.u32 %v11546, 16
            %v11754 = vor.u32 %v11751, %v11752
            %v11755 = vrot.slane %v11751, 4
            %v11757 = vshrl.u32 %v11547, 16
            %v11759 = vrot.slane %v11757, 7
            %v11760 = vshll.u32 %v11547, 16
            %v11762 = vor.u32 %v11759, %v11760
            %v11763 = vsel %vm11594, %v11755, %v11762
            %v11764 = vrot.slane %v11759, 4
            %v11766 = vshrl.u32 %v11548, 16
            %v11768 = vrot.slane %v11766, 7
            %v11769 = vshll.u32 %v11548, 16
            %v11771 = vor.u32 %v11768, %v11769
            %v11772 = vrot.slane %v11768, 4
            %v11774 = vshrl.u32 %v11549, 16
            %v11776 = vrot.slane %v11774, 7
            %v11777 = vshll.u32 %v11549, 16
            %v11779 = vor.u32 %v11776, %v11777
            %v11780 = vsel %vm11594, %v11772, %v11779
            %v11781 = vrot.slane %v11776, 4
            %v11783 = vshrl.u32 %v11550, 16
            %v11785 = vrot.slane %v11783, 7
            %v11786 = vshll.u32 %v11550, 16
            %v11788 = vor.u32 %v11785, %v11786
            %v11789 = vrot.slane %v11785, 4
            %v11791 = vshrl.u32 %v11551, 16
            %v11793 = vrot.slane %v11791, 7
            %v11794 = vshll.u32 %v11551, 16
            %v11796 = vor.u32 %v11793, %v11794
            %v11797 = vsel %vm11594, %v11789, %v11796
            %v11798 = vrot.slane %v11793, 4
            %v11800 = vshrl.u32 %v11552, 16
            %v11802 = vrot.slane %v11800, 7
            %v11803 = vshll.u32 %v11552, 16
            %v11805 = vor.u32 %v11802, %v11803
            %v11806 = vrot.slane %v11802, 4
            %v11808 = vshrl.u32 %v11553, 16
            %v11810 = vrot.slane %v11808, 7
            %v11811 = vshll.u32 %v11553, 16
            %v11813 = vor.u32 %v11810, %v11811
            %v11814 = vsel %vm11594, %v11806, %v11813
            %v11815 = vrot.slane %v11810, 4
            %v11817 = vshrl.u32 %v11554, 16
            %v11819 = vrot.slane %v11817, 7
            %v11820 = vshll.u32 %v11554, 16
            %v11822 = vor.u32 %v11819, %v11820
            %v11823 = vrot.slane %v11819, 4
            %v11825 = vshrl.u32 %v11555, 16
            %v11827 = vrot.slane %v11825, 7
            %v11828 = vshll.u32 %v11555, 16
            %v11830 = vor.u32 %v11827, %v11828
            %v11831 = vsel %vm11594, %v11823, %v11830
            %v11832 = vrot.slane %v11827, 4
            %v11834 = vshrl.u32 %v11556, 16
            %v11836 = vrot.slane %v11834, 7
            %v11837 = vshll.u32 %v11556, 16
            %v11839 = vor.u32 %v11836, %v11837
            %v11840 = vrot.slane %v11836, 4
            %v11842 = vshrl.u32 %v11557, 16
            %v11844 = vrot.slane %v11842, 7
            %v11845 = vshll.u32 %v11557, 16
            %v11847 = vor.u32 %v11844, %v11845
            %v11848 = vsel %vm11594, %v11840, %v11847
            %v11849 = vrot.slane %v11844, 4
            %v11851 = vshrl.u32 %v11558, 16
            %v11853 = vrot.slane %v11851, 7
            %v11854 = vshll.u32 %v11558, 16
            %v11856 = vor.u32 %v11853, %v11854
            %v11857 = vrot.slane %v11853, 4
            %v11859 = vshrl.u32 %v11559, 16
            %v11861 = vrot.slane %v11859, 7
            %v11862 = vshll.u32 %v11559, 16
            %v11864 = vor.u32 %v11861, %v11862
            %v11865 = vsel %vm11594, %v11857, %v11864
            %v11866 = vrot.slane %v11861, 4
            %v11868 = vshrl.u32 %v11560, 16
            %v11870 = vrot.slane %v11868, 7
            %v11871 = vshll.u32 %v11560, 16
            %v11873 = vor.u32 %v11870, %v11871
            %v11874 = vrot.slane %v11870, 4
            %v11876 = vshrl.u32 %v11561, 16
            %v11878 = vrot.slane %v11876, 7
            %v11879 = vshll.u32 %v11561, 16
            %v11881 = vor.u32 %v11878, %v11879
            %v11882 = vsel %vm11594, %v11874, %v11881
            %v11883 = vrot.slane %v11878, 4
            %v11885 = vshrl.u32 %v11562, 16
            %v11887 = vrot.slane %v11885, 7
            %v11888 = vshll.u32 %v11562, 16
            %v11890 = vor.u32 %v11887, %v11888
            %v11891 = vrot.slane %v11887, 4
            %v11893 = vshrl.u32 %v11563, 16
            %v11895 = vrot.slane %v11893, 7
            %v11896 = vshll.u32 %v11563, 16
            %v11898 = vor.u32 %v11895, %v11896
            %v11899 = vsel %vm11594, %v11891, %v11898
            %v11900 = vrot.slane %v11895, 4
            %v11902 = vshrl.u32 %v11564, 16
            %v11904 = vrot.slane %v11902, 7
            %v11905 = vshll.u32 %v11564, 16
            %v11907 = vor.u32 %v11904, %v11905
            %v11908 = vrot.slane %v11904, 4
            %v11910 = vshrl.u32 %v11565, 16
            %v11912 = vrot.slane %v11910, 7
            %v11913 = vshll.u32 %v11565, 16
            %v11915 = vor.u32 %v11912, %v11913
            %v11916 = vsel %vm11594, %v11908, %v11915
            %v11917 = vrot.slane %v11912, 4
            %v11919 = vshrl.u32 %v11566, 16
            %v11921 = vrot.slane %v11919, 7
            %v11922 = vshll.u32 %v11566, 16
            %v11924 = vor.u32 %v11921, %v11922
            %v11925 = vrot.slane %v11921, 4
            %v11927 = vshrl.u32 %v11567, 16
            %v11929 = vrot.slane %v11927, 7
            %v11930 = vshll.u32 %v11567, 16
            %v11932 = vor.u32 %v11929, %v11930
            %v11933 = vsel %vm11594, %v11925, %v11932
            %v11934 = vrot.slane %v11929, 4
            %v11936 = vshrl.u32 %v11568, 16
            %v11938 = vrot.slane %v11936, 7
            %v11939 = vshll.u32 %v11568, 16
            %v11941 = vor.u32 %v11938, %v11939
            %v11942 = vrot.slane %v11938, 4
            %v11944 = vshrl.u32 %v11569, 16
            %v11946 = vrot.slane %v11944, 7
            %v11947 = vshll.u32 %v11569, 16
            %v11949 = vor.u32 %v11946, %v11947
            %v11950 = vsel %vm11594, %v11942, %v11949
            %v11951 = vrot.slane %v11946, 4
            %v11953 = vshrl.u32 %v11570, 16
            %v11955 = vrot.slane %v11953, 7
            %v11956 = vshll.u32 %v11570, 16
            %v11958 = vor.u32 %v11955, %v11956
            %v11959 = vrot.slane %v11955, 4
            %v11961 = vshrl.u32 %v11571, 16
            %v11963 = vrot.slane %v11961, 7
            %v11964 = vshll.u32 %v11571, 16
            %v11966 = vor.u32 %v11963, %v11964
            %v11967 = vsel %vm11594, %v11959, %v11966
            %v11968 = vrot.slane %v11963, 4
            %v11970 = vshrl.u32 %v11572, 16
            %v11972 = vrot.slane %v11970, 7
            %v11973 = vshll.u32 %v11572, 16
            %v11975 = vor.u32 %v11972, %v11973
            %v11976 = vrot.slane %v11972, 4
            %v11978 = vshrl.u32 %v11573, 16
            %v11980 = vrot.slane %v11978, 7
            %v11981 = vshll.u32 %v11573, 16
            %v11983 = vor.u32 %v11980, %v11981
            %v11984 = vsel %vm11594, %v11976, %v11983
            %v11985 = vrot.slane %v11980, 4
            %v11987 = vshrl.u32 %v11574, 16
            %v11989 = vrot.slane %v11987, 7
            %v11990 = vshll.u32 %v11574, 16
            %v11992 = vor.u32 %v11989, %v11990
            %v11993 = vrot.slane %v11989, 4
            %v11995 = vshrl.u32 %v11575, 16
            %v11997 = vrot.slane %v11995, 7
            %v11998 = vshll.u32 %v11575, 16
            %v12000 = vor.u32 %v11997, %v11998
            %v12001 = vsel %vm11594, %v11993, %v12000
            %v12002 = vrot.slane %v11997, 4
            %v12004 = vshrl.u32 %v11576, 16
            %v12006 = vrot.slane %v12004, 7
            %v12007 = vshll.u32 %v11576, 16
            %v12009 = vor.u32 %v12006, %v12007
            %v12010 = vrot.slane %v12006, 4
            %v12012 = vshrl.u32 %v11577, 16
            %v12014 = vrot.slane %v12012, 7
            %v12015 = vshll.u32 %v11577, 16
            %v12017 = vor.u32 %v12014, %v12015
            %v12018 = vsel %vm11594, %v12010, %v12017
            %v12019 = vrot.slane %v12014, 4
            %v12021 = vshrl.u32 %v11578, 16
            %v12023 = vrot.slane %v12021, 7
            %v12024 = vshll.u32 %v11578, 16
            %v12026 = vor.u32 %v12023, %v12024
            %v12027 = vrot.slane %v12023, 4
            %v12029 = vshrl.u32 %v11579, 16
            %v12031 = vrot.slane %v12029, 7
            %v12032 = vshll.u32 %v11579, 16
            %v12034 = vor.u32 %v12031, %v12032
            %v12035 = vsel %vm11594, %v12027, %v12034
            %v12036 = vrot.slane %v12031, 4
            %v12038 = vshrl.u32 %v11580, 16
            %v12040 = vrot.slane %v12038, 7
            %v12041 = vshll.u32 %v11580, 16
            %v12043 = vor.u32 %v12040, %v12041
            %v12044 = vrot.slane %v12040, 4
            %v12046 = vshrl.u32 %v11581, 16
            %v12048 = vrot.slane %v12046, 7
            %v12049 = vshll.u32 %v11581, 16
            %v12051 = vor.u32 %v12048, %v12049
            %v12052 = vsel %vm11594, %v12044, %v12051
            %v12053 = vrot.slane %v12048, 4
            %v12055 = vshrl.u32 %v11582, 16
            %v12057 = vrot.slane %v12055, 7
            %v12058 = vshll.u32 %v11582, 16
            %v12060 = vor.u32 %v12057, %v12058
            %v12061 = vrot.slane %v12057, 4
            %v12063 = vshrl.u32 %v11583, 16
            %v12065 = vrot.slane %v12063, 7
            %v12066 = vshll.u32 %v11583, 16
            %v12068 = vor.u32 %v12065, %v12066
            %v12069 = vsel %vm11594, %v12061, %v12068
            %v12070 = vrot.slane %v12065, 4
            %v12072 = vshrl.u32 %v11584, 16
            %v12074 = vrot.slane %v12072, 7
            %v12075 = vshll.u32 %v11584, 16
            %v12077 = vor.u32 %v12074, %v12075
            %v12078 = vrot.slane %v12074, 4
            %v12080 = vshrl.u32 %v11585, 16
            %v12082 = vrot.slane %v12080, 7
            %v12083 = vshll.u32 %v11585, 16
            %v12085 = vor.u32 %v12082, %v12083
            %v12086 = vsel %vm11594, %v12078, %v12085
            %v12087 = vrot.slane %v12082, 4
            %v12089 = vshrl.u32 %v11586, 16
            %v12091 = vrot.slane %v12089, 7
            %v12092 = vshll.u32 %v11586, 16
            %v12094 = vor.u32 %v12091, %v12092
            %v12095 = vrot.slane %v12091, 4
            %v12097 = vshrl.u32 %v11587, 16
            %v12099 = vrot.slane %v12097, 7
            %v12100 = vshll.u32 %v11587, 16
            %v12102 = vor.u32 %v12099, %v12100
            %v12103 = vsel %vm11594, %v12095, %v12102
            %v12104 = vrot.slane %v12099, 4
            %v12106 = vshrl.u32 %v11588, 16
            %v12108 = vrot.slane %v12106, 7
            %v12109 = vshll.u32 %v11588, 16
            %v12111 = vor.u32 %v12108, %v12109
            %v12112 = vrot.slane %v12108, 4
            %v12114 = vshrl.u32 %v11589, 16
            %v12116 = vrot.slane %v12114, 7
            %v12117 = vshll.u32 %v11589, 16
            %v12119 = vor.u32 %v12116, %v12117
            %v12120 = vsel %vm11594, %v12112, %v12119
            %v12121 = vrot.slane %v12116, 4
            %v12123 = vshrl.u32 %v11590, 16
            %v12125 = vrot.slane %v12123, 7
            %v12126 = vshll.u32 %v11590, 16
            %v12128 = vor.u32 %v12125, %v12126
            %v12129 = vrot.slane %v12125, 4
            %v12131 = vshrl.u32 %v11591, 16
            %v12133 = vrot.slane %v12131, 7
            %v12134 = vshll.u32 %v11591, 16
            %v12136 = vor.u32 %v12133, %v12134
            %v12137 = vsel %vm11594, %v12129, %v12136
            %v12138 = vrot.slane %v12133, 4
            %vm12235 = vcmask 1043456
            %vm12236 = vsmask.f32 7938
            %vm12237 = vmand %vm12235, %vm12236
            %v12238 = vld [vmem:[%s3617] sm:$0xf]
            %v12239 = vsel %vm12237, %v11601, %v12238
            %12240 = vst [vmem:[%s3617] sm:$0xf] %v12239
            %12241 = vst [vmem:[%s3617 + $0x4] sm:$0xf] %v11610
            %vm12242 = vcmask 1040384
            %vm12243 = vmand %vm12242, %vm11592
            %v12244 = vld [vmem:[%s3617 + $0x8] sm:$0x1]
            %v12245 = vsel %vm12243, %v11611, %v12244
            %12246 = vst [vmem:[%s3617 + $0x8] sm:$0x1] %v12245
            %v12247 = vld [vmem:[%s3617 + $0xc] sm:$0xf]
            %v12248 = vsel %vm12237, %v11618, %v12247
            %12249 = vst [vmem:[%s3617 + $0xc] sm:$0xf] %v12248
            %12250 = vst [vmem:[%s3617 + $0x10] sm:$0xf] %v11627
            %v12251 = vld [vmem:[%s3617 + $0x14] sm:$0x1]
            %v12252 = vsel %vm12243, %v11628, %v12251
            %12253 = vst [vmem:[%s3617 + $0x14] sm:$0x1] %v12252
            %v12254 = vld [vmem:[%s3617 + $0x18] sm:$0xf]
            %v12255 = vsel %vm12237, %v11635, %v12254
            %12256 = vst [vmem:[%s3617 + $0x18] sm:$0xf] %v12255
            %12257 = vst [vmem:[%s3617 + $0x1c] sm:$0xf] %v11644
            %v12258 = vld [vmem:[%s3617 + $0x20] sm:$0x1]
            %v12259 = vsel %vm12243, %v11645, %v12258
            %12260 = vst [vmem:[%s3617 + $0x20] sm:$0x1] %v12259
            %v12261 = vld [vmem:[%s3617 + $0x24] sm:$0xf]
            %v12262 = vsel %vm12237, %v11652, %v12261
            %12263 = vst [vmem:[%s3617 + $0x24] sm:$0xf] %v12262
            %12264 = vst [vmem:[%s3617 + $0x28] sm:$0xf] %v11661
            %v12265 = vld [vmem:[%s3617 + $0x2c] sm:$0x1]
            %v12266 = vsel %vm12243, %v11662, %v12265
            %12267 = vst [vmem:[%s3617 + $0x2c] sm:$0x1] %v12266
            %v12268 = vld [vmem:[%s3617 + $0x30] sm:$0xf]
            %v12269 = vsel %vm12237, %v11669, %v12268
            %12270 = vst [vmem:[%s3617 + $0x30] sm:$0xf] %v12269
            %12271 = vst [vmem:[%s3617 + $0x34] sm:$0xf] %v11678
            %v12272 = vld [vmem:[%s3617 + $0x38] sm:$0x1]
            %v12273 = vsel %vm12243, %v11679, %v12272
            %12274 = vst [vmem:[%s3617 + $0x38] sm:$0x1] %v12273
            %v12275 = vld [vmem:[%s3617 + $0x3c] sm:$0xf]
            %v12276 = vsel %vm12237, %v11686, %v12275
            %12277 = vst [vmem:[%s3617 + $0x3c] sm:$0xf] %v12276
            %12278 = vst [vmem:[%s3617 + $0x40] sm:$0xf] %v11695
            %v12279 = vld [vmem:[%s3617 + $0x44] sm:$0x1]
            %v12280 = vsel %vm12243, %v11696, %v12279
            %12281 = vst [vmem:[%s3617 + $0x44] sm:$0x1] %v12280
            %v12282 = vld [vmem:[%s3617 + $0x48] sm:$0xf]
            %v12283 = vsel %vm12237, %v11703, %v12282
            %12284 = vst [vmem:[%s3617 + $0x48] sm:$0xf] %v12283
            %12285 = vst [vmem:[%s3617 + $0x4c] sm:$0xf] %v11712
            %v12286 = vld [vmem:[%s3617 + $0x50] sm:$0x1]
            %v12287 = vsel %vm12243, %v11713, %v12286
            %12288 = vst [vmem:[%s3617 + $0x50] sm:$0x1] %v12287
            %v12289 = vld [vmem:[%s3617 + $0x54] sm:$0xf]
            %v12290 = vsel %vm12237, %v11720, %v12289
            %12291 = vst [vmem:[%s3617 + $0x54] sm:$0xf] %v12290
            %12292 = vst [vmem:[%s3617 + $0x58] sm:$0xf] %v11729
            %v12293 = vld [vmem:[%s3617 + $0x5c] sm:$0x1]
            %v12294 = vsel %vm12243, %v11730, %v12293
            %12295 = vst [vmem:[%s3617 + $0x5c] sm:$0x1] %v12294
            %v12296 = vld [vmem:[%s3617 + $0x60] sm:$0xf]
            %v12297 = vsel %vm12237, %v11737, %v12296
            %12298 = vst [vmem:[%s3617 + $0x60] sm:$0xf] %v12297
            %12299 = vst [vmem:[%s3617 + $0x64] sm:$0xf] %v11746
            %v12300 = vld [vmem:[%s3617 + $0x68] sm:$0x1]
            %v12301 = vsel %vm12243, %v11747, %v12300
            %12302 = vst [vmem:[%s3617 + $0x68] sm:$0x1] %v12301
            %v12303 = vld [vmem:[%s3617 + $0x6c] sm:$0xf]
            %v12304 = vsel %vm12237, %v11754, %v12303
            %12305 = vst [vmem:[%s3617 + $0x6c] sm:$0xf] %v12304
            %12306 = vst [vmem:[%s3617 + $0x70] sm:$0xf] %v11763
            %v12307 = vld [vmem:[%s3617 + $0x74] sm:$0x1]
            %v12308 = vsel %vm12243, %v11764, %v12307
            %12309 = vst [vmem:[%s3617 + $0x74] sm:$0x1] %v12308
            %v12310 = vld [vmem:[%s3617 + $0x78] sm:$0xf]
            %v12311 = vsel %vm12237, %v11771, %v12310
            %12312 = vst [vmem:[%s3617 + $0x78] sm:$0xf] %v12311
            %12313 = vst [vmem:[%s3617 + $0x7c] sm:$0xf] %v11780
            %v12314 = vld [vmem:[%s3617 + $0x80] sm:$0x1]
            %v12315 = vsel %vm12243, %v11781, %v12314
            %12316 = vst [vmem:[%s3617 + $0x80] sm:$0x1] %v12315
            %v12317 = vld [vmem:[%s3617 + $0x84] sm:$0xf]
            %v12318 = vsel %vm12237, %v11788, %v12317
            %12319 = vst [vmem:[%s3617 + $0x84] sm:$0xf] %v12318
            %12320 = vst [vmem:[%s3617 + $0x88] sm:$0xf] %v11797
            %v12321 = vld [vmem:[%s3617 + $0x8c] sm:$0x1]
            %v12322 = vsel %vm12243, %v11798, %v12321
            %12323 = vst [vmem:[%s3617 + $0x8c] sm:$0x1] %v12322
            %v12324 = vld [vmem:[%s3617 + $0x90] sm:$0xf]
            %v12325 = vsel %vm12237, %v11805, %v12324
            %12326 = vst [vmem:[%s3617 + $0x90] sm:$0xf] %v12325
            %12327 = vst [vmem:[%s3617 + $0x94] sm:$0xf] %v11814
            %v12328 = vld [vmem:[%s3617 + $0x98] sm:$0x1]
            %v12329 = vsel %vm12243, %v11815, %v12328
            %12330 = vst [vmem:[%s3617 + $0x98] sm:$0x1] %v12329
            %v12331 = vld [vmem:[%s3617 + $0x9c] sm:$0xf]
            %v12332 = vsel %vm12237, %v11822, %v12331
            %12333 = vst [vmem:[%s3617 + $0x9c] sm:$0xf] %v12332
            %12334 = vst [vmem:[%s3617 + $0xa0] sm:$0xf] %v11831
            %v12335 = vld [vmem:[%s3617 + $0xa4] sm:$0x1]
            %v12336 = vsel %vm12243, %v11832, %v12335
            %12337 = vst [vmem:[%s3617 + $0xa4] sm:$0x1] %v12336
            %v12338 = vld [vmem:[%s3617 + $0xa8] sm:$0xf]
            %v12339 = vsel %vm12237, %v11839, %v12338
            %12340 = vst [vmem:[%s3617 + $0xa8] sm:$0xf] %v12339
            %12341 = vst [vmem:[%s3617 + $0xac] sm:$0xf] %v11848
            %v12342 = vld [vmem:[%s3617 + $0xb0] sm:$0x1]
            %v12343 = vsel %vm12243, %v11849, %v12342
            %12344 = vst [vmem:[%s3617 + $0xb0] sm:$0x1] %v12343
            %v12345 = vld [vmem:[%s3617 + $0xb4] sm:$0xf]
            %v12346 = vsel %vm12237, %v11856, %v12345
            %12347 = vst [vmem:[%s3617 + $0xb4] sm:$0xf] %v12346
            %12348 = vst [vmem:[%s3617 + $0xb8] sm:$0xf] %v11865
            %v12349 = vld [vmem:[%s3617 + $0xbc] sm:$0x1]
            %v12350 = vsel %vm12243, %v11866, %v12349
            %12351 = vst [vmem:[%s3617 + $0xbc] sm:$0x1] %v12350
            %v12352 = vld [vmem:[%s3617 + $0xd8] sm:$0xf]
            %v12353 = vsel %vm12237, %v11873, %v12352
            %12354 = vst [vmem:[%s3617 + $0xd8] sm:$0xf] %v12353
            %12355 = vst [vmem:[%s3617 + $0xdc] sm:$0xf] %v11882
            %v12356 = vld [vmem:[%s3617 + $0xe0] sm:$0x1]
            %v12357 = vsel %vm12243, %v11883, %v12356
            %12358 = vst [vmem:[%s3617 + $0xe0] sm:$0x1] %v12357
            %v12359 = vld [vmem:[%s3617 + $0xe4] sm:$0xf]
            %v12360 = vsel %vm12237, %v11890, %v12359
            %12361 = vst [vmem:[%s3617 + $0xe4] sm:$0xf] %v12360
            %12362 = vst [vmem:[%s3617 + $0xe8] sm:$0xf] %v11899
            %v12363 = vld [vmem:[%s3617 + $0xec] sm:$0x1]
            %v12364 = vsel %vm12243, %v11900, %v12363
            %12365 = vst [vmem:[%s3617 + $0xec] sm:$0x1] %v12364
            %v12366 = vld [vmem:[%s3617 + $0xf0] sm:$0xf]
            %v12367 = vsel %vm12237, %v11907, %v12366
            %12368 = vst [vmem:[%s3617 + $0xf0] sm:$0xf] %v12367
            %12369 = vst [vmem:[%s3617 + $0xf4] sm:$0xf] %v11916
            %v12370 = vld [vmem:[%s3617 + $0xf8] sm:$0x1]
            %v12371 = vsel %vm12243, %v11917, %v12370
            %12372 = vst [vmem:[%s3617 + $0xf8] sm:$0x1] %v12371
            %v12373 = vld [vmem:[%s3617 + $0xfc] sm:$0xf]
            %v12374 = vsel %vm12237, %v11924, %v12373
            %12375 = vst [vmem:[%s3617 + $0xfc] sm:$0xf] %v12374
            %12376 = vst [vmem:[%s3617 + $0x100] sm:$0xf] %v11933
            %v12377 = vld [vmem:[%s3617 + $0x104] sm:$0x1]
            %v12378 = vsel %vm12243, %v11934, %v12377
            %12379 = vst [vmem:[%s3617 + $0x104] sm:$0x1] %v12378
            %v12380 = vld [vmem:[%s3617 + $0x108] sm:$0xf]
            %v12381 = vsel %vm12237, %v11941, %v12380
            %12382 = vst [vmem:[%s3617 + $0x108] sm:$0xf] %v12381
            %12383 = vst [vmem:[%s3617 + $0x10c] sm:$0xf] %v11950
            %v12384 = vld [vmem:[%s3617 + $0x110] sm:$0x1]
            %v12385 = vsel %vm12243, %v11951, %v12384
            %12386 = vst [vmem:[%s3617 + $0x110] sm:$0x1] %v12385
            %v12387 = vld [vmem:[%s3617 + $0x114] sm:$0xf]
            %v12388 = vsel %vm12237, %v11958, %v12387
            %12389 = vst [vmem:[%s3617 + $0x114] sm:$0xf] %v12388
            %12390 = vst [vmem:[%s3617 + $0x118] sm:$0xf] %v11967
            %v12391 = vld [vmem:[%s3617 + $0x11c] sm:$0x1]
            %v12392 = vsel %vm12243, %v11968, %v12391
            %12393 = vst [vmem:[%s3617 + $0x11c] sm:$0x1] %v12392
            %v12394 = vld [vmem:[%s3617 + $0x120] sm:$0xf]
            %v12395 = vsel %vm12237, %v11975, %v12394
            %12396 = vst [vmem:[%s3617 + $0x120] sm:$0xf] %v12395
            %12397 = vst [vmem:[%s3617 + $0x124] sm:$0xf] %v11984
            %v12398 = vld [vmem:[%s3617 + $0x128] sm:$0x1]
            %v12399 = vsel %vm12243, %v11985, %v12398
            %12400 = vst [vmem:[%s3617 + $0x128] sm:$0x1] %v12399
            %v12401 = vld [vmem:[%s3617 + $0x12c] sm:$0xf]
            %v12402 = vsel %vm12237, %v11992, %v12401
            %12403 = vst [vmem:[%s3617 + $0x12c] sm:$0xf] %v12402
            %12404 = vst [vmem:[%s3617 + $0x130] sm:$0xf] %v12001
            %v12405 = vld [vmem:[%s3617 + $0x134] sm:$0x1]
            %v12406 = vsel %vm12243, %v12002, %v12405
            %12407 = vst [vmem:[%s3617 + $0x134] sm:$0x1] %v12406
            %v12408 = vld [vmem:[%s3617 + $0x138] sm:$0xf]
            %v12409 = vsel %vm12237, %v12009, %v12408
            %12410 = vst [vmem:[%s3617 + $0x138] sm:$0xf] %v12409
            %12411 = vst [vmem:[%s3617 + $0x13c] sm:$0xf] %v12018
            %v12412 = vld [vmem:[%s3617 + $0x140] sm:$0x1]
            %v12413 = vsel %vm12243, %v12019, %v12412
            %12414 = vst [vmem:[%s3617 + $0x140] sm:$0x1] %v12413
            %v12415 = vld [vmem:[%s3617 + $0x144] sm:$0xf]
            %v12416 = vsel %vm12237, %v12026, %v12415
            %12417 = vst [vmem:[%s3617 + $0x144] sm:$0xf] %v12416
            %12418 = vst [vmem:[%s3617 + $0x148] sm:$0xf] %v12035
            %v12419 = vld [vmem:[%s3617 + $0x14c] sm:$0x1]
            %v12420 = vsel %vm12243, %v12036, %v12419
            %12421 = vst [vmem:[%s3617 + $0x14c] sm:$0x1] %v12420
            %v12422 = vld [vmem:[%s3617 + $0x150] sm:$0xf]
            %v12423 = vsel %vm12237, %v12043, %v12422
            %12424 = vst [vmem:[%s3617 + $0x150] sm:$0xf] %v12423
            %12425 = vst [vmem:[%s3617 + $0x154] sm:$0xf] %v12052
            %v12426 = vld [vmem:[%s3617 + $0x158] sm:$0x1]
            %v12427 = vsel %vm12243, %v12053, %v12426
            %12428 = vst [vmem:[%s3617 + $0x158] sm:$0x1] %v12427
            %v12429 = vld [vmem:[%s3617 + $0x15c] sm:$0xf]
            %v12430 = vsel %vm12237, %v12060, %v12429
            %12431 = vst [vmem:[%s3617 + $0x15c] sm:$0xf] %v12430
            %12432 = vst [vmem:[%s3617 + $0x160] sm:$0xf] %v12069
            %v12433 = vld [vmem:[%s3617 + $0x164] sm:$0x1]
            %v12434 = vsel %vm12243, %v12070, %v12433
            %12435 = vst [vmem:[%s3617 + $0x164] sm:$0x1] %v12434
            %v12436 = vld [vmem:[%s3617 + $0x168] sm:$0xf]
            %v12437 = vsel %vm12237, %v12077, %v12436
            %12438 = vst [vmem:[%s3617 + $0x168] sm:$0xf] %v12437
            %12439 = vst [vmem:[%s3617 + $0x16c] sm:$0xf] %v12086
            %v12440 = vld [vmem:[%s3617 + $0x170] sm:$0x1]
            %v12441 = vsel %vm12243, %v12087, %v12440
            %12442 = vst [vmem:[%s3617 + $0x170] sm:$0x1] %v12441
            %v12443 = vld [vmem:[%s3617 + $0x174] sm:$0xf]
            %v12444 = vsel %vm12237, %v12094, %v12443
            %12445 = vst [vmem:[%s3617 + $0x174] sm:$0xf] %v12444
            %12446 = vst [vmem:[%s3617 + $0x178] sm:$0xf] %v12103
            %v12447 = vld [vmem:[%s3617 + $0x17c] sm:$0x1]
            %v12448 = vsel %vm12243, %v12104, %v12447
            %12449 = vst [vmem:[%s3617 + $0x17c] sm:$0x1] %v12448
            %v12450 = vld [vmem:[%s3617 + $0x180] sm:$0xf]
            %v12451 = vsel %vm12237, %v12111, %v12450
            %12452 = vst [vmem:[%s3617 + $0x180] sm:$0xf] %v12451
            %12453 = vst [vmem:[%s3617 + $0x184] sm:$0xf] %v12120
            %v12454 = vld [vmem:[%s3617 + $0x188] sm:$0x1]
            %v12455 = vsel %vm12243, %v12121, %v12454
            %12456 = vst [vmem:[%s3617 + $0x188] sm:$0x1] %v12455
            %v12457 = vld [vmem:[%s3617 + $0x18c] sm:$0xf]
            %v12458 = vsel %vm12237, %v12128, %v12457
            %12459 = vst [vmem:[%s3617 + $0x18c] sm:$0xf] %v12458
            %12460 = vst [vmem:[%s3617 + $0x190] sm:$0xf] %v12137
            %v12461 = vld [vmem:[%s3617 + $0x194] sm:$0x1]
            %v12462 = vsel %vm12243, %v12138, %v12461
            %12463 = vst [vmem:[%s3617 + $0x194] sm:$0x1] %v12462
          $region68: #{res_model_forward.1} parent=59 // pred_fallthru
            _
          %p12464 = scmp.eq.s32.totalorder %s21, 9
          // Predicated region
          $region69: #{res_model_forward.1} parent=59 // pred_check
            %p12465 = pneg %p12464
          $region70: #{res_model_forward.1} parent=59 // pred_check_branch
            %12467 = sbr.rel (%p12465) target = $region72
          $region71: #{res_model_forward.1} parent=59 // pred_region
            %v12468 = vadd.f32 %v11460, %v11461
            %v12469 = vadd.f32 %v12468, %v11462
            %v12470 = vadd.f32 %v12469, %v11463
            %v12471 = vadd.f32 %v12470, %v11464
            %v12472 = vadd.f32 %v12471, %v11465
            %v12473 = vadd.f32 %v12472, %v11466
            %v12474 = vadd.f32 %v12473, %v11467
            %v12475 = vadd.f32 %v12474, %v11468
            %v12476 = vadd.f32 %v12475, %v11469
            %v12477 = vadd.f32 %v12476, %v11470
            %v12478 = vadd.f32 %v12477, %v11471
            %v12479 = vadd.f32 %v12478, %v11472
            %v12480 = vadd.f32 %v12479, %v11473
            %v12481 = vadd.f32 %v12480, %v11474
            %v12482 = vadd.f32 %v12481, %v11475
            %v12483 = vadd.f32 %v12482, %v11476
            %v12484 = vadd.f32 %v12483, %v11477
            %v12485 = vadd.f32 %v12484, %v11478
            %v12486 = vadd.f32 %v12485, %v11479
            %v12487 = vadd.f32 %v12486, %v11480
            %v12488 = vadd.f32 %v12487, %v11481
            %v12489 = vadd.f32 %v12488, %v11482
            %v12490 = vadd.f32 %v12489, %v11483
            %v12491 = vadd.f32 %v12490, %v11484
            %v12492 = vadd.f32 %v12491, %v11485
            %v12493 = vadd.f32 %v12492, %v11486
            %v12494 = vadd.f32 %v12493, %v11487
            %v12495 = vadd.f32 %v12494, %v11488
            %v12496 = vadd.f32 %v12495, %v11489
            %v12497 = vadd.f32 %v12496, %v11490
            %v12498 = vadd.f32 %v12497, %v11491
            %v12499 = vrot.slane %v12498, 4
            %v12500 = vadd.f32 %v12498, %v12499
            %v12501 = vrot.slane %v12500, 2
            %v12502 = vadd.f32 %v12500, %v12501
            %v12503 = vrot.slane %v12502, 1
            %v12504 = vadd.f32 %v12502, %v12503
            %v12505 = vadd.f32 %v11492, %v11493
            %v12506 = vadd.f32 %v12505, %v11494
            %v12507 = vadd.f32 %v12506, %v11495
            %v12508 = vadd.f32 %v12507, %v11496
            %v12509 = vadd.f32 %v12508, %v11497
            %v12510 = vadd.f32 %v12509, %v11498
            %v12511 = vadd.f32 %v12510, %v11499
            %v12512 = vadd.f32 %v12511, %v11500
            %v12513 = vadd.f32 %v12512, %v11501
            %v12514 = vadd.f32 %v12513, %v11502
            %v12515 = vadd.f32 %v12514, %v11503
            %v12516 = vadd.f32 %v12515, %v11504
            %v12517 = vadd.f32 %v12516, %v11505
            %v12518 = vadd.f32 %v12517, %v11506
            %v12519 = vadd.f32 %v12518, %v11507
            %v12520 = vadd.f32 %v12519, %v11508
            %v12521 = vadd.f32 %v12520, %v11509
            %v12522 = vadd.f32 %v12521, %v11510
            %v12523 = vadd.f32 %v12522, %v11511
            %v12524 = vadd.f32 %v12523, %v11512
            %v12525 = vadd.f32 %v12524, %v11513
            %v12526 = vadd.f32 %v12525, %v11514
            %v12527 = vadd.f32 %v12526, %v11515
            %v12528 = vadd.f32 %v12527, %v11516
            %v12529 = vadd.f32 %v12528, %v11517
            %v12530 = vadd.f32 %v12529, %v11518
            %v12531 = vadd.f32 %v12530, %v11519
            %v12532 = vadd.f32 %v12531, %v11520
            %v12533 = vadd.f32 %v12532, %v11521
            %v12534 = vadd.f32 %v12533, %v11522
            %v12535 = vadd.f32 %v12534, %v11523
            %v12536 = vrot.slane %v12535, 4
            %v12537 = vadd.f32 %v12535, %v12536
            %v12538 = vrot.slane %v12537, 2
            %v12539 = vadd.f32 %v12537, %v12538
            %v12540 = vrot.slane %v12539, 1
            %v12541 = vadd.f32 %v12539, %v12540
            %v12542 = vrcp.pop 256.0
            %v12543 = vmul.f32 256.0, %v12542
            %v12544 = vsub.f32 1.0, %v12543
            %v12545 = vmul.f32 %v12542, %v12544
            %v12546 = vadd.f32 %v12542, %v12545
            %vm12547 = vweird.f32 %v12542
            %v12548 = vsel %vm12547, %v12542, %v12546
            %v12549 = vmul.f32 %v12504, %v12548
            %v12550 = vmul.f32 %v12541, %v12548
            %v12551 = vld [vmem:[%s3] sm:$0xff]
            %v12552 = vld [vmem:[%s3 + $0x8] sm:$0xff]
            %v12553 = vld [vmem:[%s3 + $0x10] sm:$0xff]
            %v12554 = vld [vmem:[%s3 + $0x18] sm:$0xff]
            %v12555 = vld [vmem:[%s3 + $0x20] sm:$0xff]
            %v12556 = vld [vmem:[%s3 + $0x28] sm:$0xff]
            %v12557 = vld [vmem:[%s3 + $0x30] sm:$0xff]
            %v12558 = vld [vmem:[%s3 + $0x38] sm:$0xff]
            %v12559 = vld [vmem:[%s3 + $0x40] sm:$0xff]
            %v12560 = vld [vmem:[%s3 + $0x48] sm:$0xff]
            %v12561 = vld [vmem:[%s3 + $0x50] sm:$0xff]
            %v12562 = vld [vmem:[%s3 + $0x58] sm:$0xff]
            %v12563 = vld [vmem:[%s3 + $0x60] sm:$0xff]
            %v12564 = vld [vmem:[%s3 + $0x68] sm:$0xff]
            %v12565 = vld [vmem:[%s3 + $0x70] sm:$0xff]
            %v12566 = vld [vmem:[%s3 + $0x78] sm:$0xff]
            %v12567 = vld [vmem:[#allocation10] sm:$0x1]
            %v12569 = vperm.slane %v12567, 0
            %vm12573 = vcmask 1041409
            %v12574 = vsel %vm12573, %v12550, %v12549
            %12576 = vmatpush.msra.mxu0 %v12566
            %12577 = vmatpush.msra.mxu0 %v12565
            %12578 = vmatpush.msra.mxu0 %v12564
            %12579 = vmatpush.msra.mxu0 %v12563
            %12580 = vmatpush.msra.mxu0 %v12562
            %12581 = vmatpush.msra.mxu0 %v12561
            %12582 = vmatpush.msra.mxu0 %v12560
            %12583 = vmatpush.msra.mxu0 %v12559
            %12584 = vmatpush.msra.mxu0 %v12558
            %12585 = vmatpush.msra.mxu0 %v12557
            %12586 = vmatpush.msra.mxu0 %v12556
            %12587 = vmatpush.msra.mxu0 %v12555
            %12588 = vmatpush.msra.mxu0 %v12554
            %12589 = vmatpush.msra.mxu0 %v12553
            %12590 = vmatpush.msra.mxu0 %v12552
            %12591 = vmatpush.msra.mxu0 %v12551
            %12592 = vmatmul.f32.gmra.mxu0 %v12574
            %v12593 = vpop.f32.mrf.mxu0
            %v12594 = vadd.f32 %v12569, %v12593
            %12595 = vdwg.mxu0
            %vm12596 = vcmask 91136
            %12597 = vst.msk [vmem:[#allocation11] sm:$0x3] %vm12596, %v12594
          $region72: #{res_model_forward.1} parent=59 // pred_fallthru
            _
        $region60: #{res_model_forward.1} parent=39 // pred_fallthru
          _
        // Predicated region
        $region73: #{res_model_forward.1} parent=39 // pred_check
          %p12598 = pneg %p150
        $region74: #{res_model_forward.1} parent=39 // pred_check_branch
          %12600 = sbr.rel (%p12598) target = $region76
        $region75: #{res_model_forward.1} parent=39 // pred_region
          %12602 = vsyncadd [#allocation7], 0
          %s12604 = sshll.u32 [#allocation11], 4
          %s12605 = int_to_ptr.vmem [resolvable:$true] %s12604
          %s12606 = sshll.u32 %s5, 4
          %s12607 = int_to_ptr.hbm [resolvable:$true] %s12606
          %12609 = dma.vmem_to_hbm [thread:$0]  %s12605, 32, %s12607, [#allocation7]
        $region76: #{res_model_forward.1} parent=39 // pred_fallthru
          _
        // Predicated region
        $region77: #{res_model_forward.1} parent=39 // pred_check
          %p12610 = pneg %p150
        $region78: #{res_model_forward.1} parent=39 // pred_check_branch
          %12612 = sbr.rel (%p12610) target = $region80
        $region79: #{res_model_forward.1} parent=39 // pred_region
          %12614 = dma.done [#allocation7], 32
        $region80: #{res_model_forward.1} parent=39 // pred_fallthru
          _
      $region40: #{res_model_forward.1} parent=5 // pred_fallthru
        _
      %p12615 = scmp.le.s32.totalorder 2, %s16
      // Predicated region
      $region81: #{res_model_forward.1} parent=5 // pred_check
        %p12616 = pneg %p12615
      $region82: #{res_model_forward.1} parent=5 // pred_check_branch
        %12618 = sbr.rel (%p12616) target = $region84
      $region83: #{res_model_forward.1} parent=5 // pred_region
        %s12619 = ssub.s32 %s16, 2
      $region84: #{res_model_forward.1} parent=5 // pred_fallthru
        _
    $region6: #{res_model_forward.1} parent=1 // loop_footer
      %s20 = sadd.s32 1, %s16
    $region7: #{res_model_forward.1} parent=1 // loop_footer_branch
      %15 = sbr.rel target = $region3
    $region8: #{res_model_forward.1} parent=1 // loop_exit
      _
    %12620 = vsyncpa [#allocation6], 1
    %s12621 = scalar_lea.sflag [#allocation6], 1
    %12622 = vsyncpa %s12621, 1
    %12623 = vsyncpa [#allocation9], 1
    %s12624 = scalar_lea.sflag [#allocation9], 1
    %12625 = vsyncpa %s12624, 1
    %12626 = vsyncpa [#allocation7], 1
    %s12627 = scalar_lea.sflag [#allocation7], 1
    %12628 = vsyncpa %s12627, 1

</llo_original>
